<compile_context>
chip_gen: v5e
topology: v5e:2x2
jax: 0.10.0
libtpu: 0.0.40
codegen_flags: <defaults>
</compile_context>

<pallas_src>
import functools
import math

import jax
import jax.numpy as jnp
from jax import lax
from jax.experimental import pallas as pl
from jax.experimental.pallas import tpu as pltpu

P = 4        # samples packed along the lane axis (4 * hid(32) = 128 lanes)
B_MAX = 4    # packed groups per grid step (<= 16 samples / step)


def _ru(x, m):
    return ((x + m - 1) // m) * m


def _layer_cfg(hin, win, target_rows):
    """Static geometry of one conv(k=3, stride 1, pad=2) layer on (hin, win)."""
    hp = hin + 4                        # zero-halo padded height
    wp = win + 4
    wp += wp % 2                        # keep padded width even (cosmetic)
    ho, wo = hin + 2, win + 2           # conv output size
    rfull = hp * wp                     # rows of the padded flat pixel grid
    nch = max(1, -(-rfull // target_rows))
    ch = _ru(-(-rfull // nch), 8)       # rows per accumulation chunk
    rcover = nch * ch                   # rows actually computed (>= rfull)
    lin = _ru(rcover + 2 * wp + 2, 8)   # rows incl. 3x3 tap-shift guard
    return dict(hp=hp, wp=wp, ho=ho, wo=wo, ch=ch, nch=nch,
                rcover=rcover, lin=lin)


def _conv9(x_ref, w_ref, bias, y_ref, cfg, cpk):
    """3x3 conv over the zero-padded flat pixel grid.

    9 shifted (ch, cpk) x (cpk, cpk) MXU dots per ~128-row chunk, bf16 operands
    with f32 accumulation; each chunk is written to VMEM exactly once.
    """
    wp, ch, nch = cfg["wp"], cfg["ch"], cfg["nch"]
    for c in range(nch):                                  # static, small
        base = c * ch
        acc = jnp.zeros((ch, cpk), jnp.float32)
        for t in range(9):
            kh, kw = divmod(t, 3)
            xs = x_ref[pl.ds(base + kh * wp + kw, ch), :]
            acc = acc + jnp.dot(xs.astype(jnp.bfloat16), w_ref[t],
                                preferred_element_type=jnp.float32)
        y_ref[pl.ds(base, ch), :] = acc + bias


def _pool_relu(y_ref, dst_ref, dst_row, cfg):
    """2x2 stride-2 max-pool + ReLU of the valid conv region held in y_ref.

    Pure VPU max over stride-2 row slices (no selection matmul); output pixel
    row `ph` is stored at flat row dst_row(ph) of dst_ref.
    """
    wp, ho, wo = cfg["wp"], cfg["ho"], cfg["wo"]
    hq, wq = ho // 2, wo // 2
    for ph in range(hq):                                  # static, <= hq
        r0 = (2 * ph) * wp
        r1 = r0 + wp
        m = jnp.maximum(
            jnp.maximum(y_ref[pl.ds(r0, wq, stride=2), :],
                        y_ref[pl.ds(r0 + 1, wq, stride=2), :]),
            jnp.maximum(y_ref[pl.ds(r1, wq, stride=2), :],
                        y_ref[pl.ds(r1 + 1, wq, stride=2), :]))
        dst_ref[pl.ds(dst_row(ph), wq), :] = jnp.maximum(m, 0.0)


def _omni_kernel(x_ref, w1_ref, b1_ref, w2_ref, b2_ref, w3_ref, b3_ref,
                 o_ref, y1_ref, x2_ref, y2_ref, x3_ref, y3_ref,
                 *, c1, c2, c3, hid, nb):
    cpk = y1_ref.shape[-1]                     # P * hid packed lane width
    npk = cpk // hid                           # samples packed per lane row

    # Zero the padded-activation grids once per grid step (see header note).
    x2_ref[...] = jnp.zeros_like(x2_ref)
    x3_ref[...] = jnp.zeros_like(x3_ref)

    b1 = b1_ref[...]
    b2 = b2_ref[...]
    b3 = b3_ref[...]
    w1 = w1_ref[...]
    wp2, wp3 = c2["wp"], c3["wp"]
    ho3, wo3 = c3["ho"], c3["wo"]

    # NOTE: conv output rows whose 3x3 window wraps across a flat-row boundary
    # or into guard rows hold garbage but are provably never read (pools and
    # the epilogue only touch pixel rows < ho and columns < wo).
    for b in range(nb):                        # batch-blocked sample groups
        # ---- layer 1: im2col conv (ONE MXU dot per chunk) ------------------
        for c in range(c1["nch"]):
            base = c * c1["ch"]
            xs = x_ref[b, pl.ds(base, c1["ch"]), :]        # bf16 (ch, P*9*cin)
            y1_ref[pl.ds(base, c1["ch"]), :] = (
                jnp.dot(xs, w1, preferred_element_type=jnp.float32) + b1)
        # maxpool(2,2) + ReLU -> interior of the layer-2 padded grid
        _pool_relu(y1_ref, x2_ref, lambda ph: (2 + ph) * wp2 + 2, c1)

        # ---- layer 2: 3x3 conv -> maxpool -> ReLU --------------------------
        _conv9(x2_ref, w2_ref, b2, y2_ref, c2, cpk)
        _pool_relu(y2_ref, x3_ref, lambda ph: (2 + ph) * wp3 + 2, c2)

        # ---- layer 3: 3x3 conv -> log_softmax over channels ----------------
        _conv9(x3_ref, w3_ref, b3, y3_ref, c3, cpk)

        # Gather all ho3*wo3 valid rows once, do a segmented (per-sample,
        # 32-lane group) log-softmax, emit one lane-dense (npix, 128) store.
        v = jnp.concatenate(
            [y3_ref[pl.ds(i * wp3, wo3), :] for i in range(ho3)], axis=0)
        outs = []
        for g in range(npk):
            vg = v[:, g * hid:(g + 1) * hid]
            mx = jnp.max(vg, axis=-1, keepdims=True)
            lse = mx + jnp.log(jnp.sum(jnp.exp(vg - mx), axis=-1,
                                       keepdims=True))
            outs.append(vg - lse)
        o_ref[b, :, :] = jnp.concatenate(outs, axis=-1)


@jax.jit
def omni_forward(x, params):
    """Omni.forward.  x: (N, Cin, H, W) NCHW float32 -> (N, hid, H3, W3)."""
    n, cin, h, w = x.shape
    hid = params["w1"].shape[-1]
    c1 = _layer_cfg(h, w, 256)
    c2 = _layer_cfg(c1["ho"] // 2, c1["wo"] // 2, 128)
    c3 = _layer_cfg(c2["ho"] // 2, c2["wo"] // 2, 128)
    ho3, wo3 = c3["ho"], c3["wo"]
    npix = ho3 * wo3
    cpk = P * hid                       # packed lane width (channels)
    k1s = 9 * cin                       # layer-1 im2col K per sample
    k1 = P * k1s
    lin1 = c1["rcover"]                 # layer-1 input rows (no tap guard)

    # ---- batch grouping: N -> (steps * nb) groups of P lane-packed samples --
    g = -(-n // P)
    nb = min(B_MAX, g)
    steps = -(-g // nb)
    gpad = steps * nb
    npad = gpad * P

    # ---- layer-1 im2col, built in the wrapper (input is tiny) ---------------
    # NCHW -> NHWC, zero halo of 2 on top/left and enough on bottom/right that
    # every (i, j) of the hp1 x wp1 output grid has an in-bounds 3x3 window.
    xt = jnp.transpose(x, (0, 2, 3, 1)).astype(jnp.float32)
    xt = jnp.pad(xt, ((0, npad - n), (2, c1["hp"] - h),
                      (2, c1["wp"] - w), (0, 0)))
    taps = [xt[:, kh:kh + c1["hp"], kw:kw + c1["wp"], :]
            for kh in range(3) for kw in range(3)]
    xi = jnp.concatenate(taps, axis=-1)                 # (npad, hp1, wp1, 9*cin)
    # lane-pack P samples (sample-major lane blocks) and flatten the pixel grid
    xi = xi.reshape(gpad, P, c1["hp"], c1["wp"], k1s)
    xi = jnp.transpose(xi, (0, 2, 3, 1, 4)).reshape(gpad,
                                                    c1["hp"] * c1["wp"], k1)
    xi = jnp.pad(xi, ((0, 0), (0, lin1 - c1["hp"] * c1["wp"]), (0, 0)))
    xi = xi.astype(jnp.bfloat16)                        # MXU operand dtype

    # ---- weights: block-diagonal over the P packed samples, bf16 operands ---
    eye_p = jnp.eye(P, dtype=jnp.float32)
    w1r = jnp.kron(eye_p, params["w1"].reshape(k1s, hid)).astype(jnp.bfloat16)
    w2m = params["w2"].reshape(9, hid, hid)
    w3m = params["w3"].reshape(9, hid, hid)
    w2r = jnp.stack([jnp.kron(eye_p, w2m[t]) for t in range(9)]
                    ).astype(jnp.bfloat16)              # (9, cpk, cpk)
    w3r = jnp.stack([jnp.kron(eye_p, w3m[t]) for t in range(9)]
                    ).astype(jnp.bfloat16)
    b1r = jnp.tile(params["b1"], P).reshape(1, cpk)     # biases stay f32 (VPU)
    b2r = jnp.tile(params["b2"], P).reshape(1, cpk)
    b3r = jnp.tile(params["b3"], P).reshape(1, cpk)

    kernel = functools.partial(_omni_kernel, c1=c1, c2=c2, c3=c3,
                               hid=hid, nb=nb)
    out = pl.pallas_call(
        kernel,
        grid=(steps,),
        in_specs=[
            pl.BlockSpec((nb, lin1, k1), lambda i: (i, 0, 0)),
            pl.BlockSpec((k1, cpk), lambda i: (0, 0)),
            pl.BlockSpec((1, cpk), lambda i: (0, 0)),
            pl.BlockSpec((9, cpk, cpk), lambda i: (0, 0, 0)),
            pl.BlockSpec((1, cpk), lambda i: (0, 0)),
            pl.BlockSpec((9, cpk, cpk), lambda i: (0, 0, 0)),
            pl.BlockSpec((1, cpk), lambda i: (0, 0)),
        ],
        out_specs=pl.BlockSpec((nb, npix, cpk), lambda i: (i, 0, 0)),
        out_shape=jax.ShapeDtypeStruct((gpad, npix, cpk), jnp.float32),
        scratch_shapes=[
            pltpu.VMEM((c1["rcover"], cpk), jnp.float32),   # y1: conv1 grid
            pltpu.VMEM((c2["lin"], cpk), jnp.float32),      # x2: padded l2 in
            pltpu.VMEM((c2["rcover"], cpk), jnp.float32),   # y2: conv2 grid
            pltpu.VMEM((c3["lin"], cpk), jnp.float32),      # x3: padded l3 in
            pltpu.VMEM((c3["rcover"], cpk), jnp.float32),   # y3: conv3 grid
        ],
        compiler_params=pltpu.CompilerParams(
            dimension_semantics=("parallel",)),
    )(xi, w1r, b1r, w2r, b2r, w3r, b3r)

    # unpack lanes: (gpad, npix, P*hid) -> (N, hid, H3, W3)
    out = out.reshape(gpad, npix, P, hid)
    out = jnp.transpose(out, (0, 2, 1, 3)).reshape(gpad * P, ho3, wo3, hid)[:n]
    return jnp.transpose(out, (0, 3, 1, 2))


# ---------------------------------------------------------------------------
# Deterministic parameters + pure-JAX reference (sanity check of the kernel)
# ---------------------------------------------------------------------------
def init_params(key, hidden=32, in_ch=1):
    ks = jax.random.split(key, 6)

    def cw(k, cin, cout):
        return (1.0 / math.sqrt(9 * cin)) * jax.random.normal(
            k, (3, 3, cin, cout), jnp.float32)

    return {
        "w1": cw(ks[0], in_ch, hidden),
        "b1": 0.1 * jax.random.normal(ks[1], (hidden,), jnp.float32),
        "w2": cw(ks[2], hidden, hidden),
        "b2": 0.1 * jax.random.normal(ks[3], (hidden,), jnp.float32),
        "w3": cw(ks[4], hidden, hidden),
        "b3": 0.1 * jax.random.normal(ks[5], (hidden,), jnp.float32),
    }


def reference_forward(x, params):
    def conv(t, w, b):
        y = lax.conv_general_dilated(
            t, w, window_strides=(1, 1), padding=((2, 2), (2, 2)),
            dimension_numbers=("NCHW", "HWIO", "NCHW"),
            precision=lax.Precision.HIGHEST)
        return y + b.reshape(1, -1, 1, 1)

    def pool_relu(t):
        nb, c, hh, ww = t.shape
        hq, wq = hh // 2, ww // 2
        t = t[:, :, :2 * hq, :2 * wq].reshape(nb, c, hq, 2, wq, 2).max(axis=(3, 5))
        return jnp.maximum(t, 0.0)

    t = pool_relu(conv(x, params["w1"], params["b1"]))
    t = pool_relu(conv(t, params["w2"], params["b2"]))
    t = conv(t, params["w3"], params["b3"])
    return jax.nn.log_softmax(t, axis=1)


if __name__ == "__main__":
    key = jax.random.PRNGKey(0)
    kp, kx = jax.random.split(key)
    hidden = 32
    params = init_params(kp, hidden=hidden, in_ch=1)
    x = jax.random.normal(kx, (6, 1, 16, 16), jnp.float32)

    out = jax.block_until_ready(omni_forward(x, params))
    ref = reference_forward(x, params)

    assert out.shape == (6, hidden, 7, 7), out.shape
    max_err = float(jnp.max(jnp.abs(out - ref)))
    # bf16 MXU operands with f32 accumulation: errors are ~1e-2 on values whose
    # typical magnitude is |log p| ~ 3.5, far inside this tolerance; any
    # layout / indexing regression would produce O(1) errors and still trip.
    assert jnp.allclose(out, ref, rtol=2e-2, atol=3e-2), max_err
    print("KERNEL_OK")
</pallas_src>

<mosaic_0001>
module attributes {stable_mosaic.version = 11 : i64} {
  func.func @_omni_kernel(%arg0: i32, %arg1: memref<2x400x36xbf16, #tpu.memory_space<vmem>>, %arg2: memref<36x128xbf16, #tpu.memory_space<vmem>>, %arg3: memref<1x128xf32, #tpu.memory_space<vmem>>, %arg4: memref<9x128x128xbf16, #tpu.memory_space<vmem>>, %arg5: memref<1x128xf32, #tpu.memory_space<vmem>>, %arg6: memref<9x128x128xbf16, #tpu.memory_space<vmem>>, %arg7: memref<1x128xf32, #tpu.memory_space<vmem>>, %arg8: memref<2x49x128xf32, #tpu.memory_space<vmem>>, %arg9: memref<400x128xf32, #tpu.memory_space<vmem>>, %arg10: memref<224x128xf32, #tpu.memory_space<vmem>>, %arg11: memref<192x128xf32, #tpu.memory_space<vmem>>, %arg12: memref<120x128xf32, #tpu.memory_space<vmem>>, %arg13: memref<96x128xf32, #tpu.memory_space<vmem>>) attributes {dimension_semantics = [#tpu.dimension_semantics<parallel>], iteration_bounds = array<i64: 1>, scalar_prefetch = 0 : i64, scratch_operands = 5 : i64, tpu.core_type = #tpu.core_type<tc>, window_params = [{transform_indices = @transform_0, window_bounds = array<i64: 2, 400, 36>}, {pipeline_mode = #tpu.pipeline_mode<synchronous>, transform_indices = @transform_1, window_bounds = array<i64: 36, 128>}, {pipeline_mode = #tpu.pipeline_mode<synchronous>, transform_indices = @transform_2, window_bounds = array<i64: 1, 128>}, {pipeline_mode = #tpu.pipeline_mode<synchronous>, transform_indices = @transform_3, window_bounds = array<i64: 9, 128, 128>}, {pipeline_mode = #tpu.pipeline_mode<synchronous>, transform_indices = @transform_4, window_bounds = array<i64: 1, 128>}, {pipeline_mode = #tpu.pipeline_mode<synchronous>, transform_indices = @transform_5, window_bounds = array<i64: 9, 128, 128>}, {pipeline_mode = #tpu.pipeline_mode<synchronous>, transform_indices = @transform_6, window_bounds = array<i64: 1, 128>}, {transform_indices = @transform_7, window_bounds = array<i64: 2, 49, 128>}]} {
    %cst = arith.constant 0.000000e+00 : f32
    %0 = vector.broadcast %cst : f32 to vector<224x128xf32>
    %c0 = arith.constant 0 : index
    %c0_0 = arith.constant 0 : index
    %1 = vector.load %arg10[%c0, %c0_0] : memref<224x128xf32, #tpu.memory_space<vmem>>, vector<224x128xf32>
    tpu.vector_store %arg10[%c0, %c0_0], %0 {strides = array<i32>} : memref<224x128xf32, #tpu.memory_space<vmem>>, vector<224x128xf32>,
    %cst_1 = arith.constant 0.000000e+00 : f32
    %2 = vector.broadcast %cst_1 : f32 to vector<120x128xf32>
    %c0_2 = arith.constant 0 : index
    %c0_3 = arith.constant 0 : index
    %3 = vector.load %arg12[%c0_2, %c0_3] : memref<120x128xf32, #tpu.memory_space<vmem>>, vector<120x128xf32>
    tpu.vector_store %arg12[%c0_2, %c0_3], %2 {strides = array<i32>} : memref<120x128xf32, #tpu.memory_space<vmem>>, vector<120x128xf32>,
    %c0_4 = arith.constant 0 : index
    %c0_5 = arith.constant 0 : index
    %4 = vector.load %arg3[%c0_4, %c0_5] : memref<1x128xf32, #tpu.memory_space<vmem>>, vector<1x128xf32>
    %c0_6 = arith.constant 0 : index
    %c0_7 = arith.constant 0 : index
    %5 = vector.load %arg5[%c0_6, %c0_7] : memref<1x128xf32, #tpu.memory_space<vmem>>, vector<1x128xf32>
    %c0_8 = arith.constant 0 : index
    %c0_9 = arith.constant 0 : index
    %6 = vector.load %arg7[%c0_8, %c0_9] : memref<1x128xf32, #tpu.memory_space<vmem>>, vector<1x128xf32>
    %c0_10 = arith.constant 0 : index
    %c0_11 = arith.constant 0 : index
    %7 = vector.load %arg2[%c0_10, %c0_11] : memref<36x128xbf16, #tpu.memory_space<vmem>>, vector<36x128xbf16>
    %c0_12 = arith.constant 0 : index
    %c0_13 = arith.constant 0 : index
    %c0_14 = arith.constant 0 : index
    %8 = vector.load %arg1[%c0_12, %c0_13, %c0_14] : memref<2x400x36xbf16, #tpu.memory_space<vmem>>, vector<1x200x36xbf16>
    %9 = vector.shape_cast %8 : vector<1x200x36xbf16> to vector<200x36xbf16>
    %cst_15 = arith.constant dense<0.000000e+00> : vector<200x128xf32>
    %10 = tpu.matmul %9, %7, %cst_15 {dimension_numbers = #tpu.dot_dimension_numbers<[1], [0], [0], [1], [0, 0, 1, 1], [], []>} : vector<200x36xbf16>, vector<36x128xbf16>, vector<200x128xf32> -> vector<200x128xf32>
    %11 = vector.broadcast %4 : vector<1x128xf32> to vector<200x128xf32>
    %12 = arith.addf %10, %11 : vector<200x128xf32>
    %c0_16 = arith.constant 0 : index
    %c0_17 = arith.constant 0 : index
    %13 = vector.load %arg9[%c0_16, %c0_17] : memref<400x128xf32, #tpu.memory_space<vmem>>, vector<200x128xf32>
    tpu.vector_store %arg9[%c0_16, %c0_17], %12 {strides = array<i32>} : memref<400x128xf32, #tpu.memory_space<vmem>>, vector<200x128xf32>,
    %c0_18 = arith.constant 0 : index
    %c200 = arith.constant 200 : index
    %c0_19 = arith.constant 0 : index
    %14 = vector.load %arg1[%c0_18, %c200, %c0_19] : memref<2x400x36xbf16, #tpu.memory_space<vmem>>, vector<1x200x36xbf16>
    %15 = vector.shape_cast %14 : vector<1x200x36xbf16> to vector<200x36xbf16>
    %cst_20 = arith.constant dense<0.000000e+00> : vector<200x128xf32>
    %16 = tpu.matmul %15, %7, %cst_20 {dimension_numbers = #tpu.dot_dimension_numbers<[1], [0], [0], [1], [0, 0, 1, 1], [], []>} : vector<200x36xbf16>, vector<36x128xbf16>, vector<200x128xf32> -> vector<200x128xf32>
    %17 = vector.broadcast %4 : vector<1x128xf32> to vector<200x128xf32>
    %18 = arith.addf %16, %17 : vector<200x128xf32>
    %c200_21 = arith.constant 200 : index
    %c0_22 = arith.constant 0 : index
    %19 = vector.load %arg9[%c200_21, %c0_22] : memref<400x128xf32, #tpu.memory_space<vmem>>, vector<200x128xf32>
    tpu.vector_store %arg9[%c200_21, %c0_22], %18 {strides = array<i32>} : memref<400x128xf32, #tpu.memory_space<vmem>>, vector<200x128xf32>,
    %c0_23 = arith.constant 0 : index
    %c0_24 = arith.constant 0 : index
    %20 = tpu.strided_load %arg9[%c0_23, %c0_24] {strides = array<i32: 2, 1>} : memref<400x128xf32, #tpu.memory_space<vmem>>, vector<9x128xf32>
    %c1 = arith.constant 1 : index
    %c0_25 = arith.constant 0 : index
    %21 = tpu.strided_load %arg9[%c1, %c0_25] {strides = array<i32: 2, 1>} : memref<400x128xf32, #tpu.memory_space<vmem>>, vector<9x128xf32>
    %22 = arith.maximumf %20, %21 : vector<9x128xf32>
    %c20 = arith.constant 20 : index
    %c0_26 = arith.constant 0 : index
    %23 = tpu.strided_load %arg9[%c20, %c0_26] {strides = array<i32: 2, 1>} : memref<400x128xf32, #tpu.memory_space<vmem>>, vector<9x128xf32>
    %c21 = arith.constant 21 : index
    %c0_27 = arith.constant 0 : index
    %24 = tpu.strided_load %arg9[%c21, %c0_27] {strides = array<i32: 2, 1>} : memref<400x128xf32, #tpu.memory_space<vmem>>, vector<9x128xf32>
    %25 = arith.maximumf %23, %24 : vector<9x128xf32>
    %26 = arith.maximumf %22, %25 : vector<9x128xf32>
    %cst_28 = arith.constant 0.000000e+00 : f32
    %27 = vector.broadcast %cst_28 : f32 to vector<9x128xf32>
    %28 = arith.maximumf %26, %27 : vector<9x128xf32>
    %c30 = arith.constant 30 : index
    %c0_29 = arith.constant 0 : index
    %29 = vector.load %arg10[%c30, %c0_29] : memref<224x128xf32, #tpu.memory_space<vmem>>, vector<9x128xf32>
    tpu.vector_store %arg10[%c30, %c0_29], %28 {strides = array<i32>} : memref<224x128xf32, #tpu.memory_space<vmem>>, vector<9x128xf32>,
    %c40 = arith.constant 40 : index
    %c0_30 = arith.constant 0 : index
    %30 = tpu.strided_load %arg9[%c40, %c0_30] {strides = array<i32: 2, 1>} : memref<400x128xf32, #tpu.memory_space<vmem>>, vector<9x128xf32>
    %c41 = arith.constant 41 : index
    %c0_31 = arith.constant 0 : index
    %31 = tpu.strided_load %arg9[%c41, %c0_31] {strides = array<i32: 2, 1>} : memref<400x128xf32, #tpu.memory_space<vmem>>, vector<9x128xf32>
    %32 = arith.maximumf %30, %31 : vector<9x128xf32>
    %c60 = arith.constant 60 : index
    %c0_32 = arith.constant 0 : index
    %33 = tpu.strided_load %arg9[%c60, %c0_32] {strides = array<i32: 2, 1>} : memref<400x128xf32, #tpu.memory_space<vmem>>, vector<9x128xf32>
    %c61 = arith.constant 61 : index
    %c0_33 = arith.constant 0 : index
    %34 = tpu.strided_load %arg9[%c61, %c0_33] {strides = array<i32: 2, 1>} : memref<400x128xf32, #tpu.memory_space<vmem>>, vector<9x128xf32>
    %35 = arith.maximumf %33, %34 : vector<9x128xf32>
    %36 = arith.maximumf %32, %35 : vector<9x128xf32>
    %cst_34 = arith.constant 0.000000e+00 : f32
    %37 = vector.broadcast %cst_34 : f32 to vector<9x128xf32>
    %38 = arith.maximumf %36, %37 : vector<9x128xf32>
    %c44 = arith.constant 44 : index
    %c0_35 = arith.constant 0 : index
    %39 = vector.load %arg10[%c44, %c0_35] : memref<224x128xf32, #tpu.memory_space<vmem>>, vector<9x128xf32>
    tpu.vector_store %arg10[%c44, %c0_35], %38 {strides = array<i32>} : memref<224x128xf32, #tpu.memory_space<vmem>>, vector<9x128xf32>,
    %c80 = arith.constant 80 : index
    %c0_36 = arith.constant 0 : index
    %40 = tpu.strided_load %arg9[%c80, %c0_36] {strides = array<i32: 2, 1>} : memref<400x128xf32, #tpu.memory_space<vmem>>, vector<9x128xf32>
    %c81 = arith.constant 81 : index
    %c0_37 = arith.constant 0 : index
    %41 = tpu.strided_load %arg9[%c81, %c0_37] {strides = array<i32: 2, 1>} : memref<400x128xf32, #tpu.memory_space<vmem>>, vector<9x128xf32>
    %42 = arith.maximumf %40, %41 : vector<9x128xf32>
    %c100 = arith.constant 100 : index
    %c0_38 = arith.constant 0 : index
    %43 = tpu.strided_load %arg9[%c100, %c0_38] {strides = array<i32: 2, 1>} : memref<400x128xf32, #tpu.memory_space<vmem>>, vector<9x128xf32>
    %c101 = arith.constant 101 : index
    %c0_39 = arith.constant 0 : index
    %44 = tpu.strided_load %arg9[%c101, %c0_39] {strides = array<i32: 2, 1>} : memref<400x128xf32, #tpu.memory_space<vmem>>, vector<9x128xf32>
    %45 = arith.maximumf %43, %44 : vector<9x128xf32>
    %46 = arith.maximumf %42, %45 : vector<9x128xf32>
    %cst_40 = arith.constant 0.000000e+00 : f32
    %47 = vector.broadcast %cst_40 : f32 to vector<9x128xf32>
    %48 = arith.maximumf %46, %47 : vector<9x128xf32>
    %c58 = arith.constant 58 : index
    %c0_41 = arith.constant 0 : index
    %49 = vector.load %arg10[%c58, %c0_41] : memref<224x128xf32, #tpu.memory_space<vmem>>, vector<9x128xf32>
    tpu.vector_store %arg10[%c58, %c0_41], %48 {strides = array<i32>} : memref<224x128xf32, #tpu.memory_space<vmem>>, vector<9x128xf32>,
    %c120 = arith.constant 120 : index
    %c0_42 = arith.constant 0 : index
    %50 = tpu.strided_load %arg9[%c120, %c0_42] {strides = array<i32: 2, 1>} : memref<400x128xf32, #tpu.memory_space<vmem>>, vector<9x128xf32>
    %c121 = arith.constant 121 : index
    %c0_43 = arith.constant 0 : index
    %51 = tpu.strided_load %arg9[%c121, %c0_43] {strides = array<i32: 2, 1>} : memref<400x128xf32, #tpu.memory_space<vmem>>, vector<9x128xf32>
    %52 = arith.maximumf %50, %51 : vector<9x128xf32>
    %c140 = arith.constant 140 : index
    %c0_44 = arith.constant 0 : index
    %53 = tpu.strided_load %arg9[%c140, %c0_44] {strides = array<i32: 2, 1>} : memref<400x128xf32, #tpu.memory_space<vmem>>, vector<9x128xf32>
    %c141 = arith.constant 141 : index
    %c0_45 = arith.constant 0 : index
    %54 = tpu.strided_load %arg9[%c141, %c0_45] {strides = array<i32: 2, 1>} : memref<400x128xf32, #tpu.memory_space<vmem>>, vector<9x128xf32>
    %55 = arith.maximumf %53, %54 : vector<9x128xf32>
    %56 = arith.maximumf %52, %55 : vector<9x128xf32>
    %cst_46 = arith.constant 0.000000e+00 : f32
    %57 = vector.broadcast %cst_46 : f32 to vector<9x128xf32>
    %58 = arith.maximumf %56, %57 : vector<9x128xf32>
    %c72 = arith.constant 72 : index
    %c0_47 = arith.constant 0 : index
    %59 = vector.load %arg10[%c72, %c0_47] : memref<224x128xf32, #tpu.memory_space<vmem>>, vector<9x128xf32>
    tpu.vector_store %arg10[%c72, %c0_47], %58 {strides = array<i32>} : memref<224x128xf32, #tpu.memory_space<vmem>>, vector<9x128xf32>,
    %c160 = arith.constant 160 : index
    %c0_48 = arith.constant 0 : index
    %60 = tpu.strided_load %arg9[%c160, %c0_48] {strides = array<i32: 2, 1>} : memref<400x128xf32, #tpu.memory_space<vmem>>, vector<9x128xf32>
    %c161 = arith.constant 161 : index
    %c0_49 = arith.constant 0 : index
    %61 = tpu.strided_load %arg9[%c161, %c0_49] {strides = array<i32: 2, 1>} : memref<400x128xf32, #tpu.memory_space<vmem>>, vector<9x128xf32>
    %62 = arith.maximumf %60, %61 : vector<9x128xf32>
    %c180 = arith.constant 180 : index
    %c0_50 = arith.constant 0 : index
    %63 = tpu.strided_load %arg9[%c180, %c0_50] {strides = array<i32: 2, 1>} : memref<400x128xf32, #tpu.memory_space<vmem>>, vector<9x128xf32>
    %c181 = arith.constant 181 : index
    %c0_51 = arith.constant 0 : index
    %64 = tpu.strided_load %arg9[%c181, %c0_51] {strides = array<i32: 2, 1>} : memref<400x128xf32, #tpu.memory_space<vmem>>, vector<9x128xf32>
    %65 = arith.maximumf %63, %64 : vector<9x128xf32>
    %66 = arith.maximumf %62, %65 : vector<9x128xf32>
    %cst_52 = arith.constant 0.000000e+00 : f32
    %67 = vector.broadcast %cst_52 : f32 to vector<9x128xf32>
    %68 = arith.maximumf %66, %67 : vector<9x128xf32>
    %c86 = arith.constant 86 : index
    %c0_53 = arith.constant 0 : index
    %69 = vector.load %arg10[%c86, %c0_53] : memref<224x128xf32, #tpu.memory_space<vmem>>, vector<9x128xf32>
    tpu.vector_store %arg10[%c86, %c0_53], %68 {strides = array<i32>} : memref<224x128xf32, #tpu.memory_space<vmem>>, vector<9x128xf32>,
    %c200_54 = arith.constant 200 : index
    %c0_55 = arith.constant 0 : index
    %70 = tpu.strided_load %arg9[%c200_54, %c0_55] {strides = array<i32: 2, 1>} : memref<400x128xf32, #tpu.memory_space<vmem>>, vector<9x128xf32>
    %c201 = arith.constant 201 : index
    %c0_56 = arith.constant 0 : index
    %71 = tpu.strided_load %arg9[%c201, %c0_56] {strides = array<i32: 2, 1>} : memref<400x128xf32, #tpu.memory_space<vmem>>, vector<9x128xf32>
    %72 = arith.maximumf %70, %71 : vector<9x128xf32>
    %c220 = arith.constant 220 : index
    %c0_57 = arith.constant 0 : index
    %73 = tpu.strided_load %arg9[%c220, %c0_57] {strides = array<i32: 2, 1>} : memref<400x128xf32, #tpu.memory_space<vmem>>, vector<9x128xf32>
    %c221 = arith.constant 221 : index
    %c0_58 = arith.constant 0 : index
    %74 = tpu.strided_load %arg9[%c221, %c0_58] {strides = array<i32: 2, 1>} : memref<400x128xf32, #tpu.memory_space<vmem>>, vector<9x128xf32>
    %75 = arith.maximumf %73, %74 : vector<9x128xf32>
    %76 = arith.maximumf %72, %75 : vector<9x128xf32>
    %cst_59 = arith.constant 0.000000e+00 : f32
    %77 = vector.broadcast %cst_59 : f32 to vector<9x128xf32>
    %78 = arith.maximumf %76, %77 : vector<9x128xf32>
    %c100_60 = arith.constant 100 : index
    %c0_61 = arith.constant 0 : index
    %79 = vector.load %arg10[%c100_60, %c0_61] : memref<224x128xf32, #tpu.memory_space<vmem>>, vector<9x128xf32>
    tpu.vector_store %arg10[%c100_60, %c0_61], %78 {strides = array<i32>} : memref<224x128xf32, #tpu.memory_space<vmem>>, vector<9x128xf32>,
    %c240 = arith.constant 240 : index
    %c0_62 = arith.constant 0 : index
    %80 = tpu.strided_load %arg9[%c240, %c0_62] {strides = array<i32: 2, 1>} : memref<400x128xf32, #tpu.memory_space<vmem>>, vector<9x128xf32>
    %c241 = arith.constant 241 : index
    %c0_63 = arith.constant 0 : index
    %81 = tpu.strided_load %arg9[%c241, %c0_63] {strides = array<i32: 2, 1>} : memref<400x128xf32, #tpu.memory_space<vmem>>, vector<9x128xf32>
    %82 = arith.maximumf %80, %81 : vector<9x128xf32>
    %c260 = arith.constant 260 : index
    %c0_64 = arith.constant 0 : index
    %83 = tpu.strided_load %arg9[%c260, %c0_64] {strides = array<i32: 2, 1>} : memref<400x128xf32, #tpu.memory_space<vmem>>, vector<9x128xf32>
    %c261 = arith.constant 261 : index
    %c0_65 = arith.constant 0 : index
    %84 = tpu.strided_load %arg9[%c261, %c0_65] {strides = array<i32: 2, 1>} : memref<400x128xf32, #tpu.memory_space<vmem>>, vector<9x128xf32>
    %85 = arith.maximumf %83, %84 : vector<9x128xf32>
    %86 = arith.maximumf %82, %85 : vector<9x128xf32>
    %cst_66 = arith.constant 0.000000e+00 : f32
    %87 = vector.broadcast %cst_66 : f32 to vector<9x128xf32>
    %88 = arith.maximumf %86, %87 : vector<9x128xf32>
    %c114 = arith.constant 114 : index
    %c0_67 = arith.constant 0 : index
    %89 = vector.load %arg10[%c114, %c0_67] : memref<224x128xf32, #tpu.memory_space<vmem>>, vector<9x128xf32>
    tpu.vector_store %arg10[%c114, %c0_67], %88 {strides = array<i32>} : memref<224x128xf32, #tpu.memory_space<vmem>>, vector<9x128xf32>,
    %c280 = arith.constant 280 : index
    %c0_68 = arith.constant 0 : index
    %90 = tpu.strided_load %arg9[%c280, %c0_68] {strides = array<i32: 2, 1>} : memref<400x128xf32, #tpu.memory_space<vmem>>, vector<9x128xf32>
    %c281 = arith.constant 281 : index
    %c0_69 = arith.constant 0 : index
    %91 = tpu.strided_load %arg9[%c281, %c0_69] {strides = array<i32: 2, 1>} : memref<400x128xf32, #tpu.memory_space<vmem>>, vector<9x128xf32>
    %92 = arith.maximumf %90, %91 : vector<9x128xf32>
    %c300 = arith.constant 300 : index
    %c0_70 = arith.constant 0 : index
    %93 = tpu.strided_load %arg9[%c300, %c0_70] {strides = array<i32: 2, 1>} : memref<400x128xf32, #tpu.memory_space<vmem>>, vector<9x128xf32>
    %c301 = arith.constant 301 : index
    %c0_71 = arith.constant 0 : index
    %94 = tpu.strided_load %arg9[%c301, %c0_71] {strides = array<i32: 2, 1>} : memref<400x128xf32, #tpu.memory_space<vmem>>, vector<9x128xf32>
    %95 = arith.maximumf %93, %94 : vector<9x128xf32>
    %96 = arith.maximumf %92, %95 : vector<9x128xf32>
    %cst_72 = arith.constant 0.000000e+00 : f32
    %97 = vector.broadcast %cst_72 : f32 to vector<9x128xf32>
    %98 = arith.maximumf %96, %97 : vector<9x128xf32>
    %c128 = arith.constant 128 : index
    %c0_73 = arith.constant 0 : index
    %99 = vector.load %arg10[%c128, %c0_73] : memref<224x128xf32, #tpu.memory_space<vmem>>, vector<9x128xf32>
    tpu.vector_store %arg10[%c128, %c0_73], %98 {strides = array<i32>} : memref<224x128xf32, #tpu.memory_space<vmem>>, vector<9x128xf32>,
    %c320 = arith.constant 320 : index
    %c0_74 = arith.constant 0 : index
    %100 = tpu.strided_load %arg9[%c320, %c0_74] {strides = array<i32: 2, 1>} : memref<400x128xf32, #tpu.memory_space<vmem>>, vector<9x128xf32>
    %c321 = arith.constant 321 : index
    %c0_75 = arith.constant 0 : index
    %101 = tpu.strided_load %arg9[%c321, %c0_75] {strides = array<i32: 2, 1>} : memref<400x128xf32, #tpu.memory_space<vmem>>, vector<9x128xf32>
    %102 = arith.maximumf %100, %101 : vector<9x128xf32>
    %c340 = arith.constant 340 : index
    %c0_76 = arith.constant 0 : index
    %103 = tpu.strided_load %arg9[%c340, %c0_76] {strides = array<i32: 2, 1>} : memref<400x128xf32, #tpu.memory_space<vmem>>, vector<9x128xf32>
    %c341 = arith.constant 341 : index
    %c0_77 = arith.constant 0 : index
    %104 = tpu.strided_load %arg9[%c341, %c0_77] {strides = array<i32: 2, 1>} : memref<400x128xf32, #tpu.memory_space<vmem>>, vector<9x128xf32>
    %105 = arith.maximumf %103, %104 : vector<9x128xf32>
    %106 = arith.maximumf %102, %105 : vector<9x128xf32>
    %cst_78 = arith.constant 0.000000e+00 : f32
    %107 = vector.broadcast %cst_78 : f32 to vector<9x128xf32>
    %108 = arith.maximumf %106, %107 : vector<9x128xf32>
    %c142 = arith.constant 142 : index
    %c0_79 = arith.constant 0 : index
    %109 = vector.load %arg10[%c142, %c0_79] : memref<224x128xf32, #tpu.memory_space<vmem>>, vector<9x128xf32>
    tpu.vector_store %arg10[%c142, %c0_79], %108 {strides = array<i32>} : memref<224x128xf32, #tpu.memory_space<vmem>>, vector<9x128xf32>,
    %cst_80 = arith.constant 0.000000e+00 : f32
    %110 = vector.broadcast %cst_80 : f32 to vector<96x128xf32>
    %c0_81 = arith.constant 0 : index
    %c0_82 = arith.constant 0 : index
    %111 = vector.load %arg10[%c0_81, %c0_82] : memref<224x128xf32, #tpu.memory_space<vmem>>, vector<96x128xf32>
    %112 = arith.truncf %111 : vector<96x128xf32> to vector<96x128xbf16>
    %c0_83 = arith.constant 0 : index
    %c0_84 = arith.constant 0 : index
    %c0_85 = arith.constant 0 : index
    %113 = vector.load %arg4[%c0_83, %c0_84, %c0_85] : memref<9x128x128xbf16, #tpu.memory_space<vmem>>, vector<1x128x128xbf16>
    %114 = vector.shape_cast %113 : vector<1x128x128xbf16> to vector<128x128xbf16>
    %cst_86 = arith.constant dense<0.000000e+00> : vector<96x128xf32>
    %115 = tpu.matmul %112, %114, %cst_86 {dimension_numbers = #tpu.dot_dimension_numbers<[1], [0], [0], [1], [0, 0, 1, 1], [], []>} : vector<96x128xbf16>, vector<128x128xbf16>, vector<96x128xf32> -> vector<96x128xf32>
    %116 = arith.addf %110, %115 : vector<96x128xf32>
    %c1_87 = arith.constant 1 : index
    %c0_88 = arith.constant 0 : index
    %117 = vector.load %arg10[%c1_87, %c0_88] : memref<224x128xf32, #tpu.memory_space<vmem>>, vector<96x128xf32>
    %118 = arith.truncf %117 : vector<96x128xf32> to vector<96x128xbf16>
    %c1_89 = arith.constant 1 : index
    %c0_90 = arith.constant 0 : index
    %c0_91 = arith.constant 0 : index
    %119 = vector.load %arg4[%c1_89, %c0_90, %c0_91] : memref<9x128x128xbf16, #tpu.memory_space<vmem>>, vector<1x128x128xbf16>
    %120 = vector.shape_cast %119 : vector<1x128x128xbf16> to vector<128x128xbf16>
    %cst_92 = arith.constant dense<0.000000e+00> : vector<96x128xf32>
    %121 = tpu.matmul %118, %120, %cst_92 {dimension_numbers = #tpu.dot_dimension_numbers<[1], [0], [0], [1], [0, 0, 1, 1], [], []>} : vector<96x128xbf16>, vector<128x128xbf16>, vector<96x128xf32> -> vector<96x128xf32>
    %122 = arith.addf %116, %121 : vector<96x128xf32>
    %c2 = arith.constant 2 : index
    %c0_93 = arith.constant 0 : index
    %123 = vector.load %arg10[%c2, %c0_93] : memref<224x128xf32, #tpu.memory_space<vmem>>, vector<96x128xf32>
    %124 = arith.truncf %123 : vector<96x128xf32> to vector<96x128xbf16>
    %c2_94 = arith.constant 2 : index
    %c0_95 = arith.constant 0 : index
    %c0_96 = arith.constant 0 : index
    %125 = vector.load %arg4[%c2_94, %c0_95, %c0_96] : memref<9x128x128xbf16, #tpu.memory_space<vmem>>, vector<1x128x128xbf16>
    %126 = vector.shape_cast %125 : vector<1x128x128xbf16> to vector<128x128xbf16>
    %cst_97 = arith.constant dense<0.000000e+00> : vector<96x128xf32>
    %127 = tpu.matmul %124, %126, %cst_97 {dimension_numbers = #tpu.dot_dimension_numbers<[1], [0], [0], [1], [0, 0, 1, 1], [], []>} : vector<96x128xbf16>, vector<128x128xbf16>, vector<96x128xf32> -> vector<96x128xf32>
    %128 = arith.addf %122, %127 : vector<96x128xf32>
    %c14 = arith.constant 14 : index
    %c0_98 = arith.constant 0 : index
    %129 = vector.load %arg10[%c14, %c0_98] : memref<224x128xf32, #tpu.memory_space<vmem>>, vector<96x128xf32>
    %130 = arith.truncf %129 : vector<96x128xf32> to vector<96x128xbf16>
    %c3 = arith.constant 3 : index
    %c0_99 = arith.constant 0 : index
    %c0_100 = arith.constant 0 : index
    %131 = vector.load %arg4[%c3, %c0_99, %c0_100] : memref<9x128x128xbf16, #tpu.memory_space<vmem>>, vector<1x128x128xbf16>
    %132 = vector.shape_cast %131 : vector<1x128x128xbf16> to vector<128x128xbf16>
    %cst_101 = arith.constant dense<0.000000e+00> : vector<96x128xf32>
    %133 = tpu.matmul %130, %132, %cst_101 {dimension_numbers = #tpu.dot_dimension_numbers<[1], [0], [0], [1], [0, 0, 1, 1], [], []>} : vector<96x128xbf16>, vector<128x128xbf16>, vector<96x128xf32> -> vector<96x128xf32>
    %134 = arith.addf %128, %133 : vector<96x128xf32>
    %c15 = arith.constant 15 : index
    %c0_102 = arith.constant 0 : index
    %135 = vector.load %arg10[%c15, %c0_102] : memref<224x128xf32, #tpu.memory_space<vmem>>, vector<96x128xf32>
    %136 = arith.truncf %135 : vector<96x128xf32> to vector<96x128xbf16>
    %c4 = arith.constant 4 : index
    %c0_103 = arith.constant 0 : index
    %c0_104 = arith.constant 0 : index
    %137 = vector.load %arg4[%c4, %c0_103, %c0_104] : memref<9x128x128xbf16, #tpu.memory_space<vmem>>, vector<1x128x128xbf16>
    %138 = vector.shape_cast %137 : vector<1x128x128xbf16> to vector<128x128xbf16>
    %cst_105 = arith.constant dense<0.000000e+00> : vector<96x128xf32>
    %139 = tpu.matmul %136, %138, %cst_105 {dimension_numbers = #tpu.dot_dimension_numbers<[1], [0], [0], [1], [0, 0, 1, 1], [], []>} : vector<96x128xbf16>, vector<128x128xbf16>, vector<96x128xf32> -> vector<96x128xf32>
    %140 = arith.addf %134, %139 : vector<96x128xf32>
    %c16 = arith.constant 16 : index
    %c0_106 = arith.constant 0 : index
    %141 = vector.load %arg10[%c16, %c0_106] : memref<224x128xf32, #tpu.memory_space<vmem>>, vector<96x128xf32>
    %142 = arith.truncf %141 : vector<96x128xf32> to vector<96x128xbf16>
    %c5 = arith.constant 5 : index
    %c0_107 = arith.constant 0 : index
    %c0_108 = arith.constant 0 : index
    %143 = vector.load %arg4[%c5, %c0_107, %c0_108] : memref<9x128x128xbf16, #tpu.memory_space<vmem>>, vector<1x128x128xbf16>
    %144 = vector.shape_cast %143 : vector<1x128x128xbf16> to vector<128x128xbf16>
    %cst_109 = arith.constant dense<0.000000e+00> : vector<96x128xf32>
    %145 = tpu.matmul %142, %144, %cst_109 {dimension_numbers = #tpu.dot_dimension_numbers<[1], [0], [0], [1], [0, 0, 1, 1], [], []>} : vector<96x128xbf16>, vector<128x128xbf16>, vector<96x128xf32> -> vector<96x128xf32>
    %146 = arith.addf %140, %145 : vector<96x128xf32>
    %c28 = arith.constant 28 : index
    %c0_110 = arith.constant 0 : index
    %147 = vector.load %arg10[%c28, %c0_110] : memref<224x128xf32, #tpu.memory_space<vmem>>, vector<96x128xf32>
    %148 = arith.truncf %147 : vector<96x128xf32> to vector<96x128xbf16>
    %c6 = arith.constant 6 : index
    %c0_111 = arith.constant 0 : index
    %c0_112 = arith.constant 0 : index
    %149 = vector.load %arg4[%c6, %c0_111, %c0_112] : memref<9x128x128xbf16, #tpu.memory_space<vmem>>, vector<1x128x128xbf16>
    %150 = vector.shape_cast %149 : vector<1x128x128xbf16> to vector<128x128xbf16>
    %cst_113 = arith.constant dense<0.000000e+00> : vector<96x128xf32>
    %151 = tpu.matmul %148, %150, %cst_113 {dimension_numbers = #tpu.dot_dimension_numbers<[1], [0], [0], [1], [0, 0, 1, 1], [], []>} : vector<96x128xbf16>, vector<128x128xbf16>, vector<96x128xf32> -> vector<96x128xf32>
    %152 = arith.addf %146, %151 : vector<96x128xf32>
    %c29 = arith.constant 29 : index
    %c0_114 = arith.constant 0 : index
    %153 = vector.load %arg10[%c29, %c0_114] : memref<224x128xf32, #tpu.memory_space<vmem>>, vector<96x128xf32>
    %154 = arith.truncf %153 : vector<96x128xf32> to vector<96x128xbf16>
    %c7 = arith.constant 7 : index
    %c0_115 = arith.constant 0 : index
    %c0_116 = arith.constant 0 : index
    %155 = vector.load %arg4[%c7, %c0_115, %c0_116] : memref<9x128x128xbf16, #tpu.memory_space<vmem>>, vector<1x128x128xbf16>
    %156 = vector.shape_cast %155 : vector<1x128x128xbf16> to vector<128x128xbf16>
    %cst_117 = arith.constant dense<0.000000e+00> : vector<96x128xf32>
    %157 = tpu.matmul %154, %156, %cst_117 {dimension_numbers = #tpu.dot_dimension_numbers<[1], [0], [0], [1], [0, 0, 1, 1], [], []>} : vector<96x128xbf16>, vector<128x128xbf16>, vector<96x128xf32> -> vector<96x128xf32>
    %158 = arith.addf %152, %157 : vector<96x128xf32>
    %c30_118 = arith.constant 30 : index
    %c0_119 = arith.constant 0 : index
    %159 = vector.load %arg10[%c30_118, %c0_119] : memref<224x128xf32, #tpu.memory_space<vmem>>, vector<96x128xf32>
    %160 = arith.truncf %159 : vector<96x128xf32> to vector<96x128xbf16>
    %c8 = arith.constant 8 : index
    %c0_120 = arith.constant 0 : index
    %c0_121 = arith.constant 0 : index
    %161 = vector.load %arg4[%c8, %c0_120, %c0_121] : memref<9x128x128xbf16, #tpu.memory_space<vmem>>, vector<1x128x128xbf16>
    %162 = vector.shape_cast %161 : vector<1x128x128xbf16> to vector<128x128xbf16>
    %cst_122 = arith.constant dense<0.000000e+00> : vector<96x128xf32>
    %163 = tpu.matmul %160, %162, %cst_122 {dimension_numbers = #tpu.dot_dimension_numbers<[1], [0], [0], [1], [0, 0, 1, 1], [], []>} : vector<96x128xbf16>, vector<128x128xbf16>, vector<96x128xf32> -> vector<96x128xf32>
    %164 = arith.addf %158, %163 : vector<96x128xf32>
    %165 = vector.broadcast %5 : vector<1x128xf32> to vector<96x128xf32>
    %166 = arith.addf %164, %165 : vector<96x128xf32>
    %c0_123 = arith.constant 0 : index
    %c0_124 = arith.constant 0 : index
    %167 = vector.load %arg11[%c0_123, %c0_124] : memref<192x128xf32, #tpu.memory_space<vmem>>, vector<96x128xf32>
    tpu.vector_store %arg11[%c0_123, %c0_124], %166 {strides = array<i32>} : memref<192x128xf32, #tpu.memory_space<vmem>>, vector<96x128xf32>,
    %cst_125 = arith.constant 0.000000e+00 : f32
    %168 = vector.broadcast %cst_125 : f32 to vector<96x128xf32>
    %c96 = arith.constant 96 : index
    %c0_126 = arith.constant 0 : index
    %169 = vector.load %arg10[%c96, %c0_126] : memref<224x128xf32, #tpu.memory_space<vmem>>, vector<96x128xf32>
    %170 = arith.truncf %169 : vector<96x128xf32> to vector<96x128xbf16>
    %c0_127 = arith.constant 0 : index
    %c0_128 = arith.constant 0 : index
    %c0_129 = arith.constant 0 : index
    %171 = vector.load %arg4[%c0_127, %c0_128, %c0_129] : memref<9x128x128xbf16, #tpu.memory_space<vmem>>, vector<1x128x128xbf16>
    %172 = vector.shape_cast %171 : vector<1x128x128xbf16> to vector<128x128xbf16>
    %cst_130 = arith.constant dense<0.000000e+00> : vector<96x128xf32>
    %173 = tpu.matmul %170, %172, %cst_130 {dimension_numbers = #tpu.dot_dimension_numbers<[1], [0], [0], [1], [0, 0, 1, 1], [], []>} : vector<96x128xbf16>, vector<128x128xbf16>, vector<96x128xf32> -> vector<96x128xf32>
    %174 = arith.addf %168, %173 : vector<96x128xf32>
    %c97 = arith.constant 97 : index
    %c0_131 = arith.constant 0 : index
    %175 = vector.load %arg10[%c97, %c0_131] : memref<224x128xf32, #tpu.memory_space<vmem>>, vector<96x128xf32>
    %176 = arith.truncf %175 : vector<96x128xf32> to vector<96x128xbf16>
    %c1_132 = arith.constant 1 : index
    %c0_133 = arith.constant 0 : index
    %c0_134 = arith.constant 0 : index
    %177 = vector.load %arg4[%c1_132, %c0_133, %c0_134] : memref<9x128x128xbf16, #tpu.memory_space<vmem>>, vector<1x128x128xbf16>
    %178 = vector.shape_cast %177 : vector<1x128x128xbf16> to vector<128x128xbf16>
    %cst_135 = arith.constant dense<0.000000e+00> : vector<96x128xf32>
    %179 = tpu.matmul %176, %178, %cst_135 {dimension_numbers = #tpu.dot_dimension_numbers<[1], [0], [0], [1], [0, 0, 1, 1], [], []>} : vector<96x128xbf16>, vector<128x128xbf16>, vector<96x128xf32> -> vector<96x128xf32>
    %180 = arith.addf %174, %179 : vector<96x128xf32>
    %c98 = arith.constant 98 : index
    %c0_136 = arith.constant 0 : index
    %181 = vector.load %arg10[%c98, %c0_136] : memref<224x128xf32, #tpu.memory_space<vmem>>, vector<96x128xf32>
    %182 = arith.truncf %181 : vector<96x128xf32> to vector<96x128xbf16>
    %c2_137 = arith.constant 2 : index
    %c0_138 = arith.constant 0 : index
    %c0_139 = arith.constant 0 : index
    %183 = vector.load %arg4[%c2_137, %c0_138, %c0_139] : memref<9x128x128xbf16, #tpu.memory_space<vmem>>, vector<1x128x128xbf16>
    %184 = vector.shape_cast %183 : vector<1x128x128xbf16> to vector<128x128xbf16>
    %cst_140 = arith.constant dense<0.000000e+00> : vector<96x128xf32>
    %185 = tpu.matmul %182, %184, %cst_140 {dimension_numbers = #tpu.dot_dimension_numbers<[1], [0], [0], [1], [0, 0, 1, 1], [], []>} : vector<96x128xbf16>, vector<128x128xbf16>, vector<96x128xf32> -> vector<96x128xf32>
    %186 = arith.addf %180, %185 : vector<96x128xf32>
    %c110 = arith.constant 110 : index
    %c0_141 = arith.constant 0 : index
    %187 = vector.load %arg10[%c110, %c0_141] : memref<224x128xf32, #tpu.memory_space<vmem>>, vector<96x128xf32>
    %188 = arith.truncf %187 : vector<96x128xf32> to vector<96x128xbf16>
    %c3_142 = arith.constant 3 : index
    %c0_143 = arith.constant 0 : index
    %c0_144 = arith.constant 0 : index
    %189 = vector.load %arg4[%c3_142, %c0_143, %c0_144] : memref<9x128x128xbf16, #tpu.memory_space<vmem>>, vector<1x128x128xbf16>
    %190 = vector.shape_cast %189 : vector<1x128x128xbf16> to vector<128x128xbf16>
    %cst_145 = arith.constant dense<0.000000e+00> : vector<96x128xf32>
    %191 = tpu.matmul %188, %190, %cst_145 {dimension_numbers = #tpu.dot_dimension_numbers<[1], [0], [0], [1], [0, 0, 1, 1], [], []>} : vector<96x128xbf16>, vector<128x128xbf16>, vector<96x128xf32> -> vector<96x128xf32>
    %192 = arith.addf %186, %191 : vector<96x128xf32>
    %c111 = arith.constant 111 : index
    %c0_146 = arith.constant 0 : index
    %193 = vector.load %arg10[%c111, %c0_146] : memref<224x128xf32, #tpu.memory_space<vmem>>, vector<96x128xf32>
    %194 = arith.truncf %193 : vector<96x128xf32> to vector<96x128xbf16>
    %c4_147 = arith.constant 4 : index
    %c0_148 = arith.constant 0 : index
    %c0_149 = arith.constant 0 : index
    %195 = vector.load %arg4[%c4_147, %c0_148, %c0_149] : memref<9x128x128xbf16, #tpu.memory_space<vmem>>, vector<1x128x128xbf16>
    %196 = vector.shape_cast %195 : vector<1x128x128xbf16> to vector<128x128xbf16>
    %cst_150 = arith.constant dense<0.000000e+00> : vector<96x128xf32>
    %197 = tpu.matmul %194, %196, %cst_150 {dimension_numbers = #tpu.dot_dimension_numbers<[1], [0], [0], [1], [0, 0, 1, 1], [], []>} : vector<96x128xbf16>, vector<128x128xbf16>, vector<96x128xf32> -> vector<96x128xf32>
    %198 = arith.addf %192, %197 : vector<96x128xf32>
    %c112 = arith.constant 112 : index
    %c0_151 = arith.constant 0 : index
    %199 = vector.load %arg10[%c112, %c0_151] : memref<224x128xf32, #tpu.memory_space<vmem>>, vector<96x128xf32>
    %200 = arith.truncf %199 : vector<96x128xf32> to vector<96x128xbf16>
    %c5_152 = arith.constant 5 : index
    %c0_153 = arith.constant 0 : index
    %c0_154 = arith.constant 0 : index
    %201 = vector.load %arg4[%c5_152, %c0_153, %c0_154] : memref<9x128x128xbf16, #tpu.memory_space<vmem>>, vector<1x128x128xbf16>
    %202 = vector.shape_cast %201 : vector<1x128x128xbf16> to vector<128x128xbf16>
    %cst_155 = arith.constant dense<0.000000e+00> : vector<96x128xf32>
    %203 = tpu.matmul %200, %202, %cst_155 {dimension_numbers = #tpu.dot_dimension_numbers<[1], [0], [0], [1], [0, 0, 1, 1], [], []>} : vector<96x128xbf16>, vector<128x128xbf16>, vector<96x128xf32> -> vector<96x128xf32>
    %204 = arith.addf %198, %203 : vector<96x128xf32>
    %c124 = arith.constant 124 : index
    %c0_156 = arith.constant 0 : index
    %205 = vector.load %arg10[%c124, %c0_156] : memref<224x128xf32, #tpu.memory_space<vmem>>, vector<96x128xf32>
    %206 = arith.truncf %205 : vector<96x128xf32> to vector<96x128xbf16>
    %c6_157 = arith.constant 6 : index
    %c0_158 = arith.constant 0 : index
    %c0_159 = arith.constant 0 : index
    %207 = vector.load %arg4[%c6_157, %c0_158, %c0_159] : memref<9x128x128xbf16, #tpu.memory_space<vmem>>, vector<1x128x128xbf16>
    %208 = vector.shape_cast %207 : vector<1x128x128xbf16> to vector<128x128xbf16>
    %cst_160 = arith.constant dense<0.000000e+00> : vector<96x128xf32>
    %209 = tpu.matmul %206, %208, %cst_160 {dimension_numbers = #tpu.dot_dimension_numbers<[1], [0], [0], [1], [0, 0, 1, 1], [], []>} : vector<96x128xbf16>, vector<128x128xbf16>, vector<96x128xf32> -> vector<96x128xf32>
    %210 = arith.addf %204, %209 : vector<96x128xf32>
    %c125 = arith.constant 125 : index
    %c0_161 = arith.constant 0 : index
    %211 = vector.load %arg10[%c125, %c0_161] : memref<224x128xf32, #tpu.memory_space<vmem>>, vector<96x128xf32>
    %212 = arith.truncf %211 : vector<96x128xf32> to vector<96x128xbf16>
    %c7_162 = arith.constant 7 : index
    %c0_163 = arith.constant 0 : index
    %c0_164 = arith.constant 0 : index
    %213 = vector.load %arg4[%c7_162, %c0_163, %c0_164] : memref<9x128x128xbf16, #tpu.memory_space<vmem>>, vector<1x128x128xbf16>
    %214 = vector.shape_cast %213 : vector<1x128x128xbf16> to vector<128x128xbf16>
    %cst_165 = arith.constant dense<0.000000e+00> : vector<96x128xf32>
    %215 = tpu.matmul %212, %214, %cst_165 {dimension_numbers = #tpu.dot_dimension_numbers<[1], [0], [0], [1], [0, 0, 1, 1], [], []>} : vector<96x128xbf16>, vector<128x128xbf16>, vector<96x128xf32> -> vector<96x128xf32>
    %216 = arith.addf %210, %215 : vector<96x128xf32>
    %c126 = arith.constant 126 : index
    %c0_166 = arith.constant 0 : index
    %217 = vector.load %arg10[%c126, %c0_166] : memref<224x128xf32, #tpu.memory_space<vmem>>, vector<96x128xf32>
    %218 = arith.truncf %217 : vector<96x128xf32> to vector<96x128xbf16>
    %c8_167 = arith.constant 8 : index
    %c0_168 = arith.constant 0 : index
    %c0_169 = arith.constant 0 : index
    %219 = vector.load %arg4[%c8_167, %c0_168, %c0_169] : memref<9x128x128xbf16, #tpu.memory_space<vmem>>, vector<1x128x128xbf16>
    %220 = vector.shape_cast %219 : vector<1x128x128xbf16> to vector<128x128xbf16>
    %cst_170 = arith.constant dense<0.000000e+00> : vector<96x128xf32>
    %221 = tpu.matmul %218, %220, %cst_170 {dimension_numbers = #tpu.dot_dimension_numbers<[1], [0], [0], [1], [0, 0, 1, 1], [], []>} : vector<96x128xbf16>, vector<128x128xbf16>, vector<96x128xf32> -> vector<96x128xf32>
    %222 = arith.addf %216, %221 : vector<96x128xf32>
    %223 = vector.broadcast %5 : vector<1x128xf32> to vector<96x128xf32>
    %224 = arith.addf %222, %223 : vector<96x128xf32>
    %c96_171 = arith.constant 96 : index
    %c0_172 = arith.constant 0 : index
    %225 = vector.load %arg11[%c96_171, %c0_172] : memref<192x128xf32, #tpu.memory_space<vmem>>, vector<96x128xf32>
    tpu.vector_store %arg11[%c96_171, %c0_172], %224 {strides = array<i32>} : memref<192x128xf32, #tpu.memory_space<vmem>>, vector<96x128xf32>,
    %c0_173 = arith.constant 0 : index
    %c0_174 = arith.constant 0 : index
    %226 = tpu.strided_load %arg11[%c0_173, %c0_174] {strides = array<i32: 2, 1>} : memref<192x128xf32, #tpu.memory_space<vmem>>, vector<5x128xf32>
    %c1_175 = arith.constant 1 : index
    %c0_176 = arith.constant 0 : index
    %227 = tpu.strided_load %arg11[%c1_175, %c0_176] {strides = array<i32: 2, 1>} : memref<192x128xf32, #tpu.memory_space<vmem>>, vector<5x128xf32>
    %228 = arith.maximumf %226, %227 : vector<5x128xf32>
    %c14_177 = arith.constant 14 : index
    %c0_178 = arith.constant 0 : index
    %229 = tpu.strided_load %arg11[%c14_177, %c0_178] {strides = array<i32: 2, 1>} : memref<192x128xf32, #tpu.memory_space<vmem>>, vector<5x128xf32>
    %c15_179 = arith.constant 15 : index
    %c0_180 = arith.constant 0 : index
    %230 = tpu.strided_load %arg11[%c15_179, %c0_180] {strides = array<i32: 2, 1>} : memref<192x128xf32, #tpu.memory_space<vmem>>, vector<5x128xf32>
    %231 = arith.maximumf %229, %230 : vector<5x128xf32>
    %232 = arith.maximumf %228, %231 : vector<5x128xf32>
    %cst_181 = arith.constant 0.000000e+00 : f32
    %233 = vector.broadcast %cst_181 : f32 to vector<5x128xf32>
    %234 = arith.maximumf %232, %233 : vector<5x128xf32>
    %c22 = arith.constant 22 : index
    %c0_182 = arith.constant 0 : index
    %235 = vector.load %arg12[%c22, %c0_182] : memref<120x128xf32, #tpu.memory_space<vmem>>, vector<5x128xf32>
    tpu.vector_store %arg12[%c22, %c0_182], %234 {strides = array<i32>} : memref<120x128xf32, #tpu.memory_space<vmem>>, vector<5x128xf32>,
    %c28_183 = arith.constant 28 : index
    %c0_184 = arith.constant 0 : index
    %236 = tpu.strided_load %arg11[%c28_183, %c0_184] {strides = array<i32: 2, 1>} : memref<192x128xf32, #tpu.memory_space<vmem>>, vector<5x128xf32>
    %c29_185 = arith.constant 29 : index
    %c0_186 = arith.constant 0 : index
    %237 = tpu.strided_load %arg11[%c29_185, %c0_186] {strides = array<i32: 2, 1>} : memref<192x128xf32, #tpu.memory_space<vmem>>, vector<5x128xf32>
    %238 = arith.maximumf %236, %237 : vector<5x128xf32>
    %c42 = arith.constant 42 : index
    %c0_187 = arith.constant 0 : index
    %239 = tpu.strided_load %arg11[%c42, %c0_187] {strides = array<i32: 2, 1>} : memref<192x128xf32, #tpu.memory_space<vmem>>, vector<5x128xf32>
    %c43 = arith.constant 43 : index
    %c0_188 = arith.constant 0 : index
    %240 = tpu.strided_load %arg11[%c43, %c0_188] {strides = array<i32: 2, 1>} : memref<192x128xf32, #tpu.memory_space<vmem>>, vector<5x128xf32>
    %241 = arith.maximumf %239, %240 : vector<5x128xf32>
    %242 = arith.maximumf %238, %241 : vector<5x128xf32>
    %cst_189 = arith.constant 0.000000e+00 : f32
    %243 = vector.broadcast %cst_189 : f32 to vector<5x128xf32>
    %244 = arith.maximumf %242, %243 : vector<5x128xf32>
    %c32 = arith.constant 32 : index
    %c0_190 = arith.constant 0 : index
    %245 = vector.load %arg12[%c32, %c0_190] : memref<120x128xf32, #tpu.memory_space<vmem>>, vector<5x128xf32>
    tpu.vector_store %arg12[%c32, %c0_190], %244 {strides = array<i32>} : memref<120x128xf32, #tpu.memory_space<vmem>>, vector<5x128xf32>,
    %c56 = arith.constant 56 : index
    %c0_191 = arith.constant 0 : index
    %246 = tpu.strided_load %arg11[%c56, %c0_191] {strides = array<i32: 2, 1>} : memref<192x128xf32, #tpu.memory_space<vmem>>, vector<5x128xf32>
    %c57 = arith.constant 57 : index
    %c0_192 = arith.constant 0 : index
    %247 = tpu.strided_load %arg11[%c57, %c0_192] {strides = array<i32: 2, 1>} : memref<192x128xf32, #tpu.memory_space<vmem>>, vector<5x128xf32>
    %248 = arith.maximumf %246, %247 : vector<5x128xf32>
    %c70 = arith.constant 70 : index
    %c0_193 = arith.constant 0 : index
    %249 = tpu.strided_load %arg11[%c70, %c0_193] {strides = array<i32: 2, 1>} : memref<192x128xf32, #tpu.memory_space<vmem>>, vector<5x128xf32>
    %c71 = arith.constant 71 : index
    %c0_194 = arith.constant 0 : index
    %250 = tpu.strided_load %arg11[%c71, %c0_194] {strides = array<i32: 2, 1>} : memref<192x128xf32, #tpu.memory_space<vmem>>, vector<5x128xf32>
    %251 = arith.maximumf %249, %250 : vector<5x128xf32>
    %252 = arith.maximumf %248, %251 : vector<5x128xf32>
    %cst_195 = arith.constant 0.000000e+00 : f32
    %253 = vector.broadcast %cst_195 : f32 to vector<5x128xf32>
    %254 = arith.maximumf %252, %253 : vector<5x128xf32>
    %c42_196 = arith.constant 42 : index
    %c0_197 = arith.constant 0 : index
    %255 = vector.load %arg12[%c42_196, %c0_197] : memref<120x128xf32, #tpu.memory_space<vmem>>, vector<5x128xf32>
    tpu.vector_store %arg12[%c42_196, %c0_197], %254 {strides = array<i32>} : memref<120x128xf32, #tpu.memory_space<vmem>>, vector<5x128xf32>,
    %c84 = arith.constant 84 : index
    %c0_198 = arith.constant 0 : index
    %256 = tpu.strided_load %arg11[%c84, %c0_198] {strides = array<i32: 2, 1>} : memref<192x128xf32, #tpu.memory_space<vmem>>, vector<5x128xf32>
    %c85 = arith.constant 85 : index
    %c0_199 = arith.constant 0 : index
    %257 = tpu.strided_load %arg11[%c85, %c0_199] {strides = array<i32: 2, 1>} : memref<192x128xf32, #tpu.memory_space<vmem>>, vector<5x128xf32>
    %258 = arith.maximumf %256, %257 : vector<5x128xf32>
    %c98_200 = arith.constant 98 : index
    %c0_201 = arith.constant 0 : index
    %259 = tpu.strided_load %arg11[%c98_200, %c0_201] {strides = array<i32: 2, 1>} : memref<192x128xf32, #tpu.memory_space<vmem>>, vector<5x128xf32>
    %c99 = arith.constant 99 : index
    %c0_202 = arith.constant 0 : index
    %260 = tpu.strided_load %arg11[%c99, %c0_202] {strides = array<i32: 2, 1>} : memref<192x128xf32, #tpu.memory_space<vmem>>, vector<5x128xf32>
    %261 = arith.maximumf %259, %260 : vector<5x128xf32>
    %262 = arith.maximumf %258, %261 : vector<5x128xf32>
    %cst_203 = arith.constant 0.000000e+00 : f32
    %263 = vector.broadcast %cst_203 : f32 to vector<5x128xf32>
    %264 = arith.maximumf %262, %263 : vector<5x128xf32>
    %c52 = arith.constant 52 : index
    %c0_204 = arith.constant 0 : index
    %265 = vector.load %arg12[%c52, %c0_204] : memref<120x128xf32, #tpu.memory_space<vmem>>, vector<5x128xf32>
    tpu.vector_store %arg12[%c52, %c0_204], %264 {strides = array<i32>} : memref<120x128xf32, #tpu.memory_space<vmem>>, vector<5x128xf32>,
    %c112_205 = arith.constant 112 : index
    %c0_206 = arith.constant 0 : index
    %266 = tpu.strided_load %arg11[%c112_205, %c0_206] {strides = array<i32: 2, 1>} : memref<192x128xf32, #tpu.memory_space<vmem>>, vector<5x128xf32>
    %c113 = arith.constant 113 : index
    %c0_207 = arith.constant 0 : index
    %267 = tpu.strided_load %arg11[%c113, %c0_207] {strides = array<i32: 2, 1>} : memref<192x128xf32, #tpu.memory_space<vmem>>, vector<5x128xf32>
    %268 = arith.maximumf %266, %267 : vector<5x128xf32>
    %c126_208 = arith.constant 126 : index
    %c0_209 = arith.constant 0 : index
    %269 = tpu.strided_load %arg11[%c126_208, %c0_209] {strides = array<i32: 2, 1>} : memref<192x128xf32, #tpu.memory_space<vmem>>, vector<5x128xf32>
    %c127 = arith.constant 127 : index
    %c0_210 = arith.constant 0 : index
    %270 = tpu.strided_load %arg11[%c127, %c0_210] {strides = array<i32: 2, 1>} : memref<192x128xf32, #tpu.memory_space<vmem>>, vector<5x128xf32>
    %271 = arith.maximumf %269, %270 : vector<5x128xf32>
    %272 = arith.maximumf %268, %271 : vector<5x128xf32>
    %cst_211 = arith.constant 0.000000e+00 : f32
    %273 = vector.broadcast %cst_211 : f32 to vector<5x128xf32>
    %274 = arith.maximumf %272, %273 : vector<5x128xf32>
    %c62 = arith.constant 62 : index
    %c0_212 = arith.constant 0 : index
    %275 = vector.load %arg12[%c62, %c0_212] : memref<120x128xf32, #tpu.memory_space<vmem>>, vector<5x128xf32>
    tpu.vector_store %arg12[%c62, %c0_212], %274 {strides = array<i32>} : memref<120x128xf32, #tpu.memory_space<vmem>>, vector<5x128xf32>,
    %cst_213 = arith.constant 0.000000e+00 : f32
    %276 = vector.broadcast %cst_213 : f32 to vector<96x128xf32>
    %c0_214 = arith.constant 0 : index
    %c0_215 = arith.constant 0 : index
    %277 = vector.load %arg12[%c0_214, %c0_215] : memref<120x128xf32, #tpu.memory_space<vmem>>, vector<96x128xf32>
    %278 = arith.truncf %277 : vector<96x128xf32> to vector<96x128xbf16>
    %c0_216 = arith.constant 0 : index
    %c0_217 = arith.constant 0 : index
    %c0_218 = arith.constant 0 : index
    %279 = vector.load %arg6[%c0_216, %c0_217, %c0_218] : memref<9x128x128xbf16, #tpu.memory_space<vmem>>, vector<1x128x128xbf16>
    %280 = vector.shape_cast %279 : vector<1x128x128xbf16> to vector<128x128xbf16>
    %cst_219 = arith.constant dense<0.000000e+00> : vector<96x128xf32>
    %281 = tpu.matmul %278, %280, %cst_219 {dimension_numbers = #tpu.dot_dimension_numbers<[1], [0], [0], [1], [0, 0, 1, 1], [], []>} : vector<96x128xbf16>, vector<128x128xbf16>, vector<96x128xf32> -> vector<96x128xf32>
    %282 = arith.addf %276, %281 : vector<96x128xf32>
    %c1_220 = arith.constant 1 : index
    %c0_221 = arith.constant 0 : index
    %283 = vector.load %arg12[%c1_220, %c0_221] : memref<120x128xf32, #tpu.memory_space<vmem>>, vector<96x128xf32>
    %284 = arith.truncf %283 : vector<96x128xf32> to vector<96x128xbf16>
    %c1_222 = arith.constant 1 : index
    %c0_223 = arith.constant 0 : index
    %c0_224 = arith.constant 0 : index
    %285 = vector.load %arg6[%c1_222, %c0_223, %c0_224] : memref<9x128x128xbf16, #tpu.memory_space<vmem>>, vector<1x128x128xbf16>
    %286 = vector.shape_cast %285 : vector<1x128x128xbf16> to vector<128x128xbf16>
    %cst_225 = arith.constant dense<0.000000e+00> : vector<96x128xf32>
    %287 = tpu.matmul %284, %286, %cst_225 {dimension_numbers = #tpu.dot_dimension_numbers<[1], [0], [0], [1], [0, 0, 1, 1], [], []>} : vector<96x128xbf16>, vector<128x128xbf16>, vector<96x128xf32> -> vector<96x128xf32>
    %288 = arith.addf %282, %287 : vector<96x128xf32>
    %c2_226 = arith.constant 2 : index
    %c0_227 = arith.constant 0 : index
    %289 = vector.load %arg12[%c2_226, %c0_227] : memref<120x128xf32, #tpu.memory_space<vmem>>, vector<96x128xf32>
    %290 = arith.truncf %289 : vector<96x128xf32> to vector<96x128xbf16>
    %c2_228 = arith.constant 2 : index
    %c0_229 = arith.constant 0 : index
    %c0_230 = arith.constant 0 : index
    %291 = vector.load %arg6[%c2_228, %c0_229, %c0_230] : memref<9x128x128xbf16, #tpu.memory_space<vmem>>, vector<1x128x128xbf16>
    %292 = vector.shape_cast %291 : vector<1x128x128xbf16> to vector<128x128xbf16>
    %cst_231 = arith.constant dense<0.000000e+00> : vector<96x128xf32>
    %293 = tpu.matmul %290, %292, %cst_231 {dimension_numbers = #tpu.dot_dimension_numbers<[1], [0], [0], [1], [0, 0, 1, 1], [], []>} : vector<96x128xbf16>, vector<128x128xbf16>, vector<96x128xf32> -> vector<96x128xf32>
    %294 = arith.addf %288, %293 : vector<96x128xf32>
    %c10 = arith.constant 10 : index
    %c0_232 = arith.constant 0 : index
    %295 = vector.load %arg12[%c10, %c0_232] : memref<120x128xf32, #tpu.memory_space<vmem>>, vector<96x128xf32>
    %296 = arith.truncf %295 : vector<96x128xf32> to vector<96x128xbf16>
    %c3_233 = arith.constant 3 : index
    %c0_234 = arith.constant 0 : index
    %c0_235 = arith.constant 0 : index
    %297 = vector.load %arg6[%c3_233, %c0_234, %c0_235] : memref<9x128x128xbf16, #tpu.memory_space<vmem>>, vector<1x128x128xbf16>
    %298 = vector.shape_cast %297 : vector<1x128x128xbf16> to vector<128x128xbf16>
    %cst_236 = arith.constant dense<0.000000e+00> : vector<96x128xf32>
    %299 = tpu.matmul %296, %298, %cst_236 {dimension_numbers = #tpu.dot_dimension_numbers<[1], [0], [0], [1], [0, 0, 1, 1], [], []>} : vector<96x128xbf16>, vector<128x128xbf16>, vector<96x128xf32> -> vector<96x128xf32>
    %300 = arith.addf %294, %299 : vector<96x128xf32>
    %c11 = arith.constant 11 : index
    %c0_237 = arith.constant 0 : index
    %301 = vector.load %arg12[%c11, %c0_237] : memref<120x128xf32, #tpu.memory_space<vmem>>, vector<96x128xf32>
    %302 = arith.truncf %301 : vector<96x128xf32> to vector<96x128xbf16>
    %c4_238 = arith.constant 4 : index
    %c0_239 = arith.constant 0 : index
    %c0_240 = arith.constant 0 : index
    %303 = vector.load %arg6[%c4_238, %c0_239, %c0_240] : memref<9x128x128xbf16, #tpu.memory_space<vmem>>, vector<1x128x128xbf16>
    %304 = vector.shape_cast %303 : vector<1x128x128xbf16> to vector<128x128xbf16>
    %cst_241 = arith.constant dense<0.000000e+00> : vector<96x128xf32>
    %305 = tpu.matmul %302, %304, %cst_241 {dimension_numbers = #tpu.dot_dimension_numbers<[1], [0], [0], [1], [0, 0, 1, 1], [], []>} : vector<96x128xbf16>, vector<128x128xbf16>, vector<96x128xf32> -> vector<96x128xf32>
    %306 = arith.addf %300, %305 : vector<96x128xf32>
    %c12 = arith.constant 12 : index
    %c0_242 = arith.constant 0 : index
    %307 = vector.load %arg12[%c12, %c0_242] : memref<120x128xf32, #tpu.memory_space<vmem>>, vector<96x128xf32>
    %308 = arith.truncf %307 : vector<96x128xf32> to vector<96x128xbf16>
    %c5_243 = arith.constant 5 : index
    %c0_244 = arith.constant 0 : index
    %c0_245 = arith.constant 0 : index
    %309 = vector.load %arg6[%c5_243, %c0_244, %c0_245] : memref<9x128x128xbf16, #tpu.memory_space<vmem>>, vector<1x128x128xbf16>
    %310 = vector.shape_cast %309 : vector<1x128x128xbf16> to vector<128x128xbf16>
    %cst_246 = arith.constant dense<0.000000e+00> : vector<96x128xf32>
    %311 = tpu.matmul %308, %310, %cst_246 {dimension_numbers = #tpu.dot_dimension_numbers<[1], [0], [0], [1], [0, 0, 1, 1], [], []>} : vector<96x128xbf16>, vector<128x128xbf16>, vector<96x128xf32> -> vector<96x128xf32>
    %312 = arith.addf %306, %311 : vector<96x128xf32>
    %c20_247 = arith.constant 20 : index
    %c0_248 = arith.constant 0 : index
    %313 = vector.load %arg12[%c20_247, %c0_248] : memref<120x128xf32, #tpu.memory_space<vmem>>, vector<96x128xf32>
    %314 = arith.truncf %313 : vector<96x128xf32> to vector<96x128xbf16>
    %c6_249 = arith.constant 6 : index
    %c0_250 = arith.constant 0 : index
    %c0_251 = arith.constant 0 : index
    %315 = vector.load %arg6[%c6_249, %c0_250, %c0_251] : memref<9x128x128xbf16, #tpu.memory_space<vmem>>, vector<1x128x128xbf16>
    %316 = vector.shape_cast %315 : vector<1x128x128xbf16> to vector<128x128xbf16>
    %cst_252 = arith.constant dense<0.000000e+00> : vector<96x128xf32>
    %317 = tpu.matmul %314, %316, %cst_252 {dimension_numbers = #tpu.dot_dimension_numbers<[1], [0], [0], [1], [0, 0, 1, 1], [], []>} : vector<96x128xbf16>, vector<128x128xbf16>, vector<96x128xf32> -> vector<96x128xf32>
    %318 = arith.addf %312, %317 : vector<96x128xf32>
    %c21_253 = arith.constant 21 : index
    %c0_254 = arith.constant 0 : index
    %319 = vector.load %arg12[%c21_253, %c0_254] : memref<120x128xf32, #tpu.memory_space<vmem>>, vector<96x128xf32>
    %320 = arith.truncf %319 : vector<96x128xf32> to vector<96x128xbf16>
    %c7_255 = arith.constant 7 : index
    %c0_256 = arith.constant 0 : index
    %c0_257 = arith.constant 0 : index
    %321 = vector.load %arg6[%c7_255, %c0_256, %c0_257] : memref<9x128x128xbf16, #tpu.memory_space<vmem>>, vector<1x128x128xbf16>
    %322 = vector.shape_cast %321 : vector<1x128x128xbf16> to vector<128x128xbf16>
    %cst_258 = arith.constant dense<0.000000e+00> : vector<96x128xf32>
    %323 = tpu.matmul %320, %322, %cst_258 {dimension_numbers = #tpu.dot_dimension_numbers<[1], [0], [0], [1], [0, 0, 1, 1], [], []>} : vector<96x128xbf16>, vector<128x128xbf16>, vector<96x128xf32> -> vector<96x128xf32>
    %324 = arith.addf %318, %323 : vector<96x128xf32>
    %c22_259 = arith.constant 22 : index
    %c0_260 = arith.constant 0 : index
    %325 = vector.load %arg12[%c22_259, %c0_260] : memref<120x128xf32, #tpu.memory_space<vmem>>, vector<96x128xf32>
    %326 = arith.truncf %325 : vector<96x128xf32> to vector<96x128xbf16>
    %c8_261 = arith.constant 8 : index
    %c0_262 = arith.constant 0 : index
    %c0_263 = arith.constant 0 : index
    %327 = vector.load %arg6[%c8_261, %c0_262, %c0_263] : memref<9x128x128xbf16, #tpu.memory_space<vmem>>, vector<1x128x128xbf16>
    %328 = vector.shape_cast %327 : vector<1x128x128xbf16> to vector<128x128xbf16>
    %cst_264 = arith.constant dense<0.000000e+00> : vector<96x128xf32>
    %329 = tpu.matmul %326, %328, %cst_264 {dimension_numbers = #tpu.dot_dimension_numbers<[1], [0], [0], [1], [0, 0, 1, 1], [], []>} : vector<96x128xbf16>, vector<128x128xbf16>, vector<96x128xf32> -> vector<96x128xf32>
    %330 = arith.addf %324, %329 : vector<96x128xf32>
    %331 = vector.broadcast %6 : vector<1x128xf32> to vector<96x128xf32>
    %332 = arith.addf %330, %331 : vector<96x128xf32>
    %c0_265 = arith.constant 0 : index
    %c0_266 = arith.constant 0 : index
    %333 = vector.load %arg13[%c0_265, %c0_266] : memref<96x128xf32, #tpu.memory_space<vmem>>, vector<96x128xf32>
    tpu.vector_store %arg13[%c0_265, %c0_266], %332 {strides = array<i32>} : memref<96x128xf32, #tpu.memory_space<vmem>>, vector<96x128xf32>,
    %c0_267 = arith.constant 0 : index
    %c0_268 = arith.constant 0 : index
    %334 = vector.load %arg13[%c0_267, %c0_268] : memref<96x128xf32, #tpu.memory_space<vmem>>, vector<7x128xf32>
    %c10_269 = arith.constant 10 : index
    %c0_270 = arith.constant 0 : index
    %335 = vector.load %arg13[%c10_269, %c0_270] : memref<96x128xf32, #tpu.memory_space<vmem>>, vector<7x128xf32>
    %c20_271 = arith.constant 20 : index
    %c0_272 = arith.constant 0 : index
    %336 = vector.load %arg13[%c20_271, %c0_272] : memref<96x128xf32, #tpu.memory_space<vmem>>, vector<7x128xf32>
    %c30_273 = arith.constant 30 : index
    %c0_274 = arith.constant 0 : index
    %337 = vector.load %arg13[%c30_273, %c0_274] : memref<96x128xf32, #tpu.memory_space<vmem>>, vector<7x128xf32>
    %c40_275 = arith.constant 40 : index
    %c0_276 = arith.constant 0 : index
    %338 = vector.load %arg13[%c40_275, %c0_276] : memref<96x128xf32, #tpu.memory_space<vmem>>, vector<7x128xf32>
    %c50 = arith.constant 50 : index
    %c0_277 = arith.constant 0 : index
    %339 = vector.load %arg13[%c50, %c0_277] : memref<96x128xf32, #tpu.memory_space<vmem>>, vector<7x128xf32>
    %c60_278 = arith.constant 60 : index
    %c0_279 = arith.constant 0 : index
    %340 = vector.load %arg13[%c60_278, %c0_279] : memref<96x128xf32, #tpu.memory_space<vmem>>, vector<7x128xf32>
    %341 = tpu.concatenate %334, %335, %336, %337, %338, %339, %340 in 0 : vector<7x128xf32>, vector<7x128xf32>, vector<7x128xf32>, vector<7x128xf32>, vector<7x128xf32>, vector<7x128xf32>, vector<7x128xf32> -> vector<49x128xf32>
    %342 = vector.extract_strided_slice %341 {offsets = [0, 0], sizes = [49, 32], strides = [1, 1]} : vector<49x128xf32> to vector<49x32xf32>
    %cst_280 = arith.constant dense<0xFF800000> : vector<49xf32>
    %343 = vector.multi_reduction <maximumf>, %342, %cst_280 [1] : vector<49x32xf32> to vector<49xf32>
    %344 = vector.shape_cast %343 : vector<49xf32> to vector<49x1xf32>
    %345 = vector.broadcast %344 : vector<49x1xf32> to vector<49x32xf32>
    %346 = arith.subf %342, %345 : vector<49x32xf32>
    %347 = math.exp %346 : vector<49x32xf32>
    %cst_281 = arith.constant dense<0.000000e+00> : vector<49xf32>
    %348 = vector.multi_reduction <add>, %347, %cst_281 [1] : vector<49x32xf32> to vector<49xf32>
    %349 = vector.shape_cast %348 : vector<49xf32> to vector<49x1xf32>
    %350 = math.log %349 : vector<49x1xf32>
    %351 = arith.addf %344, %350 : vector<49x1xf32>
    %352 = vector.broadcast %351 : vector<49x1xf32> to vector<49x32xf32>
    %353 = arith.subf %342, %352 : vector<49x32xf32>
    %354 = vector.extract_strided_slice %341 {offsets = [0, 32], sizes = [49, 32], strides = [1, 1]} : vector<49x128xf32> to vector<49x32xf32>
    %cst_282 = arith.constant dense<0xFF800000> : vector<49xf32>
    %355 = vector.multi_reduction <maximumf>, %354, %cst_282 [1] : vector<49x32xf32> to vector<49xf32>
    %356 = vector.shape_cast %355 : vector<49xf32> to vector<49x1xf32>
    %357 = vector.broadcast %356 : vector<49x1xf32> to vector<49x32xf32>
    %358 = arith.subf %354, %357 : vector<49x32xf32>
    %359 = math.exp %358 : vector<49x32xf32>
    %cst_283 = arith.constant dense<0.000000e+00> : vector<49xf32>
    %360 = vector.multi_reduction <add>, %359, %cst_283 [1] : vector<49x32xf32> to vector<49xf32>
    %361 = vector.shape_cast %360 : vector<49xf32> to vector<49x1xf32>
    %362 = math.log %361 : vector<49x1xf32>
    %363 = arith.addf %356, %362 : vector<49x1xf32>
    %364 = vector.broadcast %363 : vector<49x1xf32> to vector<49x32xf32>
    %365 = arith.subf %354, %364 : vector<49x32xf32>
    %366 = vector.extract_strided_slice %341 {offsets = [0, 64], sizes = [49, 32], strides = [1, 1]} : vector<49x128xf32> to vector<49x32xf32>
    %cst_284 = arith.constant dense<0xFF800000> : vector<49xf32>
    %367 = vector.multi_reduction <maximumf>, %366, %cst_284 [1] : vector<49x32xf32> to vector<49xf32>
    %368 = vector.shape_cast %367 : vector<49xf32> to vector<49x1xf32>
    %369 = vector.broadcast %368 : vector<49x1xf32> to vector<49x32xf32>
    %370 = arith.subf %366, %369 : vector<49x32xf32>
    %371 = math.exp %370 : vector<49x32xf32>
    %cst_285 = arith.constant dense<0.000000e+00> : vector<49xf32>
    %372 = vector.multi_reduction <add>, %371, %cst_285 [1] : vector<49x32xf32> to vector<49xf32>
    %373 = vector.shape_cast %372 : vector<49xf32> to vector<49x1xf32>
    %374 = math.log %373 : vector<49x1xf32>
    %375 = arith.addf %368, %374 : vector<49x1xf32>
    %376 = vector.broadcast %375 : vector<49x1xf32> to vector<49x32xf32>
    %377 = arith.subf %366, %376 : vector<49x32xf32>
    %378 = vector.extract_strided_slice %341 {offsets = [0, 96], sizes = [49, 32], strides = [1, 1]} : vector<49x128xf32> to vector<49x32xf32>
    %cst_286 = arith.constant dense<0xFF800000> : vector<49xf32>
    %379 = vector.multi_reduction <maximumf>, %378, %cst_286 [1] : vector<49x32xf32> to vector<49xf32>
    %380 = vector.shape_cast %379 : vector<49xf32> to vector<49x1xf32>
    %381 = vector.broadcast %380 : vector<49x1xf32> to vector<49x32xf32>
    %382 = arith.subf %378, %381 : vector<49x32xf32>
    %383 = math.exp %382 : vector<49x32xf32>
    %cst_287 = arith.constant dense<0.000000e+00> : vector<49xf32>
    %384 = vector.multi_reduction <add>, %383, %cst_287 [1] : vector<49x32xf32> to vector<49xf32>
    %385 = vector.shape_cast %384 : vector<49xf32> to vector<49x1xf32>
    %386 = math.log %385 : vector<49x1xf32>
    %387 = arith.addf %380, %386 : vector<49x1xf32>
    %388 = vector.broadcast %387 : vector<49x1xf32> to vector<49x32xf32>
    %389 = arith.subf %378, %388 : vector<49x32xf32>
    %390 = tpu.concatenate %353, %365, %377, %389 in 1 : vector<49x32xf32>, vector<49x32xf32>, vector<49x32xf32>, vector<49x32xf32> -> vector<49x128xf32>
    %c0_288 = arith.constant 0 : index
    %c0_289 = arith.constant 0 : index
    %c0_290 = arith.constant 0 : index
    %391 = vector.load %arg8[%c0_288, %c0_289, %c0_290] : memref<2x49x128xf32, #tpu.memory_space<vmem>>, vector<1x49x128xf32>
    %392 = vector.shape_cast %391 : vector<1x49x128xf32> to vector<49x128xf32>
    %393 = vector.shape_cast %390 : vector<49x128xf32> to vector<1x49x128xf32>
    tpu.vector_store %arg8[%c0_288, %c0_289, %c0_290], %393 {strides = array<i32>} : memref<2x49x128xf32, #tpu.memory_space<vmem>>, vector<1x49x128xf32>,
    %c1_291 = arith.constant 1 : index
    %c0_292 = arith.constant 0 : index
    %c0_293 = arith.constant 0 : index
    %394 = vector.load %arg1[%c1_291, %c0_292, %c0_293] : memref<2x400x36xbf16, #tpu.memory_space<vmem>>, vector<1x200x36xbf16>
    %395 = vector.shape_cast %394 : vector<1x200x36xbf16> to vector<200x36xbf16>
    %cst_294 = arith.constant dense<0.000000e+00> : vector<200x128xf32>
    %396 = tpu.matmul %395, %7, %cst_294 {dimension_numbers = #tpu.dot_dimension_numbers<[1], [0], [0], [1], [0, 0, 1, 1], [], []>} : vector<200x36xbf16>, vector<36x128xbf16>, vector<200x128xf32> -> vector<200x128xf32>
    %397 = vector.broadcast %4 : vector<1x128xf32> to vector<200x128xf32>
    %398 = arith.addf %396, %397 : vector<200x128xf32>
    %c0_295 = arith.constant 0 : index
    %c0_296 = arith.constant 0 : index
    %399 = vector.load %arg9[%c0_295, %c0_296] : memref<400x128xf32, #tpu.memory_space<vmem>>, vector<200x128xf32>
    tpu.vector_store %arg9[%c0_295, %c0_296], %398 {strides = array<i32>} : memref<400x128xf32, #tpu.memory_space<vmem>>, vector<200x128xf32>,
    %c1_297 = arith.constant 1 : index
    %c200_298 = arith.constant 200 : index
    %c0_299 = arith.constant 0 : index
    %400 = vector.load %arg1[%c1_297, %c200_298, %c0_299] : memref<2x400x36xbf16, #tpu.memory_space<vmem>>, vector<1x200x36xbf16>
    %401 = vector.shape_cast %400 : vector<1x200x36xbf16> to vector<200x36xbf16>
    %cst_300 = arith.constant dense<0.000000e+00> : vector<200x128xf32>
    %402 = tpu.matmul %401, %7, %cst_300 {dimension_numbers = #tpu.dot_dimension_numbers<[1], [0], [0], [1], [0, 0, 1, 1], [], []>} : vector<200x36xbf16>, vector<36x128xbf16>, vector<200x128xf32> -> vector<200x128xf32>
    %403 = vector.broadcast %4 : vector<1x128xf32> to vector<200x128xf32>
    %404 = arith.addf %402, %403 : vector<200x128xf32>
    %c200_301 = arith.constant 200 : index
    %c0_302 = arith.constant 0 : index
    %405 = vector.load %arg9[%c200_301, %c0_302] : memref<400x128xf32, #tpu.memory_space<vmem>>, vector<200x128xf32>
    tpu.vector_store %arg9[%c200_301, %c0_302], %404 {strides = array<i32>} : memref<400x128xf32, #tpu.memory_space<vmem>>, vector<200x128xf32>,
    %c0_303 = arith.constant 0 : index
    %c0_304 = arith.constant 0 : index
    %406 = tpu.strided_load %arg9[%c0_303, %c0_304] {strides = array<i32: 2, 1>} : memref<400x128xf32, #tpu.memory_space<vmem>>, vector<9x128xf32>
    %c1_305 = arith.constant 1 : index
    %c0_306 = arith.constant 0 : index
    %407 = tpu.strided_load %arg9[%c1_305, %c0_306] {strides = array<i32: 2, 1>} : memref<400x128xf32, #tpu.memory_space<vmem>>, vector<9x128xf32>
    %408 = arith.maximumf %406, %407 : vector<9x128xf32>
    %c20_307 = arith.constant 20 : index
    %c0_308 = arith.constant 0 : index
    %409 = tpu.strided_load %arg9[%c20_307, %c0_308] {strides = array<i32: 2, 1>} : memref<400x128xf32, #tpu.memory_space<vmem>>, vector<9x128xf32>
    %c21_309 = arith.constant 21 : index
    %c0_310 = arith.constant 0 : index
    %410 = tpu.strided_load %arg9[%c21_309, %c0_310] {strides = array<i32: 2, 1>} : memref<400x128xf32, #tpu.memory_space<vmem>>, vector<9x128xf32>
    %411 = arith.maximumf %409, %410 : vector<9x128xf32>
    %412 = arith.maximumf %408, %411 : vector<9x128xf32>
    %cst_311 = arith.constant 0.000000e+00 : f32
    %413 = vector.broadcast %cst_311 : f32 to vector<9x128xf32>
    %414 = arith.maximumf %412, %413 : vector<9x128xf32>
    %c30_312 = arith.constant 30 : index
    %c0_313 = arith.constant 0 : index
    %415 = vector.load %arg10[%c30_312, %c0_313] : memref<224x128xf32, #tpu.memory_space<vmem>>, vector<9x128xf32>
    tpu.vector_store %arg10[%c30_312, %c0_313], %414 {strides = array<i32>} : memref<224x128xf32, #tpu.memory_space<vmem>>, vector<9x128xf32>,
    %c40_314 = arith.constant 40 : index
    %c0_315 = arith.constant 0 : index
    %416 = tpu.strided_load %arg9[%c40_314, %c0_315] {strides = array<i32: 2, 1>} : memref<400x128xf32, #tpu.memory_space<vmem>>, vector<9x128xf32>
    %c41_316 = arith.constant 41 : index
    %c0_317 = arith.constant 0 : index
    %417 = tpu.strided_load %arg9[%c41_316, %c0_317] {strides = array<i32: 2, 1>} : memref<400x128xf32, #tpu.memory_space<vmem>>, vector<9x128xf32>
    %418 = arith.maximumf %416, %417 : vector<9x128xf32>
    %c60_318 = arith.constant 60 : index
    %c0_319 = arith.constant 0 : index
    %419 = tpu.strided_load %arg9[%c60_318, %c0_319] {strides = array<i32: 2, 1>} : memref<400x128xf32, #tpu.memory_space<vmem>>, vector<9x128xf32>
    %c61_320 = arith.constant 61 : index
    %c0_321 = arith.constant 0 : index
    %420 = tpu.strided_load %arg9[%c61_320, %c0_321] {strides = array<i32: 2, 1>} : memref<400x128xf32, #tpu.memory_space<vmem>>, vector<9x128xf32>
    %421 = arith.maximumf %419, %420 : vector<9x128xf32>
    %422 = arith.maximumf %418, %421 : vector<9x128xf32>
    %cst_322 = arith.constant 0.000000e+00 : f32
    %423 = vector.broadcast %cst_322 : f32 to vector<9x128xf32>
    %424 = arith.maximumf %422, %423 : vector<9x128xf32>
    %c44_323 = arith.constant 44 : index
    %c0_324 = arith.constant 0 : index
    %425 = vector.load %arg10[%c44_323, %c0_324] : memref<224x128xf32, #tpu.memory_space<vmem>>, vector<9x128xf32>
    tpu.vector_store %arg10[%c44_323, %c0_324], %424 {strides = array<i32>} : memref<224x128xf32, #tpu.memory_space<vmem>>, vector<9x128xf32>,
    %c80_325 = arith.constant 80 : index
    %c0_326 = arith.constant 0 : index
    %426 = tpu.strided_load %arg9[%c80_325, %c0_326] {strides = array<i32: 2, 1>} : memref<400x128xf32, #tpu.memory_space<vmem>>, vector<9x128xf32>
    %c81_327 = arith.constant 81 : index
    %c0_328 = arith.constant 0 : index
    %427 = tpu.strided_load %arg9[%c81_327, %c0_328] {strides = array<i32: 2, 1>} : memref<400x128xf32, #tpu.memory_space<vmem>>, vector<9x128xf32>
    %428 = arith.maximumf %426, %427 : vector<9x128xf32>
    %c100_329 = arith.constant 100 : index
    %c0_330 = arith.constant 0 : index
    %429 = tpu.strided_load %arg9[%c100_329, %c0_330] {strides = array<i32: 2, 1>} : memref<400x128xf32, #tpu.memory_space<vmem>>, vector<9x128xf32>
    %c101_331 = arith.constant 101 : index
    %c0_332 = arith.constant 0 : index
    %430 = tpu.strided_load %arg9[%c101_331, %c0_332] {strides = array<i32: 2, 1>} : memref<400x128xf32, #tpu.memory_space<vmem>>, vector<9x128xf32>
    %431 = arith.maximumf %429, %430 : vector<9x128xf32>
    %432 = arith.maximumf %428, %431 : vector<9x128xf32>
    %cst_333 = arith.constant 0.000000e+00 : f32
    %433 = vector.broadcast %cst_333 : f32 to vector<9x128xf32>
    %434 = arith.maximumf %432, %433 : vector<9x128xf32>
    %c58_334 = arith.constant 58 : index
    %c0_335 = arith.constant 0 : index
    %435 = vector.load %arg10[%c58_334, %c0_335] : memref<224x128xf32, #tpu.memory_space<vmem>>, vector<9x128xf32>
    tpu.vector_store %arg10[%c58_334, %c0_335], %434 {strides = array<i32>} : memref<224x128xf32, #tpu.memory_space<vmem>>, vector<9x128xf32>,
    %c120_336 = arith.constant 120 : index
    %c0_337 = arith.constant 0 : index
    %436 = tpu.strided_load %arg9[%c120_336, %c0_337] {strides = array<i32: 2, 1>} : memref<400x128xf32, #tpu.memory_space<vmem>>, vector<9x128xf32>
    %c121_338 = arith.constant 121 : index
    %c0_339 = arith.constant 0 : index
    %437 = tpu.strided_load %arg9[%c121_338, %c0_339] {strides = array<i32: 2, 1>} : memref<400x128xf32, #tpu.memory_space<vmem>>, vector<9x128xf32>
    %438 = arith.maximumf %436, %437 : vector<9x128xf32>
    %c140_340 = arith.constant 140 : index
    %c0_341 = arith.constant 0 : index
    %439 = tpu.strided_load %arg9[%c140_340, %c0_341] {strides = array<i32: 2, 1>} : memref<400x128xf32, #tpu.memory_space<vmem>>, vector<9x128xf32>
    %c141_342 = arith.constant 141 : index
    %c0_343 = arith.constant 0 : index
    %440 = tpu.strided_load %arg9[%c141_342, %c0_343] {strides = array<i32: 2, 1>} : memref<400x128xf32, #tpu.memory_space<vmem>>, vector<9x128xf32>
    %441 = arith.maximumf %439, %440 : vector<9x128xf32>
    %442 = arith.maximumf %438, %441 : vector<9x128xf32>
    %cst_344 = arith.constant 0.000000e+00 : f32
    %443 = vector.broadcast %cst_344 : f32 to vector<9x128xf32>
    %444 = arith.maximumf %442, %443 : vector<9x128xf32>
    %c72_345 = arith.constant 72 : index
    %c0_346 = arith.constant 0 : index
    %445 = vector.load %arg10[%c72_345, %c0_346] : memref<224x128xf32, #tpu.memory_space<vmem>>, vector<9x128xf32>
    tpu.vector_store %arg10[%c72_345, %c0_346], %444 {strides = array<i32>} : memref<224x128xf32, #tpu.memory_space<vmem>>, vector<9x128xf32>,
    %c160_347 = arith.constant 160 : index
    %c0_348 = arith.constant 0 : index
    %446 = tpu.strided_load %arg9[%c160_347, %c0_348] {strides = array<i32: 2, 1>} : memref<400x128xf32, #tpu.memory_space<vmem>>, vector<9x128xf32>
    %c161_349 = arith.constant 161 : index
    %c0_350 = arith.constant 0 : index
    %447 = tpu.strided_load %arg9[%c161_349, %c0_350] {strides = array<i32: 2, 1>} : memref<400x128xf32, #tpu.memory_space<vmem>>, vector<9x128xf32>
    %448 = arith.maximumf %446, %447 : vector<9x128xf32>
    %c180_351 = arith.constant 180 : index
    %c0_352 = arith.constant 0 : index
    %449 = tpu.strided_load %arg9[%c180_351, %c0_352] {strides = array<i32: 2, 1>} : memref<400x128xf32, #tpu.memory_space<vmem>>, vector<9x128xf32>
    %c181_353 = arith.constant 181 : index
    %c0_354 = arith.constant 0 : index
    %450 = tpu.strided_load %arg9[%c181_353, %c0_354] {strides = array<i32: 2, 1>} : memref<400x128xf32, #tpu.memory_space<vmem>>, vector<9x128xf32>
    %451 = arith.maximumf %449, %450 : vector<9x128xf32>
    %452 = arith.maximumf %448, %451 : vector<9x128xf32>
    %cst_355 = arith.constant 0.000000e+00 : f32
    %453 = vector.broadcast %cst_355 : f32 to vector<9x128xf32>
    %454 = arith.maximumf %452, %453 : vector<9x128xf32>
    %c86_356 = arith.constant 86 : index
    %c0_357 = arith.constant 0 : index
    %455 = vector.load %arg10[%c86_356, %c0_357] : memref<224x128xf32, #tpu.memory_space<vmem>>, vector<9x128xf32>
    tpu.vector_store %arg10[%c86_356, %c0_357], %454 {strides = array<i32>} : memref<224x128xf32, #tpu.memory_space<vmem>>, vector<9x128xf32>,
    %c200_358 = arith.constant 200 : index
    %c0_359 = arith.constant 0 : index
    %456 = tpu.strided_load %arg9[%c200_358, %c0_359] {strides = array<i32: 2, 1>} : memref<400x128xf32, #tpu.memory_space<vmem>>, vector<9x128xf32>
    %c201_360 = arith.constant 201 : index
    %c0_361 = arith.constant 0 : index
    %457 = tpu.strided_load %arg9[%c201_360, %c0_361] {strides = array<i32: 2, 1>} : memref<400x128xf32, #tpu.memory_space<vmem>>, vector<9x128xf32>
    %458 = arith.maximumf %456, %457 : vector<9x128xf32>
    %c220_362 = arith.constant 220 : index
    %c0_363 = arith.constant 0 : index
    %459 = tpu.strided_load %arg9[%c220_362, %c0_363] {strides = array<i32: 2, 1>} : memref<400x128xf32, #tpu.memory_space<vmem>>, vector<9x128xf32>
    %c221_364 = arith.constant 221 : index
    %c0_365 = arith.constant 0 : index
    %460 = tpu.strided_load %arg9[%c221_364, %c0_365] {strides = array<i32: 2, 1>} : memref<400x128xf32, #tpu.memory_space<vmem>>, vector<9x128xf32>
    %461 = arith.maximumf %459, %460 : vector<9x128xf32>
    %462 = arith.maximumf %458, %461 : vector<9x128xf32>
    %cst_366 = arith.constant 0.000000e+00 : f32
    %463 = vector.broadcast %cst_366 : f32 to vector<9x128xf32>
    %464 = arith.maximumf %462, %463 : vector<9x128xf32>
    %c100_367 = arith.constant 100 : index
    %c0_368 = arith.constant 0 : index
    %465 = vector.load %arg10[%c100_367, %c0_368] : memref<224x128xf32, #tpu.memory_space<vmem>>, vector<9x128xf32>
    tpu.vector_store %arg10[%c100_367, %c0_368], %464 {strides = array<i32>} : memref<224x128xf32, #tpu.memory_space<vmem>>, vector<9x128xf32>,
    %c240_369 = arith.constant 240 : index
    %c0_370 = arith.constant 0 : index
    %466 = tpu.strided_load %arg9[%c240_369, %c0_370] {strides = array<i32: 2, 1>} : memref<400x128xf32, #tpu.memory_space<vmem>>, vector<9x128xf32>
    %c241_371 = arith.constant 241 : index
    %c0_372 = arith.constant 0 : index
    %467 = tpu.strided_load %arg9[%c241_371, %c0_372] {strides = array<i32: 2, 1>} : memref<400x128xf32, #tpu.memory_space<vmem>>, vector<9x128xf32>
    %468 = arith.maximumf %466, %467 : vector<9x128xf32>
    %c260_373 = arith.constant 260 : index
    %c0_374 = arith.constant 0 : index
    %469 = tpu.strided_load %arg9[%c260_373, %c0_374] {strides = array<i32: 2, 1>} : memref<400x128xf32, #tpu.memory_space<vmem>>, vector<9x128xf32>
    %c261_375 = arith.constant 261 : index
    %c0_376 = arith.constant 0 : index
    %470 = tpu.strided_load %arg9[%c261_375, %c0_376] {strides = array<i32: 2, 1>} : memref<400x128xf32, #tpu.memory_space<vmem>>, vector<9x128xf32>
    %471 = arith.maximumf %469, %470 : vector<9x128xf32>
    %472 = arith.maximumf %468, %471 : vector<9x128xf32>
    %cst_377 = arith.constant 0.000000e+00 : f32
    %473 = vector.broadcast %cst_377 : f32 to vector<9x128xf32>
    %474 = arith.maximumf %472, %473 : vector<9x128xf32>
    %c114_378 = arith.constant 114 : index
    %c0_379 = arith.constant 0 : index
    %475 = vector.load %arg10[%c114_378, %c0_379] : memref<224x128xf32, #tpu.memory_space<vmem>>, vector<9x128xf32>
    tpu.vector_store %arg10[%c114_378, %c0_379], %474 {strides = array<i32>} : memref<224x128xf32, #tpu.memory_space<vmem>>, vector<9x128xf32>,
    %c280_380 = arith.constant 280 : index
    %c0_381 = arith.constant 0 : index
    %476 = tpu.strided_load %arg9[%c280_380, %c0_381] {strides = array<i32: 2, 1>} : memref<400x128xf32, #tpu.memory_space<vmem>>, vector<9x128xf32>
    %c281_382 = arith.constant 281 : index
    %c0_383 = arith.constant 0 : index
    %477 = tpu.strided_load %arg9[%c281_382, %c0_383] {strides = array<i32: 2, 1>} : memref<400x128xf32, #tpu.memory_space<vmem>>, vector<9x128xf32>
    %478 = arith.maximumf %476, %477 : vector<9x128xf32>
    %c300_384 = arith.constant 300 : index
    %c0_385 = arith.constant 0 : index
    %479 = tpu.strided_load %arg9[%c300_384, %c0_385] {strides = array<i32: 2, 1>} : memref<400x128xf32, #tpu.memory_space<vmem>>, vector<9x128xf32>
    %c301_386 = arith.constant 301 : index
    %c0_387 = arith.constant 0 : index
    %480 = tpu.strided_load %arg9[%c301_386, %c0_387] {strides = array<i32: 2, 1>} : memref<400x128xf32, #tpu.memory_space<vmem>>, vector<9x128xf32>
    %481 = arith.maximumf %479, %480 : vector<9x128xf32>
    %482 = arith.maximumf %478, %481 : vector<9x128xf32>
    %cst_388 = arith.constant 0.000000e+00 : f32
    %483 = vector.broadcast %cst_388 : f32 to vector<9x128xf32>
    %484 = arith.maximumf %482, %483 : vector<9x128xf32>
    %c128_389 = arith.constant 128 : index
    %c0_390 = arith.constant 0 : index
    %485 = vector.load %arg10[%c128_389, %c0_390] : memref<224x128xf32, #tpu.memory_space<vmem>>, vector<9x128xf32>
    tpu.vector_store %arg10[%c128_389, %c0_390], %484 {strides = array<i32>} : memref<224x128xf32, #tpu.memory_space<vmem>>, vector<9x128xf32>,
    %c320_391 = arith.constant 320 : index
    %c0_392 = arith.constant 0 : index
    %486 = tpu.strided_load %arg9[%c320_391, %c0_392] {strides = array<i32: 2, 1>} : memref<400x128xf32, #tpu.memory_space<vmem>>, vector<9x128xf32>
    %c321_393 = arith.constant 321 : index
    %c0_394 = arith.constant 0 : index
    %487 = tpu.strided_load %arg9[%c321_393, %c0_394] {strides = array<i32: 2, 1>} : memref<400x128xf32, #tpu.memory_space<vmem>>, vector<9x128xf32>
    %488 = arith.maximumf %486, %487 : vector<9x128xf32>
    %c340_395 = arith.constant 340 : index
    %c0_396 = arith.constant 0 : index
    %489 = tpu.strided_load %arg9[%c340_395, %c0_396] {strides = array<i32: 2, 1>} : memref<400x128xf32, #tpu.memory_space<vmem>>, vector<9x128xf32>
    %c341_397 = arith.constant 341 : index
    %c0_398 = arith.constant 0 : index
    %490 = tpu.strided_load %arg9[%c341_397, %c0_398] {strides = array<i32: 2, 1>} : memref<400x128xf32, #tpu.memory_space<vmem>>, vector<9x128xf32>
    %491 = arith.maximumf %489, %490 : vector<9x128xf32>
    %492 = arith.maximumf %488, %491 : vector<9x128xf32>
    %cst_399 = arith.constant 0.000000e+00 : f32
    %493 = vector.broadcast %cst_399 : f32 to vector<9x128xf32>
    %494 = arith.maximumf %492, %493 : vector<9x128xf32>
    %c142_400 = arith.constant 142 : index
    %c0_401 = arith.constant 0 : index
    %495 = vector.load %arg10[%c142_400, %c0_401] : memref<224x128xf32, #tpu.memory_space<vmem>>, vector<9x128xf32>
    tpu.vector_store %arg10[%c142_400, %c0_401], %494 {strides = array<i32>} : memref<224x128xf32, #tpu.memory_space<vmem>>, vector<9x128xf32>,
    %cst_402 = arith.constant 0.000000e+00 : f32
    %496 = vector.broadcast %cst_402 : f32 to vector<96x128xf32>
    %c0_403 = arith.constant 0 : index
    %c0_404 = arith.constant 0 : index
    %497 = vector.load %arg10[%c0_403, %c0_404] : memref<224x128xf32, #tpu.memory_space<vmem>>, vector<96x128xf32>
    %498 = arith.truncf %497 : vector<96x128xf32> to vector<96x128xbf16>
    %c0_405 = arith.constant 0 : index
    %c0_406 = arith.constant 0 : index
    %c0_407 = arith.constant 0 : index
    %499 = vector.load %arg4[%c0_405, %c0_406, %c0_407] : memref<9x128x128xbf16, #tpu.memory_space<vmem>>, vector<1x128x128xbf16>
    %500 = vector.shape_cast %499 : vector<1x128x128xbf16> to vector<128x128xbf16>
    %cst_408 = arith.constant dense<0.000000e+00> : vector<96x128xf32>
    %501 = tpu.matmul %498, %500, %cst_408 {dimension_numbers = #tpu.dot_dimension_numbers<[1], [0], [0], [1], [0, 0, 1, 1], [], []>} : vector<96x128xbf16>, vector<128x128xbf16>, vector<96x128xf32> -> vector<96x128xf32>
    %502 = arith.addf %496, %501 : vector<96x128xf32>
    %c1_409 = arith.constant 1 : index
    %c0_410 = arith.constant 0 : index
    %503 = vector.load %arg10[%c1_409, %c0_410] : memref<224x128xf32, #tpu.memory_space<vmem>>, vector<96x128xf32>
    %504 = arith.truncf %503 : vector<96x128xf32> to vector<96x128xbf16>
    %c1_411 = arith.constant 1 : index
    %c0_412 = arith.constant 0 : index
    %c0_413 = arith.constant 0 : index
    %505 = vector.load %arg4[%c1_411, %c0_412, %c0_413] : memref<9x128x128xbf16, #tpu.memory_space<vmem>>, vector<1x128x128xbf16>
    %506 = vector.shape_cast %505 : vector<1x128x128xbf16> to vector<128x128xbf16>
    %cst_414 = arith.constant dense<0.000000e+00> : vector<96x128xf32>
    %507 = tpu.matmul %504, %506, %cst_414 {dimension_numbers = #tpu.dot_dimension_numbers<[1], [0], [0], [1], [0, 0, 1, 1], [], []>} : vector<96x128xbf16>, vector<128x128xbf16>, vector<96x128xf32> -> vector<96x128xf32>
    %508 = arith.addf %502, %507 : vector<96x128xf32>
    %c2_415 = arith.constant 2 : index
    %c0_416 = arith.constant 0 : index
    %509 = vector.load %arg10[%c2_415, %c0_416] : memref<224x128xf32, #tpu.memory_space<vmem>>, vector<96x128xf32>
    %510 = arith.truncf %509 : vector<96x128xf32> to vector<96x128xbf16>
    %c2_417 = arith.constant 2 : index
    %c0_418 = arith.constant 0 : index
    %c0_419 = arith.constant 0 : index
    %511 = vector.load %arg4[%c2_417, %c0_418, %c0_419] : memref<9x128x128xbf16, #tpu.memory_space<vmem>>, vector<1x128x128xbf16>
    %512 = vector.shape_cast %511 : vector<1x128x128xbf16> to vector<128x128xbf16>
    %cst_420 = arith.constant dense<0.000000e+00> : vector<96x128xf32>
    %513 = tpu.matmul %510, %512, %cst_420 {dimension_numbers = #tpu.dot_dimension_numbers<[1], [0], [0], [1], [0, 0, 1, 1], [], []>} : vector<96x128xbf16>, vector<128x128xbf16>, vector<96x128xf32> -> vector<96x128xf32>
    %514 = arith.addf %508, %513 : vector<96x128xf32>
    %c14_421 = arith.constant 14 : index
    %c0_422 = arith.constant 0 : index
    %515 = vector.load %arg10[%c14_421, %c0_422] : memref<224x128xf32, #tpu.memory_space<vmem>>, vector<96x128xf32>
    %516 = arith.truncf %515 : vector<96x128xf32> to vector<96x128xbf16>
    %c3_423 = arith.constant 3 : index
    %c0_424 = arith.constant 0 : index
    %c0_425 = arith.constant 0 : index
    %517 = vector.load %arg4[%c3_423, %c0_424, %c0_425] : memref<9x128x128xbf16, #tpu.memory_space<vmem>>, vector<1x128x128xbf16>
    %518 = vector.shape_cast %517 : vector<1x128x128xbf16> to vector<128x128xbf16>
    %cst_426 = arith.constant dense<0.000000e+00> : vector<96x128xf32>
    %519 = tpu.matmul %516, %518, %cst_426 {dimension_numbers = #tpu.dot_dimension_numbers<[1], [0], [0], [1], [0, 0, 1, 1], [], []>} : vector<96x128xbf16>, vector<128x128xbf16>, vector<96x128xf32> -> vector<96x128xf32>
    %520 = arith.addf %514, %519 : vector<96x128xf32>
    %c15_427 = arith.constant 15 : index
    %c0_428 = arith.constant 0 : index
    %521 = vector.load %arg10[%c15_427, %c0_428] : memref<224x128xf32, #tpu.memory_space<vmem>>, vector<96x128xf32>
    %522 = arith.truncf %521 : vector<96x128xf32> to vector<96x128xbf16>
    %c4_429 = arith.constant 4 : index
    %c0_430 = arith.constant 0 : index
    %c0_431 = arith.constant 0 : index
    %523 = vector.load %arg4[%c4_429, %c0_430, %c0_431] : memref<9x128x128xbf16, #tpu.memory_space<vmem>>, vector<1x128x128xbf16>
    %524 = vector.shape_cast %523 : vector<1x128x128xbf16> to vector<128x128xbf16>
    %cst_432 = arith.constant dense<0.000000e+00> : vector<96x128xf32>
    %525 = tpu.matmul %522, %524, %cst_432 {dimension_numbers = #tpu.dot_dimension_numbers<[1], [0], [0], [1], [0, 0, 1, 1], [], []>} : vector<96x128xbf16>, vector<128x128xbf16>, vector<96x128xf32> -> vector<96x128xf32>
    %526 = arith.addf %520, %525 : vector<96x128xf32>
    %c16_433 = arith.constant 16 : index
    %c0_434 = arith.constant 0 : index
    %527 = vector.load %arg10[%c16_433, %c0_434] : memref<224x128xf32, #tpu.memory_space<vmem>>, vector<96x128xf32>
    %528 = arith.truncf %527 : vector<96x128xf32> to vector<96x128xbf16>
    %c5_435 = arith.constant 5 : index
    %c0_436 = arith.constant 0 : index
    %c0_437 = arith.constant 0 : index
    %529 = vector.load %arg4[%c5_435, %c0_436, %c0_437] : memref<9x128x128xbf16, #tpu.memory_space<vmem>>, vector<1x128x128xbf16>
    %530 = vector.shape_cast %529 : vector<1x128x128xbf16> to vector<128x128xbf16>
    %cst_438 = arith.constant dense<0.000000e+00> : vector<96x128xf32>
    %531 = tpu.matmul %528, %530, %cst_438 {dimension_numbers = #tpu.dot_dimension_numbers<[1], [0], [0], [1], [0, 0, 1, 1], [], []>} : vector<96x128xbf16>, vector<128x128xbf16>, vector<96x128xf32> -> vector<96x128xf32>
    %532 = arith.addf %526, %531 : vector<96x128xf32>
    %c28_439 = arith.constant 28 : index
    %c0_440 = arith.constant 0 : index
    %533 = vector.load %arg10[%c28_439, %c0_440] : memref<224x128xf32, #tpu.memory_space<vmem>>, vector<96x128xf32>
    %534 = arith.truncf %533 : vector<96x128xf32> to vector<96x128xbf16>
    %c6_441 = arith.constant 6 : index
    %c0_442 = arith.constant 0 : index
    %c0_443 = arith.constant 0 : index
    %535 = vector.load %arg4[%c6_441, %c0_442, %c0_443] : memref<9x128x128xbf16, #tpu.memory_space<vmem>>, vector<1x128x128xbf16>
    %536 = vector.shape_cast %535 : vector<1x128x128xbf16> to vector<128x128xbf16>
    %cst_444 = arith.constant dense<0.000000e+00> : vector<96x128xf32>
    %537 = tpu.matmul %534, %536, %cst_444 {dimension_numbers = #tpu.dot_dimension_numbers<[1], [0], [0], [1], [0, 0, 1, 1], [], []>} : vector<96x128xbf16>, vector<128x128xbf16>, vector<96x128xf32> -> vector<96x128xf32>
    %538 = arith.addf %532, %537 : vector<96x128xf32>
    %c29_445 = arith.constant 29 : index
    %c0_446 = arith.constant 0 : index
    %539 = vector.load %arg10[%c29_445, %c0_446] : memref<224x128xf32, #tpu.memory_space<vmem>>, vector<96x128xf32>
    %540 = arith.truncf %539 : vector<96x128xf32> to vector<96x128xbf16>
    %c7_447 = arith.constant 7 : index
    %c0_448 = arith.constant 0 : index
    %c0_449 = arith.constant 0 : index
    %541 = vector.load %arg4[%c7_447, %c0_448, %c0_449] : memref<9x128x128xbf16, #tpu.memory_space<vmem>>, vector<1x128x128xbf16>
    %542 = vector.shape_cast %541 : vector<1x128x128xbf16> to vector<128x128xbf16>
    %cst_450 = arith.constant dense<0.000000e+00> : vector<96x128xf32>
    %543 = tpu.matmul %540, %542, %cst_450 {dimension_numbers = #tpu.dot_dimension_numbers<[1], [0], [0], [1], [0, 0, 1, 1], [], []>} : vector<96x128xbf16>, vector<128x128xbf16>, vector<96x128xf32> -> vector<96x128xf32>
    %544 = arith.addf %538, %543 : vector<96x128xf32>
    %c30_451 = arith.constant 30 : index
    %c0_452 = arith.constant 0 : index
    %545 = vector.load %arg10[%c30_451, %c0_452] : memref<224x128xf32, #tpu.memory_space<vmem>>, vector<96x128xf32>
    %546 = arith.truncf %545 : vector<96x128xf32> to vector<96x128xbf16>
    %c8_453 = arith.constant 8 : index
    %c0_454 = arith.constant 0 : index
    %c0_455 = arith.constant 0 : index
    %547 = vector.load %arg4[%c8_453, %c0_454, %c0_455] : memref<9x128x128xbf16, #tpu.memory_space<vmem>>, vector<1x128x128xbf16>
    %548 = vector.shape_cast %547 : vector<1x128x128xbf16> to vector<128x128xbf16>
    %cst_456 = arith.constant dense<0.000000e+00> : vector<96x128xf32>
    %549 = tpu.matmul %546, %548, %cst_456 {dimension_numbers = #tpu.dot_dimension_numbers<[1], [0], [0], [1], [0, 0, 1, 1], [], []>} : vector<96x128xbf16>, vector<128x128xbf16>, vector<96x128xf32> -> vector<96x128xf32>
    %550 = arith.addf %544, %549 : vector<96x128xf32>
    %551 = vector.broadcast %5 : vector<1x128xf32> to vector<96x128xf32>
    %552 = arith.addf %550, %551 : vector<96x128xf32>
    %c0_457 = arith.constant 0 : index
    %c0_458 = arith.constant 0 : index
    %553 = vector.load %arg11[%c0_457, %c0_458] : memref<192x128xf32, #tpu.memory_space<vmem>>, vector<96x128xf32>
    tpu.vector_store %arg11[%c0_457, %c0_458], %552 {strides = array<i32>} : memref<192x128xf32, #tpu.memory_space<vmem>>, vector<96x128xf32>,
    %cst_459 = arith.constant 0.000000e+00 : f32
    %554 = vector.broadcast %cst_459 : f32 to vector<96x128xf32>
    %c96_460 = arith.constant 96 : index
    %c0_461 = arith.constant 0 : index
    %555 = vector.load %arg10[%c96_460, %c0_461] : memref<224x128xf32, #tpu.memory_space<vmem>>, vector<96x128xf32>
    %556 = arith.truncf %555 : vector<96x128xf32> to vector<96x128xbf16>
    %c0_462 = arith.constant 0 : index
    %c0_463 = arith.constant 0 : index
    %c0_464 = arith.constant 0 : index
    %557 = vector.load %arg4[%c0_462, %c0_463, %c0_464] : memref<9x128x128xbf16, #tpu.memory_space<vmem>>, vector<1x128x128xbf16>
    %558 = vector.shape_cast %557 : vector<1x128x128xbf16> to vector<128x128xbf16>
    %cst_465 = arith.constant dense<0.000000e+00> : vector<96x128xf32>
    %559 = tpu.matmul %556, %558, %cst_465 {dimension_numbers = #tpu.dot_dimension_numbers<[1], [0], [0], [1], [0, 0, 1, 1], [], []>} : vector<96x128xbf16>, vector<128x128xbf16>, vector<96x128xf32> -> vector<96x128xf32>
    %560 = arith.addf %554, %559 : vector<96x128xf32>
    %c97_466 = arith.constant 97 : index
    %c0_467 = arith.constant 0 : index
    %561 = vector.load %arg10[%c97_466, %c0_467] : memref<224x128xf32, #tpu.memory_space<vmem>>, vector<96x128xf32>
    %562 = arith.truncf %561 : vector<96x128xf32> to vector<96x128xbf16>
    %c1_468 = arith.constant 1 : index
    %c0_469 = arith.constant 0 : index
    %c0_470 = arith.constant 0 : index
    %563 = vector.load %arg4[%c1_468, %c0_469, %c0_470] : memref<9x128x128xbf16, #tpu.memory_space<vmem>>, vector<1x128x128xbf16>
    %564 = vector.shape_cast %563 : vector<1x128x128xbf16> to vector<128x128xbf16>
    %cst_471 = arith.constant dense<0.000000e+00> : vector<96x128xf32>
    %565 = tpu.matmul %562, %564, %cst_471 {dimension_numbers = #tpu.dot_dimension_numbers<[1], [0], [0], [1], [0, 0, 1, 1], [], []>} : vector<96x128xbf16>, vector<128x128xbf16>, vector<96x128xf32> -> vector<96x128xf32>
    %566 = arith.addf %560, %565 : vector<96x128xf32>
    %c98_472 = arith.constant 98 : index
    %c0_473 = arith.constant 0 : index
    %567 = vector.load %arg10[%c98_472, %c0_473] : memref<224x128xf32, #tpu.memory_space<vmem>>, vector<96x128xf32>
    %568 = arith.truncf %567 : vector<96x128xf32> to vector<96x128xbf16>
    %c2_474 = arith.constant 2 : index
    %c0_475 = arith.constant 0 : index
    %c0_476 = arith.constant 0 : index
    %569 = vector.load %arg4[%c2_474, %c0_475, %c0_476] : memref<9x128x128xbf16, #tpu.memory_space<vmem>>, vector<1x128x128xbf16>
    %570 = vector.shape_cast %569 : vector<1x128x128xbf16> to vector<128x128xbf16>
    %cst_477 = arith.constant dense<0.000000e+00> : vector<96x128xf32>
    %571 = tpu.matmul %568, %570, %cst_477 {dimension_numbers = #tpu.dot_dimension_numbers<[1], [0], [0], [1], [0, 0, 1, 1], [], []>} : vector<96x128xbf16>, vector<128x128xbf16>, vector<96x128xf32> -> vector<96x128xf32>
    %572 = arith.addf %566, %571 : vector<96x128xf32>
    %c110_478 = arith.constant 110 : index
    %c0_479 = arith.constant 0 : index
    %573 = vector.load %arg10[%c110_478, %c0_479] : memref<224x128xf32, #tpu.memory_space<vmem>>, vector<96x128xf32>
    %574 = arith.truncf %573 : vector<96x128xf32> to vector<96x128xbf16>
    %c3_480 = arith.constant 3 : index
    %c0_481 = arith.constant 0 : index
    %c0_482 = arith.constant 0 : index
    %575 = vector.load %arg4[%c3_480, %c0_481, %c0_482] : memref<9x128x128xbf16, #tpu.memory_space<vmem>>, vector<1x128x128xbf16>
    %576 = vector.shape_cast %575 : vector<1x128x128xbf16> to vector<128x128xbf16>
    %cst_483 = arith.constant dense<0.000000e+00> : vector<96x128xf32>
    %577 = tpu.matmul %574, %576, %cst_483 {dimension_numbers = #tpu.dot_dimension_numbers<[1], [0], [0], [1], [0, 0, 1, 1], [], []>} : vector<96x128xbf16>, vector<128x128xbf16>, vector<96x128xf32> -> vector<96x128xf32>
    %578 = arith.addf %572, %577 : vector<96x128xf32>
    %c111_484 = arith.constant 111 : index
    %c0_485 = arith.constant 0 : index
    %579 = vector.load %arg10[%c111_484, %c0_485] : memref<224x128xf32, #tpu.memory_space<vmem>>, vector<96x128xf32>
    %580 = arith.truncf %579 : vector<96x128xf32> to vector<96x128xbf16>
    %c4_486 = arith.constant 4 : index
    %c0_487 = arith.constant 0 : index
    %c0_488 = arith.constant 0 : index
    %581 = vector.load %arg4[%c4_486, %c0_487, %c0_488] : memref<9x128x128xbf16, #tpu.memory_space<vmem>>, vector<1x128x128xbf16>
    %582 = vector.shape_cast %581 : vector<1x128x128xbf16> to vector<128x128xbf16>
    %cst_489 = arith.constant dense<0.000000e+00> : vector<96x128xf32>
    %583 = tpu.matmul %580, %582, %cst_489 {dimension_numbers = #tpu.dot_dimension_numbers<[1], [0], [0], [1], [0, 0, 1, 1], [], []>} : vector<96x128xbf16>, vector<128x128xbf16>, vector<96x128xf32> -> vector<96x128xf32>
    %584 = arith.addf %578, %583 : vector<96x128xf32>
    %c112_490 = arith.constant 112 : index
    %c0_491 = arith.constant 0 : index
    %585 = vector.load %arg10[%c112_490, %c0_491] : memref<224x128xf32, #tpu.memory_space<vmem>>, vector<96x128xf32>
    %586 = arith.truncf %585 : vector<96x128xf32> to vector<96x128xbf16>
    %c5_492 = arith.constant 5 : index
    %c0_493 = arith.constant 0 : index
    %c0_494 = arith.constant 0 : index
    %587 = vector.load %arg4[%c5_492, %c0_493, %c0_494] : memref<9x128x128xbf16, #tpu.memory_space<vmem>>, vector<1x128x128xbf16>
    %588 = vector.shape_cast %587 : vector<1x128x128xbf16> to vector<128x128xbf16>
    %cst_495 = arith.constant dense<0.000000e+00> : vector<96x128xf32>
    %589 = tpu.matmul %586, %588, %cst_495 {dimension_numbers = #tpu.dot_dimension_numbers<[1], [0], [0], [1], [0, 0, 1, 1], [], []>} : vector<96x128xbf16>, vector<128x128xbf16>, vector<96x128xf32> -> vector<96x128xf32>
    %590 = arith.addf %584, %589 : vector<96x128xf32>
    %c124_496 = arith.constant 124 : index
    %c0_497 = arith.constant 0 : index
    %591 = vector.load %arg10[%c124_496, %c0_497] : memref<224x128xf32, #tpu.memory_space<vmem>>, vector<96x128xf32>
    %592 = arith.truncf %591 : vector<96x128xf32> to vector<96x128xbf16>
    %c6_498 = arith.constant 6 : index
    %c0_499 = arith.constant 0 : index
    %c0_500 = arith.constant 0 : index
    %593 = vector.load %arg4[%c6_498, %c0_499, %c0_500] : memref<9x128x128xbf16, #tpu.memory_space<vmem>>, vector<1x128x128xbf16>
    %594 = vector.shape_cast %593 : vector<1x128x128xbf16> to vector<128x128xbf16>
    %cst_501 = arith.constant dense<0.000000e+00> : vector<96x128xf32>
    %595 = tpu.matmul %592, %594, %cst_501 {dimension_numbers = #tpu.dot_dimension_numbers<[1], [0], [0], [1], [0, 0, 1, 1], [], []>} : vector<96x128xbf16>, vector<128x128xbf16>, vector<96x128xf32> -> vector<96x128xf32>
    %596 = arith.addf %590, %595 : vector<96x128xf32>
    %c125_502 = arith.constant 125 : index
    %c0_503 = arith.constant 0 : index
    %597 = vector.load %arg10[%c125_502, %c0_503] : memref<224x128xf32, #tpu.memory_space<vmem>>, vector<96x128xf32>
    %598 = arith.truncf %597 : vector<96x128xf32> to vector<96x128xbf16>
    %c7_504 = arith.constant 7 : index
    %c0_505 = arith.constant 0 : index
    %c0_506 = arith.constant 0 : index
    %599 = vector.load %arg4[%c7_504, %c0_505, %c0_506] : memref<9x128x128xbf16, #tpu.memory_space<vmem>>, vector<1x128x128xbf16>
    %600 = vector.shape_cast %599 : vector<1x128x128xbf16> to vector<128x128xbf16>
    %cst_507 = arith.constant dense<0.000000e+00> : vector<96x128xf32>
    %601 = tpu.matmul %598, %600, %cst_507 {dimension_numbers = #tpu.dot_dimension_numbers<[1], [0], [0], [1], [0, 0, 1, 1], [], []>} : vector<96x128xbf16>, vector<128x128xbf16>, vector<96x128xf32> -> vector<96x128xf32>
    %602 = arith.addf %596, %601 : vector<96x128xf32>
    %c126_508 = arith.constant 126 : index
    %c0_509 = arith.constant 0 : index
    %603 = vector.load %arg10[%c126_508, %c0_509] : memref<224x128xf32, #tpu.memory_space<vmem>>, vector<96x128xf32>
    %604 = arith.truncf %603 : vector<96x128xf32> to vector<96x128xbf16>
    %c8_510 = arith.constant 8 : index
    %c0_511 = arith.constant 0 : index
    %c0_512 = arith.constant 0 : index
    %605 = vector.load %arg4[%c8_510, %c0_511, %c0_512] : memref<9x128x128xbf16, #tpu.memory_space<vmem>>, vector<1x128x128xbf16>
    %606 = vector.shape_cast %605 : vector<1x128x128xbf16> to vector<128x128xbf16>
    %cst_513 = arith.constant dense<0.000000e+00> : vector<96x128xf32>
    %607 = tpu.matmul %604, %606, %cst_513 {dimension_numbers = #tpu.dot_dimension_numbers<[1], [0], [0], [1], [0, 0, 1, 1], [], []>} : vector<96x128xbf16>, vector<128x128xbf16>, vector<96x128xf32> -> vector<96x128xf32>
    %608 = arith.addf %602, %607 : vector<96x128xf32>
    %609 = vector.broadcast %5 : vector<1x128xf32> to vector<96x128xf32>
    %610 = arith.addf %608, %609 : vector<96x128xf32>
    %c96_514 = arith.constant 96 : index
    %c0_515 = arith.constant 0 : index
    %611 = vector.load %arg11[%c96_514, %c0_515] : memref<192x128xf32, #tpu.memory_space<vmem>>, vector<96x128xf32>
    tpu.vector_store %arg11[%c96_514, %c0_515], %610 {strides = array<i32>} : memref<192x128xf32, #tpu.memory_space<vmem>>, vector<96x128xf32>,
    %c0_516 = arith.constant 0 : index
    %c0_517 = arith.constant 0 : index
    %612 = tpu.strided_load %arg11[%c0_516, %c0_517] {strides = array<i32: 2, 1>} : memref<192x128xf32, #tpu.memory_space<vmem>>, vector<5x128xf32>
    %c1_518 = arith.constant 1 : index
    %c0_519 = arith.constant 0 : index
    %613 = tpu.strided_load %arg11[%c1_518, %c0_519] {strides = array<i32: 2, 1>} : memref<192x128xf32, #tpu.memory_space<vmem>>, vector<5x128xf32>
    %614 = arith.maximumf %612, %613 : vector<5x128xf32>
    %c14_520 = arith.constant 14 : index
    %c0_521 = arith.constant 0 : index
    %615 = tpu.strided_load %arg11[%c14_520, %c0_521] {strides = array<i32: 2, 1>} : memref<192x128xf32, #tpu.memory_space<vmem>>, vector<5x128xf32>
    %c15_522 = arith.constant 15 : index
    %c0_523 = arith.constant 0 : index
    %616 = tpu.strided_load %arg11[%c15_522, %c0_523] {strides = array<i32: 2, 1>} : memref<192x128xf32, #tpu.memory_space<vmem>>, vector<5x128xf32>
    %617 = arith.maximumf %615, %616 : vector<5x128xf32>
    %618 = arith.maximumf %614, %617 : vector<5x128xf32>
    %cst_524 = arith.constant 0.000000e+00 : f32
    %619 = vector.broadcast %cst_524 : f32 to vector<5x128xf32>
    %620 = arith.maximumf %618, %619 : vector<5x128xf32>
    %c22_525 = arith.constant 22 : index
    %c0_526 = arith.constant 0 : index
    %621 = vector.load %arg12[%c22_525, %c0_526] : memref<120x128xf32, #tpu.memory_space<vmem>>, vector<5x128xf32>
    tpu.vector_store %arg12[%c22_525, %c0_526], %620 {strides = array<i32>} : memref<120x128xf32, #tpu.memory_space<vmem>>, vector<5x128xf32>,
    %c28_527 = arith.constant 28 : index
    %c0_528 = arith.constant 0 : index
    %622 = tpu.strided_load %arg11[%c28_527, %c0_528] {strides = array<i32: 2, 1>} : memref<192x128xf32, #tpu.memory_space<vmem>>, vector<5x128xf32>
    %c29_529 = arith.constant 29 : index
    %c0_530 = arith.constant 0 : index
    %623 = tpu.strided_load %arg11[%c29_529, %c0_530] {strides = array<i32: 2, 1>} : memref<192x128xf32, #tpu.memory_space<vmem>>, vector<5x128xf32>
    %624 = arith.maximumf %622, %623 : vector<5x128xf32>
    %c42_531 = arith.constant 42 : index
    %c0_532 = arith.constant 0 : index
    %625 = tpu.strided_load %arg11[%c42_531, %c0_532] {strides = array<i32: 2, 1>} : memref<192x128xf32, #tpu.memory_space<vmem>>, vector<5x128xf32>
    %c43_533 = arith.constant 43 : index
    %c0_534 = arith.constant 0 : index
    %626 = tpu.strided_load %arg11[%c43_533, %c0_534] {strides = array<i32: 2, 1>} : memref<192x128xf32, #tpu.memory_space<vmem>>, vector<5x128xf32>
    %627 = arith.maximumf %625, %626 : vector<5x128xf32>
    %628 = arith.maximumf %624, %627 : vector<5x128xf32>
    %cst_535 = arith.constant 0.000000e+00 : f32
    %629 = vector.broadcast %cst_535 : f32 to vector<5x128xf32>
    %630 = arith.maximumf %628, %629 : vector<5x128xf32>
    %c32_536 = arith.constant 32 : index
    %c0_537 = arith.constant 0 : index
    %631 = vector.load %arg12[%c32_536, %c0_537] : memref<120x128xf32, #tpu.memory_space<vmem>>, vector<5x128xf32>
    tpu.vector_store %arg12[%c32_536, %c0_537], %630 {strides = array<i32>} : memref<120x128xf32, #tpu.memory_space<vmem>>, vector<5x128xf32>,
    %c56_538 = arith.constant 56 : index
    %c0_539 = arith.constant 0 : index
    %632 = tpu.strided_load %arg11[%c56_538, %c0_539] {strides = array<i32: 2, 1>} : memref<192x128xf32, #tpu.memory_space<vmem>>, vector<5x128xf32>
    %c57_540 = arith.constant 57 : index
    %c0_541 = arith.constant 0 : index
    %633 = tpu.strided_load %arg11[%c57_540, %c0_541] {strides = array<i32: 2, 1>} : memref<192x128xf32, #tpu.memory_space<vmem>>, vector<5x128xf32>
    %634 = arith.maximumf %632, %633 : vector<5x128xf32>
    %c70_542 = arith.constant 70 : index
    %c0_543 = arith.constant 0 : index
    %635 = tpu.strided_load %arg11[%c70_542, %c0_543] {strides = array<i32: 2, 1>} : memref<192x128xf32, #tpu.memory_space<vmem>>, vector<5x128xf32>
    %c71_544 = arith.constant 71 : index
    %c0_545 = arith.constant 0 : index
    %636 = tpu.strided_load %arg11[%c71_544, %c0_545] {strides = array<i32: 2, 1>} : memref<192x128xf32, #tpu.memory_space<vmem>>, vector<5x128xf32>
    %637 = arith.maximumf %635, %636 : vector<5x128xf32>
    %638 = arith.maximumf %634, %637 : vector<5x128xf32>
    %cst_546 = arith.constant 0.000000e+00 : f32
    %639 = vector.broadcast %cst_546 : f32 to vector<5x128xf32>
    %640 = arith.maximumf %638, %639 : vector<5x128xf32>
    %c42_547 = arith.constant 42 : index
    %c0_548 = arith.constant 0 : index
    %641 = vector.load %arg12[%c42_547, %c0_548] : memref<120x128xf32, #tpu.memory_space<vmem>>, vector<5x128xf32>
    tpu.vector_store %arg12[%c42_547, %c0_548], %640 {strides = array<i32>} : memref<120x128xf32, #tpu.memory_space<vmem>>, vector<5x128xf32>,
    %c84_549 = arith.constant 84 : index
    %c0_550 = arith.constant 0 : index
    %642 = tpu.strided_load %arg11[%c84_549, %c0_550] {strides = array<i32: 2, 1>} : memref<192x128xf32, #tpu.memory_space<vmem>>, vector<5x128xf32>
    %c85_551 = arith.constant 85 : index
    %c0_552 = arith.constant 0 : index
    %643 = tpu.strided_load %arg11[%c85_551, %c0_552] {strides = array<i32: 2, 1>} : memref<192x128xf32, #tpu.memory_space<vmem>>, vector<5x128xf32>
    %644 = arith.maximumf %642, %643 : vector<5x128xf32>
    %c98_553 = arith.constant 98 : index
    %c0_554 = arith.constant 0 : index
    %645 = tpu.strided_load %arg11[%c98_553, %c0_554] {strides = array<i32: 2, 1>} : memref<192x128xf32, #tpu.memory_space<vmem>>, vector<5x128xf32>
    %c99_555 = arith.constant 99 : index
    %c0_556 = arith.constant 0 : index
    %646 = tpu.strided_load %arg11[%c99_555, %c0_556] {strides = array<i32: 2, 1>} : memref<192x128xf32, #tpu.memory_space<vmem>>, vector<5x128xf32>
    %647 = arith.maximumf %645, %646 : vector<5x128xf32>
    %648 = arith.maximumf %644, %647 : vector<5x128xf32>
    %cst_557 = arith.constant 0.000000e+00 : f32
    %649 = vector.broadcast %cst_557 : f32 to vector<5x128xf32>
    %650 = arith.maximumf %648, %649 : vector<5x128xf32>
    %c52_558 = arith.constant 52 : index
    %c0_559 = arith.constant 0 : index
    %651 = vector.load %arg12[%c52_558, %c0_559] : memref<120x128xf32, #tpu.memory_space<vmem>>, vector<5x128xf32>
    tpu.vector_store %arg12[%c52_558, %c0_559], %650 {strides = array<i32>} : memref<120x128xf32, #tpu.memory_space<vmem>>, vector<5x128xf32>,
    %c112_560 = arith.constant 112 : index
    %c0_561 = arith.constant 0 : index
    %652 = tpu.strided_load %arg11[%c112_560, %c0_561] {strides = array<i32: 2, 1>} : memref<192x128xf32, #tpu.memory_space<vmem>>, vector<5x128xf32>
    %c113_562 = arith.constant 113 : index
    %c0_563 = arith.constant 0 : index
    %653 = tpu.strided_load %arg11[%c113_562, %c0_563] {strides = array<i32: 2, 1>} : memref<192x128xf32, #tpu.memory_space<vmem>>, vector<5x128xf32>
    %654 = arith.maximumf %652, %653 : vector<5x128xf32>
    %c126_564 = arith.constant 126 : index
    %c0_565 = arith.constant 0 : index
    %655 = tpu.strided_load %arg11[%c126_564, %c0_565] {strides = array<i32: 2, 1>} : memref<192x128xf32, #tpu.memory_space<vmem>>, vector<5x128xf32>
    %c127_566 = arith.constant 127 : index
    %c0_567 = arith.constant 0 : index
    %656 = tpu.strided_load %arg11[%c127_566, %c0_567] {strides = array<i32: 2, 1>} : memref<192x128xf32, #tpu.memory_space<vmem>>, vector<5x128xf32>
    %657 = arith.maximumf %655, %656 : vector<5x128xf32>
    %658 = arith.maximumf %654, %657 : vector<5x128xf32>
    %cst_568 = arith.constant 0.000000e+00 : f32
    %659 = vector.broadcast %cst_568 : f32 to vector<5x128xf32>
    %660 = arith.maximumf %658, %659 : vector<5x128xf32>
    %c62_569 = arith.constant 62 : index
    %c0_570 = arith.constant 0 : index
    %661 = vector.load %arg12[%c62_569, %c0_570] : memref<120x128xf32, #tpu.memory_space<vmem>>, vector<5x128xf32>
    tpu.vector_store %arg12[%c62_569, %c0_570], %660 {strides = array<i32>} : memref<120x128xf32, #tpu.memory_space<vmem>>, vector<5x128xf32>,
    %cst_571 = arith.constant 0.000000e+00 : f32
    %662 = vector.broadcast %cst_571 : f32 to vector<96x128xf32>
    %c0_572 = arith.constant 0 : index
    %c0_573 = arith.constant 0 : index
    %663 = vector.load %arg12[%c0_572, %c0_573] : memref<120x128xf32, #tpu.memory_space<vmem>>, vector<96x128xf32>
    %664 = arith.truncf %663 : vector<96x128xf32> to vector<96x128xbf16>
    %c0_574 = arith.constant 0 : index
    %c0_575 = arith.constant 0 : index
    %c0_576 = arith.constant 0 : index
    %665 = vector.load %arg6[%c0_574, %c0_575, %c0_576] : memref<9x128x128xbf16, #tpu.memory_space<vmem>>, vector<1x128x128xbf16>
    %666 = vector.shape_cast %665 : vector<1x128x128xbf16> to vector<128x128xbf16>
    %cst_577 = arith.constant dense<0.000000e+00> : vector<96x128xf32>
    %667 = tpu.matmul %664, %666, %cst_577 {dimension_numbers = #tpu.dot_dimension_numbers<[1], [0], [0], [1], [0, 0, 1, 1], [], []>} : vector<96x128xbf16>, vector<128x128xbf16>, vector<96x128xf32> -> vector<96x128xf32>
    %668 = arith.addf %662, %667 : vector<96x128xf32>
    %c1_578 = arith.constant 1 : index
    %c0_579 = arith.constant 0 : index
    %669 = vector.load %arg12[%c1_578, %c0_579] : memref<120x128xf32, #tpu.memory_space<vmem>>, vector<96x128xf32>
    %670 = arith.truncf %669 : vector<96x128xf32> to vector<96x128xbf16>
    %c1_580 = arith.constant 1 : index
    %c0_581 = arith.constant 0 : index
    %c0_582 = arith.constant 0 : index
    %671 = vector.load %arg6[%c1_580, %c0_581, %c0_582] : memref<9x128x128xbf16, #tpu.memory_space<vmem>>, vector<1x128x128xbf16>
    %672 = vector.shape_cast %671 : vector<1x128x128xbf16> to vector<128x128xbf16>
    %cst_583 = arith.constant dense<0.000000e+00> : vector<96x128xf32>
    %673 = tpu.matmul %670, %672, %cst_583 {dimension_numbers = #tpu.dot_dimension_numbers<[1], [0], [0], [1], [0, 0, 1, 1], [], []>} : vector<96x128xbf16>, vector<128x128xbf16>, vector<96x128xf32> -> vector<96x128xf32>
    %674 = arith.addf %668, %673 : vector<96x128xf32>
    %c2_584 = arith.constant 2 : index
    %c0_585 = arith.constant 0 : index
    %675 = vector.load %arg12[%c2_584, %c0_585] : memref<120x128xf32, #tpu.memory_space<vmem>>, vector<96x128xf32>
    %676 = arith.truncf %675 : vector<96x128xf32> to vector<96x128xbf16>
    %c2_586 = arith.constant 2 : index
    %c0_587 = arith.constant 0 : index
    %c0_588 = arith.constant 0 : index
    %677 = vector.load %arg6[%c2_586, %c0_587, %c0_588] : memref<9x128x128xbf16, #tpu.memory_space<vmem>>, vector<1x128x128xbf16>
    %678 = vector.shape_cast %677 : vector<1x128x128xbf16> to vector<128x128xbf16>
    %cst_589 = arith.constant dense<0.000000e+00> : vector<96x128xf32>
    %679 = tpu.matmul %676, %678, %cst_589 {dimension_numbers = #tpu.dot_dimension_numbers<[1], [0], [0], [1], [0, 0, 1, 1], [], []>} : vector<96x128xbf16>, vector<128x128xbf16>, vector<96x128xf32> -> vector<96x128xf32>
    %680 = arith.addf %674, %679 : vector<96x128xf32>
    %c10_590 = arith.constant 10 : index
    %c0_591 = arith.constant 0 : index
    %681 = vector.load %arg12[%c10_590, %c0_591] : memref<120x128xf32, #tpu.memory_space<vmem>>, vector<96x128xf32>
    %682 = arith.truncf %681 : vector<96x128xf32> to vector<96x128xbf16>
    %c3_592 = arith.constant 3 : index
    %c0_593 = arith.constant 0 : index
    %c0_594 = arith.constant 0 : index
    %683 = vector.load %arg6[%c3_592, %c0_593, %c0_594] : memref<9x128x128xbf16, #tpu.memory_space<vmem>>, vector<1x128x128xbf16>
    %684 = vector.shape_cast %683 : vector<1x128x128xbf16> to vector<128x128xbf16>
    %cst_595 = arith.constant dense<0.000000e+00> : vector<96x128xf32>
    %685 = tpu.matmul %682, %684, %cst_595 {dimension_numbers = #tpu.dot_dimension_numbers<[1], [0], [0], [1], [0, 0, 1, 1], [], []>} : vector<96x128xbf16>, vector<128x128xbf16>, vector<96x128xf32> -> vector<96x128xf32>
    %686 = arith.addf %680, %685 : vector<96x128xf32>
    %c11_596 = arith.constant 11 : index
    %c0_597 = arith.constant 0 : index
    %687 = vector.load %arg12[%c11_596, %c0_597] : memref<120x128xf32, #tpu.memory_space<vmem>>, vector<96x128xf32>
    %688 = arith.truncf %687 : vector<96x128xf32> to vector<96x128xbf16>
    %c4_598 = arith.constant 4 : index
    %c0_599 = arith.constant 0 : index
    %c0_600 = arith.constant 0 : index
    %689 = vector.load %arg6[%c4_598, %c0_599, %c0_600] : memref<9x128x128xbf16, #tpu.memory_space<vmem>>, vector<1x128x128xbf16>
    %690 = vector.shape_cast %689 : vector<1x128x128xbf16> to vector<128x128xbf16>
    %cst_601 = arith.constant dense<0.000000e+00> : vector<96x128xf32>
    %691 = tpu.matmul %688, %690, %cst_601 {dimension_numbers = #tpu.dot_dimension_numbers<[1], [0], [0], [1], [0, 0, 1, 1], [], []>} : vector<96x128xbf16>, vector<128x128xbf16>, vector<96x128xf32> -> vector<96x128xf32>
    %692 = arith.addf %686, %691 : vector<96x128xf32>
    %c12_602 = arith.constant 12 : index
    %c0_603 = arith.constant 0 : index
    %693 = vector.load %arg12[%c12_602, %c0_603] : memref<120x128xf32, #tpu.memory_space<vmem>>, vector<96x128xf32>
    %694 = arith.truncf %693 : vector<96x128xf32> to vector<96x128xbf16>
    %c5_604 = arith.constant 5 : index
    %c0_605 = arith.constant 0 : index
    %c0_606 = arith.constant 0 : index
    %695 = vector.load %arg6[%c5_604, %c0_605, %c0_606] : memref<9x128x128xbf16, #tpu.memory_space<vmem>>, vector<1x128x128xbf16>
    %696 = vector.shape_cast %695 : vector<1x128x128xbf16> to vector<128x128xbf16>
    %cst_607 = arith.constant dense<0.000000e+00> : vector<96x128xf32>
    %697 = tpu.matmul %694, %696, %cst_607 {dimension_numbers = #tpu.dot_dimension_numbers<[1], [0], [0], [1], [0, 0, 1, 1], [], []>} : vector<96x128xbf16>, vector<128x128xbf16>, vector<96x128xf32> -> vector<96x128xf32>
    %698 = arith.addf %692, %697 : vector<96x128xf32>
    %c20_608 = arith.constant 20 : index
    %c0_609 = arith.constant 0 : index
    %699 = vector.load %arg12[%c20_608, %c0_609] : memref<120x128xf32, #tpu.memory_space<vmem>>, vector<96x128xf32>
    %700 = arith.truncf %699 : vector<96x128xf32> to vector<96x128xbf16>
    %c6_610 = arith.constant 6 : index
    %c0_611 = arith.constant 0 : index
    %c0_612 = arith.constant 0 : index
    %701 = vector.load %arg6[%c6_610, %c0_611, %c0_612] : memref<9x128x128xbf16, #tpu.memory_space<vmem>>, vector<1x128x128xbf16>
    %702 = vector.shape_cast %701 : vector<1x128x128xbf16> to vector<128x128xbf16>
    %cst_613 = arith.constant dense<0.000000e+00> : vector<96x128xf32>
    %703 = tpu.matmul %700, %702, %cst_613 {dimension_numbers = #tpu.dot_dimension_numbers<[1], [0], [0], [1], [0, 0, 1, 1], [], []>} : vector<96x128xbf16>, vector<128x128xbf16>, vector<96x128xf32> -> vector<96x128xf32>
    %704 = arith.addf %698, %703 : vector<96x128xf32>
    %c21_614 = arith.constant 21 : index
    %c0_615 = arith.constant 0 : index
    %705 = vector.load %arg12[%c21_614, %c0_615] : memref<120x128xf32, #tpu.memory_space<vmem>>, vector<96x128xf32>
    %706 = arith.truncf %705 : vector<96x128xf32> to vector<96x128xbf16>
    %c7_616 = arith.constant 7 : index
    %c0_617 = arith.constant 0 : index
    %c0_618 = arith.constant 0 : index
    %707 = vector.load %arg6[%c7_616, %c0_617, %c0_618] : memref<9x128x128xbf16, #tpu.memory_space<vmem>>, vector<1x128x128xbf16>
    %708 = vector.shape_cast %707 : vector<1x128x128xbf16> to vector<128x128xbf16>
    %cst_619 = arith.constant dense<0.000000e+00> : vector<96x128xf32>
    %709 = tpu.matmul %706, %708, %cst_619 {dimension_numbers = #tpu.dot_dimension_numbers<[1], [0], [0], [1], [0, 0, 1, 1], [], []>} : vector<96x128xbf16>, vector<128x128xbf16>, vector<96x128xf32> -> vector<96x128xf32>
    %710 = arith.addf %704, %709 : vector<96x128xf32>
    %c22_620 = arith.constant 22 : index
    %c0_621 = arith.constant 0 : index
    %711 = vector.load %arg12[%c22_620, %c0_621] : memref<120x128xf32, #tpu.memory_space<vmem>>, vector<96x128xf32>
    %712 = arith.truncf %711 : vector<96x128xf32> to vector<96x128xbf16>
    %c8_622 = arith.constant 8 : index
    %c0_623 = arith.constant 0 : index
    %c0_624 = arith.constant 0 : index
    %713 = vector.load %arg6[%c8_622, %c0_623, %c0_624] : memref<9x128x128xbf16, #tpu.memory_space<vmem>>, vector<1x128x128xbf16>
    %714 = vector.shape_cast %713 : vector<1x128x128xbf16> to vector<128x128xbf16>
    %cst_625 = arith.constant dense<0.000000e+00> : vector<96x128xf32>
    %715 = tpu.matmul %712, %714, %cst_625 {dimension_numbers = #tpu.dot_dimension_numbers<[1], [0], [0], [1], [0, 0, 1, 1], [], []>} : vector<96x128xbf16>, vector<128x128xbf16>, vector<96x128xf32> -> vector<96x128xf32>
    %716 = arith.addf %710, %715 : vector<96x128xf32>
    %717 = vector.broadcast %6 : vector<1x128xf32> to vector<96x128xf32>
    %718 = arith.addf %716, %717 : vector<96x128xf32>
    %c0_626 = arith.constant 0 : index
    %c0_627 = arith.constant 0 : index
    %719 = vector.load %arg13[%c0_626, %c0_627] : memref<96x128xf32, #tpu.memory_space<vmem>>, vector<96x128xf32>
    tpu.vector_store %arg13[%c0_626, %c0_627], %718 {strides = array<i32>} : memref<96x128xf32, #tpu.memory_space<vmem>>, vector<96x128xf32>,
    %c0_628 = arith.constant 0 : index
    %c0_629 = arith.constant 0 : index
    %720 = vector.load %arg13[%c0_628, %c0_629] : memref<96x128xf32, #tpu.memory_space<vmem>>, vector<7x128xf32>
    %c10_630 = arith.constant 10 : index
    %c0_631 = arith.constant 0 : index
    %721 = vector.load %arg13[%c10_630, %c0_631] : memref<96x128xf32, #tpu.memory_space<vmem>>, vector<7x128xf32>
    %c20_632 = arith.constant 20 : index
    %c0_633 = arith.constant 0 : index
    %722 = vector.load %arg13[%c20_632, %c0_633] : memref<96x128xf32, #tpu.memory_space<vmem>>, vector<7x128xf32>
    %c30_634 = arith.constant 30 : index
    %c0_635 = arith.constant 0 : index
    %723 = vector.load %arg13[%c30_634, %c0_635] : memref<96x128xf32, #tpu.memory_space<vmem>>, vector<7x128xf32>
    %c40_636 = arith.constant 40 : index
    %c0_637 = arith.constant 0 : index
    %724 = vector.load %arg13[%c40_636, %c0_637] : memref<96x128xf32, #tpu.memory_space<vmem>>, vector<7x128xf32>
    %c50_638 = arith.constant 50 : index
    %c0_639 = arith.constant 0 : index
    %725 = vector.load %arg13[%c50_638, %c0_639] : memref<96x128xf32, #tpu.memory_space<vmem>>, vector<7x128xf32>
    %c60_640 = arith.constant 60 : index
    %c0_641 = arith.constant 0 : index
    %726 = vector.load %arg13[%c60_640, %c0_641] : memref<96x128xf32, #tpu.memory_space<vmem>>, vector<7x128xf32>
    %727 = tpu.concatenate %720, %721, %722, %723, %724, %725, %726 in 0 : vector<7x128xf32>, vector<7x128xf32>, vector<7x128xf32>, vector<7x128xf32>, vector<7x128xf32>, vector<7x128xf32>, vector<7x128xf32> -> vector<49x128xf32>
    %728 = vector.extract_strided_slice %727 {offsets = [0, 0], sizes = [49, 32], strides = [1, 1]} : vector<49x128xf32> to vector<49x32xf32>
    %cst_642 = arith.constant dense<0xFF800000> : vector<49xf32>
    %729 = vector.multi_reduction <maximumf>, %728, %cst_642 [1] : vector<49x32xf32> to vector<49xf32>
    %730 = vector.shape_cast %729 : vector<49xf32> to vector<49x1xf32>
    %731 = vector.broadcast %730 : vector<49x1xf32> to vector<49x32xf32>
    %732 = arith.subf %728, %731 : vector<49x32xf32>
    %733 = math.exp %732 : vector<49x32xf32>
    %cst_643 = arith.constant dense<0.000000e+00> : vector<49xf32>
    %734 = vector.multi_reduction <add>, %733, %cst_643 [1] : vector<49x32xf32> to vector<49xf32>
    %735 = vector.shape_cast %734 : vector<49xf32> to vector<49x1xf32>
    %736 = math.log %735 : vector<49x1xf32>
    %737 = arith.addf %730, %736 : vector<49x1xf32>
    %738 = vector.broadcast %737 : vector<49x1xf32> to vector<49x32xf32>
    %739 = arith.subf %728, %738 : vector<49x32xf32>
    %740 = vector.extract_strided_slice %727 {offsets = [0, 32], sizes = [49, 32], strides = [1, 1]} : vector<49x128xf32> to vector<49x32xf32>
    %cst_644 = arith.constant dense<0xFF800000> : vector<49xf32>
    %741 = vector.multi_reduction <maximumf>, %740, %cst_644 [1] : vector<49x32xf32> to vector<49xf32>
    %742 = vector.shape_cast %741 : vector<49xf32> to vector<49x1xf32>
    %743 = vector.broadcast %742 : vector<49x1xf32> to vector<49x32xf32>
    %744 = arith.subf %740, %743 : vector<49x32xf32>
    %745 = math.exp %744 : vector<49x32xf32>
    %cst_645 = arith.constant dense<0.000000e+00> : vector<49xf32>
    %746 = vector.multi_reduction <add>, %745, %cst_645 [1] : vector<49x32xf32> to vector<49xf32>
    %747 = vector.shape_cast %746 : vector<49xf32> to vector<49x1xf32>
    %748 = math.log %747 : vector<49x1xf32>
    %749 = arith.addf %742, %748 : vector<49x1xf32>
    %750 = vector.broadcast %749 : vector<49x1xf32> to vector<49x32xf32>
    %751 = arith.subf %740, %750 : vector<49x32xf32>
    %752 = vector.extract_strided_slice %727 {offsets = [0, 64], sizes = [49, 32], strides = [1, 1]} : vector<49x128xf32> to vector<49x32xf32>
    %cst_646 = arith.constant dense<0xFF800000> : vector<49xf32>
    %753 = vector.multi_reduction <maximumf>, %752, %cst_646 [1] : vector<49x32xf32> to vector<49xf32>
    %754 = vector.shape_cast %753 : vector<49xf32> to vector<49x1xf32>
    %755 = vector.broadcast %754 : vector<49x1xf32> to vector<49x32xf32>
    %756 = arith.subf %752, %755 : vector<49x32xf32>
    %757 = math.exp %756 : vector<49x32xf32>
    %cst_647 = arith.constant dense<0.000000e+00> : vector<49xf32>
    %758 = vector.multi_reduction <add>, %757, %cst_647 [1] : vector<49x32xf32> to vector<49xf32>
    %759 = vector.shape_cast %758 : vector<49xf32> to vector<49x1xf32>
    %760 = math.log %759 : vector<49x1xf32>
    %761 = arith.addf %754, %760 : vector<49x1xf32>
    %762 = vector.broadcast %761 : vector<49x1xf32> to vector<49x32xf32>
    %763 = arith.subf %752, %762 : vector<49x32xf32>
    %764 = vector.extract_strided_slice %727 {offsets = [0, 96], sizes = [49, 32], strides = [1, 1]} : vector<49x128xf32> to vector<49x32xf32>
    %cst_648 = arith.constant dense<0xFF800000> : vector<49xf32>
    %765 = vector.multi_reduction <maximumf>, %764, %cst_648 [1] : vector<49x32xf32> to vector<49xf32>
    %766 = vector.shape_cast %765 : vector<49xf32> to vector<49x1xf32>
    %767 = vector.broadcast %766 : vector<49x1xf32> to vector<49x32xf32>
    %768 = arith.subf %764, %767 : vector<49x32xf32>
    %769 = math.exp %768 : vector<49x32xf32>
    %cst_649 = arith.constant dense<0.000000e+00> : vector<49xf32>
    %770 = vector.multi_reduction <add>, %769, %cst_649 [1] : vector<49x32xf32> to vector<49xf32>
    %771 = vector.shape_cast %770 : vector<49xf32> to vector<49x1xf32>
    %772 = math.log %771 : vector<49x1xf32>
    %773 = arith.addf %766, %772 : vector<49x1xf32>
    %774 = vector.broadcast %773 : vector<49x1xf32> to vector<49x32xf32>
    %775 = arith.subf %764, %774 : vector<49x32xf32>
    %776 = tpu.concatenate %739, %751, %763, %775 in 1 : vector<49x32xf32>, vector<49x32xf32>, vector<49x32xf32>, vector<49x32xf32> -> vector<49x128xf32>
    %c1_650 = arith.constant 1 : index
    %c0_651 = arith.constant 0 : index
    %c0_652 = arith.constant 0 : index
    %777 = vector.load %arg8[%c1_650, %c0_651, %c0_652] : memref<2x49x128xf32, #tpu.memory_space<vmem>>, vector<1x49x128xf32>
    %778 = vector.shape_cast %777 : vector<1x49x128xf32> to vector<49x128xf32>
    %779 = vector.shape_cast %776 : vector<49x128xf32> to vector<1x49x128xf32>
    tpu.vector_store %arg8[%c1_650, %c0_651, %c0_652], %779 {strides = array<i32>} : memref<2x49x128xf32, #tpu.memory_space<vmem>>, vector<1x49x128xf32>,
    return
  }
  func.func @transform_0(%arg0: i32) -> (i32, i32, i32) {
    %c0_i32 = arith.constant 0 : i32
    %c0_i32_0 = arith.constant 0 : i32
    %c0_i32_1 = arith.constant 0 : i32
    return %arg0, %c0_i32, %c0_i32_0 : i32, i32, i32
  }
  func.func @transform_1(%arg0: i32) -> (i32, i32) {
    %c0_i32 = arith.constant 0 : i32
    %c0_i32_0 = arith.constant 0 : i32
    %c0_i32_1 = arith.constant 0 : i32
    return %c0_i32, %c0_i32_0 : i32, i32
  }
  func.func @transform_2(%arg0: i32) -> (i32, i32) {
    %c0_i32 = arith.constant 0 : i32
    %c0_i32_0 = arith.constant 0 : i32
    %c0_i32_1 = arith.constant 0 : i32
    return %c0_i32, %c0_i32_0 : i32, i32
  }
  func.func @transform_3(%arg0: i32) -> (i32, i32, i32) {
    %c0_i32 = arith.constant 0 : i32
    %c0_i32_0 = arith.constant 0 : i32
    %c0_i32_1 = arith.constant 0 : i32
    %c0_i32_2 = arith.constant 0 : i32
    return %c0_i32, %c0_i32_0, %c0_i32_1 : i32, i32, i32
  }
  func.func @transform_4(%arg0: i32) -> (i32, i32) {
    %c0_i32 = arith.constant 0 : i32
    %c0_i32_0 = arith.constant 0 : i32
    %c0_i32_1 = arith.constant 0 : i32
    return %c0_i32, %c0_i32_0 : i32, i32
  }
  func.func @transform_5(%arg0: i32) -> (i32, i32, i32) {
    %c0_i32 = arith.constant 0 : i32
    %c0_i32_0 = arith.constant 0 : i32
    %c0_i32_1 = arith.constant 0 : i32
    %c0_i32_2 = arith.constant 0 : i32
    return %c0_i32, %c0_i32_0, %c0_i32_1 : i32, i32, i32
  }
  func.func @transform_6(%arg0: i32) -> (i32, i32) {
    %c0_i32 = arith.constant 0 : i32
    %c0_i32_0 = arith.constant 0 : i32
    %c0_i32_1 = arith.constant 0 : i32
    return %c0_i32, %c0_i32_0 : i32, i32
  }
  func.func @transform_7(%arg0: i32) -> (i32, i32, i32) {
    %c0_i32 = arith.constant 0 : i32
    %c0_i32_0 = arith.constant 0 : i32
    %c0_i32_1 = arith.constant 0 : i32
    return %arg0, %c0_i32, %c0_i32_0 : i32, i32, i32
  }
}

</mosaic_0001>

<llo_original>
// kernel: mul.4
$region0: #{mul.4}
  %s0 = inlined_call_operand.vmem [shape: f32[3,3,32], index: 0, kind: input, shape index: {}]
  %s1 = inlined_call_operand.vmem [shape: f32[9,32], index: 1, kind: output, shape index: {}]
  $region1: #{mul.4} parent=0
    #allocation0 [shape = 'u8[12288]{0}', space=vmem, size = 0x3000, scoped, tag = 'scoped mem for input reshape']
    %s3 = ssub.s32 16, 1
    %s4 = scalar_lea.vmem %s0, 8
    %v5 = vld [vmem:[%s4] sm:%s3]
    %s6 = scalar_lea.vmem [#allocation0], 16
    %7 = vst [vmem:[%s6] sm:%s3] %v5
    %s8 = scalar_lea.vmem %s0, 4
    %v9 = vld [vmem:[%s8] sm:%s3]
    %s10 = scalar_lea.vmem [#allocation0], 8
    %11 = vst [vmem:[%s10] sm:%s3] %v9
    %v12 = vld [vmem:[%s0] sm:%s3]
    %13 = vst [vmem:[#allocation0] sm:%s3] %v12
    %v14 = vld [vmem:[#allocation0] sm:$0x7]
    %vm15 = vcmask 261120
    %16 = vst.msk [vmem:[%s1] sm:$0x7] %vm15, %v14
    %s17 = scalar_lea.vmem [#allocation0], 8
    %v18 = vld [vmem:[%s17] sm:$0x7]
    %vm19 = vcmask 261120
    %s20 = scalar_lea.vmem %s1, 3
    %21 = vst.msk [vmem:[%s20] sm:$0x7] %vm19, %v18
    %s22 = scalar_lea.vmem [#allocation0], 16
    %v23 = vld [vmem:[%s22] sm:$0x7]
    %vm24 = vcmask 261120
    %s25 = scalar_lea.vmem %s1, 6
    %26 = vst.msk [vmem:[%s25] sm:$0x7] %vm24, %v23

// kernel: tile.18
$region0: #{tile.18}
  #allocation0 [shape = 's32[1]{0}', space=sflag, size = 0x4, scoped, tag = 'scoped memory for tile.18']
  %s0 = inlined_call_operand.vmem [shape: f32[32], index: 0, kind: input, shape index: {}]
  %s1 = inlined_call_operand.vmem [shape: f32[4,32], index: 1, kind: output, shape index: {}]
  // Predicated region
  $region2: #{tile.18} parent=0 // pred_check
    _
  $region3: #{tile.18} parent=0 // pred_check_branch
    %3 = sbr.rel (0) target = $region5
  $region4: #{tile.18} parent=0 // pred_region
    _
  $region5: #{tile.18} parent=0 // pred_fallthru
    _
  %v4 = vld [vmem:[%s0] ss:$0 sm:$0xff]
  %5 = vst [vmem:[%s1] sm:$0xf] %v4

// kernel: tile.19
$region0: #{tile.19}
  %s0 = inlined_call_operand.vmem [shape: f32[4,32], index: 0, kind: input, shape index: {}]
  %s1 = inlined_call_operand.vmem [shape: f32[1,128], index: 1, kind: output, shape index: {}]
  $region1: #{tile.19} parent=0
    #allocation0 [shape = 'u8[4096]{0}', space=vmem, size = 0x1000, scoped, tag = 'scoped mem for output reshape']
    #allocation1 [shape = 'u8[4096]{0}', space=vmem, size = 0x1000, scoped, tag = 'scoped mem for input reshape']
    %s3 = ssub.s32 16, 1
    %v4 = vld [vmem:[%s0] sm:%s3]
    %5 = vst [vmem:[#allocation1] sm:%s3] %v4
    %v6 = vld [vmem:[#allocation1] sm:$0x1]
    %vm7 = vcmask 261120
    %8 = vst.msk [vmem:[#allocation0] sm:$0x1] %vm7, %v6
    %s9 = scalar_lea.vmem [#allocation1], 3
    %v10 = vld [vmem:[%s9] sm:$0x1]
    %11 = vrot.lane.b32.xlu0 %v10, 96
    %v12 = vpop.permute.xlu0 %11
    %vm13 = vcmask 1048320
    %14 = vst.msk [vmem:[#allocation0] sm:$0x1] %vm13, %v12
    %s15 = scalar_lea.vmem [#allocation1], 2
    %v16 = vld [vmem:[%s15] sm:$0x1]
    %17 = vrot.lane.b32.xlu0 %v16, 64
    %v18 = vpop.permute.xlu0 %17
    %vm19 = vcmask 785920
    %20 = vst.msk [vmem:[#allocation0] sm:$0x1] %vm19, %v18
    %s21 = scalar_lea.vmem [#allocation1], 1
    %v22 = vld [vmem:[%s21] sm:$0x1]
    %23 = vrot.lane.b32.xlu0 %v22, 32
    %v24 = vpop.permute.xlu0 %23
    %vm25 = vcmask 523520
    %26 = vst.msk [vmem:[#allocation0] sm:$0x1] %vm25, %v24
    %s28 = ssub.s32 2, 1
    %v29 = vld [vmem:[#allocation0] sm:%s28]
    %s31 = ssub.s32 2, 1
    %32 = vst [vmem:[%s1] sm:%s31] %v29

// kernel: omni_forward.1
$region0: #{omni_forward.1}
  #allocation0 [shape = 'u32[]', space=smem, size = 0x4, offset = 0x4, fixed_abs, tag = 'smem constant byte address 0x4 - core index']
  #allocation1 [shape = 'u32[72,128]{1,0:T(1,128)}', space=vmem, size = 0x9000, scoped, tag = 'internal scratch']
  #allocation2 [shape = 'f32[400,128]{1,0:T(8,128)}', space=vmem, size = 0x32000, scoped, tag = 'scratch operand']
  #allocation3 [shape = 'f32[224,128]{1,0:T(8,128)}', space=vmem, size = 0x1c000, scoped, tag = 'scratch operand']
  #allocation4 [shape = 'f32[192,128]{1,0:T(8,128)}', space=vmem, size = 0x18000, scoped, tag = 'scratch operand']
  #allocation5 [shape = 'f32[120,128]{1,0:T(8,128)}', space=vmem, size = 0xf000, scoped, tag = 'scratch operand']
  #allocation6 [shape = 'f32[96,128]{1,0:T(8,128)}', space=vmem, size = 0xc000, scoped, tag = 'scratch operand']
  %s0 = inlined_call_operand.vmem [shape: bf16[2,400,36], index: 0, kind: input, shape index: {}]
  %s1 = inlined_call_operand.vmem [shape: bf16[36,128], index: 1, kind: input, shape index: {}]
  %s2 = inlined_call_operand.vmem [shape: f32[1,128], index: 2, kind: input, shape index: {}]
  %s3 = inlined_call_operand.vmem [shape: bf16[9,128,128], index: 3, kind: input, shape index: {}]
  %s4 = inlined_call_operand.vmem [shape: f32[1,128], index: 4, kind: input, shape index: {}]
  %s5 = inlined_call_operand.vmem [shape: bf16[9,128,128], index: 5, kind: input, shape index: {}]
  %s6 = inlined_call_operand.vmem [shape: f32[1,128], index: 6, kind: input, shape index: {}]
  %s7 = inlined_call_operand.vmem [shape: f32[2,49,128], index: 7, kind: output, shape index: {}]
  %s8 = sld [smem:[#allocation0]]
  $region38: #{omni_forward.1} parent=0
    _
  %s10 = ssub.s32 1, %s8
  %s11 = scalar_select 0, %s10, %s8
  // Predicated region
  $region2: #{omni_forward.1} parent=0 // pred_check
    _
  $region3: #{omni_forward.1} parent=0 // pred_check_branch
    %13 = sbr.rel (0) target = $region5
  $region4: #{omni_forward.1} parent=0 // pred_region
    _
  $region5: #{omni_forward.1} parent=0 // pred_fallthru
    _
  // Predicated region
  $region6: #{omni_forward.1} parent=0 // pred_check
    _
  $region7: #{omni_forward.1} parent=0 // pred_check_branch
    %15 = sbr.rel (0) target = $region9
  $region8: #{omni_forward.1} parent=0 // pred_region
    _
  $region9: #{omni_forward.1} parent=0 // pred_fallthru
    _
  // Predicated region
  $region10: #{omni_forward.1} parent=0 // pred_check
    _
  $region11: #{omni_forward.1} parent=0 // pred_check_branch
    %17 = sbr.rel (0) target = $region13
  $region12: #{omni_forward.1} parent=0 // pred_region
    _
  $region13: #{omni_forward.1} parent=0 // pred_fallthru
    _
  // Predicated region
  $region14: #{omni_forward.1} parent=0 // pred_check
    _
  $region15: #{omni_forward.1} parent=0 // pred_check_branch
    %19 = sbr.rel (0) target = $region17
  $region16: #{omni_forward.1} parent=0 // pred_region
    _
  $region17: #{omni_forward.1} parent=0 // pred_fallthru
    _
  // Predicated region
  $region18: #{omni_forward.1} parent=0 // pred_check
    _
  $region19: #{omni_forward.1} parent=0 // pred_check_branch
    %21 = sbr.rel (0) target = $region21
  $region20: #{omni_forward.1} parent=0 // pred_region
    _
  $region21: #{omni_forward.1} parent=0 // pred_fallthru
    _
  // Predicated region
  $region22: #{omni_forward.1} parent=0 // pred_check
    _
  $region23: #{omni_forward.1} parent=0 // pred_check_branch
    %23 = sbr.rel (0) target = $region25
  $region24: #{omni_forward.1} parent=0 // pred_region
    _
  $region25: #{omni_forward.1} parent=0 // pred_fallthru
    _
  // Predicated region
  $region26: #{omni_forward.1} parent=0 // pred_check
    _
  $region27: #{omni_forward.1} parent=0 // pred_check_branch
    %25 = sbr.rel (0) target = $region29
  $region28: #{omni_forward.1} parent=0 // pred_region
    _
  $region29: #{omni_forward.1} parent=0 // pred_fallthru
    _
  %27 = vst [vmem:[#allocation3] sm:$0xff] 0.0
  %28 = vst [vmem:[#allocation3 + $0x8] sm:$0xff] 0.0
  %29 = vst [vmem:[#allocation3 + $0x10] sm:$0xff] 0.0
  %30 = vst [vmem:[#allocation3 + $0x18] sm:$0xff] 0.0
  %31 = vst [vmem:[#allocation3 + $0x20] sm:$0xff] 0.0
  %32 = vst [vmem:[#allocation3 + $0x28] sm:$0xff] 0.0
  %33 = vst [vmem:[#allocation3 + $0x30] sm:$0xff] 0.0
  %34 = vst [vmem:[#allocation3 + $0x38] sm:$0xff] 0.0
  %35 = vst [vmem:[#allocation3 + $0x40] sm:$0xff] 0.0
  %36 = vst [vmem:[#allocation3 + $0x48] sm:$0xff] 0.0
  %37 = vst [vmem:[#allocation3 + $0x50] sm:$0xff] 0.0
  %38 = vst [vmem:[#allocation3 + $0x58] sm:$0xff] 0.0
  %39 = vst [vmem:[#allocation3 + $0x60] sm:$0xff] 0.0
  %40 = vst [vmem:[#allocation3 + $0x68] sm:$0xff] 0.0
  %41 = vst [vmem:[#allocation3 + $0x70] sm:$0xff] 0.0
  %42 = vst [vmem:[#allocation3 + $0x78] sm:$0xff] 0.0
  %43 = vst [vmem:[#allocation3 + $0x80] sm:$0xff] 0.0
  %44 = vst [vmem:[#allocation3 + $0x88] sm:$0xff] 0.0
  %45 = vst [vmem:[#allocation3 + $0x90] sm:$0xff] 0.0
  %46 = vst [vmem:[#allocation3 + $0x98] sm:$0xff] 0.0
  %47 = vst [vmem:[#allocation3 + $0xa0] sm:$0xff] 0.0
  %48 = vst [vmem:[#allocation3 + $0xa8] sm:$0xff] 0.0
  %49 = vst [vmem:[#allocation3 + $0xb0] sm:$0xff] 0.0
  %50 = vst [vmem:[#allocation3 + $0xb8] sm:$0xff] 0.0
  %51 = vst [vmem:[#allocation3 + $0xc0] sm:$0xff] 0.0
  %52 = vst [vmem:[#allocation3 + $0xc8] sm:$0xff] 0.0
  %53 = vst [vmem:[#allocation3 + $0xd0] sm:$0xff] 0.0
  %54 = vst [vmem:[#allocation3 + $0xd8] sm:$0xff] 0.0
  %55 = vst [vmem:[#allocation5] sm:$0xff] 0.0
  %56 = vst [vmem:[#allocation5 + $0x8] sm:$0xff] 0.0
  %57 = vst [vmem:[#allocation5 + $0x10] sm:$0xff] 0.0
  %58 = vst [vmem:[#allocation5 + $0x18] sm:$0xff] 0.0
  %59 = vst [vmem:[#allocation5 + $0x20] sm:$0xff] 0.0
  %60 = vst [vmem:[#allocation5 + $0x28] sm:$0xff] 0.0
  %61 = vst [vmem:[#allocation5 + $0x30] sm:$0xff] 0.0
  %62 = vst [vmem:[#allocation5 + $0x38] sm:$0xff] 0.0
  %63 = vst [vmem:[#allocation5 + $0x40] sm:$0xff] 0.0
  %64 = vst [vmem:[#allocation5 + $0x48] sm:$0xff] 0.0
  %65 = vst [vmem:[#allocation5 + $0x50] sm:$0xff] 0.0
  %66 = vst [vmem:[#allocation5 + $0x58] sm:$0xff] 0.0
  %67 = vst [vmem:[#allocation5 + $0x60] sm:$0xff] 0.0
  %68 = vst [vmem:[#allocation5 + $0x68] sm:$0xff] 0.0
  %69 = vst [vmem:[#allocation5 + $0x70] sm:$0xff] 0.0
  %v70 = vld [vmem:[%s2] sm:$0x1]
  %v71 = vld [vmem:[%s4] sm:$0x1]
  %v72 = vld [vmem:[%s6] sm:$0x1]
  %v73 = vld [vmem:[%s1] sm:$0xf]
  %v74 = vld [vmem:[%s1 + $0x4] sm:$0xf]
  %v75 = vld [vmem:[%s1 + $0x8] sm:$0xf]
  %v76 = vld [vmem:[%s1 + $0xc] sm:$0xf]
  %v77 = vld [vmem:[%s1 + $0x10] sm:$0x3]
  %v78 = vld [vmem:[%s0] sm:$0xf]
  %v79 = vld [vmem:[%s0 + $0x4] sm:$0xf]
  %v80 = vld [vmem:[%s0 + $0x8] sm:$0xf]
  %v81 = vld [vmem:[%s0 + $0xc] sm:$0xf]
  %v82 = vld [vmem:[%s0 + $0x10] sm:$0xf]
  %v83 = vld [vmem:[%s0 + $0x14] sm:$0xf]
  %v84 = vld [vmem:[%s0 + $0x18] sm:$0xf]
  %v85 = vld [vmem:[%s0 + $0x1c] sm:$0xf]
  %v86 = vld [vmem:[%s0 + $0x20] sm:$0xf]
  %v87 = vld [vmem:[%s0 + $0x24] sm:$0xf]
  %v88 = vld [vmem:[%s0 + $0x28] sm:$0xf]
  %v89 = vld [vmem:[%s0 + $0x2c] sm:$0xf]
  %v90 = vld [vmem:[%s0 + $0x30] sm:$0xf]
  %v91 = vld [vmem:[%s0 + $0x34] sm:$0xf]
  %v92 = vld [vmem:[%s0 + $0x38] sm:$0xf]
  %v93 = vld [vmem:[%s0 + $0x3c] sm:$0xf]
  %v94 = vld [vmem:[%s0 + $0x40] sm:$0xf]
  %v95 = vld [vmem:[%s0 + $0x44] sm:$0xf]
  %v96 = vld [vmem:[%s0 + $0x48] sm:$0xf]
  %v97 = vld [vmem:[%s0 + $0x4c] sm:$0xf]
  %v98 = vld [vmem:[%s0 + $0x50] sm:$0xf]
  %v99 = vld [vmem:[%s0 + $0x54] sm:$0xf]
  %v100 = vld [vmem:[%s0 + $0x58] sm:$0xf]
  %v101 = vld [vmem:[%s0 + $0x5c] sm:$0xf]
  %v102 = vld [vmem:[%s0 + $0x60] sm:$0xf]
  %v104 = vperm.slane %v70, 0
  %v131 = vunpack.c.l.b16 %v78
  %v132 = vunpack.c.l.b16 %v79
  %v133 = vunpack.c.l.b16 %v80
  %v134 = vunpack.c.l.b16 %v81
  %v135 = vunpack.c.l.b16 %v82
  %v136 = vunpack.c.l.b16 %v83
  %v137 = vunpack.c.l.b16 %v84
  %v138 = vunpack.c.l.b16 %v85
  %v139 = vunpack.c.l.b16 %v86
  %v140 = vunpack.c.l.b16 %v87
  %v141 = vunpack.c.l.b16 %v88
  %v142 = vunpack.c.l.b16 %v89
  %v143 = vunpack.c.l.b16 %v90
  %v144 = vunpack.c.l.b16 %v91
  %v145 = vunpack.c.l.b16 %v92
  %v146 = vunpack.c.l.b16 %v93
  %v147 = vunpack.c.l.b16 %v94
  %v148 = vunpack.c.l.b16 %v95
  %v149 = vunpack.c.l.b16 %v96
  %v150 = vunpack.c.l.b16 %v97
  %v151 = vunpack.c.l.b16 %v98
  %v152 = vunpack.c.l.b16 %v99
  %v153 = vunpack.c.l.b16 %v100
  %v154 = vunpack.c.l.b16 %v101
  %v155 = vunpack.c.l.b16 %v102
  %v156 = vpack.c.b16 %v132, %v131
  %v157 = vpack.c.b16 %v134, %v133
  %v158 = vpack.c.b16 %v136, %v135
  %v159 = vpack.c.b16 %v138, %v137
  %v160 = vpack.c.b16 %v140, %v139
  %v161 = vpack.c.b16 %v142, %v141
  %v162 = vpack.c.b16 %v144, %v143
  %v163 = vpack.c.b16 %v146, %v145
  %v164 = vpack.c.b16 %v148, %v147
  %v165 = vpack.c.b16 %v150, %v149
  %v166 = vpack.c.b16 %v152, %v151
  %v167 = vpack.c.b16 %v154, %v153
  %v168 = vpack.c.b16 %v155, %v155
  %v174 = vunpack.c.l.b16 %v73
  %v175 = vunpack.c.l.b16 %v74
  %v176 = vunpack.c.l.b16 %v75
  %v177 = vunpack.c.l.b16 %v76
  %v178 = vunpack.c.l.b16 %v77
  %v179 = vpack.c.b16 %v175, %v174
  %v180 = vpack.c.b16 %v177, %v176
  %v181 = vpack.c.b16 %v178, %v178
  %vm184 = vcmask 293888
  %v186 = vsel %vm184, %v156, 0
  %v189 = vsel %vm184, %v157, 0
  %v192 = vsel %vm184, %v158, 0
  %v195 = vsel %vm184, %v159, 0
  %v198 = vsel %vm184, %v160, 0
  %v201 = vsel %vm184, %v161, 0
  %v204 = vsel %vm184, %v162, 0
  %v207 = vsel %vm184, %v163, 0
  %v210 = vsel %vm184, %v164, 0
  %v213 = vsel %vm184, %v165, 0
  %v216 = vsel %vm184, %v166, 0
  %v219 = vsel %vm184, %v167, 0
  %v222 = vsel %vm184, %v168, 0
  %vm224 = vcmask 1041408
  %v226 = vsel %vm224, %v181, 0
  %228 = vmatpush.bf16.msra.mxu0 0
  %229 = vmatpush.bf16.msra.mxu0 0
  %230 = vmatpush.bf16.msra.mxu0 0
  %231 = vmatpush.bf16.msra.mxu0 0
  %232 = vmatpush.bf16.msra.mxu0 0
  %233 = vmatpush.bf16.msra.mxu0 %v226
  %234 = vmatpush.bf16.msra.mxu0 %v180
  %235 = vmatpush.bf16.msra.mxu0 %v179
  %236 = vmatmul.bf16.gmra.mxu0 %v186
  %v237 = vpop.f32.mrf.mxu0
  %v238 = vadd.f32 %v104, %v237
  %v239 = vpop.f32.mrf.mxu0
  %v240 = vadd.f32 %v104, %v239
  %241 = vmatmul.bf16.gmra.mxu0 %v189
  %v242 = vpop.f32.mrf.mxu0
  %v243 = vadd.f32 %v104, %v242
  %v244 = vpop.f32.mrf.mxu0
  %v245 = vadd.f32 %v104, %v244
  %246 = vmatmul.bf16.gmra.mxu0 %v192
  %v247 = vpop.f32.mrf.mxu0
  %v248 = vadd.f32 %v104, %v247
  %v249 = vpop.f32.mrf.mxu0
  %v250 = vadd.f32 %v104, %v249
  %251 = vmatmul.bf16.gmra.mxu0 %v195
  %v252 = vpop.f32.mrf.mxu0
  %v253 = vadd.f32 %v104, %v252
  %v254 = vpop.f32.mrf.mxu0
  %v255 = vadd.f32 %v104, %v254
  %256 = vmatmul.bf16.gmra.mxu0 %v198
  %v257 = vpop.f32.mrf.mxu0
  %v258 = vadd.f32 %v104, %v257
  %v259 = vpop.f32.mrf.mxu0
  %v260 = vadd.f32 %v104, %v259
  %261 = vmatmul.bf16.gmra.mxu0 %v201
  %v262 = vpop.f32.mrf.mxu0
  %v263 = vadd.f32 %v104, %v262
  %v264 = vpop.f32.mrf.mxu0
  %v265 = vadd.f32 %v104, %v264
  %266 = vmatmul.bf16.gmra.mxu0 %v204
  %v267 = vpop.f32.mrf.mxu0
  %v268 = vadd.f32 %v104, %v267
  %v269 = vpop.f32.mrf.mxu0
  %v270 = vadd.f32 %v104, %v269
  %271 = vmatmul.bf16.gmra.mxu0 %v207
  %v272 = vpop.f32.mrf.mxu0
  %v273 = vadd.f32 %v104, %v272
  %v274 = vpop.f32.mrf.mxu0
  %v275 = vadd.f32 %v104, %v274
  %276 = vmatmul.bf16.gmra.mxu0 %v210
  %v277 = vpop.f32.mrf.mxu0
  %v278 = vadd.f32 %v104, %v277
  %v279 = vpop.f32.mrf.mxu0
  %v280 = vadd.f32 %v104, %v279
  %281 = vmatmul.bf16.gmra.mxu0 %v213
  %v282 = vpop.f32.mrf.mxu0
  %v283 = vadd.f32 %v104, %v282
  %v284 = vpop.f32.mrf.mxu0
  %v285 = vadd.f32 %v104, %v284
  %286 = vmatmul.bf16.gmra.mxu0 %v216
  %v287 = vpop.f32.mrf.mxu0
  %v288 = vadd.f32 %v104, %v287
  %v289 = vpop.f32.mrf.mxu0
  %v290 = vadd.f32 %v104, %v289
  %291 = vmatmul.bf16.gmra.mxu0 %v219
  %v292 = vpop.f32.mrf.mxu0
  %v293 = vadd.f32 %v104, %v292
  %v294 = vpop.f32.mrf.mxu0
  %v295 = vadd.f32 %v104, %v294
  %296 = vmatmul.bf16.gmra.mxu0 %v222
  %v297 = vpop.f32.mrf.mxu0
  %v298 = vadd.f32 %v104, %v297
  %v299 = vpop.f32.mrf.mxu0
  %300 = vdwg.mxu0
  %301 = vst [vmem:[#allocation2] sm:$0xff] %v238
  %302 = vst [vmem:[#allocation2 + $0x8] sm:$0xff] %v240
  %303 = vst [vmem:[#allocation2 + $0x10] sm:$0xff] %v243
  %304 = vst [vmem:[#allocation2 + $0x18] sm:$0xff] %v245
  %305 = vst [vmem:[#allocation2 + $0x20] sm:$0xff] %v248
  %306 = vst [vmem:[#allocation2 + $0x28] sm:$0xff] %v250
  %307 = vst [vmem:[#allocation2 + $0x30] sm:$0xff] %v253
  %308 = vst [vmem:[#allocation2 + $0x38] sm:$0xff] %v255
  %309 = vst [vmem:[#allocation2 + $0x40] sm:$0xff] %v258
  %310 = vst [vmem:[#allocation2 + $0x48] sm:$0xff] %v260
  %311 = vst [vmem:[#allocation2 + $0x50] sm:$0xff] %v263
  %312 = vst [vmem:[#allocation2 + $0x58] sm:$0xff] %v265
  %313 = vst [vmem:[#allocation2 + $0x60] sm:$0xff] %v268
  %314 = vst [vmem:[#allocation2 + $0x68] sm:$0xff] %v270
  %315 = vst [vmem:[#allocation2 + $0x70] sm:$0xff] %v273
  %316 = vst [vmem:[#allocation2 + $0x78] sm:$0xff] %v275
  %317 = vst [vmem:[#allocation2 + $0x80] sm:$0xff] %v278
  %318 = vst [vmem:[#allocation2 + $0x88] sm:$0xff] %v280
  %319 = vst [vmem:[#allocation2 + $0x90] sm:$0xff] %v283
  %320 = vst [vmem:[#allocation2 + $0x98] sm:$0xff] %v285
  %321 = vst [vmem:[#allocation2 + $0xa0] sm:$0xff] %v288
  %322 = vst [vmem:[#allocation2 + $0xa8] sm:$0xff] %v290
  %323 = vst [vmem:[#allocation2 + $0xb0] sm:$0xff] %v293
  %324 = vst [vmem:[#allocation2 + $0xb8] sm:$0xff] %v295
  %325 = vst [vmem:[#allocation2 + $0xc0] sm:$0xff] %v298
  %v326 = vld [vmem:[%s0 + $0x64] sm:$0xf]
  %v327 = vld [vmem:[%s0 + $0x68] sm:$0xf]
  %v328 = vld [vmem:[%s0 + $0x6c] sm:$0xf]
  %v329 = vld [vmem:[%s0 + $0x70] sm:$0xf]
  %v330 = vld [vmem:[%s0 + $0x74] sm:$0xf]
  %v331 = vld [vmem:[%s0 + $0x78] sm:$0xf]
  %v332 = vld [vmem:[%s0 + $0x7c] sm:$0xf]
  %v333 = vld [vmem:[%s0 + $0x80] sm:$0xf]
  %v334 = vld [vmem:[%s0 + $0x84] sm:$0xf]
  %v335 = vld [vmem:[%s0 + $0x88] sm:$0xf]
  %v336 = vld [vmem:[%s0 + $0x8c] sm:$0xf]
  %v337 = vld [vmem:[%s0 + $0x90] sm:$0xf]
  %v338 = vld [vmem:[%s0 + $0x94] sm:$0xf]
  %v339 = vld [vmem:[%s0 + $0x98] sm:$0xf]
  %v340 = vld [vmem:[%s0 + $0x9c] sm:$0xf]
  %v341 = vld [vmem:[%s0 + $0xa0] sm:$0xf]
  %v342 = vld [vmem:[%s0 + $0xa4] sm:$0xf]
  %v343 = vld [vmem:[%s0 + $0xa8] sm:$0xf]
  %v344 = vld [vmem:[%s0 + $0xac] sm:$0xf]
  %v345 = vld [vmem:[%s0 + $0xb0] sm:$0xf]
  %v346 = vld [vmem:[%s0 + $0xb4] sm:$0xf]
  %v347 = vld [vmem:[%s0 + $0xb8] sm:$0xf]
  %v348 = vld [vmem:[%s0 + $0xbc] sm:$0xf]
  %v349 = vld [vmem:[%s0 + $0xc0] sm:$0xf]
  %v350 = vld [vmem:[%s0 + $0xc4] sm:$0xf]
  %v376 = vunpack.c.l.b16 %v326
  %v377 = vunpack.c.l.b16 %v327
  %v378 = vunpack.c.l.b16 %v328
  %v379 = vunpack.c.l.b16 %v329
  %v380 = vunpack.c.l.b16 %v330
  %v381 = vunpack.c.l.b16 %v331
  %v382 = vunpack.c.l.b16 %v332
  %v383 = vunpack.c.l.b16 %v333
  %v384 = vunpack.c.l.b16 %v334
  %v385 = vunpack.c.l.b16 %v335
  %v386 = vunpack.c.l.b16 %v336
  %v387 = vunpack.c.l.b16 %v337
  %v388 = vunpack.c.l.b16 %v338
  %v389 = vunpack.c.l.b16 %v339
  %v390 = vunpack.c.l.b16 %v340
  %v391 = vunpack.c.l.b16 %v341
  %v392 = vunpack.c.l.b16 %v342
  %v393 = vunpack.c.l.b16 %v343
  %v394 = vunpack.c.l.b16 %v344
  %v395 = vunpack.c.l.b16 %v345
  %v396 = vunpack.c.l.b16 %v346
  %v397 = vunpack.c.l.b16 %v347
  %v398 = vunpack.c.l.b16 %v348
  %v399 = vunpack.c.l.b16 %v349
  %v400 = vunpack.c.l.b16 %v350
  %v401 = vpack.c.b16 %v377, %v376
  %v402 = vpack.c.b16 %v379, %v378
  %v403 = vpack.c.b16 %v381, %v380
  %v404 = vpack.c.b16 %v383, %v382
  %v405 = vpack.c.b16 %v385, %v384
  %v406 = vpack.c.b16 %v387, %v386
  %v407 = vpack.c.b16 %v389, %v388
  %v408 = vpack.c.b16 %v391, %v390
  %v409 = vpack.c.b16 %v393, %v392
  %v410 = vpack.c.b16 %v395, %v394
  %v411 = vpack.c.b16 %v397, %v396
  %v412 = vpack.c.b16 %v399, %v398
  %v413 = vpack.c.b16 %v400, %v400
  %v415 = vsel %vm184, %v401, 0
  %v418 = vsel %vm184, %v402, 0
  %v421 = vsel %vm184, %v403, 0
  %v424 = vsel %vm184, %v404, 0
  %v427 = vsel %vm184, %v405, 0
  %v430 = vsel %vm184, %v406, 0
  %v433 = vsel %vm184, %v407, 0
  %v436 = vsel %vm184, %v408, 0
  %v439 = vsel %vm184, %v409, 0
  %v442 = vsel %vm184, %v410, 0
  %v445 = vsel %vm184, %v411, 0
  %v448 = vsel %vm184, %v412, 0
  %v451 = vsel %vm184, %v413, 0
  %453 = vmatpush.bf16.msra.mxu0 0
  %454 = vmatpush.bf16.msra.mxu0 0
  %455 = vmatpush.bf16.msra.mxu0 0
  %456 = vmatpush.bf16.msra.mxu0 0
  %457 = vmatpush.bf16.msra.mxu0 0
  %458 = vmatpush.bf16.msra.mxu0 %v226
  %459 = vmatpush.bf16.msra.mxu0 %v180
  %460 = vmatpush.bf16.msra.mxu0 %v179
  %461 = vmatmul.bf16.gmra.mxu0 %v415
  %v462 = vpop.f32.mrf.mxu0
  %v463 = vadd.f32 %v104, %v462
  %v464 = vpop.f32.mrf.mxu0
  %v465 = vadd.f32 %v104, %v464
  %466 = vmatmul.bf16.gmra.mxu0 %v418
  %v467 = vpop.f32.mrf.mxu0
  %v468 = vadd.f32 %v104, %v467
  %v469 = vpop.f32.mrf.mxu0
  %v470 = vadd.f32 %v104, %v469
  %471 = vmatmul.bf16.gmra.mxu0 %v421
  %v472 = vpop.f32.mrf.mxu0
  %v473 = vadd.f32 %v104, %v472
  %v474 = vpop.f32.mrf.mxu0
  %v475 = vadd.f32 %v104, %v474
  %476 = vmatmul.bf16.gmra.mxu0 %v424
  %v477 = vpop.f32.mrf.mxu0
  %v478 = vadd.f32 %v104, %v477
  %v479 = vpop.f32.mrf.mxu0
  %v480 = vadd.f32 %v104, %v479
  %481 = vmatmul.bf16.gmra.mxu0 %v427
  %v482 = vpop.f32.mrf.mxu0
  %v483 = vadd.f32 %v104, %v482
  %v484 = vpop.f32.mrf.mxu0
  %v485 = vadd.f32 %v104, %v484
  %486 = vmatmul.bf16.gmra.mxu0 %v430
  %v487 = vpop.f32.mrf.mxu0
  %v488 = vadd.f32 %v104, %v487
  %v489 = vpop.f32.mrf.mxu0
  %v490 = vadd.f32 %v104, %v489
  %491 = vmatmul.bf16.gmra.mxu0 %v433
  %v492 = vpop.f32.mrf.mxu0
  %v493 = vadd.f32 %v104, %v492
  %v494 = vpop.f32.mrf.mxu0
  %v495 = vadd.f32 %v104, %v494
  %496 = vmatmul.bf16.gmra.mxu0 %v436
  %v497 = vpop.f32.mrf.mxu0
  %v498 = vadd.f32 %v104, %v497
  %v499 = vpop.f32.mrf.mxu0
  %v500 = vadd.f32 %v104, %v499
  %501 = vmatmul.bf16.gmra.mxu0 %v439
  %v502 = vpop.f32.mrf.mxu0
  %v503 = vadd.f32 %v104, %v502
  %v504 = vpop.f32.mrf.mxu0
  %v505 = vadd.f32 %v104, %v504
  %506 = vmatmul.bf16.gmra.mxu0 %v442
  %v507 = vpop.f32.mrf.mxu0
  %v508 = vadd.f32 %v104, %v507
  %v509 = vpop.f32.mrf.mxu0
  %v510 = vadd.f32 %v104, %v509
  %511 = vmatmul.bf16.gmra.mxu0 %v445
  %v512 = vpop.f32.mrf.mxu0
  %v513 = vadd.f32 %v104, %v512
  %v514 = vpop.f32.mrf.mxu0
  %v515 = vadd.f32 %v104, %v514
  %516 = vmatmul.bf16.gmra.mxu0 %v448
  %v517 = vpop.f32.mrf.mxu0
  %v518 = vadd.f32 %v104, %v517
  %v519 = vpop.f32.mrf.mxu0
  %v520 = vadd.f32 %v104, %v519
  %521 = vmatmul.bf16.gmra.mxu0 %v451
  %v522 = vpop.f32.mrf.mxu0
  %v523 = vadd.f32 %v104, %v522
  %v524 = vpop.f32.mrf.mxu0
  %525 = vdwg.mxu0
  %526 = vst [vmem:[#allocation2 + $0xc8] sm:$0xff] %v463
  %527 = vst [vmem:[#allocation2 + $0xd0] sm:$0xff] %v465
  %528 = vst [vmem:[#allocation2 + $0xd8] sm:$0xff] %v468
  %529 = vst [vmem:[#allocation2 + $0xe0] sm:$0xff] %v470
  %530 = vst [vmem:[#allocation2 + $0xe8] sm:$0xff] %v473
  %531 = vst [vmem:[#allocation2 + $0xf0] sm:$0xff] %v475
  %532 = vst [vmem:[#allocation2 + $0xf8] sm:$0xff] %v478
  %533 = vst [vmem:[#allocation2 + $0x100] sm:$0xff] %v480
  %534 = vst [vmem:[#allocation2 + $0x108] sm:$0xff] %v483
  %535 = vst [vmem:[#allocation2 + $0x110] sm:$0xff] %v485
  %536 = vst [vmem:[#allocation2 + $0x118] sm:$0xff] %v488
  %537 = vst [vmem:[#allocation2 + $0x120] sm:$0xff] %v490
  %538 = vst [vmem:[#allocation2 + $0x128] sm:$0xff] %v493
  %539 = vst [vmem:[#allocation2 + $0x130] sm:$0xff] %v495
  %540 = vst [vmem:[#allocation2 + $0x138] sm:$0xff] %v498
  %541 = vst [vmem:[#allocation2 + $0x140] sm:$0xff] %v500
  %542 = vst [vmem:[#allocation2 + $0x148] sm:$0xff] %v503
  %543 = vst [vmem:[#allocation2 + $0x150] sm:$0xff] %v505
  %544 = vst [vmem:[#allocation2 + $0x158] sm:$0xff] %v508
  %545 = vst [vmem:[#allocation2 + $0x160] sm:$0xff] %v510
  %546 = vst [vmem:[#allocation2 + $0x168] sm:$0xff] %v513
  %547 = vst [vmem:[#allocation2 + $0x170] sm:$0xff] %v515
  %548 = vst [vmem:[#allocation2 + $0x178] sm:$0xff] %v518
  %549 = vst [vmem:[#allocation2 + $0x180] sm:$0xff] %v520
  %550 = vst [vmem:[#allocation2 + $0x188] sm:$0xff] %v523
  %v551 = vld [vmem:[#allocation2] ss:$2 sm:$0xff]
  %s552 = scalar_lea.vmem [#allocation2], 16
  %v553 = vld [vmem:[%s552] ss:$2 sm:$0x1]
  %s554 = scalar_lea.vmem [#allocation2], 1
  %v555 = vld [vmem:[%s554] ss:$2 sm:$0xff]
  %s556 = scalar_lea.vmem [#allocation2], 17
  %v557 = vld [vmem:[%s556] ss:$2 sm:$0x1]
  %v558 = vmax.f32 %v551, %v555
  %v559 = vmax.f32 %v553, %v557
  %s560 = scalar_lea.vmem [#allocation2], 20
  %v561 = vld [vmem:[%s560] ss:$2 sm:$0xff]
  %s562 = scalar_lea.vmem [#allocation2], 36
  %v563 = vld [vmem:[%s562] ss:$2 sm:$0x1]
  %s564 = scalar_lea.vmem [#allocation2], 21
  %v565 = vld [vmem:[%s564] ss:$2 sm:$0xff]
  %s566 = scalar_lea.vmem [#allocation2], 37
  %v567 = vld [vmem:[%s566] ss:$2 sm:$0x1]
  %v568 = vmax.f32 %v561, %v565
  %v569 = vmax.f32 %v563, %v567
  %v570 = vmax.f32 %v558, %v568
  %v571 = vmax.f32 %v559, %v569
  %v572 = vmax.f32 %v570, 0.0
  %v573 = vmax.f32 %v571, 0.0
  %574 = vst [vmem:[#allocation3 + $0x1e] sm:$0xff] %v572
  %575 = vst [vmem:[#allocation3 + $0x26] sm:$0x1] %v573
  %s576 = scalar_lea.vmem [#allocation2], 40
  %v577 = vld [vmem:[%s576] ss:$2 sm:$0xff]
  %s578 = scalar_lea.vmem [#allocation2], 56
  %v579 = vld [vmem:[%s578] ss:$2 sm:$0x1]
  %s580 = scalar_lea.vmem [#allocation2], 41
  %v581 = vld [vmem:[%s580] ss:$2 sm:$0xff]
  %s582 = scalar_lea.vmem [#allocation2], 57
  %v583 = vld [vmem:[%s582] ss:$2 sm:$0x1]
  %v584 = vmax.f32 %v577, %v581
  %v585 = vmax.f32 %v579, %v583
  %s586 = scalar_lea.vmem [#allocation2], 60
  %v587 = vld [vmem:[%s586] ss:$2 sm:$0xff]
  %s588 = scalar_lea.vmem [#allocation2], 76
  %v589 = vld [vmem:[%s588] ss:$2 sm:$0x1]
  %s590 = scalar_lea.vmem [#allocation2], 61
  %v591 = vld [vmem:[%s590] ss:$2 sm:$0xff]
  %s592 = scalar_lea.vmem [#allocation2], 77
  %v593 = vld [vmem:[%s592] ss:$2 sm:$0x1]
  %v594 = vmax.f32 %v587, %v591
  %v595 = vmax.f32 %v589, %v593
  %v596 = vmax.f32 %v584, %v594
  %v597 = vmax.f32 %v585, %v595
  %v598 = vmax.f32 %v596, 0.0
  %v599 = vmax.f32 %v597, 0.0
  %600 = vst [vmem:[#allocation3 + $0x2c] sm:$0xff] %v598
  %601 = vst [vmem:[#allocation3 + $0x34] sm:$0x1] %v599
  %s602 = scalar_lea.vmem [#allocation2], 80
  %v603 = vld [vmem:[%s602] ss:$2 sm:$0xff]
  %s604 = scalar_lea.vmem [#allocation2], 96
  %v605 = vld [vmem:[%s604] ss:$2 sm:$0x1]
  %s606 = scalar_lea.vmem [#allocation2], 81
  %v607 = vld [vmem:[%s606] ss:$2 sm:$0xff]
  %s608 = scalar_lea.vmem [#allocation2], 97
  %v609 = vld [vmem:[%s608] ss:$2 sm:$0x1]
  %v610 = vmax.f32 %v603, %v607
  %v611 = vmax.f32 %v605, %v609
  %s612 = scalar_lea.vmem [#allocation2], 100
  %v613 = vld [vmem:[%s612] ss:$2 sm:$0xff]
  %s614 = scalar_lea.vmem [#allocation2], 116
  %v615 = vld [vmem:[%s614] ss:$2 sm:$0x1]
  %s616 = scalar_lea.vmem [#allocation2], 101
  %v617 = vld [vmem:[%s616] ss:$2 sm:$0xff]
  %s618 = scalar_lea.vmem [#allocation2], 117
  %v619 = vld [vmem:[%s618] ss:$2 sm:$0x1]
  %v620 = vmax.f32 %v613, %v617
  %v621 = vmax.f32 %v615, %v619
  %v622 = vmax.f32 %v610, %v620
  %v623 = vmax.f32 %v611, %v621
  %v624 = vmax.f32 %v622, 0.0
  %v625 = vmax.f32 %v623, 0.0
  %626 = vst [vmem:[#allocation3 + $0x3a] sm:$0xff] %v624
  %627 = vst [vmem:[#allocation3 + $0x42] sm:$0x1] %v625
  %s628 = scalar_lea.vmem [#allocation2], 120
  %v629 = vld [vmem:[%s628] ss:$2 sm:$0xff]
  %s630 = scalar_lea.vmem [#allocation2], 136
  %v631 = vld [vmem:[%s630] ss:$2 sm:$0x1]
  %s632 = scalar_lea.vmem [#allocation2], 121
  %v633 = vld [vmem:[%s632] ss:$2 sm:$0xff]
  %s634 = scalar_lea.vmem [#allocation2], 137
  %v635 = vld [vmem:[%s634] ss:$2 sm:$0x1]
  %v636 = vmax.f32 %v629, %v633
  %v637 = vmax.f32 %v631, %v635
  %s638 = scalar_lea.vmem [#allocation2], 140
  %v639 = vld [vmem:[%s638] ss:$2 sm:$0xff]
  %s640 = scalar_lea.vmem [#allocation2], 156
  %v641 = vld [vmem:[%s640] ss:$2 sm:$0x1]
  %s642 = scalar_lea.vmem [#allocation2], 141
  %v643 = vld [vmem:[%s642] ss:$2 sm:$0xff]
  %s644 = scalar_lea.vmem [#allocation2], 157
  %v645 = vld [vmem:[%s644] ss:$2 sm:$0x1]
  %v646 = vmax.f32 %v639, %v643
  %v647 = vmax.f32 %v641, %v645
  %v648 = vmax.f32 %v636, %v646
  %v649 = vmax.f32 %v637, %v647
  %v650 = vmax.f32 %v648, 0.0
  %v651 = vmax.f32 %v649, 0.0
  %652 = vst [vmem:[#allocation3 + $0x48] sm:$0xff] %v650
  %653 = vst [vmem:[#allocation3 + $0x50] sm:$0x1] %v651
  %s654 = scalar_lea.vmem [#allocation2], 160
  %v655 = vld [vmem:[%s654] ss:$2 sm:$0xff]
  %s656 = scalar_lea.vmem [#allocation2], 176
  %v657 = vld [vmem:[%s656] ss:$2 sm:$0x1]
  %s658 = scalar_lea.vmem [#allocation2], 161
  %v659 = vld [vmem:[%s658] ss:$2 sm:$0xff]
  %s660 = scalar_lea.vmem [#allocation2], 177
  %v661 = vld [vmem:[%s660] ss:$2 sm:$0x1]
  %v662 = vmax.f32 %v655, %v659
  %v663 = vmax.f32 %v657, %v661
  %s664 = scalar_lea.vmem [#allocation2], 180
  %v665 = vld [vmem:[%s664] ss:$2 sm:$0xff]
  %s666 = scalar_lea.vmem [#allocation2], 196
  %v667 = vld [vmem:[%s666] ss:$2 sm:$0x1]
  %s668 = scalar_lea.vmem [#allocation2], 181
  %v669 = vld [vmem:[%s668] ss:$2 sm:$0xff]
  %s670 = scalar_lea.vmem [#allocation2], 197
  %v671 = vld [vmem:[%s670] ss:$2 sm:$0x1]
  %v672 = vmax.f32 %v665, %v669
  %v673 = vmax.f32 %v667, %v671
  %v674 = vmax.f32 %v662, %v672
  %v675 = vmax.f32 %v663, %v673
  %v676 = vmax.f32 %v674, 0.0
  %v677 = vmax.f32 %v675, 0.0
  %678 = vst [vmem:[#allocation3 + $0x56] sm:$0xff] %v676
  %679 = vst [vmem:[#allocation3 + $0x5e] sm:$0x1] %v677
  %s680 = scalar_lea.vmem [#allocation2], 200
  %v681 = vld [vmem:[%s680] ss:$2 sm:$0xff]
  %s682 = scalar_lea.vmem [#allocation2], 216
  %v683 = vld [vmem:[%s682] ss:$2 sm:$0x1]
  %s684 = scalar_lea.vmem [#allocation2], 201
  %v685 = vld [vmem:[%s684] ss:$2 sm:$0xff]
  %s686 = scalar_lea.vmem [#allocation2], 217
  %v687 = vld [vmem:[%s686] ss:$2 sm:$0x1]
  %v688 = vmax.f32 %v681, %v685
  %v689 = vmax.f32 %v683, %v687
  %s690 = scalar_lea.vmem [#allocation2], 220
  %v691 = vld [vmem:[%s690] ss:$2 sm:$0xff]
  %s692 = scalar_lea.vmem [#allocation2], 236
  %v693 = vld [vmem:[%s692] ss:$2 sm:$0x1]
  %s694 = scalar_lea.vmem [#allocation2], 221
  %v695 = vld [vmem:[%s694] ss:$2 sm:$0xff]
  %s696 = scalar_lea.vmem [#allocation2], 237
  %v697 = vld [vmem:[%s696] ss:$2 sm:$0x1]
  %v698 = vmax.f32 %v691, %v695
  %v699 = vmax.f32 %v693, %v697
  %v700 = vmax.f32 %v688, %v698
  %v701 = vmax.f32 %v689, %v699
  %v702 = vmax.f32 %v700, 0.0
  %v703 = vmax.f32 %v701, 0.0
  %704 = vst [vmem:[#allocation3 + $0x64] sm:$0xff] %v702
  %705 = vst [vmem:[#allocation3 + $0x6c] sm:$0x1] %v703
  %s706 = scalar_lea.vmem [#allocation2], 240
  %v707 = vld [vmem:[%s706] ss:$2 sm:$0xff]
  %s708 = scalar_lea.vmem [#allocation2], 256
  %v709 = vld [vmem:[%s708] ss:$2 sm:$0x1]
  %s710 = scalar_lea.vmem [#allocation2], 241
  %v711 = vld [vmem:[%s710] ss:$2 sm:$0xff]
  %s712 = scalar_lea.vmem [#allocation2], 257
  %v713 = vld [vmem:[%s712] ss:$2 sm:$0x1]
  %v714 = vmax.f32 %v707, %v711
  %v715 = vmax.f32 %v709, %v713
  %s716 = scalar_lea.vmem [#allocation2], 260
  %v717 = vld [vmem:[%s716] ss:$2 sm:$0xff]
  %s718 = scalar_lea.vmem [#allocation2], 276
  %v719 = vld [vmem:[%s718] ss:$2 sm:$0x1]
  %s720 = scalar_lea.vmem [#allocation2], 261
  %v721 = vld [vmem:[%s720] ss:$2 sm:$0xff]
  %s722 = scalar_lea.vmem [#allocation2], 277
  %v723 = vld [vmem:[%s722] ss:$2 sm:$0x1]
  %v724 = vmax.f32 %v717, %v721
  %v725 = vmax.f32 %v719, %v723
  %v726 = vmax.f32 %v714, %v724
  %v727 = vmax.f32 %v715, %v725
  %v728 = vmax.f32 %v726, 0.0
  %v729 = vmax.f32 %v727, 0.0
  %730 = vst [vmem:[#allocation3 + $0x72] sm:$0xff] %v728
  %731 = vst [vmem:[#allocation3 + $0x7a] sm:$0x1] %v729
  %s732 = scalar_lea.vmem [#allocation2], 280
  %v733 = vld [vmem:[%s732] ss:$2 sm:$0xff]
  %s734 = scalar_lea.vmem [#allocation2], 296
  %v735 = vld [vmem:[%s734] ss:$2 sm:$0x1]
  %s736 = scalar_lea.vmem [#allocation2], 281
  %v737 = vld [vmem:[%s736] ss:$2 sm:$0xff]
  %s738 = scalar_lea.vmem [#allocation2], 297
  %v739 = vld [vmem:[%s738] ss:$2 sm:$0x1]
  %v740 = vmax.f32 %v733, %v737
  %v741 = vmax.f32 %v735, %v739
  %s742 = scalar_lea.vmem [#allocation2], 300
  %v743 = vld [vmem:[%s742] ss:$2 sm:$0xff]
  %s744 = scalar_lea.vmem [#allocation2], 316
  %v745 = vld [vmem:[%s744] ss:$2 sm:$0x1]
  %s746 = scalar_lea.vmem [#allocation2], 301
  %v747 = vld [vmem:[%s746] ss:$2 sm:$0xff]
  %s748 = scalar_lea.vmem [#allocation2], 317
  %v749 = vld [vmem:[%s748] ss:$2 sm:$0x1]
  %v750 = vmax.f32 %v743, %v747
  %v751 = vmax.f32 %v745, %v749
  %v752 = vmax.f32 %v740, %v750
  %v753 = vmax.f32 %v741, %v751
  %v754 = vmax.f32 %v752, 0.0
  %v755 = vmax.f32 %v753, 0.0
  %756 = vst [vmem:[#allocation3 + $0x80] sm:$0xff] %v754
  %757 = vst [vmem:[#allocation3 + $0x88] sm:$0x1] %v755
  %s758 = scalar_lea.vmem [#allocation2], 320
  %v759 = vld [vmem:[%s758] ss:$2 sm:$0xff]
  %s760 = scalar_lea.vmem [#allocation2], 336
  %v761 = vld [vmem:[%s760] ss:$2 sm:$0x1]
  %s762 = scalar_lea.vmem [#allocation2], 321
  %v763 = vld [vmem:[%s762] ss:$2 sm:$0xff]
  %s764 = scalar_lea.vmem [#allocation2], 337
  %v765 = vld [vmem:[%s764] ss:$2 sm:$0x1]
  %v766 = vmax.f32 %v759, %v763
  %v767 = vmax.f32 %v761, %v765
  %s768 = scalar_lea.vmem [#allocation2], 340
  %v769 = vld [vmem:[%s768] ss:$2 sm:$0xff]
  %s770 = scalar_lea.vmem [#allocation2], 356
  %v771 = vld [vmem:[%s770] ss:$2 sm:$0x1]
  %s772 = scalar_lea.vmem [#allocation2], 341
  %v773 = vld [vmem:[%s772] ss:$2 sm:$0xff]
  %s774 = scalar_lea.vmem [#allocation2], 357
  %v775 = vld [vmem:[%s774] ss:$2 sm:$0x1]
  %v776 = vmax.f32 %v769, %v773
  %v777 = vmax.f32 %v771, %v775
  %v778 = vmax.f32 %v766, %v776
  %v779 = vmax.f32 %v767, %v777
  %v780 = vmax.f32 %v778, 0.0
  %v781 = vmax.f32 %v779, 0.0
  %782 = vst [vmem:[#allocation3 + $0x8e] sm:$0xff] %v780
  %783 = vst [vmem:[#allocation3 + $0x96] sm:$0x1] %v781
  %v784 = vld [vmem:[#allocation3] sm:$0xff]
  %v785 = vld [vmem:[#allocation3 + $0x8] sm:$0xff]
  %v786 = vld [vmem:[#allocation3 + $0x10] sm:$0xff]
  %v787 = vld [vmem:[#allocation3 + $0x18] sm:$0xff]
  %v788 = vld [vmem:[#allocation3 + $0x20] sm:$0xff]
  %v789 = vld [vmem:[#allocation3 + $0x28] sm:$0xff]
  %v790 = vld [vmem:[#allocation3 + $0x30] sm:$0xff]
  %v791 = vld [vmem:[#allocation3 + $0x38] sm:$0xff]
  %v792 = vld [vmem:[#allocation3 + $0x40] sm:$0xff]
  %v793 = vld [vmem:[#allocation3 + $0x48] sm:$0xff]
  %v794 = vld [vmem:[#allocation3 + $0x50] sm:$0xff]
  %v795 = vld [vmem:[#allocation3 + $0x58] sm:$0xff]
  %v796 = vpack.c.bf16 %v785, %v784
  %v797 = vpack.c.bf16 %v787, %v786
  %v798 = vpack.c.bf16 %v789, %v788
  %v799 = vpack.c.bf16 %v791, %v790
  %v800 = vpack.c.bf16 %v793, %v792
  %v801 = vpack.c.bf16 %v795, %v794
  %v802 = vld [vmem:[%s3] sm:$0xf]
  %v803 = vld [vmem:[%s3 + $0x4] sm:$0xf]
  %v804 = vld [vmem:[%s3 + $0x8] sm:$0xf]
  %v805 = vld [vmem:[%s3 + $0xc] sm:$0xf]
  %v806 = vld [vmem:[%s3 + $0x10] sm:$0xf]
  %v807 = vld [vmem:[%s3 + $0x14] sm:$0xf]
  %v808 = vld [vmem:[%s3 + $0x18] sm:$0xf]
  %v809 = vld [vmem:[%s3 + $0x1c] sm:$0xf]
  %v810 = vld [vmem:[%s3 + $0x20] sm:$0xf]
  %v811 = vld [vmem:[%s3 + $0x24] sm:$0xf]
  %v812 = vld [vmem:[%s3 + $0x28] sm:$0xf]
  %v813 = vld [vmem:[%s3 + $0x2c] sm:$0xf]
  %v814 = vld [vmem:[%s3 + $0x30] sm:$0xf]
  %v815 = vld [vmem:[%s3 + $0x34] sm:$0xf]
  %v816 = vld [vmem:[%s3 + $0x38] sm:$0xf]
  %v817 = vld [vmem:[%s3 + $0x3c] sm:$0xf]
  %v818 = vld [vmem:[#allocation3 + $0x1] sm:$0xff]
  %v819 = vld [vmem:[#allocation3 + $0x9] sm:$0xff]
  %v820 = vld [vmem:[#allocation3 + $0x11] sm:$0xff]
  %v821 = vld [vmem:[#allocation3 + $0x19] sm:$0xff]
  %v822 = vld [vmem:[#allocation3 + $0x21] sm:$0xff]
  %v823 = vld [vmem:[#allocation3 + $0x29] sm:$0xff]
  %v824 = vld [vmem:[#allocation3 + $0x31] sm:$0xff]
  %v825 = vld [vmem:[#allocation3 + $0x39] sm:$0xff]
  %v826 = vld [vmem:[#allocation3 + $0x41] sm:$0xff]
  %v827 = vld [vmem:[#allocation3 + $0x49] sm:$0xff]
  %v828 = vld [vmem:[#allocation3 + $0x51] sm:$0xff]
  %v829 = vld [vmem:[#allocation3 + $0x59] sm:$0xff]
  %v830 = vpack.c.bf16 %v819, %v818
  %v831 = vpack.c.bf16 %v821, %v820
  %v832 = vpack.c.bf16 %v823, %v822
  %v833 = vpack.c.bf16 %v825, %v824
  %v834 = vpack.c.bf16 %v827, %v826
  %v835 = vpack.c.bf16 %v829, %v828
  %s836 = scalar_lea.vmem %s3, 64
  %v837 = vld [vmem:[%s836] sm:$0xf]
  %v838 = vld [vmem:[%s836 + $0x4] sm:$0xf]
  %v839 = vld [vmem:[%s836 + $0x8] sm:$0xf]
  %v840 = vld [vmem:[%s836 + $0xc] sm:$0xf]
  %v841 = vld [vmem:[%s836 + $0x10] sm:$0xf]
  %v842 = vld [vmem:[%s836 + $0x14] sm:$0xf]
  %v843 = vld [vmem:[%s836 + $0x18] sm:$0xf]
  %v844 = vld [vmem:[%s836 + $0x1c] sm:$0xf]
  %v845 = vld [vmem:[%s836 + $0x20] sm:$0xf]
  %v846 = vld [vmem:[%s836 + $0x24] sm:$0xf]
  %v847 = vld [vmem:[%s836 + $0x28] sm:$0xf]
  %v848 = vld [vmem:[%s836 + $0x2c] sm:$0xf]
  %v849 = vld [vmem:[%s836 + $0x30] sm:$0xf]
  %v850 = vld [vmem:[%s836 + $0x34] sm:$0xf]
  %v851 = vld [vmem:[%s836 + $0x38] sm:$0xf]
  %v852 = vld [vmem:[%s836 + $0x3c] sm:$0xf]
  %v869 = vunpack.c.l.b16 %v837
  %v870 = vunpack.c.l.b16 %v838
  %v871 = vunpack.c.l.b16 %v839
  %v872 = vunpack.c.l.b16 %v840
  %v873 = vunpack.c.l.b16 %v841
  %v874 = vunpack.c.l.b16 %v842
  %v875 = vunpack.c.l.b16 %v843
  %v876 = vunpack.c.l.b16 %v844
  %v877 = vunpack.c.l.b16 %v845
  %v878 = vunpack.c.l.b16 %v846
  %v879 = vunpack.c.l.b16 %v847
  %v880 = vunpack.c.l.b16 %v848
  %v881 = vunpack.c.l.b16 %v849
  %v882 = vunpack.c.l.b16 %v850
  %v883 = vunpack.c.l.b16 %v851
  %v884 = vunpack.c.l.b16 %v852
  %v885 = vpack.c.b16 %v870, %v869
  %v886 = vpack.c.b16 %v872, %v871
  %v887 = vpack.c.b16 %v874, %v873
  %v888 = vpack.c.b16 %v876, %v875
  %v889 = vpack.c.b16 %v878, %v877
  %v890 = vpack.c.b16 %v880, %v879
  %v891 = vpack.c.b16 %v882, %v881
  %v892 = vpack.c.b16 %v884, %v883
  %901 = vmatpush.bf16.msra.mxu0 %v892
  %902 = vmatpush.bf16.msra.mxu0 %v891
  %903 = vmatpush.bf16.msra.mxu0 %v890
  %904 = vmatpush.bf16.msra.mxu0 %v889
  %905 = vmatpush.bf16.msra.mxu0 %v888
  %906 = vmatpush.bf16.msra.mxu0 %v887
  %907 = vmatpush.bf16.msra.mxu0 %v886
  %908 = vmatpush.bf16.msra.mxu0 %v885
  %909 = vmatmul.bf16.gmra.mxu0 %v830
  %v910 = vpop.f32.mrf.mxu0
  %v911 = vadd.f32 0.0, %v910
  %v912 = vpop.f32.mrf.mxu0
  %v913 = vadd.f32 0.0, %v912
  %914 = vmatmul.bf16.gmra.mxu0 %v831
  %v915 = vpop.f32.mrf.mxu0
  %v916 = vadd.f32 0.0, %v915
  %v917 = vpop.f32.mrf.mxu0
  %v918 = vadd.f32 0.0, %v917
  %919 = vmatmul.bf16.gmra.mxu0 %v832
  %v920 = vpop.f32.mrf.mxu0
  %v921 = vadd.f32 0.0, %v920
  %v922 = vpop.f32.mrf.mxu0
  %v923 = vadd.f32 0.0, %v922
  %924 = vmatmul.bf16.gmra.mxu0 %v833
  %v925 = vpop.f32.mrf.mxu0
  %v926 = vadd.f32 0.0, %v925
  %v927 = vpop.f32.mrf.mxu0
  %v928 = vadd.f32 0.0, %v927
  %929 = vmatmul.bf16.gmra.mxu0 %v834
  %v930 = vpop.f32.mrf.mxu0
  %v931 = vadd.f32 0.0, %v930
  %v932 = vpop.f32.mrf.mxu0
  %v933 = vadd.f32 0.0, %v932
  %934 = vmatmul.bf16.gmra.mxu0 %v835
  %v935 = vpop.f32.mrf.mxu0
  %v936 = vadd.f32 0.0, %v935
  %v937 = vpop.f32.mrf.mxu0
  %v938 = vadd.f32 0.0, %v937
  %939 = vdwg.mxu0
  %v956 = vunpack.c.l.b16 %v802
  %v957 = vunpack.c.l.b16 %v803
  %v958 = vunpack.c.l.b16 %v804
  %v959 = vunpack.c.l.b16 %v805
  %v960 = vunpack.c.l.b16 %v806
  %v961 = vunpack.c.l.b16 %v807
  %v962 = vunpack.c.l.b16 %v808
  %v963 = vunpack.c.l.b16 %v809
  %v964 = vunpack.c.l.b16 %v810
  %v965 = vunpack.c.l.b16 %v811
  %v966 = vunpack.c.l.b16 %v812
  %v967 = vunpack.c.l.b16 %v813
  %v968 = vunpack.c.l.b16 %v814
  %v969 = vunpack.c.l.b16 %v815
  %v970 = vunpack.c.l.b16 %v816
  %v971 = vunpack.c.l.b16 %v817
  %v972 = vpack.c.b16 %v957, %v956
  %v973 = vpack.c.b16 %v959, %v958
  %v974 = vpack.c.b16 %v961, %v960
  %v975 = vpack.c.b16 %v963, %v962
  %v976 = vpack.c.b16 %v965, %v964
  %v977 = vpack.c.b16 %v967, %v966
  %v978 = vpack.c.b16 %v969, %v968
  %v979 = vpack.c.b16 %v971, %v970
  %988 = vmatpush.bf16.msra.mxu0 %v979
  %989 = vmatpush.bf16.msra.mxu0 %v978
  %990 = vmatpush.bf16.msra.mxu0 %v977
  %991 = vmatpush.bf16.msra.mxu0 %v976
  %992 = vmatpush.bf16.msra.mxu0 %v975
  %993 = vmatpush.bf16.msra.mxu0 %v974
  %994 = vmatpush.bf16.msra.mxu0 %v973
  %995 = vmatpush.bf16.msra.mxu0 %v972
  %996 = vmatmul.bf16.gmra.mxu0 %v796
  %v997 = vpop.f32.mrf.mxu0
  %v998 = vadd.f32 %v911, %v997
  %v999 = vpop.f32.mrf.mxu0
  %v1000 = vadd.f32 %v913, %v999
  %1001 = vmatmul.bf16.gmra.mxu0 %v797
  %v1002 = vpop.f32.mrf.mxu0
  %v1003 = vadd.f32 %v916, %v1002
  %v1004 = vpop.f32.mrf.mxu0
  %v1005 = vadd.f32 %v918, %v1004
  %1006 = vmatmul.bf16.gmra.mxu0 %v798
  %v1007 = vpop.f32.mrf.mxu0
  %v1008 = vadd.f32 %v921, %v1007
  %v1009 = vpop.f32.mrf.mxu0
  %v1010 = vadd.f32 %v923, %v1009
  %1011 = vmatmul.bf16.gmra.mxu0 %v799
  %v1012 = vpop.f32.mrf.mxu0
  %v1013 = vadd.f32 %v926, %v1012
  %v1014 = vpop.f32.mrf.mxu0
  %v1015 = vadd.f32 %v928, %v1014
  %1016 = vmatmul.bf16.gmra.mxu0 %v800
  %v1017 = vpop.f32.mrf.mxu0
  %v1018 = vadd.f32 %v931, %v1017
  %v1019 = vpop.f32.mrf.mxu0
  %v1020 = vadd.f32 %v933, %v1019
  %1021 = vmatmul.bf16.gmra.mxu0 %v801
  %v1022 = vpop.f32.mrf.mxu0
  %v1023 = vadd.f32 %v936, %v1022
  %v1024 = vpop.f32.mrf.mxu0
  %v1025 = vadd.f32 %v938, %v1024
  %1026 = vdwg.mxu0
  %v1027 = vld [vmem:[#allocation3 + $0x2] sm:$0xff]
  %v1028 = vld [vmem:[#allocation3 + $0xa] sm:$0xff]
  %v1029 = vld [vmem:[#allocation3 + $0x12] sm:$0xff]
  %v1030 = vld [vmem:[#allocation3 + $0x1a] sm:$0xff]
  %v1031 = vld [vmem:[#allocation3 + $0x22] sm:$0xff]
  %v1032 = vld [vmem:[#allocation3 + $0x2a] sm:$0xff]
  %v1033 = vld [vmem:[#allocation3 + $0x32] sm:$0xff]
  %v1034 = vld [vmem:[#allocation3 + $0x3a] sm:$0xff]
  %v1035 = vld [vmem:[#allocation3 + $0x42] sm:$0xff]
  %v1036 = vld [vmem:[#allocation3 + $0x4a] sm:$0xff]
  %v1037 = vld [vmem:[#allocation3 + $0x52] sm:$0xff]
  %v1038 = vld [vmem:[#allocation3 + $0x5a] sm:$0xff]
  %v1039 = vpack.c.bf16 %v1028, %v1027
  %v1040 = vpack.c.bf16 %v1030, %v1029
  %v1041 = vpack.c.bf16 %v1032, %v1031
  %v1042 = vpack.c.bf16 %v1034, %v1033
  %v1043 = vpack.c.bf16 %v1036, %v1035
  %v1044 = vpack.c.bf16 %v1038, %v1037
  %s1045 = scalar_lea.vmem %s3, 128
  %v1046 = vld [vmem:[%s1045] sm:$0xf]
  %v1047 = vld [vmem:[%s1045 + $0x4] sm:$0xf]
  %v1048 = vld [vmem:[%s1045 + $0x8] sm:$0xf]
  %v1049 = vld [vmem:[%s1045 + $0xc] sm:$0xf]
  %v1050 = vld [vmem:[%s1045 + $0x10] sm:$0xf]
  %v1051 = vld [vmem:[%s1045 + $0x14] sm:$0xf]
  %v1052 = vld [vmem:[%s1045 + $0x18] sm:$0xf]
  %v1053 = vld [vmem:[%s1045 + $0x1c] sm:$0xf]
  %v1054 = vld [vmem:[%s1045 + $0x20] sm:$0xf]
  %v1055 = vld [vmem:[%s1045 + $0x24] sm:$0xf]
  %v1056 = vld [vmem:[%s1045 + $0x28] sm:$0xf]
  %v1057 = vld [vmem:[%s1045 + $0x2c] sm:$0xf]
  %v1058 = vld [vmem:[%s1045 + $0x30] sm:$0xf]
  %v1059 = vld [vmem:[%s1045 + $0x34] sm:$0xf]
  %v1060 = vld [vmem:[%s1045 + $0x38] sm:$0xf]
  %v1061 = vld [vmem:[%s1045 + $0x3c] sm:$0xf]
  %v1078 = vunpack.c.l.b16 %v1046
  %v1079 = vunpack.c.l.b16 %v1047
  %v1080 = vunpack.c.l.b16 %v1048
  %v1081 = vunpack.c.l.b16 %v1049
  %v1082 = vunpack.c.l.b16 %v1050
  %v1083 = vunpack.c.l.b16 %v1051
  %v1084 = vunpack.c.l.b16 %v1052
  %v1085 = vunpack.c.l.b16 %v1053
  %v1086 = vunpack.c.l.b16 %v1054
  %v1087 = vunpack.c.l.b16 %v1055
  %v1088 = vunpack.c.l.b16 %v1056
  %v1089 = vunpack.c.l.b16 %v1057
  %v1090 = vunpack.c.l.b16 %v1058
  %v1091 = vunpack.c.l.b16 %v1059
  %v1092 = vunpack.c.l.b16 %v1060
  %v1093 = vunpack.c.l.b16 %v1061
  %v1094 = vpack.c.b16 %v1079, %v1078
  %v1095 = vpack.c.b16 %v1081, %v1080
  %v1096 = vpack.c.b16 %v1083, %v1082
  %v1097 = vpack.c.b16 %v1085, %v1084
  %v1098 = vpack.c.b16 %v1087, %v1086
  %v1099 = vpack.c.b16 %v1089, %v1088
  %v1100 = vpack.c.b16 %v1091, %v1090
  %v1101 = vpack.c.b16 %v1093, %v1092
  %1110 = vmatpush.bf16.msra.mxu0 %v1101
  %1111 = vmatpush.bf16.msra.mxu0 %v1100
  %1112 = vmatpush.bf16.msra.mxu0 %v1099
  %1113 = vmatpush.bf16.msra.mxu0 %v1098
  %1114 = vmatpush.bf16.msra.mxu0 %v1097
  %1115 = vmatpush.bf16.msra.mxu0 %v1096
  %1116 = vmatpush.bf16.msra.mxu0 %v1095
  %1117 = vmatpush.bf16.msra.mxu0 %v1094
  %1118 = vmatmul.bf16.gmra.mxu0 %v1039
  %v1119 = vpop.f32.mrf.mxu0
  %v1120 = vadd.f32 0.0, %v1119
  %v1121 = vpop.f32.mrf.mxu0
  %v1122 = vadd.f32 0.0, %v1121
  %1123 = vmatmul.bf16.gmra.mxu0 %v1040
  %v1124 = vpop.f32.mrf.mxu0
  %v1125 = vadd.f32 0.0, %v1124
  %v1126 = vpop.f32.mrf.mxu0
  %v1127 = vadd.f32 0.0, %v1126
  %1128 = vmatmul.bf16.gmra.mxu0 %v1041
  %v1129 = vpop.f32.mrf.mxu0
  %v1130 = vadd.f32 0.0, %v1129
  %v1131 = vpop.f32.mrf.mxu0
  %v1132 = vadd.f32 0.0, %v1131
  %1133 = vmatmul.bf16.gmra.mxu0 %v1042
  %v1134 = vpop.f32.mrf.mxu0
  %v1135 = vadd.f32 0.0, %v1134
  %v1136 = vpop.f32.mrf.mxu0
  %v1137 = vadd.f32 0.0, %v1136
  %1138 = vmatmul.bf16.gmra.mxu0 %v1043
  %v1139 = vpop.f32.mrf.mxu0
  %v1140 = vadd.f32 0.0, %v1139
  %v1141 = vpop.f32.mrf.mxu0
  %v1142 = vadd.f32 0.0, %v1141
  %1143 = vmatmul.bf16.gmra.mxu0 %v1044
  %v1144 = vpop.f32.mrf.mxu0
  %v1145 = vadd.f32 0.0, %v1144
  %v1146 = vpop.f32.mrf.mxu0
  %v1147 = vadd.f32 0.0, %v1146
  %1148 = vdwg.mxu0
  %v1149 = vadd.f32 %v998, %v1120
  %v1150 = vadd.f32 %v1000, %v1122
  %v1151 = vadd.f32 %v1003, %v1125
  %v1152 = vadd.f32 %v1005, %v1127
  %v1153 = vadd.f32 %v1008, %v1130
  %v1154 = vadd.f32 %v1010, %v1132
  %v1155 = vadd.f32 %v1013, %v1135
  %v1156 = vadd.f32 %v1015, %v1137
  %v1157 = vadd.f32 %v1018, %v1140
  %v1158 = vadd.f32 %v1020, %v1142
  %v1159 = vadd.f32 %v1023, %v1145
  %v1160 = vadd.f32 %v1025, %v1147
  %v1161 = vld [vmem:[#allocation3 + $0xe] sm:$0xff]
  %v1162 = vld [vmem:[#allocation3 + $0x16] sm:$0xff]
  %v1163 = vld [vmem:[#allocation3 + $0x1e] sm:$0xff]
  %v1164 = vld [vmem:[#allocation3 + $0x26] sm:$0xff]
  %v1165 = vld [vmem:[#allocation3 + $0x2e] sm:$0xff]
  %v1166 = vld [vmem:[#allocation3 + $0x36] sm:$0xff]
  %v1167 = vld [vmem:[#allocation3 + $0x3e] sm:$0xff]
  %v1168 = vld [vmem:[#allocation3 + $0x46] sm:$0xff]
  %v1169 = vld [vmem:[#allocation3 + $0x4e] sm:$0xff]
  %v1170 = vld [vmem:[#allocation3 + $0x56] sm:$0xff]
  %v1171 = vld [vmem:[#allocation3 + $0x5e] sm:$0xff]
  %v1172 = vld [vmem:[#allocation3 + $0x66] sm:$0xff]
  %v1173 = vpack.c.bf16 %v1162, %v1161
  %v1174 = vpack.c.bf16 %v1164, %v1163
  %v1175 = vpack.c.bf16 %v1166, %v1165
  %v1176 = vpack.c.bf16 %v1168, %v1167
  %v1177 = vpack.c.bf16 %v1170, %v1169
  %v1178 = vpack.c.bf16 %v1172, %v1171
  %s1179 = scalar_lea.vmem %s3, 192
  %v1180 = vld [vmem:[%s1179] sm:$0xf]
  %v1181 = vld [vmem:[%s1179 + $0x4] sm:$0xf]
  %v1182 = vld [vmem:[%s1179 + $0x8] sm:$0xf]
  %v1183 = vld [vmem:[%s1179 + $0xc] sm:$0xf]
  %v1184 = vld [vmem:[%s1179 + $0x10] sm:$0xf]
  %v1185 = vld [vmem:[%s1179 + $0x14] sm:$0xf]
  %v1186 = vld [vmem:[%s1179 + $0x18] sm:$0xf]
  %v1187 = vld [vmem:[%s1179 + $0x1c] sm:$0xf]
  %v1188 = vld [vmem:[%s1179 + $0x20] sm:$0xf]
  %v1189 = vld [vmem:[%s1179 + $0x24] sm:$0xf]
  %v1190 = vld [vmem:[%s1179 + $0x28] sm:$0xf]
  %v1191 = vld [vmem:[%s1179 + $0x2c] sm:$0xf]
  %v1192 = vld [vmem:[%s1179 + $0x30] sm:$0xf]
  %v1193 = vld [vmem:[%s1179 + $0x34] sm:$0xf]
  %v1194 = vld [vmem:[%s1179 + $0x38] sm:$0xf]
  %v1195 = vld [vmem:[%s1179 + $0x3c] sm:$0xf]
  %v1212 = vunpack.c.l.b16 %v1180
  %v1213 = vunpack.c.l.b16 %v1181
  %v1214 = vunpack.c.l.b16 %v1182
  %v1215 = vunpack.c.l.b16 %v1183
  %v1216 = vunpack.c.l.b16 %v1184
  %v1217 = vunpack.c.l.b16 %v1185
  %v1218 = vunpack.c.l.b16 %v1186
  %v1219 = vunpack.c.l.b16 %v1187
  %v1220 = vunpack.c.l.b16 %v1188
  %v1221 = vunpack.c.l.b16 %v1189
  %v1222 = vunpack.c.l.b16 %v1190
  %v1223 = vunpack.c.l.b16 %v1191
  %v1224 = vunpack.c.l.b16 %v1192
  %v1225 = vunpack.c.l.b16 %v1193
  %v1226 = vunpack.c.l.b16 %v1194
  %v1227 = vunpack.c.l.b16 %v1195
  %v1228 = vpack.c.b16 %v1213, %v1212
  %v1229 = vpack.c.b16 %v1215, %v1214
  %v1230 = vpack.c.b16 %v1217, %v1216
  %v1231 = vpack.c.b16 %v1219, %v1218
  %v1232 = vpack.c.b16 %v1221, %v1220
  %v1233 = vpack.c.b16 %v1223, %v1222
  %v1234 = vpack.c.b16 %v1225, %v1224
  %v1235 = vpack.c.b16 %v1227, %v1226
  %1244 = vmatpush.bf16.msra.mxu0 %v1235
  %1245 = vmatpush.bf16.msra.mxu0 %v1234
  %1246 = vmatpush.bf16.msra.mxu0 %v1233
  %1247 = vmatpush.bf16.msra.mxu0 %v1232
  %1248 = vmatpush.bf16.msra.mxu0 %v1231
  %1249 = vmatpush.bf16.msra.mxu0 %v1230
  %1250 = vmatpush.bf16.msra.mxu0 %v1229
  %1251 = vmatpush.bf16.msra.mxu0 %v1228
  %1252 = vmatmul.bf16.gmra.mxu0 %v1173
  %v1253 = vpop.f32.mrf.mxu0
  %v1254 = vadd.f32 0.0, %v1253
  %v1255 = vpop.f32.mrf.mxu0
  %v1256 = vadd.f32 0.0, %v1255
  %1257 = vmatmul.bf16.gmra.mxu0 %v1174
  %v1258 = vpop.f32.mrf.mxu0
  %v1259 = vadd.f32 0.0, %v1258
  %v1260 = vpop.f32.mrf.mxu0
  %v1261 = vadd.f32 0.0, %v1260
  %1262 = vmatmul.bf16.gmra.mxu0 %v1175
  %v1263 = vpop.f32.mrf.mxu0
  %v1264 = vadd.f32 0.0, %v1263
  %v1265 = vpop.f32.mrf.mxu0
  %v1266 = vadd.f32 0.0, %v1265
  %1267 = vmatmul.bf16.gmra.mxu0 %v1176
  %v1268 = vpop.f32.mrf.mxu0
  %v1269 = vadd.f32 0.0, %v1268
  %v1270 = vpop.f32.mrf.mxu0
  %v1271 = vadd.f32 0.0, %v1270
  %1272 = vmatmul.bf16.gmra.mxu0 %v1177
  %v1273 = vpop.f32.mrf.mxu0
  %v1274 = vadd.f32 0.0, %v1273
  %v1275 = vpop.f32.mrf.mxu0
  %v1276 = vadd.f32 0.0, %v1275
  %1277 = vmatmul.bf16.gmra.mxu0 %v1178
  %v1278 = vpop.f32.mrf.mxu0
  %v1279 = vadd.f32 0.0, %v1278
  %v1280 = vpop.f32.mrf.mxu0
  %v1281 = vadd.f32 0.0, %v1280
  %1282 = vdwg.mxu0
  %v1283 = vadd.f32 %v1149, %v1254
  %v1284 = vadd.f32 %v1150, %v1256
  %v1285 = vadd.f32 %v1151, %v1259
  %v1286 = vadd.f32 %v1152, %v1261
  %v1287 = vadd.f32 %v1153, %v1264
  %v1288 = vadd.f32 %v1154, %v1266
  %v1289 = vadd.f32 %v1155, %v1269
  %v1290 = vadd.f32 %v1156, %v1271
  %v1291 = vadd.f32 %v1157, %v1274
  %v1292 = vadd.f32 %v1158, %v1276
  %v1293 = vadd.f32 %v1159, %v1279
  %v1294 = vadd.f32 %v1160, %v1281
  %v1295 = vld [vmem:[#allocation3 + $0xf] sm:$0xff]
  %v1296 = vld [vmem:[#allocation3 + $0x17] sm:$0xff]
  %v1297 = vld [vmem:[#allocation3 + $0x1f] sm:$0xff]
  %v1298 = vld [vmem:[#allocation3 + $0x27] sm:$0xff]
  %v1299 = vld [vmem:[#allocation3 + $0x2f] sm:$0xff]
  %v1300 = vld [vmem:[#allocation3 + $0x37] sm:$0xff]
  %v1301 = vld [vmem:[#allocation3 + $0x3f] sm:$0xff]
  %v1302 = vld [vmem:[#allocation3 + $0x47] sm:$0xff]
  %v1303 = vld [vmem:[#allocation3 + $0x4f] sm:$0xff]
  %v1304 = vld [vmem:[#allocation3 + $0x57] sm:$0xff]
  %v1305 = vld [vmem:[#allocation3 + $0x5f] sm:$0xff]
  %v1306 = vld [vmem:[#allocation3 + $0x67] sm:$0xff]
  %v1307 = vpack.c.bf16 %v1296, %v1295
  %v1308 = vpack.c.bf16 %v1298, %v1297
  %v1309 = vpack.c.bf16 %v1300, %v1299
  %v1310 = vpack.c.bf16 %v1302, %v1301
  %v1311 = vpack.c.bf16 %v1304, %v1303
  %v1312 = vpack.c.bf16 %v1306, %v1305
  %s1313 = scalar_lea.vmem %s3, 256
  %v1314 = vld [vmem:[%s1313] sm:$0xf]
  %v1315 = vld [vmem:[%s1313 + $0x4] sm:$0xf]
  %v1316 = vld [vmem:[%s1313 + $0x8] sm:$0xf]
  %v1317 = vld [vmem:[%s1313 + $0xc] sm:$0xf]
  %v1318 = vld [vmem:[%s1313 + $0x10] sm:$0xf]
  %v1319 = vld [vmem:[%s1313 + $0x14] sm:$0xf]
  %v1320 = vld [vmem:[%s1313 + $0x18] sm:$0xf]
  %v1321 = vld [vmem:[%s1313 + $0x1c] sm:$0xf]
  %v1322 = vld [vmem:[%s1313 + $0x20] sm:$0xf]
  %v1323 = vld [vmem:[%s1313 + $0x24] sm:$0xf]
  %v1324 = vld [vmem:[%s1313 + $0x28] sm:$0xf]
  %v1325 = vld [vmem:[%s1313 + $0x2c] sm:$0xf]
  %v1326 = vld [vmem:[%s1313 + $0x30] sm:$0xf]
  %v1327 = vld [vmem:[%s1313 + $0x34] sm:$0xf]
  %v1328 = vld [vmem:[%s1313 + $0x38] sm:$0xf]
  %v1329 = vld [vmem:[%s1313 + $0x3c] sm:$0xf]
  %v1346 = vunpack.c.l.b16 %v1314
  %v1347 = vunpack.c.l.b16 %v1315
  %v1348 = vunpack.c.l.b16 %v1316
  %v1349 = vunpack.c.l.b16 %v1317
  %v1350 = vunpack.c.l.b16 %v1318
  %v1351 = vunpack.c.l.b16 %v1319
  %v1352 = vunpack.c.l.b16 %v1320
  %v1353 = vunpack.c.l.b16 %v1321
  %v1354 = vunpack.c.l.b16 %v1322
  %v1355 = vunpack.c.l.b16 %v1323
  %v1356 = vunpack.c.l.b16 %v1324
  %v1357 = vunpack.c.l.b16 %v1325
  %v1358 = vunpack.c.l.b16 %v1326
  %v1359 = vunpack.c.l.b16 %v1327
  %v1360 = vunpack.c.l.b16 %v1328
  %v1361 = vunpack.c.l.b16 %v1329
  %v1362 = vpack.c.b16 %v1347, %v1346
  %v1363 = vpack.c.b16 %v1349, %v1348
  %v1364 = vpack.c.b16 %v1351, %v1350
  %v1365 = vpack.c.b16 %v1353, %v1352
  %v1366 = vpack.c.b16 %v1355, %v1354
  %v1367 = vpack.c.b16 %v1357, %v1356
  %v1368 = vpack.c.b16 %v1359, %v1358
  %v1369 = vpack.c.b16 %v1361, %v1360
  %1378 = vmatpush.bf16.msra.mxu0 %v1369
  %1379 = vmatpush.bf16.msra.mxu0 %v1368
  %1380 = vmatpush.bf16.msra.mxu0 %v1367
  %1381 = vmatpush.bf16.msra.mxu0 %v1366
  %1382 = vmatpush.bf16.msra.mxu0 %v1365
  %1383 = vmatpush.bf16.msra.mxu0 %v1364
  %1384 = vmatpush.bf16.msra.mxu0 %v1363
  %1385 = vmatpush.bf16.msra.mxu0 %v1362
  %1386 = vmatmul.bf16.gmra.mxu0 %v1307
  %v1387 = vpop.f32.mrf.mxu0
  %v1388 = vadd.f32 0.0, %v1387
  %v1389 = vpop.f32.mrf.mxu0
  %v1390 = vadd.f32 0.0, %v1389
  %1391 = vmatmul.bf16.gmra.mxu0 %v1308
  %v1392 = vpop.f32.mrf.mxu0
  %v1393 = vadd.f32 0.0, %v1392
  %v1394 = vpop.f32.mrf.mxu0
  %v1395 = vadd.f32 0.0, %v1394
  %1396 = vmatmul.bf16.gmra.mxu0 %v1309
  %v1397 = vpop.f32.mrf.mxu0
  %v1398 = vadd.f32 0.0, %v1397
  %v1399 = vpop.f32.mrf.mxu0
  %v1400 = vadd.f32 0.0, %v1399
  %1401 = vmatmul.bf16.gmra.mxu0 %v1310
  %v1402 = vpop.f32.mrf.mxu0
  %v1403 = vadd.f32 0.0, %v1402
  %v1404 = vpop.f32.mrf.mxu0
  %v1405 = vadd.f32 0.0, %v1404
  %1406 = vmatmul.bf16.gmra.mxu0 %v1311
  %v1407 = vpop.f32.mrf.mxu0
  %v1408 = vadd.f32 0.0, %v1407
  %v1409 = vpop.f32.mrf.mxu0
  %v1410 = vadd.f32 0.0, %v1409
  %1411 = vmatmul.bf16.gmra.mxu0 %v1312
  %v1412 = vpop.f32.mrf.mxu0
  %v1413 = vadd.f32 0.0, %v1412
  %v1414 = vpop.f32.mrf.mxu0
  %v1415 = vadd.f32 0.0, %v1414
  %1416 = vdwg.mxu0
  %v1417 = vadd.f32 %v1283, %v1388
  %v1418 = vadd.f32 %v1284, %v1390
  %v1419 = vadd.f32 %v1285, %v1393
  %v1420 = vadd.f32 %v1286, %v1395
  %v1421 = vadd.f32 %v1287, %v1398
  %v1422 = vadd.f32 %v1288, %v1400
  %v1423 = vadd.f32 %v1289, %v1403
  %v1424 = vadd.f32 %v1290, %v1405
  %v1425 = vadd.f32 %v1291, %v1408
  %v1426 = vadd.f32 %v1292, %v1410
  %v1427 = vadd.f32 %v1293, %v1413
  %v1428 = vadd.f32 %v1294, %v1415
  %v1429 = vld [vmem:[#allocation3 + $0x10] sm:$0xff]
  %v1430 = vld [vmem:[#allocation3 + $0x18] sm:$0xff]
  %v1431 = vld [vmem:[#allocation3 + $0x20] sm:$0xff]
  %v1432 = vld [vmem:[#allocation3 + $0x28] sm:$0xff]
  %v1433 = vld [vmem:[#allocation3 + $0x30] sm:$0xff]
  %v1434 = vld [vmem:[#allocation3 + $0x38] sm:$0xff]
  %v1435 = vld [vmem:[#allocation3 + $0x40] sm:$0xff]
  %v1436 = vld [vmem:[#allocation3 + $0x48] sm:$0xff]
  %v1437 = vld [vmem:[#allocation3 + $0x50] sm:$0xff]
  %v1438 = vld [vmem:[#allocation3 + $0x58] sm:$0xff]
  %v1439 = vld [vmem:[#allocation3 + $0x60] sm:$0xff]
  %v1440 = vld [vmem:[#allocation3 + $0x68] sm:$0xff]
  %v1441 = vpack.c.bf16 %v1430, %v1429
  %v1442 = vpack.c.bf16 %v1432, %v1431
  %v1443 = vpack.c.bf16 %v1434, %v1433
  %v1444 = vpack.c.bf16 %v1436, %v1435
  %v1445 = vpack.c.bf16 %v1438, %v1437
  %v1446 = vpack.c.bf16 %v1440, %v1439
  %s1447 = scalar_lea.vmem %s3, 320
  %v1448 = vld [vmem:[%s1447] sm:$0xf]
  %v1449 = vld [vmem:[%s1447 + $0x4] sm:$0xf]
  %v1450 = vld [vmem:[%s1447 + $0x8] sm:$0xf]
  %v1451 = vld [vmem:[%s1447 + $0xc] sm:$0xf]
  %v1452 = vld [vmem:[%s1447 + $0x10] sm:$0xf]
  %v1453 = vld [vmem:[%s1447 + $0x14] sm:$0xf]
  %v1454 = vld [vmem:[%s1447 + $0x18] sm:$0xf]
  %v1455 = vld [vmem:[%s1447 + $0x1c] sm:$0xf]
  %v1456 = vld [vmem:[%s1447 + $0x20] sm:$0xf]
  %v1457 = vld [vmem:[%s1447 + $0x24] sm:$0xf]
  %v1458 = vld [vmem:[%s1447 + $0x28] sm:$0xf]
  %v1459 = vld [vmem:[%s1447 + $0x2c] sm:$0xf]
  %v1460 = vld [vmem:[%s1447 + $0x30] sm:$0xf]
  %v1461 = vld [vmem:[%s1447 + $0x34] sm:$0xf]
  %v1462 = vld [vmem:[%s1447 + $0x38] sm:$0xf]
  %v1463 = vld [vmem:[%s1447 + $0x3c] sm:$0xf]
  %v1480 = vunpack.c.l.b16 %v1448
  %v1481 = vunpack.c.l.b16 %v1449
  %v1482 = vunpack.c.l.b16 %v1450
  %v1483 = vunpack.c.l.b16 %v1451
  %v1484 = vunpack.c.l.b16 %v1452
  %v1485 = vunpack.c.l.b16 %v1453
  %v1486 = vunpack.c.l.b16 %v1454
  %v1487 = vunpack.c.l.b16 %v1455
  %v1488 = vunpack.c.l.b16 %v1456
  %v1489 = vunpack.c.l.b16 %v1457
  %v1490 = vunpack.c.l.b16 %v1458
  %v1491 = vunpack.c.l.b16 %v1459
  %v1492 = vunpack.c.l.b16 %v1460
  %v1493 = vunpack.c.l.b16 %v1461
  %v1494 = vunpack.c.l.b16 %v1462
  %v1495 = vunpack.c.l.b16 %v1463
  %v1496 = vpack.c.b16 %v1481, %v1480
  %v1497 = vpack.c.b16 %v1483, %v1482
  %v1498 = vpack.c.b16 %v1485, %v1484
  %v1499 = vpack.c.b16 %v1487, %v1486
  %v1500 = vpack.c.b16 %v1489, %v1488
  %v1501 = vpack.c.b16 %v1491, %v1490
  %v1502 = vpack.c.b16 %v1493, %v1492
  %v1503 = vpack.c.b16 %v1495, %v1494
  %1512 = vmatpush.bf16.msra.mxu0 %v1503
  %1513 = vmatpush.bf16.msra.mxu0 %v1502
  %1514 = vmatpush.bf16.msra.mxu0 %v1501
  %1515 = vmatpush.bf16.msra.mxu0 %v1500
  %1516 = vmatpush.bf16.msra.mxu0 %v1499
  %1517 = vmatpush.bf16.msra.mxu0 %v1498
  %1518 = vmatpush.bf16.msra.mxu0 %v1497
  %1519 = vmatpush.bf16.msra.mxu0 %v1496
  %1520 = vmatmul.bf16.gmra.mxu0 %v1441
  %v1521 = vpop.f32.mrf.mxu0
  %v1522 = vadd.f32 0.0, %v1521
  %v1523 = vpop.f32.mrf.mxu0
  %v1524 = vadd.f32 0.0, %v1523
  %1525 = vmatmul.bf16.gmra.mxu0 %v1442
  %v1526 = vpop.f32.mrf.mxu0
  %v1527 = vadd.f32 0.0, %v1526
  %v1528 = vpop.f32.mrf.mxu0
  %v1529 = vadd.f32 0.0, %v1528
  %1530 = vmatmul.bf16.gmra.mxu0 %v1443
  %v1531 = vpop.f32.mrf.mxu0
  %v1532 = vadd.f32 0.0, %v1531
  %v1533 = vpop.f32.mrf.mxu0
  %v1534 = vadd.f32 0.0, %v1533
  %1535 = vmatmul.bf16.gmra.mxu0 %v1444
  %v1536 = vpop.f32.mrf.mxu0
  %v1537 = vadd.f32 0.0, %v1536
  %v1538 = vpop.f32.mrf.mxu0
  %v1539 = vadd.f32 0.0, %v1538
  %1540 = vmatmul.bf16.gmra.mxu0 %v1445
  %v1541 = vpop.f32.mrf.mxu0
  %v1542 = vadd.f32 0.0, %v1541
  %v1543 = vpop.f32.mrf.mxu0
  %v1544 = vadd.f32 0.0, %v1543
  %1545 = vmatmul.bf16.gmra.mxu0 %v1446
  %v1546 = vpop.f32.mrf.mxu0
  %v1547 = vadd.f32 0.0, %v1546
  %v1548 = vpop.f32.mrf.mxu0
  %v1549 = vadd.f32 0.0, %v1548
  %1550 = vdwg.mxu0
  %v1551 = vadd.f32 %v1417, %v1522
  %v1552 = vadd.f32 %v1418, %v1524
  %v1553 = vadd.f32 %v1419, %v1527
  %v1554 = vadd.f32 %v1420, %v1529
  %v1555 = vadd.f32 %v1421, %v1532
  %v1556 = vadd.f32 %v1422, %v1534
  %v1557 = vadd.f32 %v1423, %v1537
  %v1558 = vadd.f32 %v1424, %v1539
  %v1559 = vadd.f32 %v1425, %v1542
  %v1560 = vadd.f32 %v1426, %v1544
  %v1561 = vadd.f32 %v1427, %v1547
  %v1562 = vadd.f32 %v1428, %v1549
  %v1563 = vld [vmem:[#allocation3 + $0x1c] sm:$0xff]
  %v1564 = vld [vmem:[#allocation3 + $0x24] sm:$0xff]
  %v1565 = vld [vmem:[#allocation3 + $0x2c] sm:$0xff]
  %v1566 = vld [vmem:[#allocation3 + $0x34] sm:$0xff]
  %v1567 = vld [vmem:[#allocation3 + $0x3c] sm:$0xff]
  %v1568 = vld [vmem:[#allocation3 + $0x44] sm:$0xff]
  %v1569 = vld [vmem:[#allocation3 + $0x4c] sm:$0xff]
  %v1570 = vld [vmem:[#allocation3 + $0x54] sm:$0xff]
  %v1571 = vld [vmem:[#allocation3 + $0x5c] sm:$0xff]
  %v1572 = vld [vmem:[#allocation3 + $0x64] sm:$0xff]
  %v1573 = vld [vmem:[#allocation3 + $0x6c] sm:$0xff]
  %v1574 = vld [vmem:[#allocation3 + $0x74] sm:$0xff]
  %v1575 = vpack.c.bf16 %v1564, %v1563
  %v1576 = vpack.c.bf16 %v1566, %v1565
  %v1577 = vpack.c.bf16 %v1568, %v1567
  %v1578 = vpack.c.bf16 %v1570, %v1569
  %v1579 = vpack.c.bf16 %v1572, %v1571
  %v1580 = vpack.c.bf16 %v1574, %v1573
  %s1581 = scalar_lea.vmem %s3, 384
  %v1582 = vld [vmem:[%s1581] sm:$0xf]
  %v1583 = vld [vmem:[%s1581 + $0x4] sm:$0xf]
  %v1584 = vld [vmem:[%s1581 + $0x8] sm:$0xf]
  %v1585 = vld [vmem:[%s1581 + $0xc] sm:$0xf]
  %v1586 = vld [vmem:[%s1581 + $0x10] sm:$0xf]
  %v1587 = vld [vmem:[%s1581 + $0x14] sm:$0xf]
  %v1588 = vld [vmem:[%s1581 + $0x18] sm:$0xf]
  %v1589 = vld [vmem:[%s1581 + $0x1c] sm:$0xf]
  %v1590 = vld [vmem:[%s1581 + $0x20] sm:$0xf]
  %v1591 = vld [vmem:[%s1581 + $0x24] sm:$0xf]
  %v1592 = vld [vmem:[%s1581 + $0x28] sm:$0xf]
  %v1593 = vld [vmem:[%s1581 + $0x2c] sm:$0xf]
  %v1594 = vld [vmem:[%s1581 + $0x30] sm:$0xf]
  %v1595 = vld [vmem:[%s1581 + $0x34] sm:$0xf]
  %v1596 = vld [vmem:[%s1581 + $0x38] sm:$0xf]
  %v1597 = vld [vmem:[%s1581 + $0x3c] sm:$0xf]
  %v1614 = vunpack.c.l.b16 %v1582
  %v1615 = vunpack.c.l.b16 %v1583
  %v1616 = vunpack.c.l.b16 %v1584
  %v1617 = vunpack.c.l.b16 %v1585
  %v1618 = vunpack.c.l.b16 %v1586
  %v1619 = vunpack.c.l.b16 %v1587
  %v1620 = vunpack.c.l.b16 %v1588
  %v1621 = vunpack.c.l.b16 %v1589
  %v1622 = vunpack.c.l.b16 %v1590
  %v1623 = vunpack.c.l.b16 %v1591
  %v1624 = vunpack.c.l.b16 %v1592
  %v1625 = vunpack.c.l.b16 %v1593
  %v1626 = vunpack.c.l.b16 %v1594
  %v1627 = vunpack.c.l.b16 %v1595
  %v1628 = vunpack.c.l.b16 %v1596
  %v1629 = vunpack.c.l.b16 %v1597
  %v1630 = vpack.c.b16 %v1615, %v1614
  %v1631 = vpack.c.b16 %v1617, %v1616
  %v1632 = vpack.c.b16 %v1619, %v1618
  %v1633 = vpack.c.b16 %v1621, %v1620
  %v1634 = vpack.c.b16 %v1623, %v1622
  %v1635 = vpack.c.b16 %v1625, %v1624
  %v1636 = vpack.c.b16 %v1627, %v1626
  %v1637 = vpack.c.b16 %v1629, %v1628
  %1646 = vmatpush.bf16.msra.mxu0 %v1637
  %1647 = vmatpush.bf16.msra.mxu0 %v1636
  %1648 = vmatpush.bf16.msra.mxu0 %v1635
  %1649 = vmatpush.bf16.msra.mxu0 %v1634
  %1650 = vmatpush.bf16.msra.mxu0 %v1633
  %1651 = vmatpush.bf16.msra.mxu0 %v1632
  %1652 = vmatpush.bf16.msra.mxu0 %v1631
  %1653 = vmatpush.bf16.msra.mxu0 %v1630
  %1654 = vmatmul.bf16.gmra.mxu0 %v1575
  %v1655 = vpop.f32.mrf.mxu0
  %v1656 = vadd.f32 0.0, %v1655
  %v1657 = vpop.f32.mrf.mxu0
  %v1658 = vadd.f32 0.0, %v1657
  %1659 = vmatmul.bf16.gmra.mxu0 %v1576
  %v1660 = vpop.f32.mrf.mxu0
  %v1661 = vadd.f32 0.0, %v1660
  %v1662 = vpop.f32.mrf.mxu0
  %v1663 = vadd.f32 0.0, %v1662
  %1664 = vmatmul.bf16.gmra.mxu0 %v1577
  %v1665 = vpop.f32.mrf.mxu0
  %v1666 = vadd.f32 0.0, %v1665
  %v1667 = vpop.f32.mrf.mxu0
  %v1668 = vadd.f32 0.0, %v1667
  %1669 = vmatmul.bf16.gmra.mxu0 %v1578
  %v1670 = vpop.f32.mrf.mxu0
  %v1671 = vadd.f32 0.0, %v1670
  %v1672 = vpop.f32.mrf.mxu0
  %v1673 = vadd.f32 0.0, %v1672
  %1674 = vmatmul.bf16.gmra.mxu0 %v1579
  %v1675 = vpop.f32.mrf.mxu0
  %v1676 = vadd.f32 0.0, %v1675
  %v1677 = vpop.f32.mrf.mxu0
  %v1678 = vadd.f32 0.0, %v1677
  %1679 = vmatmul.bf16.gmra.mxu0 %v1580
  %v1680 = vpop.f32.mrf.mxu0
  %v1681 = vadd.f32 0.0, %v1680
  %v1682 = vpop.f32.mrf.mxu0
  %v1683 = vadd.f32 0.0, %v1682
  %1684 = vdwg.mxu0
  %v1685 = vadd.f32 %v1551, %v1656
  %v1686 = vadd.f32 %v1552, %v1658
  %v1687 = vadd.f32 %v1553, %v1661
  %v1688 = vadd.f32 %v1554, %v1663
  %v1689 = vadd.f32 %v1555, %v1666
  %v1690 = vadd.f32 %v1556, %v1668
  %v1691 = vadd.f32 %v1557, %v1671
  %v1692 = vadd.f32 %v1558, %v1673
  %v1693 = vadd.f32 %v1559, %v1676
  %v1694 = vadd.f32 %v1560, %v1678
  %v1695 = vadd.f32 %v1561, %v1681
  %v1696 = vadd.f32 %v1562, %v1683
  %v1697 = vld [vmem:[#allocation3 + $0x1d] sm:$0xff]
  %v1698 = vld [vmem:[#allocation3 + $0x25] sm:$0xff]
  %v1699 = vld [vmem:[#allocation3 + $0x2d] sm:$0xff]
  %v1700 = vld [vmem:[#allocation3 + $0x35] sm:$0xff]
  %v1701 = vld [vmem:[#allocation3 + $0x3d] sm:$0xff]
  %v1702 = vld [vmem:[#allocation3 + $0x45] sm:$0xff]
  %v1703 = vld [vmem:[#allocation3 + $0x4d] sm:$0xff]
  %v1704 = vld [vmem:[#allocation3 + $0x55] sm:$0xff]
  %v1705 = vld [vmem:[#allocation3 + $0x5d] sm:$0xff]
  %v1706 = vld [vmem:[#allocation3 + $0x65] sm:$0xff]
  %v1707 = vld [vmem:[#allocation3 + $0x6d] sm:$0xff]
  %v1708 = vld [vmem:[#allocation3 + $0x75] sm:$0xff]
  %v1709 = vpack.c.bf16 %v1698, %v1697
  %v1710 = vpack.c.bf16 %v1700, %v1699
  %v1711 = vpack.c.bf16 %v1702, %v1701
  %v1712 = vpack.c.bf16 %v1704, %v1703
  %v1713 = vpack.c.bf16 %v1706, %v1705
  %v1714 = vpack.c.bf16 %v1708, %v1707
  %s1715 = scalar_lea.vmem %s3, 448
  %v1716 = vld [vmem:[%s1715] sm:$0xf]
  %v1717 = vld [vmem:[%s1715 + $0x4] sm:$0xf]
  %v1718 = vld [vmem:[%s1715 + $0x8] sm:$0xf]
  %v1719 = vld [vmem:[%s1715 + $0xc] sm:$0xf]
  %v1720 = vld [vmem:[%s1715 + $0x10] sm:$0xf]
  %v1721 = vld [vmem:[%s1715 + $0x14] sm:$0xf]
  %v1722 = vld [vmem:[%s1715 + $0x18] sm:$0xf]
  %v1723 = vld [vmem:[%s1715 + $0x1c] sm:$0xf]
  %v1724 = vld [vmem:[%s1715 + $0x20] sm:$0xf]
  %v1725 = vld [vmem:[%s1715 + $0x24] sm:$0xf]
  %v1726 = vld [vmem:[%s1715 + $0x28] sm:$0xf]
  %v1727 = vld [vmem:[%s1715 + $0x2c] sm:$0xf]
  %v1728 = vld [vmem:[%s1715 + $0x30] sm:$0xf]
  %v1729 = vld [vmem:[%s1715 + $0x34] sm:$0xf]
  %v1730 = vld [vmem:[%s1715 + $0x38] sm:$0xf]
  %v1731 = vld [vmem:[%s1715 + $0x3c] sm:$0xf]
  %v1748 = vunpack.c.l.b16 %v1716
  %v1749 = vunpack.c.l.b16 %v1717
  %v1750 = vunpack.c.l.b16 %v1718
  %v1751 = vunpack.c.l.b16 %v1719
  %v1752 = vunpack.c.l.b16 %v1720
  %v1753 = vunpack.c.l.b16 %v1721
  %v1754 = vunpack.c.l.b16 %v1722
  %v1755 = vunpack.c.l.b16 %v1723
  %v1756 = vunpack.c.l.b16 %v1724
  %v1757 = vunpack.c.l.b16 %v1725
  %v1758 = vunpack.c.l.b16 %v1726
  %v1759 = vunpack.c.l.b16 %v1727
  %v1760 = vunpack.c.l.b16 %v1728
  %v1761 = vunpack.c.l.b16 %v1729
  %v1762 = vunpack.c.l.b16 %v1730
  %v1763 = vunpack.c.l.b16 %v1731
  %v1764 = vpack.c.b16 %v1749, %v1748
  %v1765 = vpack.c.b16 %v1751, %v1750
  %v1766 = vpack.c.b16 %v1753, %v1752
  %v1767 = vpack.c.b16 %v1755, %v1754
  %v1768 = vpack.c.b16 %v1757, %v1756
  %v1769 = vpack.c.b16 %v1759, %v1758
  %v1770 = vpack.c.b16 %v1761, %v1760
  %v1771 = vpack.c.b16 %v1763, %v1762
  %1780 = vmatpush.bf16.msra.mxu0 %v1771
  %1781 = vmatpush.bf16.msra.mxu0 %v1770
  %1782 = vmatpush.bf16.msra.mxu0 %v1769
  %1783 = vmatpush.bf16.msra.mxu0 %v1768
  %1784 = vmatpush.bf16.msra.mxu0 %v1767
  %1785 = vmatpush.bf16.msra.mxu0 %v1766
  %1786 = vmatpush.bf16.msra.mxu0 %v1765
  %1787 = vmatpush.bf16.msra.mxu0 %v1764
  %1788 = vmatmul.bf16.gmra.mxu0 %v1709
  %v1789 = vpop.f32.mrf.mxu0
  %v1790 = vadd.f32 0.0, %v1789
  %v1791 = vpop.f32.mrf.mxu0
  %v1792 = vadd.f32 0.0, %v1791
  %1793 = vmatmul.bf16.gmra.mxu0 %v1710
  %v1794 = vpop.f32.mrf.mxu0
  %v1795 = vadd.f32 0.0, %v1794
  %v1796 = vpop.f32.mrf.mxu0
  %v1797 = vadd.f32 0.0, %v1796
  %1798 = vmatmul.bf16.gmra.mxu0 %v1711
  %v1799 = vpop.f32.mrf.mxu0
  %v1800 = vadd.f32 0.0, %v1799
  %v1801 = vpop.f32.mrf.mxu0
  %v1802 = vadd.f32 0.0, %v1801
  %1803 = vmatmul.bf16.gmra.mxu0 %v1712
  %v1804 = vpop.f32.mrf.mxu0
  %v1805 = vadd.f32 0.0, %v1804
  %v1806 = vpop.f32.mrf.mxu0
  %v1807 = vadd.f32 0.0, %v1806
  %1808 = vmatmul.bf16.gmra.mxu0 %v1713
  %v1809 = vpop.f32.mrf.mxu0
  %v1810 = vadd.f32 0.0, %v1809
  %v1811 = vpop.f32.mrf.mxu0
  %v1812 = vadd.f32 0.0, %v1811
  %1813 = vmatmul.bf16.gmra.mxu0 %v1714
  %v1814 = vpop.f32.mrf.mxu0
  %v1815 = vadd.f32 0.0, %v1814
  %v1816 = vpop.f32.mrf.mxu0
  %v1817 = vadd.f32 0.0, %v1816
  %1818 = vdwg.mxu0
  %v1819 = vadd.f32 %v1685, %v1790
  %v1820 = vadd.f32 %v1686, %v1792
  %v1821 = vadd.f32 %v1687, %v1795
  %v1822 = vadd.f32 %v1688, %v1797
  %v1823 = vadd.f32 %v1689, %v1800
  %v1824 = vadd.f32 %v1690, %v1802
  %v1825 = vadd.f32 %v1691, %v1805
  %v1826 = vadd.f32 %v1692, %v1807
  %v1827 = vadd.f32 %v1693, %v1810
  %v1828 = vadd.f32 %v1694, %v1812
  %v1829 = vadd.f32 %v1695, %v1815
  %v1830 = vadd.f32 %v1696, %v1817
  %v1831 = vld [vmem:[#allocation3 + $0x1e] sm:$0xff]
  %v1832 = vld [vmem:[#allocation3 + $0x26] sm:$0xff]
  %v1833 = vld [vmem:[#allocation3 + $0x2e] sm:$0xff]
  %v1834 = vld [vmem:[#allocation3 + $0x36] sm:$0xff]
  %v1835 = vld [vmem:[#allocation3 + $0x3e] sm:$0xff]
  %v1836 = vld [vmem:[#allocation3 + $0x46] sm:$0xff]
  %v1837 = vld [vmem:[#allocation3 + $0x4e] sm:$0xff]
  %v1838 = vld [vmem:[#allocation3 + $0x56] sm:$0xff]
  %v1839 = vld [vmem:[#allocation3 + $0x5e] sm:$0xff]
  %v1840 = vld [vmem:[#allocation3 + $0x66] sm:$0xff]
  %v1841 = vld [vmem:[#allocation3 + $0x6e] sm:$0xff]
  %v1842 = vld [vmem:[#allocation3 + $0x76] sm:$0xff]
  %v1843 = vpack.c.bf16 %v1832, %v1831
  %v1844 = vpack.c.bf16 %v1834, %v1833
  %v1845 = vpack.c.bf16 %v1836, %v1835
  %v1846 = vpack.c.bf16 %v1838, %v1837
  %v1847 = vpack.c.bf16 %v1840, %v1839
  %v1848 = vpack.c.bf16 %v1842, %v1841
  %s1849 = scalar_lea.vmem %s3, 512
  %v1850 = vld [vmem:[%s1849] sm:$0xf]
  %v1851 = vld [vmem:[%s1849 + $0x4] sm:$0xf]
  %v1852 = vld [vmem:[%s1849 + $0x8] sm:$0xf]
  %v1853 = vld [vmem:[%s1849 + $0xc] sm:$0xf]
  %v1854 = vld [vmem:[%s1849 + $0x10] sm:$0xf]
  %v1855 = vld [vmem:[%s1849 + $0x14] sm:$0xf]
  %v1856 = vld [vmem:[%s1849 + $0x18] sm:$0xf]
  %v1857 = vld [vmem:[%s1849 + $0x1c] sm:$0xf]
  %v1858 = vld [vmem:[%s1849 + $0x20] sm:$0xf]
  %v1859 = vld [vmem:[%s1849 + $0x24] sm:$0xf]
  %v1860 = vld [vmem:[%s1849 + $0x28] sm:$0xf]
  %v1861 = vld [vmem:[%s1849 + $0x2c] sm:$0xf]
  %v1862 = vld [vmem:[%s1849 + $0x30] sm:$0xf]
  %v1863 = vld [vmem:[%s1849 + $0x34] sm:$0xf]
  %v1864 = vld [vmem:[%s1849 + $0x38] sm:$0xf]
  %v1865 = vld [vmem:[%s1849 + $0x3c] sm:$0xf]
  %v1882 = vunpack.c.l.b16 %v1850
  %v1883 = vunpack.c.l.b16 %v1851
  %v1884 = vunpack.c.l.b16 %v1852
  %v1885 = vunpack.c.l.b16 %v1853
  %v1886 = vunpack.c.l.b16 %v1854
  %v1887 = vunpack.c.l.b16 %v1855
  %v1888 = vunpack.c.l.b16 %v1856
  %v1889 = vunpack.c.l.b16 %v1857
  %v1890 = vunpack.c.l.b16 %v1858
  %v1891 = vunpack.c.l.b16 %v1859
  %v1892 = vunpack.c.l.b16 %v1860
  %v1893 = vunpack.c.l.b16 %v1861
  %v1894 = vunpack.c.l.b16 %v1862
  %v1895 = vunpack.c.l.b16 %v1863
  %v1896 = vunpack.c.l.b16 %v1864
  %v1897 = vunpack.c.l.b16 %v1865
  %v1898 = vpack.c.b16 %v1883, %v1882
  %v1899 = vpack.c.b16 %v1885, %v1884
  %v1900 = vpack.c.b16 %v1887, %v1886
  %v1901 = vpack.c.b16 %v1889, %v1888
  %v1902 = vpack.c.b16 %v1891, %v1890
  %v1903 = vpack.c.b16 %v1893, %v1892
  %v1904 = vpack.c.b16 %v1895, %v1894
  %v1905 = vpack.c.b16 %v1897, %v1896
  %1914 = vmatpush.bf16.msra.mxu0 %v1905
  %1915 = vmatpush.bf16.msra.mxu0 %v1904
  %1916 = vmatpush.bf16.msra.mxu0 %v1903
  %1917 = vmatpush.bf16.msra.mxu0 %v1902
  %1918 = vmatpush.bf16.msra.mxu0 %v1901
  %1919 = vmatpush.bf16.msra.mxu0 %v1900
  %1920 = vmatpush.bf16.msra.mxu0 %v1899
  %1921 = vmatpush.bf16.msra.mxu0 %v1898
  %1922 = vmatmul.bf16.gmra.mxu0 %v1843
  %v1923 = vpop.f32.mrf.mxu0
  %v1924 = vadd.f32 0.0, %v1923
  %v1925 = vpop.f32.mrf.mxu0
  %v1926 = vadd.f32 0.0, %v1925
  %1927 = vmatmul.bf16.gmra.mxu0 %v1844
  %v1928 = vpop.f32.mrf.mxu0
  %v1929 = vadd.f32 0.0, %v1928
  %v1930 = vpop.f32.mrf.mxu0
  %v1931 = vadd.f32 0.0, %v1930
  %1932 = vmatmul.bf16.gmra.mxu0 %v1845
  %v1933 = vpop.f32.mrf.mxu0
  %v1934 = vadd.f32 0.0, %v1933
  %v1935 = vpop.f32.mrf.mxu0
  %v1936 = vadd.f32 0.0, %v1935
  %1937 = vmatmul.bf16.gmra.mxu0 %v1846
  %v1938 = vpop.f32.mrf.mxu0
  %v1939 = vadd.f32 0.0, %v1938
  %v1940 = vpop.f32.mrf.mxu0
  %v1941 = vadd.f32 0.0, %v1940
  %1942 = vmatmul.bf16.gmra.mxu0 %v1847
  %v1943 = vpop.f32.mrf.mxu0
  %v1944 = vadd.f32 0.0, %v1943
  %v1945 = vpop.f32.mrf.mxu0
  %v1946 = vadd.f32 0.0, %v1945
  %1947 = vmatmul.bf16.gmra.mxu0 %v1848
  %v1948 = vpop.f32.mrf.mxu0
  %v1949 = vadd.f32 0.0, %v1948
  %v1950 = vpop.f32.mrf.mxu0
  %v1951 = vadd.f32 0.0, %v1950
  %1952 = vdwg.mxu0
  %v1953 = vadd.f32 %v1819, %v1924
  %v1954 = vadd.f32 %v1820, %v1926
  %v1955 = vadd.f32 %v1821, %v1929
  %v1956 = vadd.f32 %v1822, %v1931
  %v1957 = vadd.f32 %v1823, %v1934
  %v1958 = vadd.f32 %v1824, %v1936
  %v1959 = vadd.f32 %v1825, %v1939
  %v1960 = vadd.f32 %v1826, %v1941
  %v1961 = vadd.f32 %v1827, %v1944
  %v1962 = vadd.f32 %v1828, %v1946
  %v1963 = vadd.f32 %v1829, %v1949
  %v1964 = vadd.f32 %v1830, %v1951
  %v1966 = vperm.slane %v71, 0
  %v1968 = vadd.f32 %v1953, %v1966
  %v1969 = vadd.f32 %v1954, %v1966
  %v1970 = vadd.f32 %v1955, %v1966
  %v1971 = vadd.f32 %v1956, %v1966
  %v1972 = vadd.f32 %v1957, %v1966
  %v1973 = vadd.f32 %v1958, %v1966
  %v1974 = vadd.f32 %v1959, %v1966
  %v1975 = vadd.f32 %v1960, %v1966
  %v1976 = vadd.f32 %v1961, %v1966
  %v1977 = vadd.f32 %v1962, %v1966
  %v1978 = vadd.f32 %v1963, %v1966
  %v1979 = vadd.f32 %v1964, %v1966
  %1980 = vst [vmem:[#allocation4] sm:$0xff] %v1968
  %1981 = vst [vmem:[#allocation4 + $0x8] sm:$0xff] %v1969
  %1982 = vst [vmem:[#allocation4 + $0x10] sm:$0xff] %v1970
  %1983 = vst [vmem:[#allocation4 + $0x18] sm:$0xff] %v1971
  %1984 = vst [vmem:[#allocation4 + $0x20] sm:$0xff] %v1972
  %1985 = vst [vmem:[#allocation4 + $0x28] sm:$0xff] %v1973
  %1986 = vst [vmem:[#allocation4 + $0x30] sm:$0xff] %v1974
  %1987 = vst [vmem:[#allocation4 + $0x38] sm:$0xff] %v1975
  %1988 = vst [vmem:[#allocation4 + $0x40] sm:$0xff] %v1976
  %1989 = vst [vmem:[#allocation4 + $0x48] sm:$0xff] %v1977
  %1990 = vst [vmem:[#allocation4 + $0x50] sm:$0xff] %v1978
  %1991 = vst [vmem:[#allocation4 + $0x58] sm:$0xff] %v1979
  %v1992 = vld [vmem:[#allocation3 + $0x60] sm:$0xff]
  %v1993 = vld [vmem:[#allocation3 + $0x68] sm:$0xff]
  %v1994 = vld [vmem:[#allocation3 + $0x70] sm:$0xff]
  %v1995 = vld [vmem:[#allocation3 + $0x78] sm:$0xff]
  %v1996 = vld [vmem:[#allocation3 + $0x80] sm:$0xff]
  %v1997 = vld [vmem:[#allocation3 + $0x88] sm:$0xff]
  %v1998 = vld [vmem:[#allocation3 + $0x90] sm:$0xff]
  %v1999 = vld [vmem:[#allocation3 + $0x98] sm:$0xff]
  %v2000 = vld [vmem:[#allocation3 + $0xa0] sm:$0xff]
  %v2001 = vld [vmem:[#allocation3 + $0xa8] sm:$0xff]
  %v2002 = vld [vmem:[#allocation3 + $0xb0] sm:$0xff]
  %v2003 = vld [vmem:[#allocation3 + $0xb8] sm:$0xff]
  %v2004 = vpack.c.bf16 %v1993, %v1992
  %v2005 = vpack.c.bf16 %v1995, %v1994
  %v2006 = vpack.c.bf16 %v1997, %v1996
  %v2007 = vpack.c.bf16 %v1999, %v1998
  %v2008 = vpack.c.bf16 %v2001, %v2000
  %v2009 = vpack.c.bf16 %v2003, %v2002
  %v2010 = vld [vmem:[%s3] sm:$0xf]
  %v2011 = vld [vmem:[%s3 + $0x4] sm:$0xf]
  %v2012 = vld [vmem:[%s3 + $0x8] sm:$0xf]
  %v2013 = vld [vmem:[%s3 + $0xc] sm:$0xf]
  %v2014 = vld [vmem:[%s3 + $0x10] sm:$0xf]
  %v2015 = vld [vmem:[%s3 + $0x14] sm:$0xf]
  %v2016 = vld [vmem:[%s3 + $0x18] sm:$0xf]
  %v2017 = vld [vmem:[%s3 + $0x1c] sm:$0xf]
  %v2018 = vld [vmem:[%s3 + $0x20] sm:$0xf]
  %v2019 = vld [vmem:[%s3 + $0x24] sm:$0xf]
  %v2020 = vld [vmem:[%s3 + $0x28] sm:$0xf]
  %v2021 = vld [vmem:[%s3 + $0x2c] sm:$0xf]
  %v2022 = vld [vmem:[%s3 + $0x30] sm:$0xf]
  %v2023 = vld [vmem:[%s3 + $0x34] sm:$0xf]
  %v2024 = vld [vmem:[%s3 + $0x38] sm:$0xf]
  %v2025 = vld [vmem:[%s3 + $0x3c] sm:$0xf]
  %v2026 = vld [vmem:[#allocation3 + $0x61] sm:$0xff]
  %v2027 = vld [vmem:[#allocation3 + $0x69] sm:$0xff]
  %v2028 = vld [vmem:[#allocation3 + $0x71] sm:$0xff]
  %v2029 = vld [vmem:[#allocation3 + $0x79] sm:$0xff]
  %v2030 = vld [vmem:[#allocation3 + $0x81] sm:$0xff]
  %v2031 = vld [vmem:[#allocation3 + $0x89] sm:$0xff]
  %v2032 = vld [vmem:[#allocation3 + $0x91] sm:$0xff]
  %v2033 = vld [vmem:[#allocation3 + $0x99] sm:$0xff]
  %v2034 = vld [vmem:[#allocation3 + $0xa1] sm:$0xff]
  %v2035 = vld [vmem:[#allocation3 + $0xa9] sm:$0xff]
  %v2036 = vld [vmem:[#allocation3 + $0xb1] sm:$0xff]
  %v2037 = vld [vmem:[#allocation3 + $0xb9] sm:$0xff]
  %v2038 = vpack.c.bf16 %v2027, %v2026
  %v2039 = vpack.c.bf16 %v2029, %v2028
  %v2040 = vpack.c.bf16 %v2031, %v2030
  %v2041 = vpack.c.bf16 %v2033, %v2032
  %v2042 = vpack.c.bf16 %v2035, %v2034
  %v2043 = vpack.c.bf16 %v2037, %v2036
  %v2044 = vld [vmem:[%s836] sm:$0xf]
  %v2045 = vld [vmem:[%s836 + $0x4] sm:$0xf]
  %v2046 = vld [vmem:[%s836 + $0x8] sm:$0xf]
  %v2047 = vld [vmem:[%s836 + $0xc] sm:$0xf]
  %v2048 = vld [vmem:[%s836 + $0x10] sm:$0xf]
  %v2049 = vld [vmem:[%s836 + $0x14] sm:$0xf]
  %v2050 = vld [vmem:[%s836 + $0x18] sm:$0xf]
  %v2051 = vld [vmem:[%s836 + $0x1c] sm:$0xf]
  %v2052 = vld [vmem:[%s836 + $0x20] sm:$0xf]
  %v2053 = vld [vmem:[%s836 + $0x24] sm:$0xf]
  %v2054 = vld [vmem:[%s836 + $0x28] sm:$0xf]
  %v2055 = vld [vmem:[%s836 + $0x2c] sm:$0xf]
  %v2056 = vld [vmem:[%s836 + $0x30] sm:$0xf]
  %v2057 = vld [vmem:[%s836 + $0x34] sm:$0xf]
  %v2058 = vld [vmem:[%s836 + $0x38] sm:$0xf]
  %v2059 = vld [vmem:[%s836 + $0x3c] sm:$0xf]
  %v2076 = vunpack.c.l.b16 %v2044
  %v2077 = vunpack.c.l.b16 %v2045
  %v2078 = vunpack.c.l.b16 %v2046
  %v2079 = vunpack.c.l.b16 %v2047
  %v2080 = vunpack.c.l.b16 %v2048
  %v2081 = vunpack.c.l.b16 %v2049
  %v2082 = vunpack.c.l.b16 %v2050
  %v2083 = vunpack.c.l.b16 %v2051
  %v2084 = vunpack.c.l.b16 %v2052
  %v2085 = vunpack.c.l.b16 %v2053
  %v2086 = vunpack.c.l.b16 %v2054
  %v2087 = vunpack.c.l.b16 %v2055
  %v2088 = vunpack.c.l.b16 %v2056
  %v2089 = vunpack.c.l.b16 %v2057
  %v2090 = vunpack.c.l.b16 %v2058
  %v2091 = vunpack.c.l.b16 %v2059
  %v2092 = vpack.c.b16 %v2077, %v2076
  %v2093 = vpack.c.b16 %v2079, %v2078
  %v2094 = vpack.c.b16 %v2081, %v2080
  %v2095 = vpack.c.b16 %v2083, %v2082
  %v2096 = vpack.c.b16 %v2085, %v2084
  %v2097 = vpack.c.b16 %v2087, %v2086
  %v2098 = vpack.c.b16 %v2089, %v2088
  %v2099 = vpack.c.b16 %v2091, %v2090
  %2108 = vmatpush.bf16.msra.mxu0 %v2099
  %2109 = vmatpush.bf16.msra.mxu0 %v2098
  %2110 = vmatpush.bf16.msra.mxu0 %v2097
  %2111 = vmatpush.bf16.msra.mxu0 %v2096
  %2112 = vmatpush.bf16.msra.mxu0 %v2095
  %2113 = vmatpush.bf16.msra.mxu0 %v2094
  %2114 = vmatpush.bf16.msra.mxu0 %v2093
  %2115 = vmatpush.bf16.msra.mxu0 %v2092
  %2116 = vmatmul.bf16.gmra.mxu0 %v2038
  %v2117 = vpop.f32.mrf.mxu0
  %v2118 = vadd.f32 0.0, %v2117
  %v2119 = vpop.f32.mrf.mxu0
  %v2120 = vadd.f32 0.0, %v2119
  %2121 = vmatmul.bf16.gmra.mxu0 %v2039
  %v2122 = vpop.f32.mrf.mxu0
  %v2123 = vadd.f32 0.0, %v2122
  %v2124 = vpop.f32.mrf.mxu0
  %v2125 = vadd.f32 0.0, %v2124
  %2126 = vmatmul.bf16.gmra.mxu0 %v2040
  %v2127 = vpop.f32.mrf.mxu0
  %v2128 = vadd.f32 0.0, %v2127
  %v2129 = vpop.f32.mrf.mxu0
  %v2130 = vadd.f32 0.0, %v2129
  %2131 = vmatmul.bf16.gmra.mxu0 %v2041
  %v2132 = vpop.f32.mrf.mxu0
  %v2133 = vadd.f32 0.0, %v2132
  %v2134 = vpop.f32.mrf.mxu0
  %v2135 = vadd.f32 0.0, %v2134
  %2136 = vmatmul.bf16.gmra.mxu0 %v2042
  %v2137 = vpop.f32.mrf.mxu0
  %v2138 = vadd.f32 0.0, %v2137
  %v2139 = vpop.f32.mrf.mxu0
  %v2140 = vadd.f32 0.0, %v2139
  %2141 = vmatmul.bf16.gmra.mxu0 %v2043
  %v2142 = vpop.f32.mrf.mxu0
  %v2143 = vadd.f32 0.0, %v2142
  %v2144 = vpop.f32.mrf.mxu0
  %v2145 = vadd.f32 0.0, %v2144
  %2146 = vdwg.mxu0
  %v2163 = vunpack.c.l.b16 %v2010
  %v2164 = vunpack.c.l.b16 %v2011
  %v2165 = vunpack.c.l.b16 %v2012
  %v2166 = vunpack.c.l.b16 %v2013
  %v2167 = vunpack.c.l.b16 %v2014
  %v2168 = vunpack.c.l.b16 %v2015
  %v2169 = vunpack.c.l.b16 %v2016
  %v2170 = vunpack.c.l.b16 %v2017
  %v2171 = vunpack.c.l.b16 %v2018
  %v2172 = vunpack.c.l.b16 %v2019
  %v2173 = vunpack.c.l.b16 %v2020
  %v2174 = vunpack.c.l.b16 %v2021
  %v2175 = vunpack.c.l.b16 %v2022
  %v2176 = vunpack.c.l.b16 %v2023
  %v2177 = vunpack.c.l.b16 %v2024
  %v2178 = vunpack.c.l.b16 %v2025
  %v2179 = vpack.c.b16 %v2164, %v2163
  %v2180 = vpack.c.b16 %v2166, %v2165
  %v2181 = vpack.c.b16 %v2168, %v2167
  %v2182 = vpack.c.b16 %v2170, %v2169
  %v2183 = vpack.c.b16 %v2172, %v2171
  %v2184 = vpack.c.b16 %v2174, %v2173
  %v2185 = vpack.c.b16 %v2176, %v2175
  %v2186 = vpack.c.b16 %v2178, %v2177
  %2195 = vmatpush.bf16.msra.mxu0 %v2186
  %2196 = vmatpush.bf16.msra.mxu0 %v2185
  %2197 = vmatpush.bf16.msra.mxu0 %v2184
  %2198 = vmatpush.bf16.msra.mxu0 %v2183
  %2199 = vmatpush.bf16.msra.mxu0 %v2182
  %2200 = vmatpush.bf16.msra.mxu0 %v2181
  %2201 = vmatpush.bf16.msra.mxu0 %v2180
  %2202 = vmatpush.bf16.msra.mxu0 %v2179
  %2203 = vmatmul.bf16.gmra.mxu0 %v2004
  %v2204 = vpop.f32.mrf.mxu0
  %v2205 = vadd.f32 %v2118, %v2204
  %v2206 = vpop.f32.mrf.mxu0
  %v2207 = vadd.f32 %v2120, %v2206
  %2208 = vmatmul.bf16.gmra.mxu0 %v2005
  %v2209 = vpop.f32.mrf.mxu0
  %v2210 = vadd.f32 %v2123, %v2209
  %v2211 = vpop.f32.mrf.mxu0
  %v2212 = vadd.f32 %v2125, %v2211
  %2213 = vmatmul.bf16.gmra.mxu0 %v2006
  %v2214 = vpop.f32.mrf.mxu0
  %v2215 = vadd.f32 %v2128, %v2214
  %v2216 = vpop.f32.mrf.mxu0
  %v2217 = vadd.f32 %v2130, %v2216
  %2218 = vmatmul.bf16.gmra.mxu0 %v2007
  %v2219 = vpop.f32.mrf.mxu0
  %v2220 = vadd.f32 %v2133, %v2219
  %v2221 = vpop.f32.mrf.mxu0
  %v2222 = vadd.f32 %v2135, %v2221
  %2223 = vmatmul.bf16.gmra.mxu0 %v2008
  %v2224 = vpop.f32.mrf.mxu0
  %v2225 = vadd.f32 %v2138, %v2224
  %v2226 = vpop.f32.mrf.mxu0
  %v2227 = vadd.f32 %v2140, %v2226
  %2228 = vmatmul.bf16.gmra.mxu0 %v2009
  %v2229 = vpop.f32.mrf.mxu0
  %v2230 = vadd.f32 %v2143, %v2229
  %v2231 = vpop.f32.mrf.mxu0
  %v2232 = vadd.f32 %v2145, %v2231
  %2233 = vdwg.mxu0
  %v2234 = vld [vmem:[#allocation3 + $0x62] sm:$0xff]
  %v2235 = vld [vmem:[#allocation3 + $0x6a] sm:$0xff]
  %v2236 = vld [vmem:[#allocation3 + $0x72] sm:$0xff]
  %v2237 = vld [vmem:[#allocation3 + $0x7a] sm:$0xff]
  %v2238 = vld [vmem:[#allocation3 + $0x82] sm:$0xff]
  %v2239 = vld [vmem:[#allocation3 + $0x8a] sm:$0xff]
  %v2240 = vld [vmem:[#allocation3 + $0x92] sm:$0xff]
  %v2241 = vld [vmem:[#allocation3 + $0x9a] sm:$0xff]
  %v2242 = vld [vmem:[#allocation3 + $0xa2] sm:$0xff]
  %v2243 = vld [vmem:[#allocation3 + $0xaa] sm:$0xff]
  %v2244 = vld [vmem:[#allocation3 + $0xb2] sm:$0xff]
  %v2245 = vld [vmem:[#allocation3 + $0xba] sm:$0xff]
  %v2246 = vpack.c.bf16 %v2235, %v2234
  %v2247 = vpack.c.bf16 %v2237, %v2236
  %v2248 = vpack.c.bf16 %v2239, %v2238
  %v2249 = vpack.c.bf16 %v2241, %v2240
  %v2250 = vpack.c.bf16 %v2243, %v2242
  %v2251 = vpack.c.bf16 %v2245, %v2244
  %v2252 = vld [vmem:[%s1045] sm:$0xf]
  %v2253 = vld [vmem:[%s1045 + $0x4] sm:$0xf]
  %v2254 = vld [vmem:[%s1045 + $0x8] sm:$0xf]
  %v2255 = vld [vmem:[%s1045 + $0xc] sm:$0xf]
  %v2256 = vld [vmem:[%s1045 + $0x10] sm:$0xf]
  %v2257 = vld [vmem:[%s1045 + $0x14] sm:$0xf]
  %v2258 = vld [vmem:[%s1045 + $0x18] sm:$0xf]
  %v2259 = vld [vmem:[%s1045 + $0x1c] sm:$0xf]
  %v2260 = vld [vmem:[%s1045 + $0x20] sm:$0xf]
  %v2261 = vld [vmem:[%s1045 + $0x24] sm:$0xf]
  %v2262 = vld [vmem:[%s1045 + $0x28] sm:$0xf]
  %v2263 = vld [vmem:[%s1045 + $0x2c] sm:$0xf]
  %v2264 = vld [vmem:[%s1045 + $0x30] sm:$0xf]
  %v2265 = vld [vmem:[%s1045 + $0x34] sm:$0xf]
  %v2266 = vld [vmem:[%s1045 + $0x38] sm:$0xf]
  %v2267 = vld [vmem:[%s1045 + $0x3c] sm:$0xf]
  %v2284 = vunpack.c.l.b16 %v2252
  %v2285 = vunpack.c.l.b16 %v2253
  %v2286 = vunpack.c.l.b16 %v2254
  %v2287 = vunpack.c.l.b16 %v2255
  %v2288 = vunpack.c.l.b16 %v2256
  %v2289 = vunpack.c.l.b16 %v2257
  %v2290 = vunpack.c.l.b16 %v2258
  %v2291 = vunpack.c.l.b16 %v2259
  %v2292 = vunpack.c.l.b16 %v2260
  %v2293 = vunpack.c.l.b16 %v2261
  %v2294 = vunpack.c.l.b16 %v2262
  %v2295 = vunpack.c.l.b16 %v2263
  %v2296 = vunpack.c.l.b16 %v2264
  %v2297 = vunpack.c.l.b16 %v2265
  %v2298 = vunpack.c.l.b16 %v2266
  %v2299 = vunpack.c.l.b16 %v2267
  %v2300 = vpack.c.b16 %v2285, %v2284
  %v2301 = vpack.c.b16 %v2287, %v2286
  %v2302 = vpack.c.b16 %v2289, %v2288
  %v2303 = vpack.c.b16 %v2291, %v2290
  %v2304 = vpack.c.b16 %v2293, %v2292
  %v2305 = vpack.c.b16 %v2295, %v2294
  %v2306 = vpack.c.b16 %v2297, %v2296
  %v2307 = vpack.c.b16 %v2299, %v2298
  %2316 = vmatpush.bf16.msra.mxu0 %v2307
  %2317 = vmatpush.bf16.msra.mxu0 %v2306
  %2318 = vmatpush.bf16.msra.mxu0 %v2305
  %2319 = vmatpush.bf16.msra.mxu0 %v2304
  %2320 = vmatpush.bf16.msra.mxu0 %v2303
  %2321 = vmatpush.bf16.msra.mxu0 %v2302
  %2322 = vmatpush.bf16.msra.mxu0 %v2301
  %2323 = vmatpush.bf16.msra.mxu0 %v2300
  %2324 = vmatmul.bf16.gmra.mxu0 %v2246
  %v2325 = vpop.f32.mrf.mxu0
  %v2326 = vadd.f32 0.0, %v2325
  %v2327 = vpop.f32.mrf.mxu0
  %v2328 = vadd.f32 0.0, %v2327
  %2329 = vmatmul.bf16.gmra.mxu0 %v2247
  %v2330 = vpop.f32.mrf.mxu0
  %v2331 = vadd.f32 0.0, %v2330
  %v2332 = vpop.f32.mrf.mxu0
  %v2333 = vadd.f32 0.0, %v2332
  %2334 = vmatmul.bf16.gmra.mxu0 %v2248
  %v2335 = vpop.f32.mrf.mxu0
  %v2336 = vadd.f32 0.0, %v2335
  %v2337 = vpop.f32.mrf.mxu0
  %v2338 = vadd.f32 0.0, %v2337
  %2339 = vmatmul.bf16.gmra.mxu0 %v2249
  %v2340 = vpop.f32.mrf.mxu0
  %v2341 = vadd.f32 0.0, %v2340
  %v2342 = vpop.f32.mrf.mxu0
  %v2343 = vadd.f32 0.0, %v2342
  %2344 = vmatmul.bf16.gmra.mxu0 %v2250
  %v2345 = vpop.f32.mrf.mxu0
  %v2346 = vadd.f32 0.0, %v2345
  %v2347 = vpop.f32.mrf.mxu0
  %v2348 = vadd.f32 0.0, %v2347
  %2349 = vmatmul.bf16.gmra.mxu0 %v2251
  %v2350 = vpop.f32.mrf.mxu0
  %v2351 = vadd.f32 0.0, %v2350
  %v2352 = vpop.f32.mrf.mxu0
  %v2353 = vadd.f32 0.0, %v2352
  %2354 = vdwg.mxu0
  %v2355 = vadd.f32 %v2205, %v2326
  %v2356 = vadd.f32 %v2207, %v2328
  %v2357 = vadd.f32 %v2210, %v2331
  %v2358 = vadd.f32 %v2212, %v2333
  %v2359 = vadd.f32 %v2215, %v2336
  %v2360 = vadd.f32 %v2217, %v2338
  %v2361 = vadd.f32 %v2220, %v2341
  %v2362 = vadd.f32 %v2222, %v2343
  %v2363 = vadd.f32 %v2225, %v2346
  %v2364 = vadd.f32 %v2227, %v2348
  %v2365 = vadd.f32 %v2230, %v2351
  %v2366 = vadd.f32 %v2232, %v2353
  %v2367 = vld [vmem:[#allocation3 + $0x6e] sm:$0xff]
  %v2368 = vld [vmem:[#allocation3 + $0x76] sm:$0xff]
  %v2369 = vld [vmem:[#allocation3 + $0x7e] sm:$0xff]
  %v2370 = vld [vmem:[#allocation3 + $0x86] sm:$0xff]
  %v2371 = vld [vmem:[#allocation3 + $0x8e] sm:$0xff]
  %v2372 = vld [vmem:[#allocation3 + $0x96] sm:$0xff]
  %v2373 = vld [vmem:[#allocation3 + $0x9e] sm:$0xff]
  %v2374 = vld [vmem:[#allocation3 + $0xa6] sm:$0xff]
  %v2375 = vld [vmem:[#allocation3 + $0xae] sm:$0xff]
  %v2376 = vld [vmem:[#allocation3 + $0xb6] sm:$0xff]
  %v2377 = vld [vmem:[#allocation3 + $0xbe] sm:$0xff]
  %v2378 = vld [vmem:[#allocation3 + $0xc6] sm:$0xff]
  %v2379 = vpack.c.bf16 %v2368, %v2367
  %v2380 = vpack.c.bf16 %v2370, %v2369
  %v2381 = vpack.c.bf16 %v2372, %v2371
  %v2382 = vpack.c.bf16 %v2374, %v2373
  %v2383 = vpack.c.bf16 %v2376, %v2375
  %v2384 = vpack.c.bf16 %v2378, %v2377
  %v2385 = vld [vmem:[%s1179] sm:$0xf]
  %v2386 = vld [vmem:[%s1179 + $0x4] sm:$0xf]
  %v2387 = vld [vmem:[%s1179 + $0x8] sm:$0xf]
  %v2388 = vld [vmem:[%s1179 + $0xc] sm:$0xf]
  %v2389 = vld [vmem:[%s1179 + $0x10] sm:$0xf]
  %v2390 = vld [vmem:[%s1179 + $0x14] sm:$0xf]
  %v2391 = vld [vmem:[%s1179 + $0x18] sm:$0xf]
  %v2392 = vld [vmem:[%s1179 + $0x1c] sm:$0xf]
  %v2393 = vld [vmem:[%s1179 + $0x20] sm:$0xf]
  %v2394 = vld [vmem:[%s1179 + $0x24] sm:$0xf]
  %v2395 = vld [vmem:[%s1179 + $0x28] sm:$0xf]
  %v2396 = vld [vmem:[%s1179 + $0x2c] sm:$0xf]
  %v2397 = vld [vmem:[%s1179 + $0x30] sm:$0xf]
  %v2398 = vld [vmem:[%s1179 + $0x34] sm:$0xf]
  %v2399 = vld [vmem:[%s1179 + $0x38] sm:$0xf]
  %v2400 = vld [vmem:[%s1179 + $0x3c] sm:$0xf]
  %v2417 = vunpack.c.l.b16 %v2385
  %v2418 = vunpack.c.l.b16 %v2386
  %v2419 = vunpack.c.l.b16 %v2387
  %v2420 = vunpack.c.l.b16 %v2388
  %v2421 = vunpack.c.l.b16 %v2389
  %v2422 = vunpack.c.l.b16 %v2390
  %v2423 = vunpack.c.l.b16 %v2391
  %v2424 = vunpack.c.l.b16 %v2392
  %v2425 = vunpack.c.l.b16 %v2393
  %v2426 = vunpack.c.l.b16 %v2394
  %v2427 = vunpack.c.l.b16 %v2395
  %v2428 = vunpack.c.l.b16 %v2396
  %v2429 = vunpack.c.l.b16 %v2397
  %v2430 = vunpack.c.l.b16 %v2398
  %v2431 = vunpack.c.l.b16 %v2399
  %v2432 = vunpack.c.l.b16 %v2400
  %v2433 = vpack.c.b16 %v2418, %v2417
  %v2434 = vpack.c.b16 %v2420, %v2419
  %v2435 = vpack.c.b16 %v2422, %v2421
  %v2436 = vpack.c.b16 %v2424, %v2423
  %v2437 = vpack.c.b16 %v2426, %v2425
  %v2438 = vpack.c.b16 %v2428, %v2427
  %v2439 = vpack.c.b16 %v2430, %v2429
  %v2440 = vpack.c.b16 %v2432, %v2431
  %2449 = vmatpush.bf16.msra.mxu0 %v2440
  %2450 = vmatpush.bf16.msra.mxu0 %v2439
  %2451 = vmatpush.bf16.msra.mxu0 %v2438
  %2452 = vmatpush.bf16.msra.mxu0 %v2437
  %2453 = vmatpush.bf16.msra.mxu0 %v2436
  %2454 = vmatpush.bf16.msra.mxu0 %v2435
  %2455 = vmatpush.bf16.msra.mxu0 %v2434
  %2456 = vmatpush.bf16.msra.mxu0 %v2433
  %2457 = vmatmul.bf16.gmra.mxu0 %v2379
  %v2458 = vpop.f32.mrf.mxu0
  %v2459 = vadd.f32 0.0, %v2458
  %v2460 = vpop.f32.mrf.mxu0
  %v2461 = vadd.f32 0.0, %v2460
  %2462 = vmatmul.bf16.gmra.mxu0 %v2380
  %v2463 = vpop.f32.mrf.mxu0
  %v2464 = vadd.f32 0.0, %v2463
  %v2465 = vpop.f32.mrf.mxu0
  %v2466 = vadd.f32 0.0, %v2465
  %2467 = vmatmul.bf16.gmra.mxu0 %v2381
  %v2468 = vpop.f32.mrf.mxu0
  %v2469 = vadd.f32 0.0, %v2468
  %v2470 = vpop.f32.mrf.mxu0
  %v2471 = vadd.f32 0.0, %v2470
  %2472 = vmatmul.bf16.gmra.mxu0 %v2382
  %v2473 = vpop.f32.mrf.mxu0
  %v2474 = vadd.f32 0.0, %v2473
  %v2475 = vpop.f32.mrf.mxu0
  %v2476 = vadd.f32 0.0, %v2475
  %2477 = vmatmul.bf16.gmra.mxu0 %v2383
  %v2478 = vpop.f32.mrf.mxu0
  %v2479 = vadd.f32 0.0, %v2478
  %v2480 = vpop.f32.mrf.mxu0
  %v2481 = vadd.f32 0.0, %v2480
  %2482 = vmatmul.bf16.gmra.mxu0 %v2384
  %v2483 = vpop.f32.mrf.mxu0
  %v2484 = vadd.f32 0.0, %v2483
  %v2485 = vpop.f32.mrf.mxu0
  %v2486 = vadd.f32 0.0, %v2485
  %2487 = vdwg.mxu0
  %v2488 = vadd.f32 %v2355, %v2459
  %v2489 = vadd.f32 %v2356, %v2461
  %v2490 = vadd.f32 %v2357, %v2464
  %v2491 = vadd.f32 %v2358, %v2466
  %v2492 = vadd.f32 %v2359, %v2469
  %v2493 = vadd.f32 %v2360, %v2471
  %v2494 = vadd.f32 %v2361, %v2474
  %v2495 = vadd.f32 %v2362, %v2476
  %v2496 = vadd.f32 %v2363, %v2479
  %v2497 = vadd.f32 %v2364, %v2481
  %v2498 = vadd.f32 %v2365, %v2484
  %v2499 = vadd.f32 %v2366, %v2486
  %v2500 = vld [vmem:[#allocation3 + $0x6f] sm:$0xff]
  %v2501 = vld [vmem:[#allocation3 + $0x77] sm:$0xff]
  %v2502 = vld [vmem:[#allocation3 + $0x7f] sm:$0xff]
  %v2503 = vld [vmem:[#allocation3 + $0x87] sm:$0xff]
  %v2504 = vld [vmem:[#allocation3 + $0x8f] sm:$0xff]
  %v2505 = vld [vmem:[#allocation3 + $0x97] sm:$0xff]
  %v2506 = vld [vmem:[#allocation3 + $0x9f] sm:$0xff]
  %v2507 = vld [vmem:[#allocation3 + $0xa7] sm:$0xff]
  %v2508 = vld [vmem:[#allocation3 + $0xaf] sm:$0xff]
  %v2509 = vld [vmem:[#allocation3 + $0xb7] sm:$0xff]
  %v2510 = vld [vmem:[#allocation3 + $0xbf] sm:$0xff]
  %v2511 = vld [vmem:[#allocation3 + $0xc7] sm:$0xff]
  %v2512 = vpack.c.bf16 %v2501, %v2500
  %v2513 = vpack.c.bf16 %v2503, %v2502
  %v2514 = vpack.c.bf16 %v2505, %v2504
  %v2515 = vpack.c.bf16 %v2507, %v2506
  %v2516 = vpack.c.bf16 %v2509, %v2508
  %v2517 = vpack.c.bf16 %v2511, %v2510
  %v2518 = vld [vmem:[%s1313] sm:$0xf]
  %v2519 = vld [vmem:[%s1313 + $0x4] sm:$0xf]
  %v2520 = vld [vmem:[%s1313 + $0x8] sm:$0xf]
  %v2521 = vld [vmem:[%s1313 + $0xc] sm:$0xf]
  %v2522 = vld [vmem:[%s1313 + $0x10] sm:$0xf]
  %v2523 = vld [vmem:[%s1313 + $0x14] sm:$0xf]
  %v2524 = vld [vmem:[%s1313 + $0x18] sm:$0xf]
  %v2525 = vld [vmem:[%s1313 + $0x1c] sm:$0xf]
  %v2526 = vld [vmem:[%s1313 + $0x20] sm:$0xf]
  %v2527 = vld [vmem:[%s1313 + $0x24] sm:$0xf]
  %v2528 = vld [vmem:[%s1313 + $0x28] sm:$0xf]
  %v2529 = vld [vmem:[%s1313 + $0x2c] sm:$0xf]
  %v2530 = vld [vmem:[%s1313 + $0x30] sm:$0xf]
  %v2531 = vld [vmem:[%s1313 + $0x34] sm:$0xf]
  %v2532 = vld [vmem:[%s1313 + $0x38] sm:$0xf]
  %v2533 = vld [vmem:[%s1313 + $0x3c] sm:$0xf]
  %v2550 = vunpack.c.l.b16 %v2518
  %v2551 = vunpack.c.l.b16 %v2519
  %v2552 = vunpack.c.l.b16 %v2520
  %v2553 = vunpack.c.l.b16 %v2521
  %v2554 = vunpack.c.l.b16 %v2522
  %v2555 = vunpack.c.l.b16 %v2523
  %v2556 = vunpack.c.l.b16 %v2524
  %v2557 = vunpack.c.l.b16 %v2525
  %v2558 = vunpack.c.l.b16 %v2526
  %v2559 = vunpack.c.l.b16 %v2527
  %v2560 = vunpack.c.l.b16 %v2528
  %v2561 = vunpack.c.l.b16 %v2529
  %v2562 = vunpack.c.l.b16 %v2530
  %v2563 = vunpack.c.l.b16 %v2531
  %v2564 = vunpack.c.l.b16 %v2532
  %v2565 = vunpack.c.l.b16 %v2533
  %v2566 = vpack.c.b16 %v2551, %v2550
  %v2567 = vpack.c.b16 %v2553, %v2552
  %v2568 = vpack.c.b16 %v2555, %v2554
  %v2569 = vpack.c.b16 %v2557, %v2556
  %v2570 = vpack.c.b16 %v2559, %v2558
  %v2571 = vpack.c.b16 %v2561, %v2560
  %v2572 = vpack.c.b16 %v2563, %v2562
  %v2573 = vpack.c.b16 %v2565, %v2564
  %2582 = vmatpush.bf16.msra.mxu0 %v2573
  %2583 = vmatpush.bf16.msra.mxu0 %v2572
  %2584 = vmatpush.bf16.msra.mxu0 %v2571
  %2585 = vmatpush.bf16.msra.mxu0 %v2570
  %2586 = vmatpush.bf16.msra.mxu0 %v2569
  %2587 = vmatpush.bf16.msra.mxu0 %v2568
  %2588 = vmatpush.bf16.msra.mxu0 %v2567
  %2589 = vmatpush.bf16.msra.mxu0 %v2566
  %2590 = vmatmul.bf16.gmra.mxu0 %v2512
  %v2591 = vpop.f32.mrf.mxu0
  %v2592 = vadd.f32 0.0, %v2591
  %v2593 = vpop.f32.mrf.mxu0
  %v2594 = vadd.f32 0.0, %v2593
  %2595 = vmatmul.bf16.gmra.mxu0 %v2513
  %v2596 = vpop.f32.mrf.mxu0
  %v2597 = vadd.f32 0.0, %v2596
  %v2598 = vpop.f32.mrf.mxu0
  %v2599 = vadd.f32 0.0, %v2598
  %2600 = vmatmul.bf16.gmra.mxu0 %v2514
  %v2601 = vpop.f32.mrf.mxu0
  %v2602 = vadd.f32 0.0, %v2601
  %v2603 = vpop.f32.mrf.mxu0
  %v2604 = vadd.f32 0.0, %v2603
  %2605 = vmatmul.bf16.gmra.mxu0 %v2515
  %v2606 = vpop.f32.mrf.mxu0
  %v2607 = vadd.f32 0.0, %v2606
  %v2608 = vpop.f32.mrf.mxu0
  %v2609 = vadd.f32 0.0, %v2608
  %2610 = vmatmul.bf16.gmra.mxu0 %v2516
  %v2611 = vpop.f32.mrf.mxu0
  %v2612 = vadd.f32 0.0, %v2611
  %v2613 = vpop.f32.mrf.mxu0
  %v2614 = vadd.f32 0.0, %v2613
  %2615 = vmatmul.bf16.gmra.mxu0 %v2517
  %v2616 = vpop.f32.mrf.mxu0
  %v2617 = vadd.f32 0.0, %v2616
  %v2618 = vpop.f32.mrf.mxu0
  %v2619 = vadd.f32 0.0, %v2618
  %2620 = vdwg.mxu0
  %v2621 = vadd.f32 %v2488, %v2592
  %v2622 = vadd.f32 %v2489, %v2594
  %v2623 = vadd.f32 %v2490, %v2597
  %v2624 = vadd.f32 %v2491, %v2599
  %v2625 = vadd.f32 %v2492, %v2602
  %v2626 = vadd.f32 %v2493, %v2604
  %v2627 = vadd.f32 %v2494, %v2607
  %v2628 = vadd.f32 %v2495, %v2609
  %v2629 = vadd.f32 %v2496, %v2612
  %v2630 = vadd.f32 %v2497, %v2614
  %v2631 = vadd.f32 %v2498, %v2617
  %v2632 = vadd.f32 %v2499, %v2619
  %v2633 = vld [vmem:[#allocation3 + $0x70] sm:$0xff]
  %v2634 = vld [vmem:[#allocation3 + $0x78] sm:$0xff]
  %v2635 = vld [vmem:[#allocation3 + $0x80] sm:$0xff]
  %v2636 = vld [vmem:[#allocation3 + $0x88] sm:$0xff]
  %v2637 = vld [vmem:[#allocation3 + $0x90] sm:$0xff]
  %v2638 = vld [vmem:[#allocation3 + $0x98] sm:$0xff]
  %v2639 = vld [vmem:[#allocation3 + $0xa0] sm:$0xff]
  %v2640 = vld [vmem:[#allocation3 + $0xa8] sm:$0xff]
  %v2641 = vld [vmem:[#allocation3 + $0xb0] sm:$0xff]
  %v2642 = vld [vmem:[#allocation3 + $0xb8] sm:$0xff]
  %v2643 = vld [vmem:[#allocation3 + $0xc0] sm:$0xff]
  %v2644 = vld [vmem:[#allocation3 + $0xc8] sm:$0xff]
  %v2645 = vpack.c.bf16 %v2634, %v2633
  %v2646 = vpack.c.bf16 %v2636, %v2635
  %v2647 = vpack.c.bf16 %v2638, %v2637
  %v2648 = vpack.c.bf16 %v2640, %v2639
  %v2649 = vpack.c.bf16 %v2642, %v2641
  %v2650 = vpack.c.bf16 %v2644, %v2643
  %v2651 = vld [vmem:[%s1447] sm:$0xf]
  %v2652 = vld [vmem:[%s1447 + $0x4] sm:$0xf]
  %v2653 = vld [vmem:[%s1447 + $0x8] sm:$0xf]
  %v2654 = vld [vmem:[%s1447 + $0xc] sm:$0xf]
  %v2655 = vld [vmem:[%s1447 + $0x10] sm:$0xf]
  %v2656 = vld [vmem:[%s1447 + $0x14] sm:$0xf]
  %v2657 = vld [vmem:[%s1447 + $0x18] sm:$0xf]
  %v2658 = vld [vmem:[%s1447 + $0x1c] sm:$0xf]
  %v2659 = vld [vmem:[%s1447 + $0x20] sm:$0xf]
  %v2660 = vld [vmem:[%s1447 + $0x24] sm:$0xf]
  %v2661 = vld [vmem:[%s1447 + $0x28] sm:$0xf]
  %v2662 = vld [vmem:[%s1447 + $0x2c] sm:$0xf]
  %v2663 = vld [vmem:[%s1447 + $0x30] sm:$0xf]
  %v2664 = vld [vmem:[%s1447 + $0x34] sm:$0xf]
  %v2665 = vld [vmem:[%s1447 + $0x38] sm:$0xf]
  %v2666 = vld [vmem:[%s1447 + $0x3c] sm:$0xf]
  %v2683 = vunpack.c.l.b16 %v2651
  %v2684 = vunpack.c.l.b16 %v2652
  %v2685 = vunpack.c.l.b16 %v2653
  %v2686 = vunpack.c.l.b16 %v2654
  %v2687 = vunpack.c.l.b16 %v2655
  %v2688 = vunpack.c.l.b16 %v2656
  %v2689 = vunpack.c.l.b16 %v2657
  %v2690 = vunpack.c.l.b16 %v2658
  %v2691 = vunpack.c.l.b16 %v2659
  %v2692 = vunpack.c.l.b16 %v2660
  %v2693 = vunpack.c.l.b16 %v2661
  %v2694 = vunpack.c.l.b16 %v2662
  %v2695 = vunpack.c.l.b16 %v2663
  %v2696 = vunpack.c.l.b16 %v2664
  %v2697 = vunpack.c.l.b16 %v2665
  %v2698 = vunpack.c.l.b16 %v2666
  %v2699 = vpack.c.b16 %v2684, %v2683
  %v2700 = vpack.c.b16 %v2686, %v2685
  %v2701 = vpack.c.b16 %v2688, %v2687
  %v2702 = vpack.c.b16 %v2690, %v2689
  %v2703 = vpack.c.b16 %v2692, %v2691
  %v2704 = vpack.c.b16 %v2694, %v2693
  %v2705 = vpack.c.b16 %v2696, %v2695
  %v2706 = vpack.c.b16 %v2698, %v2697
  %2715 = vmatpush.bf16.msra.mxu0 %v2706
  %2716 = vmatpush.bf16.msra.mxu0 %v2705
  %2717 = vmatpush.bf16.msra.mxu0 %v2704
  %2718 = vmatpush.bf16.msra.mxu0 %v2703
  %2719 = vmatpush.bf16.msra.mxu0 %v2702
  %2720 = vmatpush.bf16.msra.mxu0 %v2701
  %2721 = vmatpush.bf16.msra.mxu0 %v2700
  %2722 = vmatpush.bf16.msra.mxu0 %v2699
  %2723 = vmatmul.bf16.gmra.mxu0 %v2645
  %v2724 = vpop.f32.mrf.mxu0
  %v2725 = vadd.f32 0.0, %v2724
  %v2726 = vpop.f32.mrf.mxu0
  %v2727 = vadd.f32 0.0, %v2726
  %2728 = vmatmul.bf16.gmra.mxu0 %v2646
  %v2729 = vpop.f32.mrf.mxu0
  %v2730 = vadd.f32 0.0, %v2729
  %v2731 = vpop.f32.mrf.mxu0
  %v2732 = vadd.f32 0.0, %v2731
  %2733 = vmatmul.bf16.gmra.mxu0 %v2647
  %v2734 = vpop.f32.mrf.mxu0
  %v2735 = vadd.f32 0.0, %v2734
  %v2736 = vpop.f32.mrf.mxu0
  %v2737 = vadd.f32 0.0, %v2736
  %2738 = vmatmul.bf16.gmra.mxu0 %v2648
  %v2739 = vpop.f32.mrf.mxu0
  %v2740 = vadd.f32 0.0, %v2739
  %v2741 = vpop.f32.mrf.mxu0
  %v2742 = vadd.f32 0.0, %v2741
  %2743 = vmatmul.bf16.gmra.mxu0 %v2649
  %v2744 = vpop.f32.mrf.mxu0
  %v2745 = vadd.f32 0.0, %v2744
  %v2746 = vpop.f32.mrf.mxu0
  %v2747 = vadd.f32 0.0, %v2746
  %2748 = vmatmul.bf16.gmra.mxu0 %v2650
  %v2749 = vpop.f32.mrf.mxu0
  %v2750 = vadd.f32 0.0, %v2749
  %v2751 = vpop.f32.mrf.mxu0
  %v2752 = vadd.f32 0.0, %v2751
  %2753 = vdwg.mxu0
  %v2754 = vadd.f32 %v2621, %v2725
  %v2755 = vadd.f32 %v2622, %v2727
  %v2756 = vadd.f32 %v2623, %v2730
  %v2757 = vadd.f32 %v2624, %v2732
  %v2758 = vadd.f32 %v2625, %v2735
  %v2759 = vadd.f32 %v2626, %v2737
  %v2760 = vadd.f32 %v2627, %v2740
  %v2761 = vadd.f32 %v2628, %v2742
  %v2762 = vadd.f32 %v2629, %v2745
  %v2763 = vadd.f32 %v2630, %v2747
  %v2764 = vadd.f32 %v2631, %v2750
  %v2765 = vadd.f32 %v2632, %v2752
  %v2766 = vld [vmem:[#allocation3 + $0x7c] sm:$0xff]
  %v2767 = vld [vmem:[#allocation3 + $0x84] sm:$0xff]
  %v2768 = vld [vmem:[#allocation3 + $0x8c] sm:$0xff]
  %v2769 = vld [vmem:[#allocation3 + $0x94] sm:$0xff]
  %v2770 = vld [vmem:[#allocation3 + $0x9c] sm:$0xff]
  %v2771 = vld [vmem:[#allocation3 + $0xa4] sm:$0xff]
  %v2772 = vld [vmem:[#allocation3 + $0xac] sm:$0xff]
  %v2773 = vld [vmem:[#allocation3 + $0xb4] sm:$0xff]
  %v2774 = vld [vmem:[#allocation3 + $0xbc] sm:$0xff]
  %v2775 = vld [vmem:[#allocation3 + $0xc4] sm:$0xff]
  %v2776 = vld [vmem:[#allocation3 + $0xcc] sm:$0xff]
  %v2777 = vld [vmem:[#allocation3 + $0xd4] sm:$0xff]
  %v2778 = vpack.c.bf16 %v2767, %v2766
  %v2779 = vpack.c.bf16 %v2769, %v2768
  %v2780 = vpack.c.bf16 %v2771, %v2770
  %v2781 = vpack.c.bf16 %v2773, %v2772
  %v2782 = vpack.c.bf16 %v2775, %v2774
  %v2783 = vpack.c.bf16 %v2777, %v2776
  %v2784 = vld [vmem:[%s1581] sm:$0xf]
  %v2785 = vld [vmem:[%s1581 + $0x4] sm:$0xf]
  %v2786 = vld [vmem:[%s1581 + $0x8] sm:$0xf]
  %v2787 = vld [vmem:[%s1581 + $0xc] sm:$0xf]
  %v2788 = vld [vmem:[%s1581 + $0x10] sm:$0xf]
  %v2789 = vld [vmem:[%s1581 + $0x14] sm:$0xf]
  %v2790 = vld [vmem:[%s1581 + $0x18] sm:$0xf]
  %v2791 = vld [vmem:[%s1581 + $0x1c] sm:$0xf]
  %v2792 = vld [vmem:[%s1581 + $0x20] sm:$0xf]
  %v2793 = vld [vmem:[%s1581 + $0x24] sm:$0xf]
  %v2794 = vld [vmem:[%s1581 + $0x28] sm:$0xf]
  %v2795 = vld [vmem:[%s1581 + $0x2c] sm:$0xf]
  %v2796 = vld [vmem:[%s1581 + $0x30] sm:$0xf]
  %v2797 = vld [vmem:[%s1581 + $0x34] sm:$0xf]
  %v2798 = vld [vmem:[%s1581 + $0x38] sm:$0xf]
  %v2799 = vld [vmem:[%s1581 + $0x3c] sm:$0xf]
  %v2816 = vunpack.c.l.b16 %v2784
  %v2817 = vunpack.c.l.b16 %v2785
  %v2818 = vunpack.c.l.b16 %v2786
  %v2819 = vunpack.c.l.b16 %v2787
  %v2820 = vunpack.c.l.b16 %v2788
  %v2821 = vunpack.c.l.b16 %v2789
  %v2822 = vunpack.c.l.b16 %v2790
  %v2823 = vunpack.c.l.b16 %v2791
  %v2824 = vunpack.c.l.b16 %v2792
  %v2825 = vunpack.c.l.b16 %v2793
  %v2826 = vunpack.c.l.b16 %v2794
  %v2827 = vunpack.c.l.b16 %v2795
  %v2828 = vunpack.c.l.b16 %v2796
  %v2829 = vunpack.c.l.b16 %v2797
  %v2830 = vunpack.c.l.b16 %v2798
  %v2831 = vunpack.c.l.b16 %v2799
  %v2832 = vpack.c.b16 %v2817, %v2816
  %v2833 = vpack.c.b16 %v2819, %v2818
  %v2834 = vpack.c.b16 %v2821, %v2820
  %v2835 = vpack.c.b16 %v2823, %v2822
  %v2836 = vpack.c.b16 %v2825, %v2824
  %v2837 = vpack.c.b16 %v2827, %v2826
  %v2838 = vpack.c.b16 %v2829, %v2828
  %v2839 = vpack.c.b16 %v2831, %v2830
  %2848 = vmatpush.bf16.msra.mxu0 %v2839
  %2849 = vmatpush.bf16.msra.mxu0 %v2838
  %2850 = vmatpush.bf16.msra.mxu0 %v2837
  %2851 = vmatpush.bf16.msra.mxu0 %v2836
  %2852 = vmatpush.bf16.msra.mxu0 %v2835
  %2853 = vmatpush.bf16.msra.mxu0 %v2834
  %2854 = vmatpush.bf16.msra.mxu0 %v2833
  %2855 = vmatpush.bf16.msra.mxu0 %v2832
  %2856 = vmatmul.bf16.gmra.mxu0 %v2778
  %v2857 = vpop.f32.mrf.mxu0
  %v2858 = vadd.f32 0.0, %v2857
  %v2859 = vpop.f32.mrf.mxu0
  %v2860 = vadd.f32 0.0, %v2859
  %2861 = vmatmul.bf16.gmra.mxu0 %v2779
  %v2862 = vpop.f32.mrf.mxu0
  %v2863 = vadd.f32 0.0, %v2862
  %v2864 = vpop.f32.mrf.mxu0
  %v2865 = vadd.f32 0.0, %v2864
  %2866 = vmatmul.bf16.gmra.mxu0 %v2780
  %v2867 = vpop.f32.mrf.mxu0
  %v2868 = vadd.f32 0.0, %v2867
  %v2869 = vpop.f32.mrf.mxu0
  %v2870 = vadd.f32 0.0, %v2869
  %2871 = vmatmul.bf16.gmra.mxu0 %v2781
  %v2872 = vpop.f32.mrf.mxu0
  %v2873 = vadd.f32 0.0, %v2872
  %v2874 = vpop.f32.mrf.mxu0
  %v2875 = vadd.f32 0.0, %v2874
  %2876 = vmatmul.bf16.gmra.mxu0 %v2782
  %v2877 = vpop.f32.mrf.mxu0
  %v2878 = vadd.f32 0.0, %v2877
  %v2879 = vpop.f32.mrf.mxu0
  %v2880 = vadd.f32 0.0, %v2879
  %2881 = vmatmul.bf16.gmra.mxu0 %v2783
  %v2882 = vpop.f32.mrf.mxu0
  %v2883 = vadd.f32 0.0, %v2882
  %v2884 = vpop.f32.mrf.mxu0
  %v2885 = vadd.f32 0.0, %v2884
  %2886 = vdwg.mxu0
  %v2887 = vadd.f32 %v2754, %v2858
  %v2888 = vadd.f32 %v2755, %v2860
  %v2889 = vadd.f32 %v2756, %v2863
  %v2890 = vadd.f32 %v2757, %v2865
  %v2891 = vadd.f32 %v2758, %v2868
  %v2892 = vadd.f32 %v2759, %v2870
  %v2893 = vadd.f32 %v2760, %v2873
  %v2894 = vadd.f32 %v2761, %v2875
  %v2895 = vadd.f32 %v2762, %v2878
  %v2896 = vadd.f32 %v2763, %v2880
  %v2897 = vadd.f32 %v2764, %v2883
  %v2898 = vadd.f32 %v2765, %v2885
  %v2899 = vld [vmem:[#allocation3 + $0x7d] sm:$0xff]
  %v2900 = vld [vmem:[#allocation3 + $0x85] sm:$0xff]
  %v2901 = vld [vmem:[#allocation3 + $0x8d] sm:$0xff]
  %v2902 = vld [vmem:[#allocation3 + $0x95] sm:$0xff]
  %v2903 = vld [vmem:[#allocation3 + $0x9d] sm:$0xff]
  %v2904 = vld [vmem:[#allocation3 + $0xa5] sm:$0xff]
  %v2905 = vld [vmem:[#allocation3 + $0xad] sm:$0xff]
  %v2906 = vld [vmem:[#allocation3 + $0xb5] sm:$0xff]
  %v2907 = vld [vmem:[#allocation3 + $0xbd] sm:$0xff]
  %v2908 = vld [vmem:[#allocation3 + $0xc5] sm:$0xff]
  %v2909 = vld [vmem:[#allocation3 + $0xcd] sm:$0xff]
  %v2910 = vld [vmem:[#allocation3 + $0xd5] sm:$0xff]
  %v2911 = vpack.c.bf16 %v2900, %v2899
  %v2912 = vpack.c.bf16 %v2902, %v2901
  %v2913 = vpack.c.bf16 %v2904, %v2903
  %v2914 = vpack.c.bf16 %v2906, %v2905
  %v2915 = vpack.c.bf16 %v2908, %v2907
  %v2916 = vpack.c.bf16 %v2910, %v2909
  %v2917 = vld [vmem:[%s1715] sm:$0xf]
  %v2918 = vld [vmem:[%s1715 + $0x4] sm:$0xf]
  %v2919 = vld [vmem:[%s1715 + $0x8] sm:$0xf]
  %v2920 = vld [vmem:[%s1715 + $0xc] sm:$0xf]
  %v2921 = vld [vmem:[%s1715 + $0x10] sm:$0xf]
  %v2922 = vld [vmem:[%s1715 + $0x14] sm:$0xf]
  %v2923 = vld [vmem:[%s1715 + $0x18] sm:$0xf]
  %v2924 = vld [vmem:[%s1715 + $0x1c] sm:$0xf]
  %v2925 = vld [vmem:[%s1715 + $0x20] sm:$0xf]
  %v2926 = vld [vmem:[%s1715 + $0x24] sm:$0xf]
  %v2927 = vld [vmem:[%s1715 + $0x28] sm:$0xf]
  %v2928 = vld [vmem:[%s1715 + $0x2c] sm:$0xf]
  %v2929 = vld [vmem:[%s1715 + $0x30] sm:$0xf]
  %v2930 = vld [vmem:[%s1715 + $0x34] sm:$0xf]
  %v2931 = vld [vmem:[%s1715 + $0x38] sm:$0xf]
  %v2932 = vld [vmem:[%s1715 + $0x3c] sm:$0xf]
  %v2949 = vunpack.c.l.b16 %v2917
  %v2950 = vunpack.c.l.b16 %v2918
  %v2951 = vunpack.c.l.b16 %v2919
  %v2952 = vunpack.c.l.b16 %v2920
  %v2953 = vunpack.c.l.b16 %v2921
  %v2954 = vunpack.c.l.b16 %v2922
  %v2955 = vunpack.c.l.b16 %v2923
  %v2956 = vunpack.c.l.b16 %v2924
  %v2957 = vunpack.c.l.b16 %v2925
  %v2958 = vunpack.c.l.b16 %v2926
  %v2959 = vunpack.c.l.b16 %v2927
  %v2960 = vunpack.c.l.b16 %v2928
  %v2961 = vunpack.c.l.b16 %v2929
  %v2962 = vunpack.c.l.b16 %v2930
  %v2963 = vunpack.c.l.b16 %v2931
  %v2964 = vunpack.c.l.b16 %v2932
  %v2965 = vpack.c.b16 %v2950, %v2949
  %v2966 = vpack.c.b16 %v2952, %v2951
  %v2967 = vpack.c.b16 %v2954, %v2953
  %v2968 = vpack.c.b16 %v2956, %v2955
  %v2969 = vpack.c.b16 %v2958, %v2957
  %v2970 = vpack.c.b16 %v2960, %v2959
  %v2971 = vpack.c.b16 %v2962, %v2961
  %v2972 = vpack.c.b16 %v2964, %v2963
  %2981 = vmatpush.bf16.msra.mxu0 %v2972
  %2982 = vmatpush.bf16.msra.mxu0 %v2971
  %2983 = vmatpush.bf16.msra.mxu0 %v2970
  %2984 = vmatpush.bf16.msra.mxu0 %v2969
  %2985 = vmatpush.bf16.msra.mxu0 %v2968
  %2986 = vmatpush.bf16.msra.mxu0 %v2967
  %2987 = vmatpush.bf16.msra.mxu0 %v2966
  %2988 = vmatpush.bf16.msra.mxu0 %v2965
  %2989 = vmatmul.bf16.gmra.mxu0 %v2911
  %v2990 = vpop.f32.mrf.mxu0
  %v2991 = vadd.f32 0.0, %v2990
  %v2992 = vpop.f32.mrf.mxu0
  %v2993 = vadd.f32 0.0, %v2992
  %2994 = vmatmul.bf16.gmra.mxu0 %v2912
  %v2995 = vpop.f32.mrf.mxu0
  %v2996 = vadd.f32 0.0, %v2995
  %v2997 = vpop.f32.mrf.mxu0
  %v2998 = vadd.f32 0.0, %v2997
  %2999 = vmatmul.bf16.gmra.mxu0 %v2913
  %v3000 = vpop.f32.mrf.mxu0
  %v3001 = vadd.f32 0.0, %v3000
  %v3002 = vpop.f32.mrf.mxu0
  %v3003 = vadd.f32 0.0, %v3002
  %3004 = vmatmul.bf16.gmra.mxu0 %v2914
  %v3005 = vpop.f32.mrf.mxu0
  %v3006 = vadd.f32 0.0, %v3005
  %v3007 = vpop.f32.mrf.mxu0
  %v3008 = vadd.f32 0.0, %v3007
  %3009 = vmatmul.bf16.gmra.mxu0 %v2915
  %v3010 = vpop.f32.mrf.mxu0
  %v3011 = vadd.f32 0.0, %v3010
  %v3012 = vpop.f32.mrf.mxu0
  %v3013 = vadd.f32 0.0, %v3012
  %3014 = vmatmul.bf16.gmra.mxu0 %v2916
  %v3015 = vpop.f32.mrf.mxu0
  %v3016 = vadd.f32 0.0, %v3015
  %v3017 = vpop.f32.mrf.mxu0
  %v3018 = vadd.f32 0.0, %v3017
  %3019 = vdwg.mxu0
  %v3020 = vadd.f32 %v2887, %v2991
  %v3021 = vadd.f32 %v2888, %v2993
  %v3022 = vadd.f32 %v2889, %v2996
  %v3023 = vadd.f32 %v2890, %v2998
  %v3024 = vadd.f32 %v2891, %v3001
  %v3025 = vadd.f32 %v2892, %v3003
  %v3026 = vadd.f32 %v2893, %v3006
  %v3027 = vadd.f32 %v2894, %v3008
  %v3028 = vadd.f32 %v2895, %v3011
  %v3029 = vadd.f32 %v2896, %v3013
  %v3030 = vadd.f32 %v2897, %v3016
  %v3031 = vadd.f32 %v2898, %v3018
  %v3032 = vld [vmem:[#allocation3 + $0x7e] sm:$0xff]
  %v3033 = vld [vmem:[#allocation3 + $0x86] sm:$0xff]
  %v3034 = vld [vmem:[#allocation3 + $0x8e] sm:$0xff]
  %v3035 = vld [vmem:[#allocation3 + $0x96] sm:$0xff]
  %v3036 = vld [vmem:[#allocation3 + $0x9e] sm:$0xff]
  %v3037 = vld [vmem:[#allocation3 + $0xa6] sm:$0xff]
  %v3038 = vld [vmem:[#allocation3 + $0xae] sm:$0xff]
  %v3039 = vld [vmem:[#allocation3 + $0xb6] sm:$0xff]
  %v3040 = vld [vmem:[#allocation3 + $0xbe] sm:$0xff]
  %v3041 = vld [vmem:[#allocation3 + $0xc6] sm:$0xff]
  %v3042 = vld [vmem:[#allocation3 + $0xce] sm:$0xff]
  %v3043 = vld [vmem:[#allocation3 + $0xd6] sm:$0xff]
  %v3044 = vpack.c.bf16 %v3033, %v3032
  %v3045 = vpack.c.bf16 %v3035, %v3034
  %v3046 = vpack.c.bf16 %v3037, %v3036
  %v3047 = vpack.c.bf16 %v3039, %v3038
  %v3048 = vpack.c.bf16 %v3041, %v3040
  %v3049 = vpack.c.bf16 %v3043, %v3042
  %v3050 = vld [vmem:[%s1849] sm:$0xf]
  %v3051 = vld [vmem:[%s1849 + $0x4] sm:$0xf]
  %v3052 = vld [vmem:[%s1849 + $0x8] sm:$0xf]
  %v3053 = vld [vmem:[%s1849 + $0xc] sm:$0xf]
  %v3054 = vld [vmem:[%s1849 + $0x10] sm:$0xf]
  %v3055 = vld [vmem:[%s1849 + $0x14] sm:$0xf]
  %v3056 = vld [vmem:[%s1849 + $0x18] sm:$0xf]
  %v3057 = vld [vmem:[%s1849 + $0x1c] sm:$0xf]
  %v3058 = vld [vmem:[%s1849 + $0x20] sm:$0xf]
  %v3059 = vld [vmem:[%s1849 + $0x24] sm:$0xf]
  %v3060 = vld [vmem:[%s1849 + $0x28] sm:$0xf]
  %v3061 = vld [vmem:[%s1849 + $0x2c] sm:$0xf]
  %v3062 = vld [vmem:[%s1849 + $0x30] sm:$0xf]
  %v3063 = vld [vmem:[%s1849 + $0x34] sm:$0xf]
  %v3064 = vld [vmem:[%s1849 + $0x38] sm:$0xf]
  %v3065 = vld [vmem:[%s1849 + $0x3c] sm:$0xf]
  %v3082 = vunpack.c.l.b16 %v3050
  %v3083 = vunpack.c.l.b16 %v3051
  %v3084 = vunpack.c.l.b16 %v3052
  %v3085 = vunpack.c.l.b16 %v3053
  %v3086 = vunpack.c.l.b16 %v3054
  %v3087 = vunpack.c.l.b16 %v3055
  %v3088 = vunpack.c.l.b16 %v3056
  %v3089 = vunpack.c.l.b16 %v3057
  %v3090 = vunpack.c.l.b16 %v3058
  %v3091 = vunpack.c.l.b16 %v3059
  %v3092 = vunpack.c.l.b16 %v3060
  %v3093 = vunpack.c.l.b16 %v3061
  %v3094 = vunpack.c.l.b16 %v3062
  %v3095 = vunpack.c.l.b16 %v3063
  %v3096 = vunpack.c.l.b16 %v3064
  %v3097 = vunpack.c.l.b16 %v3065
  %v3098 = vpack.c.b16 %v3083, %v3082
  %v3099 = vpack.c.b16 %v3085, %v3084
  %v3100 = vpack.c.b16 %v3087, %v3086
  %v3101 = vpack.c.b16 %v3089, %v3088
  %v3102 = vpack.c.b16 %v3091, %v3090
  %v3103 = vpack.c.b16 %v3093, %v3092
  %v3104 = vpack.c.b16 %v3095, %v3094
  %v3105 = vpack.c.b16 %v3097, %v3096
  %3114 = vmatpush.bf16.msra.mxu0 %v3105
  %3115 = vmatpush.bf16.msra.mxu0 %v3104
  %3116 = vmatpush.bf16.msra.mxu0 %v3103
  %3117 = vmatpush.bf16.msra.mxu0 %v3102
  %3118 = vmatpush.bf16.msra.mxu0 %v3101
  %3119 = vmatpush.bf16.msra.mxu0 %v3100
  %3120 = vmatpush.bf16.msra.mxu0 %v3099
  %3121 = vmatpush.bf16.msra.mxu0 %v3098
  %3122 = vmatmul.bf16.gmra.mxu0 %v3044
  %v3123 = vpop.f32.mrf.mxu0
  %v3124 = vadd.f32 0.0, %v3123
  %v3125 = vpop.f32.mrf.mxu0
  %v3126 = vadd.f32 0.0, %v3125
  %3127 = vmatmul.bf16.gmra.mxu0 %v3045
  %v3128 = vpop.f32.mrf.mxu0
  %v3129 = vadd.f32 0.0, %v3128
  %v3130 = vpop.f32.mrf.mxu0
  %v3131 = vadd.f32 0.0, %v3130
  %3132 = vmatmul.bf16.gmra.mxu0 %v3046
  %v3133 = vpop.f32.mrf.mxu0
  %v3134 = vadd.f32 0.0, %v3133
  %v3135 = vpop.f32.mrf.mxu0
  %v3136 = vadd.f32 0.0, %v3135
  %3137 = vmatmul.bf16.gmra.mxu0 %v3047
  %v3138 = vpop.f32.mrf.mxu0
  %v3139 = vadd.f32 0.0, %v3138
  %v3140 = vpop.f32.mrf.mxu0
  %v3141 = vadd.f32 0.0, %v3140
  %3142 = vmatmul.bf16.gmra.mxu0 %v3048
  %v3143 = vpop.f32.mrf.mxu0
  %v3144 = vadd.f32 0.0, %v3143
  %v3145 = vpop.f32.mrf.mxu0
  %v3146 = vadd.f32 0.0, %v3145
  %3147 = vmatmul.bf16.gmra.mxu0 %v3049
  %v3148 = vpop.f32.mrf.mxu0
  %v3149 = vadd.f32 0.0, %v3148
  %v3150 = vpop.f32.mrf.mxu0
  %v3151 = vadd.f32 0.0, %v3150
  %3152 = vdwg.mxu0
  %v3153 = vadd.f32 %v3020, %v3124
  %v3154 = vadd.f32 %v3021, %v3126
  %v3155 = vadd.f32 %v3022, %v3129
  %v3156 = vadd.f32 %v3023, %v3131
  %v3157 = vadd.f32 %v3024, %v3134
  %v3158 = vadd.f32 %v3025, %v3136
  %v3159 = vadd.f32 %v3026, %v3139
  %v3160 = vadd.f32 %v3027, %v3141
  %v3161 = vadd.f32 %v3028, %v3144
  %v3162 = vadd.f32 %v3029, %v3146
  %v3163 = vadd.f32 %v3030, %v3149
  %v3164 = vadd.f32 %v3031, %v3151
  %v3165 = vadd.f32 %v3153, %v1966
  %v3166 = vadd.f32 %v3154, %v1966
  %v3167 = vadd.f32 %v3155, %v1966
  %v3168 = vadd.f32 %v3156, %v1966
  %v3169 = vadd.f32 %v3157, %v1966
  %v3170 = vadd.f32 %v3158, %v1966
  %v3171 = vadd.f32 %v3159, %v1966
  %v3172 = vadd.f32 %v3160, %v1966
  %v3173 = vadd.f32 %v3161, %v1966
  %v3174 = vadd.f32 %v3162, %v1966
  %v3175 = vadd.f32 %v3163, %v1966
  %v3176 = vadd.f32 %v3164, %v1966
  %3177 = vst [vmem:[#allocation4 + $0x60] sm:$0xff] %v3165
  %3178 = vst [vmem:[#allocation4 + $0x68] sm:$0xff] %v3166
  %3179 = vst [vmem:[#allocation4 + $0x70] sm:$0xff] %v3167
  %3180 = vst [vmem:[#allocation4 + $0x78] sm:$0xff] %v3168
  %3181 = vst [vmem:[#allocation4 + $0x80] sm:$0xff] %v3169
  %3182 = vst [vmem:[#allocation4 + $0x88] sm:$0xff] %v3170
  %3183 = vst [vmem:[#allocation4 + $0x90] sm:$0xff] %v3171
  %3184 = vst [vmem:[#allocation4 + $0x98] sm:$0xff] %v3172
  %3185 = vst [vmem:[#allocation4 + $0xa0] sm:$0xff] %v3173
  %3186 = vst [vmem:[#allocation4 + $0xa8] sm:$0xff] %v3174
  %3187 = vst [vmem:[#allocation4 + $0xb0] sm:$0xff] %v3175
  %3188 = vst [vmem:[#allocation4 + $0xb8] sm:$0xff] %v3176
  %v3189 = vld [vmem:[#allocation4] ss:$2 sm:$0x1f]
  %s3190 = scalar_lea.vmem [#allocation4], 1
  %v3191 = vld [vmem:[%s3190] ss:$2 sm:$0x1f]
  %v3192 = vmax.f32 %v3189, %v3191
  %s3193 = scalar_lea.vmem [#allocation4], 14
  %v3194 = vld [vmem:[%s3193] ss:$2 sm:$0x1f]
  %s3195 = scalar_lea.vmem [#allocation4], 15
  %v3196 = vld [vmem:[%s3195] ss:$2 sm:$0x1f]
  %v3197 = vmax.f32 %v3194, %v3196
  %v3198 = vmax.f32 %v3192, %v3197
  %v3199 = vmax.f32 %v3198, 0.0
  %3200 = vst [vmem:[#allocation5 + $0x16] sm:$0x1f] %v3199
  %s3201 = scalar_lea.vmem [#allocation4], 28
  %v3202 = vld [vmem:[%s3201] ss:$2 sm:$0x1f]
  %s3203 = scalar_lea.vmem [#allocation4], 29
  %v3204 = vld [vmem:[%s3203] ss:$2 sm:$0x1f]
  %v3205 = vmax.f32 %v3202, %v3204
  %s3206 = scalar_lea.vmem [#allocation4], 42
  %v3207 = vld [vmem:[%s3206] ss:$2 sm:$0x1f]
  %s3208 = scalar_lea.vmem [#allocation4], 43
  %v3209 = vld [vmem:[%s3208] ss:$2 sm:$0x1f]
  %v3210 = vmax.f32 %v3207, %v3209
  %v3211 = vmax.f32 %v3205, %v3210
  %v3212 = vmax.f32 %v3211, 0.0
  %3213 = vst [vmem:[#allocation5 + $0x20] sm:$0x1f] %v3212
  %s3214 = scalar_lea.vmem [#allocation4], 56
  %v3215 = vld [vmem:[%s3214] ss:$2 sm:$0x1f]
  %s3216 = scalar_lea.vmem [#allocation4], 57
  %v3217 = vld [vmem:[%s3216] ss:$2 sm:$0x1f]
  %v3218 = vmax.f32 %v3215, %v3217
  %s3219 = scalar_lea.vmem [#allocation4], 70
  %v3220 = vld [vmem:[%s3219] ss:$2 sm:$0x1f]
  %s3221 = scalar_lea.vmem [#allocation4], 71
  %v3222 = vld [vmem:[%s3221] ss:$2 sm:$0x1f]
  %v3223 = vmax.f32 %v3220, %v3222
  %v3224 = vmax.f32 %v3218, %v3223
  %v3225 = vmax.f32 %v3224, 0.0
  %3226 = vst [vmem:[#allocation5 + $0x2a] sm:$0x1f] %v3225
  %s3227 = scalar_lea.vmem [#allocation4], 84
  %v3228 = vld [vmem:[%s3227] ss:$2 sm:$0x1f]
  %s3229 = scalar_lea.vmem [#allocation4], 85
  %v3230 = vld [vmem:[%s3229] ss:$2 sm:$0x1f]
  %v3231 = vmax.f32 %v3228, %v3230
  %s3232 = scalar_lea.vmem [#allocation4], 98
  %v3233 = vld [vmem:[%s3232] ss:$2 sm:$0x1f]
  %s3234 = scalar_lea.vmem [#allocation4], 99
  %v3235 = vld [vmem:[%s3234] ss:$2 sm:$0x1f]
  %v3236 = vmax.f32 %v3233, %v3235
  %v3237 = vmax.f32 %v3231, %v3236
  %v3238 = vmax.f32 %v3237, 0.0
  %3239 = vst [vmem:[#allocation5 + $0x34] sm:$0x1f] %v3238
  %s3240 = scalar_lea.vmem [#allocation4], 112
  %v3241 = vld [vmem:[%s3240] ss:$2 sm:$0x1f]
  %s3242 = scalar_lea.vmem [#allocation4], 113
  %v3243 = vld [vmem:[%s3242] ss:$2 sm:$0x1f]
  %v3244 = vmax.f32 %v3241, %v3243
  %s3245 = scalar_lea.vmem [#allocation4], 126
  %v3246 = vld [vmem:[%s3245] ss:$2 sm:$0x1f]
  %s3247 = scalar_lea.vmem [#allocation4], 127
  %v3248 = vld [vmem:[%s3247] ss:$2 sm:$0x1f]
  %v3249 = vmax.f32 %v3246, %v3248
  %v3250 = vmax.f32 %v3244, %v3249
  %v3251 = vmax.f32 %v3250, 0.0
  %3252 = vst [vmem:[#allocation5 + $0x3e] sm:$0x1f] %v3251
  %v3253 = vld [vmem:[#allocation5] sm:$0xff]
  %v3254 = vld [vmem:[#allocation5 + $0x8] sm:$0xff]
  %v3255 = vld [vmem:[#allocation5 + $0x10] sm:$0xff]
  %v3256 = vld [vmem:[#allocation5 + $0x18] sm:$0xff]
  %v3257 = vld [vmem:[#allocation5 + $0x20] sm:$0xff]
  %v3258 = vld [vmem:[#allocation5 + $0x28] sm:$0xff]
  %v3259 = vld [vmem:[#allocation5 + $0x30] sm:$0xff]
  %v3260 = vld [vmem:[#allocation5 + $0x38] sm:$0xff]
  %v3261 = vld [vmem:[#allocation5 + $0x40] sm:$0xff]
  %v3262 = vld [vmem:[#allocation5 + $0x48] sm:$0xff]
  %v3263 = vld [vmem:[#allocation5 + $0x50] sm:$0xff]
  %v3264 = vld [vmem:[#allocation5 + $0x58] sm:$0xff]
  %v3265 = vpack.c.bf16 %v3254, %v3253
  %v3266 = vpack.c.bf16 %v3256, %v3255
  %v3267 = vpack.c.bf16 %v3258, %v3257
  %v3268 = vpack.c.bf16 %v3260, %v3259
  %v3269 = vpack.c.bf16 %v3262, %v3261
  %v3270 = vpack.c.bf16 %v3264, %v3263
  %v3271 = vld [vmem:[%s5] sm:$0xf]
  %v3272 = vld [vmem:[%s5 + $0x4] sm:$0xf]
  %v3273 = vld [vmem:[%s5 + $0x8] sm:$0xf]
  %v3274 = vld [vmem:[%s5 + $0xc] sm:$0xf]
  %v3275 = vld [vmem:[%s5 + $0x10] sm:$0xf]
  %v3276 = vld [vmem:[%s5 + $0x14] sm:$0xf]
  %v3277 = vld [vmem:[%s5 + $0x18] sm:$0xf]
  %v3278 = vld [vmem:[%s5 + $0x1c] sm:$0xf]
  %v3279 = vld [vmem:[%s5 + $0x20] sm:$0xf]
  %v3280 = vld [vmem:[%s5 + $0x24] sm:$0xf]
  %v3281 = vld [vmem:[%s5 + $0x28] sm:$0xf]
  %v3282 = vld [vmem:[%s5 + $0x2c] sm:$0xf]
  %v3283 = vld [vmem:[%s5 + $0x30] sm:$0xf]
  %v3284 = vld [vmem:[%s5 + $0x34] sm:$0xf]
  %v3285 = vld [vmem:[%s5 + $0x38] sm:$0xf]
  %v3286 = vld [vmem:[%s5 + $0x3c] sm:$0xf]
  %v3287 = vld [vmem:[#allocation5 + $0x1] sm:$0xff]
  %v3288 = vld [vmem:[#allocation5 + $0x9] sm:$0xff]
  %v3289 = vld [vmem:[#allocation5 + $0x11] sm:$0xff]
  %v3290 = vld [vmem:[#allocation5 + $0x19] sm:$0xff]
  %v3291 = vld [vmem:[#allocation5 + $0x21] sm:$0xff]
  %v3292 = vld [vmem:[#allocation5 + $0x29] sm:$0xff]
  %v3293 = vld [vmem:[#allocation5 + $0x31] sm:$0xff]
  %v3294 = vld [vmem:[#allocation5 + $0x39] sm:$0xff]
  %v3295 = vld [vmem:[#allocation5 + $0x41] sm:$0xff]
  %v3296 = vld [vmem:[#allocation5 + $0x49] sm:$0xff]
  %v3297 = vld [vmem:[#allocation5 + $0x51] sm:$0xff]
  %v3298 = vld [vmem:[#allocation5 + $0x59] sm:$0xff]
  %v3299 = vpack.c.bf16 %v3288, %v3287
  %v3300 = vpack.c.bf16 %v3290, %v3289
  %v3301 = vpack.c.bf16 %v3292, %v3291
  %v3302 = vpack.c.bf16 %v3294, %v3293
  %v3303 = vpack.c.bf16 %v3296, %v3295
  %v3304 = vpack.c.bf16 %v3298, %v3297
  %s3305 = scalar_lea.vmem %s5, 64
  %v3306 = vld [vmem:[%s3305] sm:$0xf]
  %v3307 = vld [vmem:[%s3305 + $0x4] sm:$0xf]
  %v3308 = vld [vmem:[%s3305 + $0x8] sm:$0xf]
  %v3309 = vld [vmem:[%s3305 + $0xc] sm:$0xf]
  %v3310 = vld [vmem:[%s3305 + $0x10] sm:$0xf]
  %v3311 = vld [vmem:[%s3305 + $0x14] sm:$0xf]
  %v3312 = vld [vmem:[%s3305 + $0x18] sm:$0xf]
  %v3313 = vld [vmem:[%s3305 + $0x1c] sm:$0xf]
  %v3314 = vld [vmem:[%s3305 + $0x20] sm:$0xf]
  %v3315 = vld [vmem:[%s3305 + $0x24] sm:$0xf]
  %v3316 = vld [vmem:[%s3305 + $0x28] sm:$0xf]
  %v3317 = vld [vmem:[%s3305 + $0x2c] sm:$0xf]
  %v3318 = vld [vmem:[%s3305 + $0x30] sm:$0xf]
  %v3319 = vld [vmem:[%s3305 + $0x34] sm:$0xf]
  %v3320 = vld [vmem:[%s3305 + $0x38] sm:$0xf]
  %v3321 = vld [vmem:[%s3305 + $0x3c] sm:$0xf]
  %v3338 = vunpack.c.l.b16 %v3306
  %v3339 = vunpack.c.l.b16 %v3307
  %v3340 = vunpack.c.l.b16 %v3308
  %v3341 = vunpack.c.l.b16 %v3309
  %v3342 = vunpack.c.l.b16 %v3310
  %v3343 = vunpack.c.l.b16 %v3311
  %v3344 = vunpack.c.l.b16 %v3312
  %v3345 = vunpack.c.l.b16 %v3313
  %v3346 = vunpack.c.l.b16 %v3314
  %v3347 = vunpack.c.l.b16 %v3315
  %v3348 = vunpack.c.l.b16 %v3316
  %v3349 = vunpack.c.l.b16 %v3317
  %v3350 = vunpack.c.l.b16 %v3318
  %v3351 = vunpack.c.l.b16 %v3319
  %v3352 = vunpack.c.l.b16 %v3320
  %v3353 = vunpack.c.l.b16 %v3321
  %v3354 = vpack.c.b16 %v3339, %v3338
  %v3355 = vpack.c.b16 %v3341, %v3340
  %v3356 = vpack.c.b16 %v3343, %v3342
  %v3357 = vpack.c.b16 %v3345, %v3344
  %v3358 = vpack.c.b16 %v3347, %v3346
  %v3359 = vpack.c.b16 %v3349, %v3348
  %v3360 = vpack.c.b16 %v3351, %v3350
  %v3361 = vpack.c.b16 %v3353, %v3352
  %3370 = vmatpush.bf16.msra.mxu0 %v3361
  %3371 = vmatpush.bf16.msra.mxu0 %v3360
  %3372 = vmatpush.bf16.msra.mxu0 %v3359
  %3373 = vmatpush.bf16.msra.mxu0 %v3358
  %3374 = vmatpush.bf16.msra.mxu0 %v3357
  %3375 = vmatpush.bf16.msra.mxu0 %v3356
  %3376 = vmatpush.bf16.msra.mxu0 %v3355
  %3377 = vmatpush.bf16.msra.mxu0 %v3354
  %3378 = vmatmul.bf16.gmra.mxu0 %v3299
  %v3379 = vpop.f32.mrf.mxu0
  %v3380 = vadd.f32 0.0, %v3379
  %v3381 = vpop.f32.mrf.mxu0
  %v3382 = vadd.f32 0.0, %v3381
  %3383 = vmatmul.bf16.gmra.mxu0 %v3300
  %v3384 = vpop.f32.mrf.mxu0
  %v3385 = vadd.f32 0.0, %v3384
  %v3386 = vpop.f32.mrf.mxu0
  %v3387 = vadd.f32 0.0, %v3386
  %3388 = vmatmul.bf16.gmra.mxu0 %v3301
  %v3389 = vpop.f32.mrf.mxu0
  %v3390 = vadd.f32 0.0, %v3389
  %v3391 = vpop.f32.mrf.mxu0
  %v3392 = vadd.f32 0.0, %v3391
  %3393 = vmatmul.bf16.gmra.mxu0 %v3302
  %v3394 = vpop.f32.mrf.mxu0
  %v3395 = vadd.f32 0.0, %v3394
  %v3396 = vpop.f32.mrf.mxu0
  %v3397 = vadd.f32 0.0, %v3396
  %3398 = vmatmul.bf16.gmra.mxu0 %v3303
  %v3399 = vpop.f32.mrf.mxu0
  %v3400 = vadd.f32 0.0, %v3399
  %v3401 = vpop.f32.mrf.mxu0
  %v3402 = vadd.f32 0.0, %v3401
  %3403 = vmatmul.bf16.gmra.mxu0 %v3304
  %v3404 = vpop.f32.mrf.mxu0
  %v3405 = vadd.f32 0.0, %v3404
  %v3406 = vpop.f32.mrf.mxu0
  %v3407 = vadd.f32 0.0, %v3406
  %3408 = vdwg.mxu0
  %v3425 = vunpack.c.l.b16 %v3271
  %v3426 = vunpack.c.l.b16 %v3272
  %v3427 = vunpack.c.l.b16 %v3273
  %v3428 = vunpack.c.l.b16 %v3274
  %v3429 = vunpack.c.l.b16 %v3275
  %v3430 = vunpack.c.l.b16 %v3276
  %v3431 = vunpack.c.l.b16 %v3277
  %v3432 = vunpack.c.l.b16 %v3278
  %v3433 = vunpack.c.l.b16 %v3279
  %v3434 = vunpack.c.l.b16 %v3280
  %v3435 = vunpack.c.l.b16 %v3281
  %v3436 = vunpack.c.l.b16 %v3282
  %v3437 = vunpack.c.l.b16 %v3283
  %v3438 = vunpack.c.l.b16 %v3284
  %v3439 = vunpack.c.l.b16 %v3285
  %v3440 = vunpack.c.l.b16 %v3286
  %v3441 = vpack.c.b16 %v3426, %v3425
  %v3442 = vpack.c.b16 %v3428, %v3427
  %v3443 = vpack.c.b16 %v3430, %v3429
  %v3444 = vpack.c.b16 %v3432, %v3431
  %v3445 = vpack.c.b16 %v3434, %v3433
  %v3446 = vpack.c.b16 %v3436, %v3435
  %v3447 = vpack.c.b16 %v3438, %v3437
  %v3448 = vpack.c.b16 %v3440, %v3439
  %3457 = vmatpush.bf16.msra.mxu0 %v3448
  %3458 = vmatpush.bf16.msra.mxu0 %v3447
  %3459 = vmatpush.bf16.msra.mxu0 %v3446
  %3460 = vmatpush.bf16.msra.mxu0 %v3445
  %3461 = vmatpush.bf16.msra.mxu0 %v3444
  %3462 = vmatpush.bf16.msra.mxu0 %v3443
  %3463 = vmatpush.bf16.msra.mxu0 %v3442
  %3464 = vmatpush.bf16.msra.mxu0 %v3441
  %3465 = vmatmul.bf16.gmra.mxu0 %v3265
  %v3466 = vpop.f32.mrf.mxu0
  %v3467 = vadd.f32 %v3380, %v3466
  %v3468 = vpop.f32.mrf.mxu0
  %v3469 = vadd.f32 %v3382, %v3468
  %3470 = vmatmul.bf16.gmra.mxu0 %v3266
  %v3471 = vpop.f32.mrf.mxu0
  %v3472 = vadd.f32 %v3385, %v3471
  %v3473 = vpop.f32.mrf.mxu0
  %v3474 = vadd.f32 %v3387, %v3473
  %3475 = vmatmul.bf16.gmra.mxu0 %v3267
  %v3476 = vpop.f32.mrf.mxu0
  %v3477 = vadd.f32 %v3390, %v3476
  %v3478 = vpop.f32.mrf.mxu0
  %v3479 = vadd.f32 %v3392, %v3478
  %3480 = vmatmul.bf16.gmra.mxu0 %v3268
  %v3481 = vpop.f32.mrf.mxu0
  %v3482 = vadd.f32 %v3395, %v3481
  %v3483 = vpop.f32.mrf.mxu0
  %v3484 = vadd.f32 %v3397, %v3483
  %3485 = vmatmul.bf16.gmra.mxu0 %v3269
  %v3486 = vpop.f32.mrf.mxu0
  %v3487 = vadd.f32 %v3400, %v3486
  %v3488 = vpop.f32.mrf.mxu0
  %v3489 = vadd.f32 %v3402, %v3488
  %3490 = vmatmul.bf16.gmra.mxu0 %v3270
  %v3491 = vpop.f32.mrf.mxu0
  %v3492 = vadd.f32 %v3405, %v3491
  %v3493 = vpop.f32.mrf.mxu0
  %v3494 = vadd.f32 %v3407, %v3493
  %3495 = vdwg.mxu0
  %v3496 = vld [vmem:[#allocation5 + $0x2] sm:$0xff]
  %v3497 = vld [vmem:[#allocation5 + $0xa] sm:$0xff]
  %v3498 = vld [vmem:[#allocation5 + $0x12] sm:$0xff]
  %v3499 = vld [vmem:[#allocation5 + $0x1a] sm:$0xff]
  %v3500 = vld [vmem:[#allocation5 + $0x22] sm:$0xff]
  %v3501 = vld [vmem:[#allocation5 + $0x2a] sm:$0xff]
  %v3502 = vld [vmem:[#allocation5 + $0x32] sm:$0xff]
  %v3503 = vld [vmem:[#allocation5 + $0x3a] sm:$0xff]
  %v3504 = vld [vmem:[#allocation5 + $0x42] sm:$0xff]
  %v3505 = vld [vmem:[#allocation5 + $0x4a] sm:$0xff]
  %v3506 = vld [vmem:[#allocation5 + $0x52] sm:$0xff]
  %v3507 = vld [vmem:[#allocation5 + $0x5a] sm:$0xff]
  %v3508 = vpack.c.bf16 %v3497, %v3496
  %v3509 = vpack.c.bf16 %v3499, %v3498
  %v3510 = vpack.c.bf16 %v3501, %v3500
  %v3511 = vpack.c.bf16 %v3503, %v3502
  %v3512 = vpack.c.bf16 %v3505, %v3504
  %v3513 = vpack.c.bf16 %v3507, %v3506
  %s3514 = scalar_lea.vmem %s5, 128
  %v3515 = vld [vmem:[%s3514] sm:$0xf]
  %v3516 = vld [vmem:[%s3514 + $0x4] sm:$0xf]
  %v3517 = vld [vmem:[%s3514 + $0x8] sm:$0xf]
  %v3518 = vld [vmem:[%s3514 + $0xc] sm:$0xf]
  %v3519 = vld [vmem:[%s3514 + $0x10] sm:$0xf]
  %v3520 = vld [vmem:[%s3514 + $0x14] sm:$0xf]
  %v3521 = vld [vmem:[%s3514 + $0x18] sm:$0xf]
  %v3522 = vld [vmem:[%s3514 + $0x1c] sm:$0xf]
  %v3523 = vld [vmem:[%s3514 + $0x20] sm:$0xf]
  %v3524 = vld [vmem:[%s3514 + $0x24] sm:$0xf]
  %v3525 = vld [vmem:[%s3514 + $0x28] sm:$0xf]
  %v3526 = vld [vmem:[%s3514 + $0x2c] sm:$0xf]
  %v3527 = vld [vmem:[%s3514 + $0x30] sm:$0xf]
  %v3528 = vld [vmem:[%s3514 + $0x34] sm:$0xf]
  %v3529 = vld [vmem:[%s3514 + $0x38] sm:$0xf]
  %v3530 = vld [vmem:[%s3514 + $0x3c] sm:$0xf]
  %v3547 = vunpack.c.l.b16 %v3515
  %v3548 = vunpack.c.l.b16 %v3516
  %v3549 = vunpack.c.l.b16 %v3517
  %v3550 = vunpack.c.l.b16 %v3518
  %v3551 = vunpack.c.l.b16 %v3519
  %v3552 = vunpack.c.l.b16 %v3520
  %v3553 = vunpack.c.l.b16 %v3521
  %v3554 = vunpack.c.l.b16 %v3522
  %v3555 = vunpack.c.l.b16 %v3523
  %v3556 = vunpack.c.l.b16 %v3524
  %v3557 = vunpack.c.l.b16 %v3525
  %v3558 = vunpack.c.l.b16 %v3526
  %v3559 = vunpack.c.l.b16 %v3527
  %v3560 = vunpack.c.l.b16 %v3528
  %v3561 = vunpack.c.l.b16 %v3529
  %v3562 = vunpack.c.l.b16 %v3530
  %v3563 = vpack.c.b16 %v3548, %v3547
  %v3564 = vpack.c.b16 %v3550, %v3549
  %v3565 = vpack.c.b16 %v3552, %v3551
  %v3566 = vpack.c.b16 %v3554, %v3553
  %v3567 = vpack.c.b16 %v3556, %v3555
  %v3568 = vpack.c.b16 %v3558, %v3557
  %v3569 = vpack.c.b16 %v3560, %v3559
  %v3570 = vpack.c.b16 %v3562, %v3561
  %3579 = vmatpush.bf16.msra.mxu0 %v3570
  %3580 = vmatpush.bf16.msra.mxu0 %v3569
  %3581 = vmatpush.bf16.msra.mxu0 %v3568
  %3582 = vmatpush.bf16.msra.mxu0 %v3567
  %3583 = vmatpush.bf16.msra.mxu0 %v3566
  %3584 = vmatpush.bf16.msra.mxu0 %v3565
  %3585 = vmatpush.bf16.msra.mxu0 %v3564
  %3586 = vmatpush.bf16.msra.mxu0 %v3563
  %3587 = vmatmul.bf16.gmra.mxu0 %v3508
  %v3588 = vpop.f32.mrf.mxu0
  %v3589 = vadd.f32 0.0, %v3588
  %v3590 = vpop.f32.mrf.mxu0
  %v3591 = vadd.f32 0.0, %v3590
  %3592 = vmatmul.bf16.gmra.mxu0 %v3509
  %v3593 = vpop.f32.mrf.mxu0
  %v3594 = vadd.f32 0.0, %v3593
  %v3595 = vpop.f32.mrf.mxu0
  %v3596 = vadd.f32 0.0, %v3595
  %3597 = vmatmul.bf16.gmra.mxu0 %v3510
  %v3598 = vpop.f32.mrf.mxu0
  %v3599 = vadd.f32 0.0, %v3598
  %v3600 = vpop.f32.mrf.mxu0
  %v3601 = vadd.f32 0.0, %v3600
  %3602 = vmatmul.bf16.gmra.mxu0 %v3511
  %v3603 = vpop.f32.mrf.mxu0
  %v3604 = vadd.f32 0.0, %v3603
  %v3605 = vpop.f32.mrf.mxu0
  %v3606 = vadd.f32 0.0, %v3605
  %3607 = vmatmul.bf16.gmra.mxu0 %v3512
  %v3608 = vpop.f32.mrf.mxu0
  %v3609 = vadd.f32 0.0, %v3608
  %v3610 = vpop.f32.mrf.mxu0
  %v3611 = vadd.f32 0.0, %v3610
  %3612 = vmatmul.bf16.gmra.mxu0 %v3513
  %v3613 = vpop.f32.mrf.mxu0
  %v3614 = vadd.f32 0.0, %v3613
  %v3615 = vpop.f32.mrf.mxu0
  %v3616 = vadd.f32 0.0, %v3615
  %3617 = vdwg.mxu0
  %v3618 = vadd.f32 %v3467, %v3589
  %v3619 = vadd.f32 %v3469, %v3591
  %v3620 = vadd.f32 %v3472, %v3594
  %v3621 = vadd.f32 %v3474, %v3596
  %v3622 = vadd.f32 %v3477, %v3599
  %v3623 = vadd.f32 %v3479, %v3601
  %v3624 = vadd.f32 %v3482, %v3604
  %v3625 = vadd.f32 %v3484, %v3606
  %v3626 = vadd.f32 %v3487, %v3609
  %v3627 = vadd.f32 %v3489, %v3611
  %v3628 = vadd.f32 %v3492, %v3614
  %v3629 = vadd.f32 %v3494, %v3616
  %v3630 = vld [vmem:[#allocation5 + $0xa] sm:$0xff]
  %v3631 = vld [vmem:[#allocation5 + $0x12] sm:$0xff]
  %v3632 = vld [vmem:[#allocation5 + $0x1a] sm:$0xff]
  %v3633 = vld [vmem:[#allocation5 + $0x22] sm:$0xff]
  %v3634 = vld [vmem:[#allocation5 + $0x2a] sm:$0xff]
  %v3635 = vld [vmem:[#allocation5 + $0x32] sm:$0xff]
  %v3636 = vld [vmem:[#allocation5 + $0x3a] sm:$0xff]
  %v3637 = vld [vmem:[#allocation5 + $0x42] sm:$0xff]
  %v3638 = vld [vmem:[#allocation5 + $0x4a] sm:$0xff]
  %v3639 = vld [vmem:[#allocation5 + $0x52] sm:$0xff]
  %v3640 = vld [vmem:[#allocation5 + $0x5a] sm:$0xff]
  %v3641 = vld [vmem:[#allocation5 + $0x62] sm:$0xff]
  %v3642 = vpack.c.bf16 %v3631, %v3630
  %v3643 = vpack.c.bf16 %v3633, %v3632
  %v3644 = vpack.c.bf16 %v3635, %v3634
  %v3645 = vpack.c.bf16 %v3637, %v3636
  %v3646 = vpack.c.bf16 %v3639, %v3638
  %v3647 = vpack.c.bf16 %v3641, %v3640
  %s3648 = scalar_lea.vmem %s5, 192
  %v3649 = vld [vmem:[%s3648] sm:$0xf]
  %v3650 = vld [vmem:[%s3648 + $0x4] sm:$0xf]
  %v3651 = vld [vmem:[%s3648 + $0x8] sm:$0xf]
  %v3652 = vld [vmem:[%s3648 + $0xc] sm:$0xf]
  %v3653 = vld [vmem:[%s3648 + $0x10] sm:$0xf]
  %v3654 = vld [vmem:[%s3648 + $0x14] sm:$0xf]
  %v3655 = vld [vmem:[%s3648 + $0x18] sm:$0xf]
  %v3656 = vld [vmem:[%s3648 + $0x1c] sm:$0xf]
  %v3657 = vld [vmem:[%s3648 + $0x20] sm:$0xf]
  %v3658 = vld [vmem:[%s3648 + $0x24] sm:$0xf]
  %v3659 = vld [vmem:[%s3648 + $0x28] sm:$0xf]
  %v3660 = vld [vmem:[%s3648 + $0x2c] sm:$0xf]
  %v3661 = vld [vmem:[%s3648 + $0x30] sm:$0xf]
  %v3662 = vld [vmem:[%s3648 + $0x34] sm:$0xf]
  %v3663 = vld [vmem:[%s3648 + $0x38] sm:$0xf]
  %v3664 = vld [vmem:[%s3648 + $0x3c] sm:$0xf]
  %v3681 = vunpack.c.l.b16 %v3649
  %v3682 = vunpack.c.l.b16 %v3650
  %v3683 = vunpack.c.l.b16 %v3651
  %v3684 = vunpack.c.l.b16 %v3652
  %v3685 = vunpack.c.l.b16 %v3653
  %v3686 = vunpack.c.l.b16 %v3654
  %v3687 = vunpack.c.l.b16 %v3655
  %v3688 = vunpack.c.l.b16 %v3656
  %v3689 = vunpack.c.l.b16 %v3657
  %v3690 = vunpack.c.l.b16 %v3658
  %v3691 = vunpack.c.l.b16 %v3659
  %v3692 = vunpack.c.l.b16 %v3660
  %v3693 = vunpack.c.l.b16 %v3661
  %v3694 = vunpack.c.l.b16 %v3662
  %v3695 = vunpack.c.l.b16 %v3663
  %v3696 = vunpack.c.l.b16 %v3664
  %v3697 = vpack.c.b16 %v3682, %v3681
  %v3698 = vpack.c.b16 %v3684, %v3683
  %v3699 = vpack.c.b16 %v3686, %v3685
  %v3700 = vpack.c.b16 %v3688, %v3687
  %v3701 = vpack.c.b16 %v3690, %v3689
  %v3702 = vpack.c.b16 %v3692, %v3691
  %v3703 = vpack.c.b16 %v3694, %v3693
  %v3704 = vpack.c.b16 %v3696, %v3695
  %3713 = vmatpush.bf16.msra.mxu0 %v3704
  %3714 = vmatpush.bf16.msra.mxu0 %v3703
  %3715 = vmatpush.bf16.msra.mxu0 %v3702
  %3716 = vmatpush.bf16.msra.mxu0 %v3701
  %3717 = vmatpush.bf16.msra.mxu0 %v3700
  %3718 = vmatpush.bf16.msra.mxu0 %v3699
  %3719 = vmatpush.bf16.msra.mxu0 %v3698
  %3720 = vmatpush.bf16.msra.mxu0 %v3697
  %3721 = vmatmul.bf16.gmra.mxu0 %v3642
  %v3722 = vpop.f32.mrf.mxu0
  %v3723 = vadd.f32 0.0, %v3722
  %v3724 = vpop.f32.mrf.mxu0
  %v3725 = vadd.f32 0.0, %v3724
  %3726 = vmatmul.bf16.gmra.mxu0 %v3643
  %v3727 = vpop.f32.mrf.mxu0
  %v3728 = vadd.f32 0.0, %v3727
  %v3729 = vpop.f32.mrf.mxu0
  %v3730 = vadd.f32 0.0, %v3729
  %3731 = vmatmul.bf16.gmra.mxu0 %v3644
  %v3732 = vpop.f32.mrf.mxu0
  %v3733 = vadd.f32 0.0, %v3732
  %v3734 = vpop.f32.mrf.mxu0
  %v3735 = vadd.f32 0.0, %v3734
  %3736 = vmatmul.bf16.gmra.mxu0 %v3645
  %v3737 = vpop.f32.mrf.mxu0
  %v3738 = vadd.f32 0.0, %v3737
  %v3739 = vpop.f32.mrf.mxu0
  %v3740 = vadd.f32 0.0, %v3739
  %3741 = vmatmul.bf16.gmra.mxu0 %v3646
  %v3742 = vpop.f32.mrf.mxu0
  %v3743 = vadd.f32 0.0, %v3742
  %v3744 = vpop.f32.mrf.mxu0
  %v3745 = vadd.f32 0.0, %v3744
  %3746 = vmatmul.bf16.gmra.mxu0 %v3647
  %v3747 = vpop.f32.mrf.mxu0
  %v3748 = vadd.f32 0.0, %v3747
  %v3749 = vpop.f32.mrf.mxu0
  %v3750 = vadd.f32 0.0, %v3749
  %3751 = vdwg.mxu0
  %v3752 = vadd.f32 %v3618, %v3723
  %v3753 = vadd.f32 %v3619, %v3725
  %v3754 = vadd.f32 %v3620, %v3728
  %v3755 = vadd.f32 %v3621, %v3730
  %v3756 = vadd.f32 %v3622, %v3733
  %v3757 = vadd.f32 %v3623, %v3735
  %v3758 = vadd.f32 %v3624, %v3738
  %v3759 = vadd.f32 %v3625, %v3740
  %v3760 = vadd.f32 %v3626, %v3743
  %v3761 = vadd.f32 %v3627, %v3745
  %v3762 = vadd.f32 %v3628, %v3748
  %v3763 = vadd.f32 %v3629, %v3750
  %v3764 = vld [vmem:[#allocation5 + $0xb] sm:$0xff]
  %v3765 = vld [vmem:[#allocation5 + $0x13] sm:$0xff]
  %v3766 = vld [vmem:[#allocation5 + $0x1b] sm:$0xff]
  %v3767 = vld [vmem:[#allocation5 + $0x23] sm:$0xff]
  %v3768 = vld [vmem:[#allocation5 + $0x2b] sm:$0xff]
  %v3769 = vld [vmem:[#allocation5 + $0x33] sm:$0xff]
  %v3770 = vld [vmem:[#allocation5 + $0x3b] sm:$0xff]
  %v3771 = vld [vmem:[#allocation5 + $0x43] sm:$0xff]
  %v3772 = vld [vmem:[#allocation5 + $0x4b] sm:$0xff]
  %v3773 = vld [vmem:[#allocation5 + $0x53] sm:$0xff]
  %v3774 = vld [vmem:[#allocation5 + $0x5b] sm:$0xff]
  %v3775 = vld [vmem:[#allocation5 + $0x63] sm:$0xff]
  %v3776 = vpack.c.bf16 %v3765, %v3764
  %v3777 = vpack.c.bf16 %v3767, %v3766
  %v3778 = vpack.c.bf16 %v3769, %v3768
  %v3779 = vpack.c.bf16 %v3771, %v3770
  %v3780 = vpack.c.bf16 %v3773, %v3772
  %v3781 = vpack.c.bf16 %v3775, %v3774
  %s3782 = scalar_lea.vmem %s5, 256
  %v3783 = vld [vmem:[%s3782] sm:$0xf]
  %v3784 = vld [vmem:[%s3782 + $0x4] sm:$0xf]
  %v3785 = vld [vmem:[%s3782 + $0x8] sm:$0xf]
  %v3786 = vld [vmem:[%s3782 + $0xc] sm:$0xf]
  %v3787 = vld [vmem:[%s3782 + $0x10] sm:$0xf]
  %v3788 = vld [vmem:[%s3782 + $0x14] sm:$0xf]
  %v3789 = vld [vmem:[%s3782 + $0x18] sm:$0xf]
  %v3790 = vld [vmem:[%s3782 + $0x1c] sm:$0xf]
  %v3791 = vld [vmem:[%s3782 + $0x20] sm:$0xf]
  %v3792 = vld [vmem:[%s3782 + $0x24] sm:$0xf]
  %v3793 = vld [vmem:[%s3782 + $0x28] sm:$0xf]
  %v3794 = vld [vmem:[%s3782 + $0x2c] sm:$0xf]
  %v3795 = vld [vmem:[%s3782 + $0x30] sm:$0xf]
  %v3796 = vld [vmem:[%s3782 + $0x34] sm:$0xf]
  %v3797 = vld [vmem:[%s3782 + $0x38] sm:$0xf]
  %v3798 = vld [vmem:[%s3782 + $0x3c] sm:$0xf]
  %v3815 = vunpack.c.l.b16 %v3783
  %v3816 = vunpack.c.l.b16 %v3784
  %v3817 = vunpack.c.l.b16 %v3785
  %v3818 = vunpack.c.l.b16 %v3786
  %v3819 = vunpack.c.l.b16 %v3787
  %v3820 = vunpack.c.l.b16 %v3788
  %v3821 = vunpack.c.l.b16 %v3789
  %v3822 = vunpack.c.l.b16 %v3790
  %v3823 = vunpack.c.l.b16 %v3791
  %v3824 = vunpack.c.l.b16 %v3792
  %v3825 = vunpack.c.l.b16 %v3793
  %v3826 = vunpack.c.l.b16 %v3794
  %v3827 = vunpack.c.l.b16 %v3795
  %v3828 = vunpack.c.l.b16 %v3796
  %v3829 = vunpack.c.l.b16 %v3797
  %v3830 = vunpack.c.l.b16 %v3798
  %v3831 = vpack.c.b16 %v3816, %v3815
  %v3832 = vpack.c.b16 %v3818, %v3817
  %v3833 = vpack.c.b16 %v3820, %v3819
  %v3834 = vpack.c.b16 %v3822, %v3821
  %v3835 = vpack.c.b16 %v3824, %v3823
  %v3836 = vpack.c.b16 %v3826, %v3825
  %v3837 = vpack.c.b16 %v3828, %v3827
  %v3838 = vpack.c.b16 %v3830, %v3829
  %3847 = vmatpush.bf16.msra.mxu0 %v3838
  %3848 = vmatpush.bf16.msra.mxu0 %v3837
  %3849 = vmatpush.bf16.msra.mxu0 %v3836
  %3850 = vmatpush.bf16.msra.mxu0 %v3835
  %3851 = vmatpush.bf16.msra.mxu0 %v3834
  %3852 = vmatpush.bf16.msra.mxu0 %v3833
  %3853 = vmatpush.bf16.msra.mxu0 %v3832
  %3854 = vmatpush.bf16.msra.mxu0 %v3831
  %3855 = vmatmul.bf16.gmra.mxu0 %v3776
  %v3856 = vpop.f32.mrf.mxu0
  %v3857 = vadd.f32 0.0, %v3856
  %v3858 = vpop.f32.mrf.mxu0
  %v3859 = vadd.f32 0.0, %v3858
  %3860 = vmatmul.bf16.gmra.mxu0 %v3777
  %v3861 = vpop.f32.mrf.mxu0
  %v3862 = vadd.f32 0.0, %v3861
  %v3863 = vpop.f32.mrf.mxu0
  %v3864 = vadd.f32 0.0, %v3863
  %3865 = vmatmul.bf16.gmra.mxu0 %v3778
  %v3866 = vpop.f32.mrf.mxu0
  %v3867 = vadd.f32 0.0, %v3866
  %v3868 = vpop.f32.mrf.mxu0
  %v3869 = vadd.f32 0.0, %v3868
  %3870 = vmatmul.bf16.gmra.mxu0 %v3779
  %v3871 = vpop.f32.mrf.mxu0
  %v3872 = vadd.f32 0.0, %v3871
  %v3873 = vpop.f32.mrf.mxu0
  %v3874 = vadd.f32 0.0, %v3873
  %3875 = vmatmul.bf16.gmra.mxu0 %v3780
  %v3876 = vpop.f32.mrf.mxu0
  %v3877 = vadd.f32 0.0, %v3876
  %v3878 = vpop.f32.mrf.mxu0
  %v3879 = vadd.f32 0.0, %v3878
  %3880 = vmatmul.bf16.gmra.mxu0 %v3781
  %v3881 = vpop.f32.mrf.mxu0
  %v3882 = vadd.f32 0.0, %v3881
  %v3883 = vpop.f32.mrf.mxu0
  %v3884 = vadd.f32 0.0, %v3883
  %3885 = vdwg.mxu0
  %v3886 = vadd.f32 %v3752, %v3857
  %v3887 = vadd.f32 %v3753, %v3859
  %v3888 = vadd.f32 %v3754, %v3862
  %v3889 = vadd.f32 %v3755, %v3864
  %v3890 = vadd.f32 %v3756, %v3867
  %v3891 = vadd.f32 %v3757, %v3869
  %v3892 = vadd.f32 %v3758, %v3872
  %v3893 = vadd.f32 %v3759, %v3874
  %v3894 = vadd.f32 %v3760, %v3877
  %v3895 = vadd.f32 %v3761, %v3879
  %v3896 = vadd.f32 %v3762, %v3882
  %v3897 = vadd.f32 %v3763, %v3884
  %v3898 = vld [vmem:[#allocation5 + $0xc] sm:$0xff]
  %v3899 = vld [vmem:[#allocation5 + $0x14] sm:$0xff]
  %v3900 = vld [vmem:[#allocation5 + $0x1c] sm:$0xff]
  %v3901 = vld [vmem:[#allocation5 + $0x24] sm:$0xff]
  %v3902 = vld [vmem:[#allocation5 + $0x2c] sm:$0xff]
  %v3903 = vld [vmem:[#allocation5 + $0x34] sm:$0xff]
  %v3904 = vld [vmem:[#allocation5 + $0x3c] sm:$0xff]
  %v3905 = vld [vmem:[#allocation5 + $0x44] sm:$0xff]
  %v3906 = vld [vmem:[#allocation5 + $0x4c] sm:$0xff]
  %v3907 = vld [vmem:[#allocation5 + $0x54] sm:$0xff]
  %v3908 = vld [vmem:[#allocation5 + $0x5c] sm:$0xff]
  %v3909 = vld [vmem:[#allocation5 + $0x64] sm:$0xff]
  %v3910 = vpack.c.bf16 %v3899, %v3898
  %v3911 = vpack.c.bf16 %v3901, %v3900
  %v3912 = vpack.c.bf16 %v3903, %v3902
  %v3913 = vpack.c.bf16 %v3905, %v3904
  %v3914 = vpack.c.bf16 %v3907, %v3906
  %v3915 = vpack.c.bf16 %v3909, %v3908
  %s3916 = scalar_lea.vmem %s5, 320
  %v3917 = vld [vmem:[%s3916] sm:$0xf]
  %v3918 = vld [vmem:[%s3916 + $0x4] sm:$0xf]
  %v3919 = vld [vmem:[%s3916 + $0x8] sm:$0xf]
  %v3920 = vld [vmem:[%s3916 + $0xc] sm:$0xf]
  %v3921 = vld [vmem:[%s3916 + $0x10] sm:$0xf]
  %v3922 = vld [vmem:[%s3916 + $0x14] sm:$0xf]
  %v3923 = vld [vmem:[%s3916 + $0x18] sm:$0xf]
  %v3924 = vld [vmem:[%s3916 + $0x1c] sm:$0xf]
  %v3925 = vld [vmem:[%s3916 + $0x20] sm:$0xf]
  %v3926 = vld [vmem:[%s3916 + $0x24] sm:$0xf]
  %v3927 = vld [vmem:[%s3916 + $0x28] sm:$0xf]
  %v3928 = vld [vmem:[%s3916 + $0x2c] sm:$0xf]
  %v3929 = vld [vmem:[%s3916 + $0x30] sm:$0xf]
  %v3930 = vld [vmem:[%s3916 + $0x34] sm:$0xf]
  %v3931 = vld [vmem:[%s3916 + $0x38] sm:$0xf]
  %v3932 = vld [vmem:[%s3916 + $0x3c] sm:$0xf]
  %v3949 = vunpack.c.l.b16 %v3917
  %v3950 = vunpack.c.l.b16 %v3918
  %v3951 = vunpack.c.l.b16 %v3919
  %v3952 = vunpack.c.l.b16 %v3920
  %v3953 = vunpack.c.l.b16 %v3921
  %v3954 = vunpack.c.l.b16 %v3922
  %v3955 = vunpack.c.l.b16 %v3923
  %v3956 = vunpack.c.l.b16 %v3924
  %v3957 = vunpack.c.l.b16 %v3925
  %v3958 = vunpack.c.l.b16 %v3926
  %v3959 = vunpack.c.l.b16 %v3927
  %v3960 = vunpack.c.l.b16 %v3928
  %v3961 = vunpack.c.l.b16 %v3929
  %v3962 = vunpack.c.l.b16 %v3930
  %v3963 = vunpack.c.l.b16 %v3931
  %v3964 = vunpack.c.l.b16 %v3932
  %v3965 = vpack.c.b16 %v3950, %v3949
  %v3966 = vpack.c.b16 %v3952, %v3951
  %v3967 = vpack.c.b16 %v3954, %v3953
  %v3968 = vpack.c.b16 %v3956, %v3955
  %v3969 = vpack.c.b16 %v3958, %v3957
  %v3970 = vpack.c.b16 %v3960, %v3959
  %v3971 = vpack.c.b16 %v3962, %v3961
  %v3972 = vpack.c.b16 %v3964, %v3963
  %3981 = vmatpush.bf16.msra.mxu0 %v3972
  %3982 = vmatpush.bf16.msra.mxu0 %v3971
  %3983 = vmatpush.bf16.msra.mxu0 %v3970
  %3984 = vmatpush.bf16.msra.mxu0 %v3969
  %3985 = vmatpush.bf16.msra.mxu0 %v3968
  %3986 = vmatpush.bf16.msra.mxu0 %v3967
  %3987 = vmatpush.bf16.msra.mxu0 %v3966
  %3988 = vmatpush.bf16.msra.mxu0 %v3965
  %3989 = vmatmul.bf16.gmra.mxu0 %v3910
  %v3990 = vpop.f32.mrf.mxu0
  %v3991 = vadd.f32 0.0, %v3990
  %v3992 = vpop.f32.mrf.mxu0
  %v3993 = vadd.f32 0.0, %v3992
  %3994 = vmatmul.bf16.gmra.mxu0 %v3911
  %v3995 = vpop.f32.mrf.mxu0
  %v3996 = vadd.f32 0.0, %v3995
  %v3997 = vpop.f32.mrf.mxu0
  %v3998 = vadd.f32 0.0, %v3997
  %3999 = vmatmul.bf16.gmra.mxu0 %v3912
  %v4000 = vpop.f32.mrf.mxu0
  %v4001 = vadd.f32 0.0, %v4000
  %v4002 = vpop.f32.mrf.mxu0
  %v4003 = vadd.f32 0.0, %v4002
  %4004 = vmatmul.bf16.gmra.mxu0 %v3913
  %v4005 = vpop.f32.mrf.mxu0
  %v4006 = vadd.f32 0.0, %v4005
  %v4007 = vpop.f32.mrf.mxu0
  %v4008 = vadd.f32 0.0, %v4007
  %4009 = vmatmul.bf16.gmra.mxu0 %v3914
  %v4010 = vpop.f32.mrf.mxu0
  %v4011 = vadd.f32 0.0, %v4010
  %v4012 = vpop.f32.mrf.mxu0
  %v4013 = vadd.f32 0.0, %v4012
  %4014 = vmatmul.bf16.gmra.mxu0 %v3915
  %v4015 = vpop.f32.mrf.mxu0
  %v4016 = vadd.f32 0.0, %v4015
  %v4017 = vpop.f32.mrf.mxu0
  %v4018 = vadd.f32 0.0, %v4017
  %4019 = vdwg.mxu0
  %v4020 = vadd.f32 %v3886, %v3991
  %v4021 = vadd.f32 %v3887, %v3993
  %v4022 = vadd.f32 %v3888, %v3996
  %v4023 = vadd.f32 %v3889, %v3998
  %v4024 = vadd.f32 %v3890, %v4001
  %v4025 = vadd.f32 %v3891, %v4003
  %v4026 = vadd.f32 %v3892, %v4006
  %v4027 = vadd.f32 %v3893, %v4008
  %v4028 = vadd.f32 %v3894, %v4011
  %v4029 = vadd.f32 %v3895, %v4013
  %v4030 = vadd.f32 %v3896, %v4016
  %v4031 = vadd.f32 %v3897, %v4018
  %v4032 = vld [vmem:[#allocation5 + $0x14] sm:$0xff]
  %v4033 = vld [vmem:[#allocation5 + $0x1c] sm:$0xff]
  %v4034 = vld [vmem:[#allocation5 + $0x24] sm:$0xff]
  %v4035 = vld [vmem:[#allocation5 + $0x2c] sm:$0xff]
  %v4036 = vld [vmem:[#allocation5 + $0x34] sm:$0xff]
  %v4037 = vld [vmem:[#allocation5 + $0x3c] sm:$0xff]
  %v4038 = vld [vmem:[#allocation5 + $0x44] sm:$0xff]
  %v4039 = vld [vmem:[#allocation5 + $0x4c] sm:$0xff]
  %v4040 = vld [vmem:[#allocation5 + $0x54] sm:$0xff]
  %v4041 = vld [vmem:[#allocation5 + $0x5c] sm:$0xff]
  %v4042 = vld [vmem:[#allocation5 + $0x64] sm:$0xff]
  %v4043 = vld [vmem:[#allocation5 + $0x6c] sm:$0xff]
  %v4044 = vpack.c.bf16 %v4033, %v4032
  %v4045 = vpack.c.bf16 %v4035, %v4034
  %v4046 = vpack.c.bf16 %v4037, %v4036
  %v4047 = vpack.c.bf16 %v4039, %v4038
  %v4048 = vpack.c.bf16 %v4041, %v4040
  %v4049 = vpack.c.bf16 %v4043, %v4042
  %s4050 = scalar_lea.vmem %s5, 384
  %v4051 = vld [vmem:[%s4050] sm:$0xf]
  %v4052 = vld [vmem:[%s4050 + $0x4] sm:$0xf]
  %v4053 = vld [vmem:[%s4050 + $0x8] sm:$0xf]
  %v4054 = vld [vmem:[%s4050 + $0xc] sm:$0xf]
  %v4055 = vld [vmem:[%s4050 + $0x10] sm:$0xf]
  %v4056 = vld [vmem:[%s4050 + $0x14] sm:$0xf]
  %v4057 = vld [vmem:[%s4050 + $0x18] sm:$0xf]
  %v4058 = vld [vmem:[%s4050 + $0x1c] sm:$0xf]
  %v4059 = vld [vmem:[%s4050 + $0x20] sm:$0xf]
  %v4060 = vld [vmem:[%s4050 + $0x24] sm:$0xf]
  %v4061 = vld [vmem:[%s4050 + $0x28] sm:$0xf]
  %v4062 = vld [vmem:[%s4050 + $0x2c] sm:$0xf]
  %v4063 = vld [vmem:[%s4050 + $0x30] sm:$0xf]
  %v4064 = vld [vmem:[%s4050 + $0x34] sm:$0xf]
  %v4065 = vld [vmem:[%s4050 + $0x38] sm:$0xf]
  %v4066 = vld [vmem:[%s4050 + $0x3c] sm:$0xf]
  %v4083 = vunpack.c.l.b16 %v4051
  %v4084 = vunpack.c.l.b16 %v4052
  %v4085 = vunpack.c.l.b16 %v4053
  %v4086 = vunpack.c.l.b16 %v4054
  %v4087 = vunpack.c.l.b16 %v4055
  %v4088 = vunpack.c.l.b16 %v4056
  %v4089 = vunpack.c.l.b16 %v4057
  %v4090 = vunpack.c.l.b16 %v4058
  %v4091 = vunpack.c.l.b16 %v4059
  %v4092 = vunpack.c.l.b16 %v4060
  %v4093 = vunpack.c.l.b16 %v4061
  %v4094 = vunpack.c.l.b16 %v4062
  %v4095 = vunpack.c.l.b16 %v4063
  %v4096 = vunpack.c.l.b16 %v4064
  %v4097 = vunpack.c.l.b16 %v4065
  %v4098 = vunpack.c.l.b16 %v4066
  %v4099 = vpack.c.b16 %v4084, %v4083
  %v4100 = vpack.c.b16 %v4086, %v4085
  %v4101 = vpack.c.b16 %v4088, %v4087
  %v4102 = vpack.c.b16 %v4090, %v4089
  %v4103 = vpack.c.b16 %v4092, %v4091
  %v4104 = vpack.c.b16 %v4094, %v4093
  %v4105 = vpack.c.b16 %v4096, %v4095
  %v4106 = vpack.c.b16 %v4098, %v4097
  %4115 = vmatpush.bf16.msra.mxu0 %v4106
  %4116 = vmatpush.bf16.msra.mxu0 %v4105
  %4117 = vmatpush.bf16.msra.mxu0 %v4104
  %4118 = vmatpush.bf16.msra.mxu0 %v4103
  %4119 = vmatpush.bf16.msra.mxu0 %v4102
  %4120 = vmatpush.bf16.msra.mxu0 %v4101
  %4121 = vmatpush.bf16.msra.mxu0 %v4100
  %4122 = vmatpush.bf16.msra.mxu0 %v4099
  %4123 = vmatmul.bf16.gmra.mxu0 %v4044
  %v4124 = vpop.f32.mrf.mxu0
  %v4125 = vadd.f32 0.0, %v4124
  %v4126 = vpop.f32.mrf.mxu0
  %v4127 = vadd.f32 0.0, %v4126
  %4128 = vmatmul.bf16.gmra.mxu0 %v4045
  %v4129 = vpop.f32.mrf.mxu0
  %v4130 = vadd.f32 0.0, %v4129
  %v4131 = vpop.f32.mrf.mxu0
  %v4132 = vadd.f32 0.0, %v4131
  %4133 = vmatmul.bf16.gmra.mxu0 %v4046
  %v4134 = vpop.f32.mrf.mxu0
  %v4135 = vadd.f32 0.0, %v4134
  %v4136 = vpop.f32.mrf.mxu0
  %v4137 = vadd.f32 0.0, %v4136
  %4138 = vmatmul.bf16.gmra.mxu0 %v4047
  %v4139 = vpop.f32.mrf.mxu0
  %v4140 = vadd.f32 0.0, %v4139
  %v4141 = vpop.f32.mrf.mxu0
  %v4142 = vadd.f32 0.0, %v4141
  %4143 = vmatmul.bf16.gmra.mxu0 %v4048
  %v4144 = vpop.f32.mrf.mxu0
  %v4145 = vadd.f32 0.0, %v4144
  %v4146 = vpop.f32.mrf.mxu0
  %v4147 = vadd.f32 0.0, %v4146
  %4148 = vmatmul.bf16.gmra.mxu0 %v4049
  %v4149 = vpop.f32.mrf.mxu0
  %v4150 = vadd.f32 0.0, %v4149
  %v4151 = vpop.f32.mrf.mxu0
  %v4152 = vadd.f32 0.0, %v4151
  %4153 = vdwg.mxu0
  %v4154 = vadd.f32 %v4020, %v4125
  %v4155 = vadd.f32 %v4021, %v4127
  %v4156 = vadd.f32 %v4022, %v4130
  %v4157 = vadd.f32 %v4023, %v4132
  %v4158 = vadd.f32 %v4024, %v4135
  %v4159 = vadd.f32 %v4025, %v4137
  %v4160 = vadd.f32 %v4026, %v4140
  %v4161 = vadd.f32 %v4027, %v4142
  %v4162 = vadd.f32 %v4028, %v4145
  %v4163 = vadd.f32 %v4029, %v4147
  %v4164 = vadd.f32 %v4030, %v4150
  %v4165 = vadd.f32 %v4031, %v4152
  %v4166 = vld [vmem:[#allocation5 + $0x15] sm:$0xff]
  %v4167 = vld [vmem:[#allocation5 + $0x1d] sm:$0xff]
  %v4168 = vld [vmem:[#allocation5 + $0x25] sm:$0xff]
  %v4169 = vld [vmem:[#allocation5 + $0x2d] sm:$0xff]
  %v4170 = vld [vmem:[#allocation5 + $0x35] sm:$0xff]
  %v4171 = vld [vmem:[#allocation5 + $0x3d] sm:$0xff]
  %v4172 = vld [vmem:[#allocation5 + $0x45] sm:$0xff]
  %v4173 = vld [vmem:[#allocation5 + $0x4d] sm:$0xff]
  %v4174 = vld [vmem:[#allocation5 + $0x55] sm:$0xff]
  %v4175 = vld [vmem:[#allocation5 + $0x5d] sm:$0xff]
  %v4176 = vld [vmem:[#allocation5 + $0x65] sm:$0xff]
  %v4177 = vld [vmem:[#allocation5 + $0x6d] sm:$0xff]
  %v4178 = vpack.c.bf16 %v4167, %v4166
  %v4179 = vpack.c.bf16 %v4169, %v4168
  %v4180 = vpack.c.bf16 %v4171, %v4170
  %v4181 = vpack.c.bf16 %v4173, %v4172
  %v4182 = vpack.c.bf16 %v4175, %v4174
  %v4183 = vpack.c.bf16 %v4177, %v4176
  %s4184 = scalar_lea.vmem %s5, 448
  %v4185 = vld [vmem:[%s4184] sm:$0xf]
  %v4186 = vld [vmem:[%s4184 + $0x4] sm:$0xf]
  %v4187 = vld [vmem:[%s4184 + $0x8] sm:$0xf]
  %v4188 = vld [vmem:[%s4184 + $0xc] sm:$0xf]
  %v4189 = vld [vmem:[%s4184 + $0x10] sm:$0xf]
  %v4190 = vld [vmem:[%s4184 + $0x14] sm:$0xf]
  %v4191 = vld [vmem:[%s4184 + $0x18] sm:$0xf]
  %v4192 = vld [vmem:[%s4184 + $0x1c] sm:$0xf]
  %v4193 = vld [vmem:[%s4184 + $0x20] sm:$0xf]
  %v4194 = vld [vmem:[%s4184 + $0x24] sm:$0xf]
  %v4195 = vld [vmem:[%s4184 + $0x28] sm:$0xf]
  %v4196 = vld [vmem:[%s4184 + $0x2c] sm:$0xf]
  %v4197 = vld [vmem:[%s4184 + $0x30] sm:$0xf]
  %v4198 = vld [vmem:[%s4184 + $0x34] sm:$0xf]
  %v4199 = vld [vmem:[%s4184 + $0x38] sm:$0xf]
  %v4200 = vld [vmem:[%s4184 + $0x3c] sm:$0xf]
  %v4217 = vunpack.c.l.b16 %v4185
  %v4218 = vunpack.c.l.b16 %v4186
  %v4219 = vunpack.c.l.b16 %v4187
  %v4220 = vunpack.c.l.b16 %v4188
  %v4221 = vunpack.c.l.b16 %v4189
  %v4222 = vunpack.c.l.b16 %v4190
  %v4223 = vunpack.c.l.b16 %v4191
  %v4224 = vunpack.c.l.b16 %v4192
  %v4225 = vunpack.c.l.b16 %v4193
  %v4226 = vunpack.c.l.b16 %v4194
  %v4227 = vunpack.c.l.b16 %v4195
  %v4228 = vunpack.c.l.b16 %v4196
  %v4229 = vunpack.c.l.b16 %v4197
  %v4230 = vunpack.c.l.b16 %v4198
  %v4231 = vunpack.c.l.b16 %v4199
  %v4232 = vunpack.c.l.b16 %v4200
  %v4233 = vpack.c.b16 %v4218, %v4217
  %v4234 = vpack.c.b16 %v4220, %v4219
  %v4235 = vpack.c.b16 %v4222, %v4221
  %v4236 = vpack.c.b16 %v4224, %v4223
  %v4237 = vpack.c.b16 %v4226, %v4225
  %v4238 = vpack.c.b16 %v4228, %v4227
  %v4239 = vpack.c.b16 %v4230, %v4229
  %v4240 = vpack.c.b16 %v4232, %v4231
  %4249 = vmatpush.bf16.msra.mxu0 %v4240
  %4250 = vmatpush.bf16.msra.mxu0 %v4239
  %4251 = vmatpush.bf16.msra.mxu0 %v4238
  %4252 = vmatpush.bf16.msra.mxu0 %v4237
  %4253 = vmatpush.bf16.msra.mxu0 %v4236
  %4254 = vmatpush.bf16.msra.mxu0 %v4235
  %4255 = vmatpush.bf16.msra.mxu0 %v4234
  %4256 = vmatpush.bf16.msra.mxu0 %v4233
  %4257 = vmatmul.bf16.gmra.mxu0 %v4178
  %v4258 = vpop.f32.mrf.mxu0
  %v4259 = vadd.f32 0.0, %v4258
  %v4260 = vpop.f32.mrf.mxu0
  %v4261 = vadd.f32 0.0, %v4260
  %4262 = vmatmul.bf16.gmra.mxu0 %v4179
  %v4263 = vpop.f32.mrf.mxu0
  %v4264 = vadd.f32 0.0, %v4263
  %v4265 = vpop.f32.mrf.mxu0
  %v4266 = vadd.f32 0.0, %v4265
  %4267 = vmatmul.bf16.gmra.mxu0 %v4180
  %v4268 = vpop.f32.mrf.mxu0
  %v4269 = vadd.f32 0.0, %v4268
  %v4270 = vpop.f32.mrf.mxu0
  %v4271 = vadd.f32 0.0, %v4270
  %4272 = vmatmul.bf16.gmra.mxu0 %v4181
  %v4273 = vpop.f32.mrf.mxu0
  %v4274 = vadd.f32 0.0, %v4273
  %v4275 = vpop.f32.mrf.mxu0
  %v4276 = vadd.f32 0.0, %v4275
  %4277 = vmatmul.bf16.gmra.mxu0 %v4182
  %v4278 = vpop.f32.mrf.mxu0
  %v4279 = vadd.f32 0.0, %v4278
  %v4280 = vpop.f32.mrf.mxu0
  %v4281 = vadd.f32 0.0, %v4280
  %4282 = vmatmul.bf16.gmra.mxu0 %v4183
  %v4283 = vpop.f32.mrf.mxu0
  %v4284 = vadd.f32 0.0, %v4283
  %v4285 = vpop.f32.mrf.mxu0
  %v4286 = vadd.f32 0.0, %v4285
  %4287 = vdwg.mxu0
  %v4288 = vadd.f32 %v4154, %v4259
  %v4289 = vadd.f32 %v4155, %v4261
  %v4290 = vadd.f32 %v4156, %v4264
  %v4291 = vadd.f32 %v4157, %v4266
  %v4292 = vadd.f32 %v4158, %v4269
  %v4293 = vadd.f32 %v4159, %v4271
  %v4294 = vadd.f32 %v4160, %v4274
  %v4295 = vadd.f32 %v4161, %v4276
  %v4296 = vadd.f32 %v4162, %v4279
  %v4297 = vadd.f32 %v4163, %v4281
  %v4298 = vadd.f32 %v4164, %v4284
  %v4299 = vadd.f32 %v4165, %v4286
  %v4300 = vld [vmem:[#allocation5 + $0x16] sm:$0xff]
  %v4301 = vld [vmem:[#allocation5 + $0x1e] sm:$0xff]
  %v4302 = vld [vmem:[#allocation5 + $0x26] sm:$0xff]
  %v4303 = vld [vmem:[#allocation5 + $0x2e] sm:$0xff]
  %v4304 = vld [vmem:[#allocation5 + $0x36] sm:$0xff]
  %v4305 = vld [vmem:[#allocation5 + $0x3e] sm:$0xff]
  %v4306 = vld [vmem:[#allocation5 + $0x46] sm:$0xff]
  %v4307 = vld [vmem:[#allocation5 + $0x4e] sm:$0xff]
  %v4308 = vld [vmem:[#allocation5 + $0x56] sm:$0xff]
  %v4309 = vld [vmem:[#allocation5 + $0x5e] sm:$0xff]
  %v4310 = vld [vmem:[#allocation5 + $0x66] sm:$0xff]
  %v4311 = vld [vmem:[#allocation5 + $0x6e] sm:$0xff]
  %v4312 = vpack.c.bf16 %v4301, %v4300
  %v4313 = vpack.c.bf16 %v4303, %v4302
  %v4314 = vpack.c.bf16 %v4305, %v4304
  %v4315 = vpack.c.bf16 %v4307, %v4306
  %v4316 = vpack.c.bf16 %v4309, %v4308
  %v4317 = vpack.c.bf16 %v4311, %v4310
  %s4318 = scalar_lea.vmem %s5, 512
  %v4319 = vld [vmem:[%s4318] sm:$0xf]
  %v4320 = vld [vmem:[%s4318 + $0x4] sm:$0xf]
  %v4321 = vld [vmem:[%s4318 + $0x8] sm:$0xf]
  %v4322 = vld [vmem:[%s4318 + $0xc] sm:$0xf]
  %v4323 = vld [vmem:[%s4318 + $0x10] sm:$0xf]
  %v4324 = vld [vmem:[%s4318 + $0x14] sm:$0xf]
  %v4325 = vld [vmem:[%s4318 + $0x18] sm:$0xf]
  %v4326 = vld [vmem:[%s4318 + $0x1c] sm:$0xf]
  %v4327 = vld [vmem:[%s4318 + $0x20] sm:$0xf]
  %v4328 = vld [vmem:[%s4318 + $0x24] sm:$0xf]
  %v4329 = vld [vmem:[%s4318 + $0x28] sm:$0xf]
  %v4330 = vld [vmem:[%s4318 + $0x2c] sm:$0xf]
  %v4331 = vld [vmem:[%s4318 + $0x30] sm:$0xf]
  %v4332 = vld [vmem:[%s4318 + $0x34] sm:$0xf]
  %v4333 = vld [vmem:[%s4318 + $0x38] sm:$0xf]
  %v4334 = vld [vmem:[%s4318 + $0x3c] sm:$0xf]
  %v4351 = vunpack.c.l.b16 %v4319
  %v4352 = vunpack.c.l.b16 %v4320
  %v4353 = vunpack.c.l.b16 %v4321
  %v4354 = vunpack.c.l.b16 %v4322
  %v4355 = vunpack.c.l.b16 %v4323
  %v4356 = vunpack.c.l.b16 %v4324
  %v4357 = vunpack.c.l.b16 %v4325
  %v4358 = vunpack.c.l.b16 %v4326
  %v4359 = vunpack.c.l.b16 %v4327
  %v4360 = vunpack.c.l.b16 %v4328
  %v4361 = vunpack.c.l.b16 %v4329
  %v4362 = vunpack.c.l.b16 %v4330
  %v4363 = vunpack.c.l.b16 %v4331
  %v4364 = vunpack.c.l.b16 %v4332
  %v4365 = vunpack.c.l.b16 %v4333
  %v4366 = vunpack.c.l.b16 %v4334
  %v4367 = vpack.c.b16 %v4352, %v4351
  %v4368 = vpack.c.b16 %v4354, %v4353
  %v4369 = vpack.c.b16 %v4356, %v4355
  %v4370 = vpack.c.b16 %v4358, %v4357
  %v4371 = vpack.c.b16 %v4360, %v4359
  %v4372 = vpack.c.b16 %v4362, %v4361
  %v4373 = vpack.c.b16 %v4364, %v4363
  %v4374 = vpack.c.b16 %v4366, %v4365
  %4383 = vmatpush.bf16.msra.mxu0 %v4374
  %4384 = vmatpush.bf16.msra.mxu0 %v4373
  %4385 = vmatpush.bf16.msra.mxu0 %v4372
  %4386 = vmatpush.bf16.msra.mxu0 %v4371
  %4387 = vmatpush.bf16.msra.mxu0 %v4370
  %4388 = vmatpush.bf16.msra.mxu0 %v4369
  %4389 = vmatpush.bf16.msra.mxu0 %v4368
  %4390 = vmatpush.bf16.msra.mxu0 %v4367
  %4391 = vmatmul.bf16.gmra.mxu0 %v4312
  %v4392 = vpop.f32.mrf.mxu0
  %v4393 = vadd.f32 0.0, %v4392
  %v4394 = vpop.f32.mrf.mxu0
  %v4395 = vadd.f32 0.0, %v4394
  %4396 = vmatmul.bf16.gmra.mxu0 %v4313
  %v4397 = vpop.f32.mrf.mxu0
  %v4398 = vadd.f32 0.0, %v4397
  %v4399 = vpop.f32.mrf.mxu0
  %v4400 = vadd.f32 0.0, %v4399
  %4401 = vmatmul.bf16.gmra.mxu0 %v4314
  %v4402 = vpop.f32.mrf.mxu0
  %v4403 = vadd.f32 0.0, %v4402
  %v4404 = vpop.f32.mrf.mxu0
  %v4405 = vadd.f32 0.0, %v4404
  %4406 = vmatmul.bf16.gmra.mxu0 %v4315
  %v4407 = vpop.f32.mrf.mxu0
  %v4408 = vadd.f32 0.0, %v4407
  %v4409 = vpop.f32.mrf.mxu0
  %v4410 = vadd.f32 0.0, %v4409
  %4411 = vmatmul.bf16.gmra.mxu0 %v4316
  %v4412 = vpop.f32.mrf.mxu0
  %v4413 = vadd.f32 0.0, %v4412
  %v4414 = vpop.f32.mrf.mxu0
  %v4415 = vadd.f32 0.0, %v4414
  %4416 = vmatmul.bf16.gmra.mxu0 %v4317
  %v4417 = vpop.f32.mrf.mxu0
  %v4418 = vadd.f32 0.0, %v4417
  %v4419 = vpop.f32.mrf.mxu0
  %v4420 = vadd.f32 0.0, %v4419
  %4421 = vdwg.mxu0
  %v4422 = vadd.f32 %v4288, %v4393
  %v4423 = vadd.f32 %v4289, %v4395
  %v4424 = vadd.f32 %v4290, %v4398
  %v4425 = vadd.f32 %v4291, %v4400
  %v4426 = vadd.f32 %v4292, %v4403
  %v4427 = vadd.f32 %v4293, %v4405
  %v4428 = vadd.f32 %v4294, %v4408
  %v4429 = vadd.f32 %v4295, %v4410
  %v4430 = vadd.f32 %v4296, %v4413
  %v4431 = vadd.f32 %v4297, %v4415
  %v4432 = vadd.f32 %v4298, %v4418
  %v4433 = vadd.f32 %v4299, %v4420
  %v4435 = vperm.slane %v72, 0
  %v4437 = vadd.f32 %v4422, %v4435
  %v4438 = vadd.f32 %v4423, %v4435
  %v4439 = vadd.f32 %v4424, %v4435
  %v4440 = vadd.f32 %v4425, %v4435
  %v4441 = vadd.f32 %v4426, %v4435
  %v4442 = vadd.f32 %v4427, %v4435
  %v4443 = vadd.f32 %v4428, %v4435
  %v4444 = vadd.f32 %v4429, %v4435
  %v4445 = vadd.f32 %v4430, %v4435
  %v4446 = vadd.f32 %v4431, %v4435
  %v4447 = vadd.f32 %v4432, %v4435
  %v4448 = vadd.f32 %v4433, %v4435
  %4449 = vst [vmem:[#allocation6] sm:$0xff] %v4437
  %4450 = vst [vmem:[#allocation6 + $0x8] sm:$0xff] %v4438
  %4451 = vst [vmem:[#allocation6 + $0x10] sm:$0xff] %v4439
  %4452 = vst [vmem:[#allocation6 + $0x18] sm:$0xff] %v4440
  %4453 = vst [vmem:[#allocation6 + $0x20] sm:$0xff] %v4441
  %4454 = vst [vmem:[#allocation6 + $0x28] sm:$0xff] %v4442
  %4455 = vst [vmem:[#allocation6 + $0x30] sm:$0xff] %v4443
  %4456 = vst [vmem:[#allocation6 + $0x38] sm:$0xff] %v4444
  %4457 = vst [vmem:[#allocation6 + $0x40] sm:$0xff] %v4445
  %4458 = vst [vmem:[#allocation6 + $0x48] sm:$0xff] %v4446
  %4459 = vst [vmem:[#allocation6 + $0x50] sm:$0xff] %v4447
  %4460 = vst [vmem:[#allocation6 + $0x58] sm:$0xff] %v4448
  %v4461 = vld [vmem:[#allocation6] sm:$0x7f]
  %v4462 = vld [vmem:[#allocation6 + $0xa] sm:$0x7f]
  %v4463 = vld [vmem:[#allocation6 + $0x14] sm:$0x7f]
  %v4464 = vld [vmem:[#allocation6 + $0x1e] sm:$0x7f]
  %v4465 = vld [vmem:[#allocation6 + $0x28] sm:$0x7f]
  %v4466 = vld [vmem:[#allocation6 + $0x32] sm:$0x7f]
  %v4467 = vld [vmem:[#allocation6 + $0x3c] sm:$0x7f]
  %v4469 = vrot.slane %v4462, 1
  %v4472 = vrot.slane %v4463, 2
  %v4475 = vrot.slane %v4464, 3
  %v4478 = vrot.slane %v4465, 4
  %v4481 = vrot.slane %v4466, 5
  %v4484 = vrot.slane %v4467, 6
  %vm4486 = vcmask 1046528
  %v4487 = vsel %vm4486, %v4461, %v4469
  %vm4488 = vcmask 1045504
  %v4489 = vsel %vm4488, %v4469, %v4472
  %vm4490 = vcmask 1044480
  %v4491 = vsel %vm4490, %v4472, %v4475
  %vm4492 = vcmask 1043456
  %v4493 = vsel %vm4492, %v4475, %v4478
  %vm4494 = vcmask 1042432
  %v4495 = vsel %vm4494, %v4478, %v4481
  %v4496 = vsel %vm224, %v4481, %v4484
  %vm4497 = vcmask 261120
  %v4498 = vsel %vm4497, %v4487, -inf
  %4499 = vmax.xlane.f32.xlu0 %v4498
  %v4500 = vpop.xlane.xlu0 %4499
  %v4501 = vsel %vm4497, %v4489, -inf
  %4502 = vmax.xlane.f32.xlu0 %v4501
  %v4503 = vpop.xlane.xlu0 %4502
  %v4504 = vsel %vm4497, %v4491, -inf
  %4505 = vmax.xlane.f32.xlu0 %v4504
  %v4506 = vpop.xlane.xlu0 %4505
  %v4507 = vsel %vm4497, %v4493, -inf
  %4508 = vmax.xlane.f32.xlu0 %v4507
  %v4509 = vpop.xlane.xlu0 %4508
  %v4510 = vsel %vm4497, %v4495, -inf
  %4511 = vmax.xlane.f32.xlu0 %v4510
  %v4512 = vpop.xlane.xlu0 %4511
  %v4513 = vsel %vm4497, %v4496, -inf
  %4514 = vmax.xlane.f32.xlu0 %v4513
  %v4515 = vpop.xlane.xlu0 %4514
  %vm4516 = vcmask 253952
  %v4517 = vsel %vm4516, %v4484, -inf
  %4518 = vmax.xlane.f32.xlu0 %v4517
  %v4519 = vpop.xlane.xlu0 %4518
  %v4520 = vsub.f32 %v4487, %v4500
  %v4521 = vsub.f32 %v4489, %v4503
  %v4522 = vsub.f32 %v4491, %v4506
  %v4523 = vsub.f32 %v4493, %v4509
  %v4524 = vsub.f32 %v4495, %v4512
  %v4525 = vsub.f32 %v4496, %v4515
  %v4526 = vsub.f32 %v4484, %v4519
  %v4527 = vmul.f32 %v4520, 1.442695
  %v4528 = vpow.pop %v4527
  %v4529 = vmul.f32 %v4521, 1.442695
  %v4530 = vpow.pop %v4529
  %v4531 = vmul.f32 %v4522, 1.442695
  %v4532 = vpow.pop %v4531
  %v4533 = vmul.f32 %v4523, 1.442695
  %v4534 = vpow.pop %v4533
  %v4535 = vmul.f32 %v4524, 1.442695
  %v4536 = vpow.pop %v4535
  %v4537 = vmul.f32 %v4525, 1.442695
  %v4538 = vpow.pop %v4537
  %v4539 = vmul.f32 %v4526, 1.442695
  %v4540 = vpow.pop %v4539
  %v4541 = vsel %vm4497, %v4528, 0.0
  %4542 = vadd.xlane.f32.xlu0 %v4541
  %v4543 = vpop.xlane.xlu0 %4542
  %v4544 = vsel %vm4497, %v4530, 0.0
  %4545 = vadd.xlane.f32.xlu0 %v4544
  %v4546 = vpop.xlane.xlu0 %4545
  %v4547 = vsel %vm4497, %v4532, 0.0
  %4548 = vadd.xlane.f32.xlu0 %v4547
  %v4549 = vpop.xlane.xlu0 %4548
  %v4550 = vsel %vm4497, %v4534, 0.0
  %4551 = vadd.xlane.f32.xlu0 %v4550
  %v4552 = vpop.xlane.xlu0 %4551
  %v4553 = vsel %vm4497, %v4536, 0.0
  %4554 = vadd.xlane.f32.xlu0 %v4553
  %v4555 = vpop.xlane.xlu0 %4554
  %v4556 = vsel %vm4497, %v4538, 0.0
  %4557 = vadd.xlane.f32.xlu0 %v4556
  %v4558 = vpop.xlane.xlu0 %4557
  %v4559 = vsel %vm4516, %v4540, 0.0
  %4560 = vadd.xlane.f32.xlu0 %v4559
  %v4561 = vpop.xlane.xlu0 %4560
  %v4562 = vlog2.pop %v4543
  %v4563 = vmul.f32 %v4562, 0.6931472
  %v4564 = vlog2.pop %v4546
  %v4565 = vmul.f32 %v4564, 0.6931472
  %v4566 = vlog2.pop %v4549
  %v4567 = vmul.f32 %v4566, 0.6931472
  %v4568 = vlog2.pop %v4552
  %v4569 = vmul.f32 %v4568, 0.6931472
  %v4570 = vlog2.pop %v4555
  %v4571 = vmul.f32 %v4570, 0.6931472
  %v4572 = vlog2.pop %v4558
  %v4573 = vmul.f32 %v4572, 0.6931472
  %v4574 = vlog2.pop %v4561
  %v4575 = vmul.f32 %v4574, 0.6931472
  %v4576 = vadd.f32 %v4500, %v4563
  %v4577 = vadd.f32 %v4503, %v4565
  %v4578 = vadd.f32 %v4506, %v4567
  %v4579 = vadd.f32 %v4509, %v4569
  %v4580 = vadd.f32 %v4512, %v4571
  %v4581 = vadd.f32 %v4515, %v4573
  %v4582 = vadd.f32 %v4519, %v4575
  %v4583 = vsub.f32 %v4487, %v4576
  %v4584 = vsub.f32 %v4489, %v4577
  %v4585 = vsub.f32 %v4491, %v4578
  %v4586 = vsub.f32 %v4493, %v4579
  %v4587 = vsub.f32 %v4495, %v4580
  %v4588 = vsub.f32 %v4496, %v4581
  %v4589 = vsub.f32 %v4484, %v4582
  %vm4590 = vcmask 523520
  %v4591 = vsel %vm4590, %v4487, -inf
  %4592 = vmax.xlane.f32.xlu0 %v4591
  %v4593 = vpop.xlane.xlu0 %4592
  %v4594 = vsel %vm4590, %v4489, -inf
  %4595 = vmax.xlane.f32.xlu0 %v4594
  %v4596 = vpop.xlane.xlu0 %4595
  %v4597 = vsel %vm4590, %v4491, -inf
  %4598 = vmax.xlane.f32.xlu0 %v4597
  %v4599 = vpop.xlane.xlu0 %4598
  %v4600 = vsel %vm4590, %v4493, -inf
  %4601 = vmax.xlane.f32.xlu0 %v4600
  %v4602 = vpop.xlane.xlu0 %4601
  %v4603 = vsel %vm4590, %v4495, -inf
  %4604 = vmax.xlane.f32.xlu0 %v4603
  %v4605 = vpop.xlane.xlu0 %4604
  %v4606 = vsel %vm4590, %v4496, -inf
  %4607 = vmax.xlane.f32.xlu0 %v4606
  %v4608 = vpop.xlane.xlu0 %4607
  %vm4609 = vcmask 516352
  %v4610 = vsel %vm4609, %v4484, -inf
  %4611 = vmax.xlane.f32.xlu0 %v4610
  %v4612 = vpop.xlane.xlu0 %4611
  %v4613 = vsub.f32 %v4487, %v4593
  %v4614 = vsub.f32 %v4489, %v4596
  %v4615 = vsub.f32 %v4491, %v4599
  %v4616 = vsub.f32 %v4493, %v4602
  %v4617 = vsub.f32 %v4495, %v4605
  %v4618 = vsub.f32 %v4496, %v4608
  %v4619 = vsub.f32 %v4484, %v4612
  %v4620 = vmul.f32 %v4613, 1.442695
  %v4621 = vpow.pop %v4620
  %v4622 = vmul.f32 %v4614, 1.442695
  %v4623 = vpow.pop %v4622
  %v4624 = vmul.f32 %v4615, 1.442695
  %v4625 = vpow.pop %v4624
  %v4626 = vmul.f32 %v4616, 1.442695
  %v4627 = vpow.pop %v4626
  %v4628 = vmul.f32 %v4617, 1.442695
  %v4629 = vpow.pop %v4628
  %v4630 = vmul.f32 %v4618, 1.442695
  %v4631 = vpow.pop %v4630
  %v4632 = vmul.f32 %v4619, 1.442695
  %v4633 = vpow.pop %v4632
  %4641 = vrot.lane.b32.xlu0 %v4621, 96
  %v4642 = vpop.permute.xlu0 %4641
  %4643 = vrot.lane.b32.xlu0 %v4623, 96
  %v4644 = vpop.permute.xlu0 %4643
  %4645 = vrot.lane.b32.xlu0 %v4625, 96
  %v4646 = vpop.permute.xlu0 %4645
  %4647 = vrot.lane.b32.xlu0 %v4627, 96
  %v4648 = vpop.permute.xlu0 %4647
  %4649 = vrot.lane.b32.xlu0 %v4629, 96
  %v4650 = vpop.permute.xlu0 %4649
  %4651 = vrot.lane.b32.xlu0 %v4631, 96
  %v4652 = vpop.permute.xlu0 %4651
  %4653 = vrot.lane.b32.xlu0 %v4633, 96
  %v4654 = vpop.permute.xlu0 %4653
  %v4662 = vsel %vm4497, %v4642, 0.0
  %4663 = vadd.xlane.f32.xlu0 %v4662
  %v4664 = vpop.xlane.xlu0 %4663
  %v4665 = vsel %vm4497, %v4644, 0.0
  %4666 = vadd.xlane.f32.xlu0 %v4665
  %v4667 = vpop.xlane.xlu0 %4666
  %v4668 = vsel %vm4497, %v4646, 0.0
  %4669 = vadd.xlane.f32.xlu0 %v4668
  %v4670 = vpop.xlane.xlu0 %4669
  %v4671 = vsel %vm4497, %v4648, 0.0
  %4672 = vadd.xlane.f32.xlu0 %v4671
  %v4673 = vpop.xlane.xlu0 %4672
  %v4674 = vsel %vm4497, %v4650, 0.0
  %4675 = vadd.xlane.f32.xlu0 %v4674
  %v4676 = vpop.xlane.xlu0 %4675
  %v4677 = vsel %vm4497, %v4652, 0.0
  %4678 = vadd.xlane.f32.xlu0 %v4677
  %v4679 = vpop.xlane.xlu0 %4678
  %v4680 = vsel %vm4516, %v4654, 0.0
  %4681 = vadd.xlane.f32.xlu0 %v4680
  %v4682 = vpop.xlane.xlu0 %4681
  %v4683 = vlog2.pop %v4664
  %v4684 = vmul.f32 %v4683, 0.6931472
  %v4685 = vlog2.pop %v4667
  %v4686 = vmul.f32 %v4685, 0.6931472
  %v4687 = vlog2.pop %v4670
  %v4688 = vmul.f32 %v4687, 0.6931472
  %v4689 = vlog2.pop %v4673
  %v4690 = vmul.f32 %v4689, 0.6931472
  %v4691 = vlog2.pop %v4676
  %v4692 = vmul.f32 %v4691, 0.6931472
  %v4693 = vlog2.pop %v4679
  %v4694 = vmul.f32 %v4693, 0.6931472
  %v4695 = vlog2.pop %v4682
  %v4696 = vmul.f32 %v4695, 0.6931472
  %v4697 = vadd.f32 %v4593, %v4684
  %v4698 = vadd.f32 %v4596, %v4686
  %v4699 = vadd.f32 %v4599, %v4688
  %v4700 = vadd.f32 %v4602, %v4690
  %v4701 = vadd.f32 %v4605, %v4692
  %v4702 = vadd.f32 %v4608, %v4694
  %v4703 = vadd.f32 %v4612, %v4696
  %v4704 = vsub.f32 %v4487, %v4697
  %v4705 = vsub.f32 %v4489, %v4698
  %v4706 = vsub.f32 %v4491, %v4699
  %v4707 = vsub.f32 %v4493, %v4700
  %v4708 = vsub.f32 %v4495, %v4701
  %v4709 = vsub.f32 %v4496, %v4702
  %v4710 = vsub.f32 %v4484, %v4703
  %vm4711 = vcmask 785920
  %v4712 = vsel %vm4711, %v4487, -inf
  %4713 = vmax.xlane.f32.xlu0 %v4712
  %v4714 = vpop.xlane.xlu0 %4713
  %v4715 = vsel %vm4711, %v4489, -inf
  %4716 = vmax.xlane.f32.xlu0 %v4715
  %v4717 = vpop.xlane.xlu0 %4716
  %v4718 = vsel %vm4711, %v4491, -inf
  %4719 = vmax.xlane.f32.xlu0 %v4718
  %v4720 = vpop.xlane.xlu0 %4719
  %v4721 = vsel %vm4711, %v4493, -inf
  %4722 = vmax.xlane.f32.xlu0 %v4721
  %v4723 = vpop.xlane.xlu0 %4722
  %v4724 = vsel %vm4711, %v4495, -inf
  %4725 = vmax.xlane.f32.xlu0 %v4724
  %v4726 = vpop.xlane.xlu0 %4725
  %v4727 = vsel %vm4711, %v4496, -inf
  %4728 = vmax.xlane.f32.xlu0 %v4727
  %v4729 = vpop.xlane.xlu0 %4728
  %vm4730 = vcmask 778752
  %v4731 = vsel %vm4730, %v4484, -inf
  %4732 = vmax.xlane.f32.xlu0 %v4731
  %v4733 = vpop.xlane.xlu0 %4732
  %v4734 = vsub.f32 %v4487, %v4714
  %v4735 = vsub.f32 %v4489, %v4717
  %v4736 = vsub.f32 %v4491, %v4720
  %v4737 = vsub.f32 %v4493, %v4723
  %v4738 = vsub.f32 %v4495, %v4726
  %v4739 = vsub.f32 %v4496, %v4729
  %v4740 = vsub.f32 %v4484, %v4733
  %v4741 = vmul.f32 %v4734, 1.442695
  %v4742 = vpow.pop %v4741
  %v4743 = vmul.f32 %v4735, 1.442695
  %v4744 = vpow.pop %v4743
  %v4745 = vmul.f32 %v4736, 1.442695
  %v4746 = vpow.pop %v4745
  %v4747 = vmul.f32 %v4737, 1.442695
  %v4748 = vpow.pop %v4747
  %v4749 = vmul.f32 %v4738, 1.442695
  %v4750 = vpow.pop %v4749
  %v4751 = vmul.f32 %v4739, 1.442695
  %v4752 = vpow.pop %v4751
  %v4753 = vmul.f32 %v4740, 1.442695
  %v4754 = vpow.pop %v4753
  %4762 = vrot.lane.b32.xlu0 %v4742, 64
  %v4763 = vpop.permute.xlu0 %4762
  %4764 = vrot.lane.b32.xlu0 %v4744, 64
  %v4765 = vpop.permute.xlu0 %4764
  %4766 = vrot.lane.b32.xlu0 %v4746, 64
  %v4767 = vpop.permute.xlu0 %4766
  %4768 = vrot.lane.b32.xlu0 %v4748, 64
  %v4769 = vpop.permute.xlu0 %4768
  %4770 = vrot.lane.b32.xlu0 %v4750, 64
  %v4771 = vpop.permute.xlu0 %4770
  %4772 = vrot.lane.b32.xlu0 %v4752, 64
  %v4773 = vpop.permute.xlu0 %4772
  %4774 = vrot.lane.b32.xlu0 %v4754, 64
  %v4775 = vpop.permute.xlu0 %4774
  %v4783 = vsel %vm4497, %v4763, 0.0
  %4784 = vadd.xlane.f32.xlu0 %v4783
  %v4785 = vpop.xlane.xlu0 %4784
  %v4786 = vsel %vm4497, %v4765, 0.0
  %4787 = vadd.xlane.f32.xlu0 %v4786
  %v4788 = vpop.xlane.xlu0 %4787
  %v4789 = vsel %vm4497, %v4767, 0.0
  %4790 = vadd.xlane.f32.xlu0 %v4789
  %v4791 = vpop.xlane.xlu0 %4790
  %v4792 = vsel %vm4497, %v4769, 0.0
  %4793 = vadd.xlane.f32.xlu0 %v4792
  %v4794 = vpop.xlane.xlu0 %4793
  %v4795 = vsel %vm4497, %v4771, 0.0
  %4796 = vadd.xlane.f32.xlu0 %v4795
  %v4797 = vpop.xlane.xlu0 %4796
  %v4798 = vsel %vm4497, %v4773, 0.0
  %4799 = vadd.xlane.f32.xlu0 %v4798
  %v4800 = vpop.xlane.xlu0 %4799
  %v4801 = vsel %vm4516, %v4775, 0.0
  %4802 = vadd.xlane.f32.xlu0 %v4801
  %v4803 = vpop.xlane.xlu0 %4802
  %v4804 = vlog2.pop %v4785
  %v4805 = vmul.f32 %v4804, 0.6931472
  %v4806 = vlog2.pop %v4788
  %v4807 = vmul.f32 %v4806, 0.6931472
  %v4808 = vlog2.pop %v4791
  %v4809 = vmul.f32 %v4808, 0.6931472
  %v4810 = vlog2.pop %v4794
  %v4811 = vmul.f32 %v4810, 0.6931472
  %v4812 = vlog2.pop %v4797
  %v4813 = vmul.f32 %v4812, 0.6931472
  %v4814 = vlog2.pop %v4800
  %v4815 = vmul.f32 %v4814, 0.6931472
  %v4816 = vlog2.pop %v4803
  %v4817 = vmul.f32 %v4816, 0.6931472
  %v4818 = vadd.f32 %v4714, %v4805
  %v4819 = vadd.f32 %v4717, %v4807
  %v4820 = vadd.f32 %v4720, %v4809
  %v4821 = vadd.f32 %v4723, %v4811
  %v4822 = vadd.f32 %v4726, %v4813
  %v4823 = vadd.f32 %v4729, %v4815
  %v4824 = vadd.f32 %v4733, %v4817
  %v4825 = vsub.f32 %v4487, %v4818
  %v4826 = vsub.f32 %v4489, %v4819
  %v4827 = vsub.f32 %v4491, %v4820
  %v4828 = vsub.f32 %v4493, %v4821
  %v4829 = vsub.f32 %v4495, %v4822
  %v4830 = vsub.f32 %v4496, %v4823
  %v4831 = vsub.f32 %v4484, %v4824
  %vm4832 = vcmask 1048320
  %v4833 = vsel %vm4832, %v4487, -inf
  %4834 = vmax.xlane.f32.xlu0 %v4833
  %v4835 = vpop.xlane.xlu0 %4834
  %v4836 = vsel %vm4832, %v4489, -inf
  %4837 = vmax.xlane.f32.xlu0 %v4836
  %v4838 = vpop.xlane.xlu0 %4837
  %v4839 = vsel %vm4832, %v4491, -inf
  %4840 = vmax.xlane.f32.xlu0 %v4839
  %v4841 = vpop.xlane.xlu0 %4840
  %v4842 = vsel %vm4832, %v4493, -inf
  %4843 = vmax.xlane.f32.xlu0 %v4842
  %v4844 = vpop.xlane.xlu0 %4843
  %v4845 = vsel %vm4832, %v4495, -inf
  %4846 = vmax.xlane.f32.xlu0 %v4845
  %v4847 = vpop.xlane.xlu0 %4846
  %v4848 = vsel %vm4832, %v4496, -inf
  %4849 = vmax.xlane.f32.xlu0 %v4848
  %v4850 = vpop.xlane.xlu0 %4849
  %vm4851 = vcmask 1041152
  %v4852 = vsel %vm4851, %v4484, -inf
  %4853 = vmax.xlane.f32.xlu0 %v4852
  %v4854 = vpop.xlane.xlu0 %4853
  %v4855 = vsub.f32 %v4487, %v4835
  %v4856 = vsub.f32 %v4489, %v4838
  %v4857 = vsub.f32 %v4491, %v4841
  %v4858 = vsub.f32 %v4493, %v4844
  %v4859 = vsub.f32 %v4495, %v4847
  %v4860 = vsub.f32 %v4496, %v4850
  %v4861 = vsub.f32 %v4484, %v4854
  %v4862 = vmul.f32 %v4855, 1.442695
  %v4863 = vpow.pop %v4862
  %v4864 = vmul.f32 %v4856, 1.442695
  %v4865 = vpow.pop %v4864
  %v4866 = vmul.f32 %v4857, 1.442695
  %v4867 = vpow.pop %v4866
  %v4868 = vmul.f32 %v4858, 1.442695
  %v4869 = vpow.pop %v4868
  %v4870 = vmul.f32 %v4859, 1.442695
  %v4871 = vpow.pop %v4870
  %v4872 = vmul.f32 %v4860, 1.442695
  %v4873 = vpow.pop %v4872
  %v4874 = vmul.f32 %v4861, 1.442695
  %v4875 = vpow.pop %v4874
  %4883 = vrot.lane.b32.xlu0 %v4863, 32
  %v4884 = vpop.permute.xlu0 %4883
  %4885 = vrot.lane.b32.xlu0 %v4865, 32
  %v4886 = vpop.permute.xlu0 %4885
  %4887 = vrot.lane.b32.xlu0 %v4867, 32
  %v4888 = vpop.permute.xlu0 %4887
  %4889 = vrot.lane.b32.xlu0 %v4869, 32
  %v4890 = vpop.permute.xlu0 %4889
  %4891 = vrot.lane.b32.xlu0 %v4871, 32
  %v4892 = vpop.permute.xlu0 %4891
  %4893 = vrot.lane.b32.xlu0 %v4873, 32
  %v4894 = vpop.permute.xlu0 %4893
  %4895 = vrot.lane.b32.xlu0 %v4875, 32
  %v4896 = vpop.permute.xlu0 %4895
  %v4904 = vsel %vm4497, %v4884, 0.0
  %4905 = vadd.xlane.f32.xlu0 %v4904
  %v4906 = vpop.xlane.xlu0 %4905
  %v4907 = vsel %vm4497, %v4886, 0.0
  %4908 = vadd.xlane.f32.xlu0 %v4907
  %v4909 = vpop.xlane.xlu0 %4908
  %v4910 = vsel %vm4497, %v4888, 0.0
  %4911 = vadd.xlane.f32.xlu0 %v4910
  %v4912 = vpop.xlane.xlu0 %4911
  %v4913 = vsel %vm4497, %v4890, 0.0
  %4914 = vadd.xlane.f32.xlu0 %v4913
  %v4915 = vpop.xlane.xlu0 %4914
  %v4916 = vsel %vm4497, %v4892, 0.0
  %4917 = vadd.xlane.f32.xlu0 %v4916
  %v4918 = vpop.xlane.xlu0 %4917
  %v4919 = vsel %vm4497, %v4894, 0.0
  %4920 = vadd.xlane.f32.xlu0 %v4919
  %v4921 = vpop.xlane.xlu0 %4920
  %v4922 = vsel %vm4516, %v4896, 0.0
  %4923 = vadd.xlane.f32.xlu0 %v4922
  %v4924 = vpop.xlane.xlu0 %4923
  %v4925 = vlog2.pop %v4906
  %v4926 = vmul.f32 %v4925, 0.6931472
  %v4927 = vlog2.pop %v4909
  %v4928 = vmul.f32 %v4927, 0.6931472
  %v4929 = vlog2.pop %v4912
  %v4930 = vmul.f32 %v4929, 0.6931472
  %v4931 = vlog2.pop %v4915
  %v4932 = vmul.f32 %v4931, 0.6931472
  %v4933 = vlog2.pop %v4918
  %v4934 = vmul.f32 %v4933, 0.6931472
  %v4935 = vlog2.pop %v4921
  %v4936 = vmul.f32 %v4935, 0.6931472
  %v4937 = vlog2.pop %v4924
  %v4938 = vmul.f32 %v4937, 0.6931472
  %v4939 = vadd.f32 %v4835, %v4926
  %v4940 = vadd.f32 %v4838, %v4928
  %v4941 = vadd.f32 %v4841, %v4930
  %v4942 = vadd.f32 %v4844, %v4932
  %v4943 = vadd.f32 %v4847, %v4934
  %v4944 = vadd.f32 %v4850, %v4936
  %v4945 = vadd.f32 %v4854, %v4938
  %v4946 = vsub.f32 %v4487, %v4939
  %v4947 = vsub.f32 %v4489, %v4940
  %v4948 = vsub.f32 %v4491, %v4941
  %v4949 = vsub.f32 %v4493, %v4942
  %v4950 = vsub.f32 %v4495, %v4943
  %v4951 = vsub.f32 %v4496, %v4944
  %v4952 = vsub.f32 %v4484, %v4945
  %v4953 = vsel %vm4497, %v4583, %v4704
  %v4954 = vsel %vm4497, %v4584, %v4705
  %v4955 = vsel %vm4497, %v4585, %v4706
  %v4956 = vsel %vm4497, %v4586, %v4707
  %v4957 = vsel %vm4497, %v4587, %v4708
  %v4958 = vsel %vm4497, %v4588, %v4709
  %v4959 = vsel %vm4497, %v4589, %v4710
  %vm4960 = vcmask 523264
  %v4961 = vsel %vm4960, %v4953, %v4825
  %v4962 = vsel %vm4960, %v4954, %v4826
  %v4963 = vsel %vm4960, %v4955, %v4827
  %v4964 = vsel %vm4960, %v4956, %v4828
  %v4965 = vsel %vm4960, %v4957, %v4829
  %v4966 = vsel %vm4960, %v4958, %v4830
  %v4967 = vsel %vm4960, %v4959, %v4831
  %vm4968 = vcmask 785408
  %v4969 = vsel %vm4968, %v4961, %v4946
  %v4970 = vsel %vm4968, %v4962, %v4947
  %v4971 = vsel %vm4968, %v4963, %v4948
  %v4972 = vsel %vm4968, %v4964, %v4949
  %v4973 = vsel %vm4968, %v4965, %v4950
  %v4974 = vsel %vm4968, %v4966, %v4951
  %v4975 = vsel %vm4968, %v4967, %v4952
  %4976 = vst [vmem:[%s7] sm:$0xff] %v4969
  %4977 = vst [vmem:[%s7 + $0x8] sm:$0xff] %v4970
  %4978 = vst [vmem:[%s7 + $0x10] sm:$0xff] %v4971
  %4979 = vst [vmem:[%s7 + $0x18] sm:$0xff] %v4972
  %4980 = vst [vmem:[%s7 + $0x20] sm:$0xff] %v4973
  %4981 = vst [vmem:[%s7 + $0x28] sm:$0xff] %v4974
  %4982 = vst [vmem:[%s7 + $0x30] sm:$0x1] %v4975
  %s4983 = scalar_lea.vmem %s0, 200
  %v4984 = vld [vmem:[%s4983] sm:$0xf]
  %v4985 = vld [vmem:[%s4983 + $0x4] sm:$0xf]
  %v4986 = vld [vmem:[%s4983 + $0x8] sm:$0xf]
  %v4987 = vld [vmem:[%s4983 + $0xc] sm:$0xf]
  %v4988 = vld [vmem:[%s4983 + $0x10] sm:$0xf]
  %v4989 = vld [vmem:[%s4983 + $0x14] sm:$0xf]
  %v4990 = vld [vmem:[%s4983 + $0x18] sm:$0xf]
  %v4991 = vld [vmem:[%s4983 + $0x1c] sm:$0xf]
  %v4992 = vld [vmem:[%s4983 + $0x20] sm:$0xf]
  %v4993 = vld [vmem:[%s4983 + $0x24] sm:$0xf]
  %v4994 = vld [vmem:[%s4983 + $0x28] sm:$0xf]
  %v4995 = vld [vmem:[%s4983 + $0x2c] sm:$0xf]
  %v4996 = vld [vmem:[%s4983 + $0x30] sm:$0xf]
  %v4997 = vld [vmem:[%s4983 + $0x34] sm:$0xf]
  %v4998 = vld [vmem:[%s4983 + $0x38] sm:$0xf]
  %v4999 = vld [vmem:[%s4983 + $0x3c] sm:$0xf]
  %v5000 = vld [vmem:[%s4983 + $0x40] sm:$0xf]
  %v5001 = vld [vmem:[%s4983 + $0x44] sm:$0xf]
  %v5002 = vld [vmem:[%s4983 + $0x48] sm:$0xf]
  %v5003 = vld [vmem:[%s4983 + $0x4c] sm:$0xf]
  %v5004 = vld [vmem:[%s4983 + $0x50] sm:$0xf]
  %v5005 = vld [vmem:[%s4983 + $0x54] sm:$0xf]
  %v5006 = vld [vmem:[%s4983 + $0x58] sm:$0xf]
  %v5007 = vld [vmem:[%s4983 + $0x5c] sm:$0xf]
  %v5008 = vld [vmem:[%s4983 + $0x60] sm:$0xf]
  %v5034 = vunpack.c.l.b16 %v4984
  %v5035 = vunpack.c.l.b16 %v4985
  %v5036 = vunpack.c.l.b16 %v4986
  %v5037 = vunpack.c.l.b16 %v4987
  %v5038 = vunpack.c.l.b16 %v4988
  %v5039 = vunpack.c.l.b16 %v4989
  %v5040 = vunpack.c.l.b16 %v4990
  %v5041 = vunpack.c.l.b16 %v4991
  %v5042 = vunpack.c.l.b16 %v4992
  %v5043 = vunpack.c.l.b16 %v4993
  %v5044 = vunpack.c.l.b16 %v4994
  %v5045 = vunpack.c.l.b16 %v4995
  %v5046 = vunpack.c.l.b16 %v4996
  %v5047 = vunpack.c.l.b16 %v4997
  %v5048 = vunpack.c.l.b16 %v4998
  %v5049 = vunpack.c.l.b16 %v4999
  %v5050 = vunpack.c.l.b16 %v5000
  %v5051 = vunpack.c.l.b16 %v5001
  %v5052 = vunpack.c.l.b16 %v5002
  %v5053 = vunpack.c.l.b16 %v5003
  %v5054 = vunpack.c.l.b16 %v5004
  %v5055 = vunpack.c.l.b16 %v5005
  %v5056 = vunpack.c.l.b16 %v5006
  %v5057 = vunpack.c.l.b16 %v5007
  %v5058 = vunpack.c.l.b16 %v5008
  %v5059 = vpack.c.b16 %v5035, %v5034
  %v5060 = vpack.c.b16 %v5037, %v5036
  %v5061 = vpack.c.b16 %v5039, %v5038
  %v5062 = vpack.c.b16 %v5041, %v5040
  %v5063 = vpack.c.b16 %v5043, %v5042
  %v5064 = vpack.c.b16 %v5045, %v5044
  %v5065 = vpack.c.b16 %v5047, %v5046
  %v5066 = vpack.c.b16 %v5049, %v5048
  %v5067 = vpack.c.b16 %v5051, %v5050
  %v5068 = vpack.c.b16 %v5053, %v5052
  %v5069 = vpack.c.b16 %v5055, %v5054
  %v5070 = vpack.c.b16 %v5057, %v5056
  %v5071 = vpack.c.b16 %v5058, %v5058
  %v5073 = vsel %vm184, %v5059, 0
  %v5076 = vsel %vm184, %v5060, 0
  %v5079 = vsel %vm184, %v5061, 0
  %v5082 = vsel %vm184, %v5062, 0
  %v5085 = vsel %vm184, %v5063, 0
  %v5088 = vsel %vm184, %v5064, 0
  %v5091 = vsel %vm184, %v5065, 0
  %v5094 = vsel %vm184, %v5066, 0
  %v5097 = vsel %vm184, %v5067, 0
  %v5100 = vsel %vm184, %v5068, 0
  %v5103 = vsel %vm184, %v5069, 0
  %v5106 = vsel %vm184, %v5070, 0
  %v5109 = vsel %vm184, %v5071, 0
  %5111 = vmatpush.bf16.msra.mxu0 0
  %5112 = vmatpush.bf16.msra.mxu0 0
  %5113 = vmatpush.bf16.msra.mxu0 0
  %5114 = vmatpush.bf16.msra.mxu0 0
  %5115 = vmatpush.bf16.msra.mxu0 0
  %5116 = vmatpush.bf16.msra.mxu0 %v226
  %5117 = vmatpush.bf16.msra.mxu0 %v180
  %5118 = vmatpush.bf16.msra.mxu0 %v179
  %5119 = vmatmul.bf16.gmra.mxu0 %v5073
  %v5120 = vpop.f32.mrf.mxu0
  %v5121 = vadd.f32 %v104, %v5120
  %v5122 = vpop.f32.mrf.mxu0
  %v5123 = vadd.f32 %v104, %v5122
  %5124 = vmatmul.bf16.gmra.mxu0 %v5076
  %v5125 = vpop.f32.mrf.mxu0
  %v5126 = vadd.f32 %v104, %v5125
  %v5127 = vpop.f32.mrf.mxu0
  %v5128 = vadd.f32 %v104, %v5127
  %5129 = vmatmul.bf16.gmra.mxu0 %v5079
  %v5130 = vpop.f32.mrf.mxu0
  %v5131 = vadd.f32 %v104, %v5130
  %v5132 = vpop.f32.mrf.mxu0
  %v5133 = vadd.f32 %v104, %v5132
  %5134 = vmatmul.bf16.gmra.mxu0 %v5082
  %v5135 = vpop.f32.mrf.mxu0
  %v5136 = vadd.f32 %v104, %v5135
  %v5137 = vpop.f32.mrf.mxu0
  %v5138 = vadd.f32 %v104, %v5137
  %5139 = vmatmul.bf16.gmra.mxu0 %v5085
  %v5140 = vpop.f32.mrf.mxu0
  %v5141 = vadd.f32 %v104, %v5140
  %v5142 = vpop.f32.mrf.mxu0
  %v5143 = vadd.f32 %v104, %v5142
  %5144 = vmatmul.bf16.gmra.mxu0 %v5088
  %v5145 = vpop.f32.mrf.mxu0
  %v5146 = vadd.f32 %v104, %v5145
  %v5147 = vpop.f32.mrf.mxu0
  %v5148 = vadd.f32 %v104, %v5147
  %5149 = vmatmul.bf16.gmra.mxu0 %v5091
  %v5150 = vpop.f32.mrf.mxu0
  %v5151 = vadd.f32 %v104, %v5150
  %v5152 = vpop.f32.mrf.mxu0
  %v5153 = vadd.f32 %v104, %v5152
  %5154 = vmatmul.bf16.gmra.mxu0 %v5094
  %v5155 = vpop.f32.mrf.mxu0
  %v5156 = vadd.f32 %v104, %v5155
  %v5157 = vpop.f32.mrf.mxu0
  %v5158 = vadd.f32 %v104, %v5157
  %5159 = vmatmul.bf16.gmra.mxu0 %v5097
  %v5160 = vpop.f32.mrf.mxu0
  %v5161 = vadd.f32 %v104, %v5160
  %v5162 = vpop.f32.mrf.mxu0
  %v5163 = vadd.f32 %v104, %v5162
  %5164 = vmatmul.bf16.gmra.mxu0 %v5100
  %v5165 = vpop.f32.mrf.mxu0
  %v5166 = vadd.f32 %v104, %v5165
  %v5167 = vpop.f32.mrf.mxu0
  %v5168 = vadd.f32 %v104, %v5167
  %5169 = vmatmul.bf16.gmra.mxu0 %v5103
  %v5170 = vpop.f32.mrf.mxu0
  %v5171 = vadd.f32 %v104, %v5170
  %v5172 = vpop.f32.mrf.mxu0
  %v5173 = vadd.f32 %v104, %v5172
  %5174 = vmatmul.bf16.gmra.mxu0 %v5106
  %v5175 = vpop.f32.mrf.mxu0
  %v5176 = vadd.f32 %v104, %v5175
  %v5177 = vpop.f32.mrf.mxu0
  %v5178 = vadd.f32 %v104, %v5177
  %5179 = vmatmul.bf16.gmra.mxu0 %v5109
  %v5180 = vpop.f32.mrf.mxu0
  %v5181 = vadd.f32 %v104, %v5180
  %v5182 = vpop.f32.mrf.mxu0
  %5183 = vdwg.mxu0
  %5184 = vst [vmem:[#allocation2] sm:$0xff] %v5121
  %5185 = vst [vmem:[#allocation2 + $0x8] sm:$0xff] %v5123
  %5186 = vst [vmem:[#allocation2 + $0x10] sm:$0xff] %v5126
  %5187 = vst [vmem:[#allocation2 + $0x18] sm:$0xff] %v5128
  %5188 = vst [vmem:[#allocation2 + $0x20] sm:$0xff] %v5131
  %5189 = vst [vmem:[#allocation2 + $0x28] sm:$0xff] %v5133
  %5190 = vst [vmem:[#allocation2 + $0x30] sm:$0xff] %v5136
  %5191 = vst [vmem:[#allocation2 + $0x38] sm:$0xff] %v5138
  %5192 = vst [vmem:[#allocation2 + $0x40] sm:$0xff] %v5141
  %5193 = vst [vmem:[#allocation2 + $0x48] sm:$0xff] %v5143
  %5194 = vst [vmem:[#allocation2 + $0x50] sm:$0xff] %v5146
  %5195 = vst [vmem:[#allocation2 + $0x58] sm:$0xff] %v5148
  %5196 = vst [vmem:[#allocation2 + $0x60] sm:$0xff] %v5151
  %5197 = vst [vmem:[#allocation2 + $0x68] sm:$0xff] %v5153
  %5198 = vst [vmem:[#allocation2 + $0x70] sm:$0xff] %v5156
  %5199 = vst [vmem:[#allocation2 + $0x78] sm:$0xff] %v5158
  %5200 = vst [vmem:[#allocation2 + $0x80] sm:$0xff] %v5161
  %5201 = vst [vmem:[#allocation2 + $0x88] sm:$0xff] %v5163
  %5202 = vst [vmem:[#allocation2 + $0x90] sm:$0xff] %v5166
  %5203 = vst [vmem:[#allocation2 + $0x98] sm:$0xff] %v5168
  %5204 = vst [vmem:[#allocation2 + $0xa0] sm:$0xff] %v5171
  %5205 = vst [vmem:[#allocation2 + $0xa8] sm:$0xff] %v5173
  %5206 = vst [vmem:[#allocation2 + $0xb0] sm:$0xff] %v5176
  %5207 = vst [vmem:[#allocation2 + $0xb8] sm:$0xff] %v5178
  %5208 = vst [vmem:[#allocation2 + $0xc0] sm:$0xff] %v5181
  %v5209 = vld [vmem:[%s4983 + $0x64] sm:$0xf]
  %v5210 = vld [vmem:[%s4983 + $0x68] sm:$0xf]
  %v5211 = vld [vmem:[%s4983 + $0x6c] sm:$0xf]
  %v5212 = vld [vmem:[%s4983 + $0x70] sm:$0xf]
  %v5213 = vld [vmem:[%s4983 + $0x74] sm:$0xf]
  %v5214 = vld [vmem:[%s4983 + $0x78] sm:$0xf]
  %v5215 = vld [vmem:[%s4983 + $0x7c] sm:$0xf]
  %v5216 = vld [vmem:[%s4983 + $0x80] sm:$0xf]
  %v5217 = vld [vmem:[%s4983 + $0x84] sm:$0xf]
  %v5218 = vld [vmem:[%s4983 + $0x88] sm:$0xf]
  %v5219 = vld [vmem:[%s4983 + $0x8c] sm:$0xf]
  %v5220 = vld [vmem:[%s4983 + $0x90] sm:$0xf]
  %v5221 = vld [vmem:[%s4983 + $0x94] sm:$0xf]
  %v5222 = vld [vmem:[%s4983 + $0x98] sm:$0xf]
  %v5223 = vld [vmem:[%s4983 + $0x9c] sm:$0xf]
  %v5224 = vld [vmem:[%s4983 + $0xa0] sm:$0xf]
  %v5225 = vld [vmem:[%s4983 + $0xa4] sm:$0xf]
  %v5226 = vld [vmem:[%s4983 + $0xa8] sm:$0xf]
  %v5227 = vld [vmem:[%s4983 + $0xac] sm:$0xf]
  %v5228 = vld [vmem:[%s4983 + $0xb0] sm:$0xf]
  %v5229 = vld [vmem:[%s4983 + $0xb4] sm:$0xf]
  %v5230 = vld [vmem:[%s4983 + $0xb8] sm:$0xf]
  %v5231 = vld [vmem:[%s4983 + $0xbc] sm:$0xf]
  %v5232 = vld [vmem:[%s4983 + $0xc0] sm:$0xf]
  %v5233 = vld [vmem:[%s4983 + $0xc4] sm:$0xf]
  %v5259 = vunpack.c.l.b16 %v5209
  %v5260 = vunpack.c.l.b16 %v5210
  %v5261 = vunpack.c.l.b16 %v5211
  %v5262 = vunpack.c.l.b16 %v5212
  %v5263 = vunpack.c.l.b16 %v5213
  %v5264 = vunpack.c.l.b16 %v5214
  %v5265 = vunpack.c.l.b16 %v5215
  %v5266 = vunpack.c.l.b16 %v5216
  %v5267 = vunpack.c.l.b16 %v5217
  %v5268 = vunpack.c.l.b16 %v5218
  %v5269 = vunpack.c.l.b16 %v5219
  %v5270 = vunpack.c.l.b16 %v5220
  %v5271 = vunpack.c.l.b16 %v5221
  %v5272 = vunpack.c.l.b16 %v5222
  %v5273 = vunpack.c.l.b16 %v5223
  %v5274 = vunpack.c.l.b16 %v5224
  %v5275 = vunpack.c.l.b16 %v5225
  %v5276 = vunpack.c.l.b16 %v5226
  %v5277 = vunpack.c.l.b16 %v5227
  %v5278 = vunpack.c.l.b16 %v5228
  %v5279 = vunpack.c.l.b16 %v5229
  %v5280 = vunpack.c.l.b16 %v5230
  %v5281 = vunpack.c.l.b16 %v5231
  %v5282 = vunpack.c.l.b16 %v5232
  %v5283 = vunpack.c.l.b16 %v5233
  %v5284 = vpack.c.b16 %v5260, %v5259
  %v5285 = vpack.c.b16 %v5262, %v5261
  %v5286 = vpack.c.b16 %v5264, %v5263
  %v5287 = vpack.c.b16 %v5266, %v5265
  %v5288 = vpack.c.b16 %v5268, %v5267
  %v5289 = vpack.c.b16 %v5270, %v5269
  %v5290 = vpack.c.b16 %v5272, %v5271
  %v5291 = vpack.c.b16 %v5274, %v5273
  %v5292 = vpack.c.b16 %v5276, %v5275
  %v5293 = vpack.c.b16 %v5278, %v5277
  %v5294 = vpack.c.b16 %v5280, %v5279
  %v5295 = vpack.c.b16 %v5282, %v5281
  %v5296 = vpack.c.b16 %v5283, %v5283
  %v5298 = vsel %vm184, %v5284, 0
  %v5301 = vsel %vm184, %v5285, 0
  %v5304 = vsel %vm184, %v5286, 0
  %v5307 = vsel %vm184, %v5287, 0
  %v5310 = vsel %vm184, %v5288, 0
  %v5313 = vsel %vm184, %v5289, 0
  %v5316 = vsel %vm184, %v5290, 0
  %v5319 = vsel %vm184, %v5291, 0
  %v5322 = vsel %vm184, %v5292, 0
  %v5325 = vsel %vm184, %v5293, 0
  %v5328 = vsel %vm184, %v5294, 0
  %v5331 = vsel %vm184, %v5295, 0
  %v5334 = vsel %vm184, %v5296, 0
  %5336 = vmatpush.bf16.msra.mxu0 0
  %5337 = vmatpush.bf16.msra.mxu0 0
  %5338 = vmatpush.bf16.msra.mxu0 0
  %5339 = vmatpush.bf16.msra.mxu0 0
  %5340 = vmatpush.bf16.msra.mxu0 0
  %5341 = vmatpush.bf16.msra.mxu0 %v226
  %5342 = vmatpush.bf16.msra.mxu0 %v180
  %5343 = vmatpush.bf16.msra.mxu0 %v179
  %5344 = vmatmul.bf16.gmra.mxu0 %v5298
  %v5345 = vpop.f32.mrf.mxu0
  %v5346 = vadd.f32 %v104, %v5345
  %v5347 = vpop.f32.mrf.mxu0
  %v5348 = vadd.f32 %v104, %v5347
  %5349 = vmatmul.bf16.gmra.mxu0 %v5301
  %v5350 = vpop.f32.mrf.mxu0
  %v5351 = vadd.f32 %v104, %v5350
  %v5352 = vpop.f32.mrf.mxu0
  %v5353 = vadd.f32 %v104, %v5352
  %5354 = vmatmul.bf16.gmra.mxu0 %v5304
  %v5355 = vpop.f32.mrf.mxu0
  %v5356 = vadd.f32 %v104, %v5355
  %v5357 = vpop.f32.mrf.mxu0
  %v5358 = vadd.f32 %v104, %v5357
  %5359 = vmatmul.bf16.gmra.mxu0 %v5307
  %v5360 = vpop.f32.mrf.mxu0
  %v5361 = vadd.f32 %v104, %v5360
  %v5362 = vpop.f32.mrf.mxu0
  %v5363 = vadd.f32 %v104, %v5362
  %5364 = vmatmul.bf16.gmra.mxu0 %v5310
  %v5365 = vpop.f32.mrf.mxu0
  %v5366 = vadd.f32 %v104, %v5365
  %v5367 = vpop.f32.mrf.mxu0
  %v5368 = vadd.f32 %v104, %v5367
  %5369 = vmatmul.bf16.gmra.mxu0 %v5313
  %v5370 = vpop.f32.mrf.mxu0
  %v5371 = vadd.f32 %v104, %v5370
  %v5372 = vpop.f32.mrf.mxu0
  %v5373 = vadd.f32 %v104, %v5372
  %5374 = vmatmul.bf16.gmra.mxu0 %v5316
  %v5375 = vpop.f32.mrf.mxu0
  %v5376 = vadd.f32 %v104, %v5375
  %v5377 = vpop.f32.mrf.mxu0
  %v5378 = vadd.f32 %v104, %v5377
  %5379 = vmatmul.bf16.gmra.mxu0 %v5319
  %v5380 = vpop.f32.mrf.mxu0
  %v5381 = vadd.f32 %v104, %v5380
  %v5382 = vpop.f32.mrf.mxu0
  %v5383 = vadd.f32 %v104, %v5382
  %5384 = vmatmul.bf16.gmra.mxu0 %v5322
  %v5385 = vpop.f32.mrf.mxu0
  %v5386 = vadd.f32 %v104, %v5385
  %v5387 = vpop.f32.mrf.mxu0
  %v5388 = vadd.f32 %v104, %v5387
  %5389 = vmatmul.bf16.gmra.mxu0 %v5325
  %v5390 = vpop.f32.mrf.mxu0
  %v5391 = vadd.f32 %v104, %v5390
  %v5392 = vpop.f32.mrf.mxu0
  %v5393 = vadd.f32 %v104, %v5392
  %5394 = vmatmul.bf16.gmra.mxu0 %v5328
  %v5395 = vpop.f32.mrf.mxu0
  %v5396 = vadd.f32 %v104, %v5395
  %v5397 = vpop.f32.mrf.mxu0
  %v5398 = vadd.f32 %v104, %v5397
  %5399 = vmatmul.bf16.gmra.mxu0 %v5331
  %v5400 = vpop.f32.mrf.mxu0
  %v5401 = vadd.f32 %v104, %v5400
  %v5402 = vpop.f32.mrf.mxu0
  %v5403 = vadd.f32 %v104, %v5402
  %5404 = vmatmul.bf16.gmra.mxu0 %v5334
  %v5405 = vpop.f32.mrf.mxu0
  %v5406 = vadd.f32 %v104, %v5405
  %v5407 = vpop.f32.mrf.mxu0
  %5408 = vdwg.mxu0
  %5409 = vst [vmem:[#allocation2 + $0xc8] sm:$0xff] %v5346
  %5410 = vst [vmem:[#allocation2 + $0xd0] sm:$0xff] %v5348
  %5411 = vst [vmem:[#allocation2 + $0xd8] sm:$0xff] %v5351
  %5412 = vst [vmem:[#allocation2 + $0xe0] sm:$0xff] %v5353
  %5413 = vst [vmem:[#allocation2 + $0xe8] sm:$0xff] %v5356
  %5414 = vst [vmem:[#allocation2 + $0xf0] sm:$0xff] %v5358
  %5415 = vst [vmem:[#allocation2 + $0xf8] sm:$0xff] %v5361
  %5416 = vst [vmem:[#allocation2 + $0x100] sm:$0xff] %v5363
  %5417 = vst [vmem:[#allocation2 + $0x108] sm:$0xff] %v5366
  %5418 = vst [vmem:[#allocation2 + $0x110] sm:$0xff] %v5368
  %5419 = vst [vmem:[#allocation2 + $0x118] sm:$0xff] %v5371
  %5420 = vst [vmem:[#allocation2 + $0x120] sm:$0xff] %v5373
  %5421 = vst [vmem:[#allocation2 + $0x128] sm:$0xff] %v5376
  %5422 = vst [vmem:[#allocation2 + $0x130] sm:$0xff] %v5378
  %5423 = vst [vmem:[#allocation2 + $0x138] sm:$0xff] %v5381
  %5424 = vst [vmem:[#allocation2 + $0x140] sm:$0xff] %v5383
  %5425 = vst [vmem:[#allocation2 + $0x148] sm:$0xff] %v5386
  %5426 = vst [vmem:[#allocation2 + $0x150] sm:$0xff] %v5388
  %5427 = vst [vmem:[#allocation2 + $0x158] sm:$0xff] %v5391
  %5428 = vst [vmem:[#allocation2 + $0x160] sm:$0xff] %v5393
  %5429 = vst [vmem:[#allocation2 + $0x168] sm:$0xff] %v5396
  %5430 = vst [vmem:[#allocation2 + $0x170] sm:$0xff] %v5398
  %5431 = vst [vmem:[#allocation2 + $0x178] sm:$0xff] %v5401
  %5432 = vst [vmem:[#allocation2 + $0x180] sm:$0xff] %v5403
  %5433 = vst [vmem:[#allocation2 + $0x188] sm:$0xff] %v5406
  %v5434 = vld [vmem:[#allocation2] ss:$2 sm:$0xff]
  %v5435 = vld [vmem:[%s552] ss:$2 sm:$0x1]
  %v5436 = vld [vmem:[%s554] ss:$2 sm:$0xff]
  %v5437 = vld [vmem:[%s556] ss:$2 sm:$0x1]
  %v5438 = vmax.f32 %v5434, %v5436
  %v5439 = vmax.f32 %v5435, %v5437
  %v5440 = vld [vmem:[%s560] ss:$2 sm:$0xff]
  %v5441 = vld [vmem:[%s562] ss:$2 sm:$0x1]
  %v5442 = vld [vmem:[%s564] ss:$2 sm:$0xff]
  %v5443 = vld [vmem:[%s566] ss:$2 sm:$0x1]
  %v5444 = vmax.f32 %v5440, %v5442
  %v5445 = vmax.f32 %v5441, %v5443
  %v5446 = vmax.f32 %v5438, %v5444
  %v5447 = vmax.f32 %v5439, %v5445
  %v5448 = vmax.f32 %v5446, 0.0
  %v5449 = vmax.f32 %v5447, 0.0
  %5450 = vst [vmem:[#allocation3 + $0x1e] sm:$0xff] %v5448
  %5451 = vst [vmem:[#allocation3 + $0x26] sm:$0x1] %v5449
  %v5452 = vld [vmem:[%s576] ss:$2 sm:$0xff]
  %v5453 = vld [vmem:[%s578] ss:$2 sm:$0x1]
  %v5454 = vld [vmem:[%s580] ss:$2 sm:$0xff]
  %v5455 = vld [vmem:[%s582] ss:$2 sm:$0x1]
  %v5456 = vmax.f32 %v5452, %v5454
  %v5457 = vmax.f32 %v5453, %v5455
  %v5458 = vld [vmem:[%s586] ss:$2 sm:$0xff]
  %v5459 = vld [vmem:[%s588] ss:$2 sm:$0x1]
  %v5460 = vld [vmem:[%s590] ss:$2 sm:$0xff]
  %v5461 = vld [vmem:[%s592] ss:$2 sm:$0x1]
  %v5462 = vmax.f32 %v5458, %v5460
  %v5463 = vmax.f32 %v5459, %v5461
  %v5464 = vmax.f32 %v5456, %v5462
  %v5465 = vmax.f32 %v5457, %v5463
  %v5466 = vmax.f32 %v5464, 0.0
  %v5467 = vmax.f32 %v5465, 0.0
  %5468 = vst [vmem:[#allocation3 + $0x2c] sm:$0xff] %v5466
  %5469 = vst [vmem:[#allocation3 + $0x34] sm:$0x1] %v5467
  %v5470 = vld [vmem:[%s602] ss:$2 sm:$0xff]
  %v5471 = vld [vmem:[%s604] ss:$2 sm:$0x1]
  %v5472 = vld [vmem:[%s606] ss:$2 sm:$0xff]
  %v5473 = vld [vmem:[%s608] ss:$2 sm:$0x1]
  %v5474 = vmax.f32 %v5470, %v5472
  %v5475 = vmax.f32 %v5471, %v5473
  %v5476 = vld [vmem:[%s612] ss:$2 sm:$0xff]
  %v5477 = vld [vmem:[%s614] ss:$2 sm:$0x1]
  %v5478 = vld [vmem:[%s616] ss:$2 sm:$0xff]
  %v5479 = vld [vmem:[%s618] ss:$2 sm:$0x1]
  %v5480 = vmax.f32 %v5476, %v5478
  %v5481 = vmax.f32 %v5477, %v5479
  %v5482 = vmax.f32 %v5474, %v5480
  %v5483 = vmax.f32 %v5475, %v5481
  %v5484 = vmax.f32 %v5482, 0.0
  %v5485 = vmax.f32 %v5483, 0.0
  %5486 = vst [vmem:[#allocation3 + $0x3a] sm:$0xff] %v5484
  %5487 = vst [vmem:[#allocation3 + $0x42] sm:$0x1] %v5485
  %v5488 = vld [vmem:[%s628] ss:$2 sm:$0xff]
  %v5489 = vld [vmem:[%s630] ss:$2 sm:$0x1]
  %v5490 = vld [vmem:[%s632] ss:$2 sm:$0xff]
  %v5491 = vld [vmem:[%s634] ss:$2 sm:$0x1]
  %v5492 = vmax.f32 %v5488, %v5490
  %v5493 = vmax.f32 %v5489, %v5491
  %v5494 = vld [vmem:[%s638] ss:$2 sm:$0xff]
  %v5495 = vld [vmem:[%s640] ss:$2 sm:$0x1]
  %v5496 = vld [vmem:[%s642] ss:$2 sm:$0xff]
  %v5497 = vld [vmem:[%s644] ss:$2 sm:$0x1]
  %v5498 = vmax.f32 %v5494, %v5496
  %v5499 = vmax.f32 %v5495, %v5497
  %v5500 = vmax.f32 %v5492, %v5498
  %v5501 = vmax.f32 %v5493, %v5499
  %v5502 = vmax.f32 %v5500, 0.0
  %v5503 = vmax.f32 %v5501, 0.0
  %5504 = vst [vmem:[#allocation3 + $0x48] sm:$0xff] %v5502
  %5505 = vst [vmem:[#allocation3 + $0x50] sm:$0x1] %v5503
  %v5506 = vld [vmem:[%s654] ss:$2 sm:$0xff]
  %v5507 = vld [vmem:[%s656] ss:$2 sm:$0x1]
  %v5508 = vld [vmem:[%s658] ss:$2 sm:$0xff]
  %v5509 = vld [vmem:[%s660] ss:$2 sm:$0x1]
  %v5510 = vmax.f32 %v5506, %v5508
  %v5511 = vmax.f32 %v5507, %v5509
  %v5512 = vld [vmem:[%s664] ss:$2 sm:$0xff]
  %v5513 = vld [vmem:[%s666] ss:$2 sm:$0x1]
  %v5514 = vld [vmem:[%s668] ss:$2 sm:$0xff]
  %v5515 = vld [vmem:[%s670] ss:$2 sm:$0x1]
  %v5516 = vmax.f32 %v5512, %v5514
  %v5517 = vmax.f32 %v5513, %v5515
  %v5518 = vmax.f32 %v5510, %v5516
  %v5519 = vmax.f32 %v5511, %v5517
  %v5520 = vmax.f32 %v5518, 0.0
  %v5521 = vmax.f32 %v5519, 0.0
  %5522 = vst [vmem:[#allocation3 + $0x56] sm:$0xff] %v5520
  %5523 = vst [vmem:[#allocation3 + $0x5e] sm:$0x1] %v5521
  %v5524 = vld [vmem:[%s680] ss:$2 sm:$0xff]
  %v5525 = vld [vmem:[%s682] ss:$2 sm:$0x1]
  %v5526 = vld [vmem:[%s684] ss:$2 sm:$0xff]
  %v5527 = vld [vmem:[%s686] ss:$2 sm:$0x1]
  %v5528 = vmax.f32 %v5524, %v5526
  %v5529 = vmax.f32 %v5525, %v5527
  %v5530 = vld [vmem:[%s690] ss:$2 sm:$0xff]
  %v5531 = vld [vmem:[%s692] ss:$2 sm:$0x1]
  %v5532 = vld [vmem:[%s694] ss:$2 sm:$0xff]
  %v5533 = vld [vmem:[%s696] ss:$2 sm:$0x1]
  %v5534 = vmax.f32 %v5530, %v5532
  %v5535 = vmax.f32 %v5531, %v5533
  %v5536 = vmax.f32 %v5528, %v5534
  %v5537 = vmax.f32 %v5529, %v5535
  %v5538 = vmax.f32 %v5536, 0.0
  %v5539 = vmax.f32 %v5537, 0.0
  %5540 = vst [vmem:[#allocation3 + $0x64] sm:$0xff] %v5538
  %5541 = vst [vmem:[#allocation3 + $0x6c] sm:$0x1] %v5539
  %v5542 = vld [vmem:[%s706] ss:$2 sm:$0xff]
  %v5543 = vld [vmem:[%s708] ss:$2 sm:$0x1]
  %v5544 = vld [vmem:[%s710] ss:$2 sm:$0xff]
  %v5545 = vld [vmem:[%s712] ss:$2 sm:$0x1]
  %v5546 = vmax.f32 %v5542, %v5544
  %v5547 = vmax.f32 %v5543, %v5545
  %v5548 = vld [vmem:[%s716] ss:$2 sm:$0xff]
  %v5549 = vld [vmem:[%s718] ss:$2 sm:$0x1]
  %v5550 = vld [vmem:[%s720] ss:$2 sm:$0xff]
  %v5551 = vld [vmem:[%s722] ss:$2 sm:$0x1]
  %v5552 = vmax.f32 %v5548, %v5550
  %v5553 = vmax.f32 %v5549, %v5551
  %v5554 = vmax.f32 %v5546, %v5552
  %v5555 = vmax.f32 %v5547, %v5553
  %v5556 = vmax.f32 %v5554, 0.0
  %v5557 = vmax.f32 %v5555, 0.0
  %5558 = vst [vmem:[#allocation3 + $0x72] sm:$0xff] %v5556
  %5559 = vst [vmem:[#allocation3 + $0x7a] sm:$0x1] %v5557
  %v5560 = vld [vmem:[%s732] ss:$2 sm:$0xff]
  %v5561 = vld [vmem:[%s734] ss:$2 sm:$0x1]
  %v5562 = vld [vmem:[%s736] ss:$2 sm:$0xff]
  %v5563 = vld [vmem:[%s738] ss:$2 sm:$0x1]
  %v5564 = vmax.f32 %v5560, %v5562
  %v5565 = vmax.f32 %v5561, %v5563
  %v5566 = vld [vmem:[%s742] ss:$2 sm:$0xff]
  %v5567 = vld [vmem:[%s744] ss:$2 sm:$0x1]
  %v5568 = vld [vmem:[%s746] ss:$2 sm:$0xff]
  %v5569 = vld [vmem:[%s748] ss:$2 sm:$0x1]
  %v5570 = vmax.f32 %v5566, %v5568
  %v5571 = vmax.f32 %v5567, %v5569
  %v5572 = vmax.f32 %v5564, %v5570
  %v5573 = vmax.f32 %v5565, %v5571
  %v5574 = vmax.f32 %v5572, 0.0
  %v5575 = vmax.f32 %v5573, 0.0
  %5576 = vst [vmem:[#allocation3 + $0x80] sm:$0xff] %v5574
  %5577 = vst [vmem:[#allocation3 + $0x88] sm:$0x1] %v5575
  %v5578 = vld [vmem:[%s758] ss:$2 sm:$0xff]
  %v5579 = vld [vmem:[%s760] ss:$2 sm:$0x1]
  %v5580 = vld [vmem:[%s762] ss:$2 sm:$0xff]
  %v5581 = vld [vmem:[%s764] ss:$2 sm:$0x1]
  %v5582 = vmax.f32 %v5578, %v5580
  %v5583 = vmax.f32 %v5579, %v5581
  %v5584 = vld [vmem:[%s768] ss:$2 sm:$0xff]
  %v5585 = vld [vmem:[%s770] ss:$2 sm:$0x1]
  %v5586 = vld [vmem:[%s772] ss:$2 sm:$0xff]
  %v5587 = vld [vmem:[%s774] ss:$2 sm:$0x1]
  %v5588 = vmax.f32 %v5584, %v5586
  %v5589 = vmax.f32 %v5585, %v5587
  %v5590 = vmax.f32 %v5582, %v5588
  %v5591 = vmax.f32 %v5583, %v5589
  %v5592 = vmax.f32 %v5590, 0.0
  %v5593 = vmax.f32 %v5591, 0.0
  %5594 = vst [vmem:[#allocation3 + $0x8e] sm:$0xff] %v5592
  %5595 = vst [vmem:[#allocation3 + $0x96] sm:$0x1] %v5593
  %v5596 = vld [vmem:[#allocation3] sm:$0xff]
  %v5597 = vld [vmem:[#allocation3 + $0x8] sm:$0xff]
  %v5598 = vld [vmem:[#allocation3 + $0x10] sm:$0xff]
  %v5599 = vld [vmem:[#allocation3 + $0x18] sm:$0xff]
  %v5600 = vld [vmem:[#allocation3 + $0x20] sm:$0xff]
  %v5601 = vld [vmem:[#allocation3 + $0x28] sm:$0xff]
  %v5602 = vld [vmem:[#allocation3 + $0x30] sm:$0xff]
  %v5603 = vld [vmem:[#allocation3 + $0x38] sm:$0xff]
  %v5604 = vld [vmem:[#allocation3 + $0x40] sm:$0xff]
  %v5605 = vld [vmem:[#allocation3 + $0x48] sm:$0xff]
  %v5606 = vld [vmem:[#allocation3 + $0x50] sm:$0xff]
  %v5607 = vld [vmem:[#allocation3 + $0x58] sm:$0xff]
  %v5608 = vpack.c.bf16 %v5597, %v5596
  %v5609 = vpack.c.bf16 %v5599, %v5598
  %v5610 = vpack.c.bf16 %v5601, %v5600
  %v5611 = vpack.c.bf16 %v5603, %v5602
  %v5612 = vpack.c.bf16 %v5605, %v5604
  %v5613 = vpack.c.bf16 %v5607, %v5606
  %v5614 = vld [vmem:[%s3] sm:$0xf]
  %v5615 = vld [vmem:[%s3 + $0x4] sm:$0xf]
  %v5616 = vld [vmem:[%s3 + $0x8] sm:$0xf]
  %v5617 = vld [vmem:[%s3 + $0xc] sm:$0xf]
  %v5618 = vld [vmem:[%s3 + $0x10] sm:$0xf]
  %v5619 = vld [vmem:[%s3 + $0x14] sm:$0xf]
  %v5620 = vld [vmem:[%s3 + $0x18] sm:$0xf]
  %v5621 = vld [vmem:[%s3 + $0x1c] sm:$0xf]
  %v5622 = vld [vmem:[%s3 + $0x20] sm:$0xf]
  %v5623 = vld [vmem:[%s3 + $0x24] sm:$0xf]
  %v5624 = vld [vmem:[%s3 + $0x28] sm:$0xf]
  %v5625 = vld [vmem:[%s3 + $0x2c] sm:$0xf]
  %v5626 = vld [vmem:[%s3 + $0x30] sm:$0xf]
  %v5627 = vld [vmem:[%s3 + $0x34] sm:$0xf]
  %v5628 = vld [vmem:[%s3 + $0x38] sm:$0xf]
  %v5629 = vld [vmem:[%s3 + $0x3c] sm:$0xf]
  %v5630 = vld [vmem:[#allocation3 + $0x1] sm:$0xff]
  %v5631 = vld [vmem:[#allocation3 + $0x9] sm:$0xff]
  %v5632 = vld [vmem:[#allocation3 + $0x11] sm:$0xff]
  %v5633 = vld [vmem:[#allocation3 + $0x19] sm:$0xff]
  %v5634 = vld [vmem:[#allocation3 + $0x21] sm:$0xff]
  %v5635 = vld [vmem:[#allocation3 + $0x29] sm:$0xff]
  %v5636 = vld [vmem:[#allocation3 + $0x31] sm:$0xff]
  %v5637 = vld [vmem:[#allocation3 + $0x39] sm:$0xff]
  %v5638 = vld [vmem:[#allocation3 + $0x41] sm:$0xff]
  %v5639 = vld [vmem:[#allocation3 + $0x49] sm:$0xff]
  %v5640 = vld [vmem:[#allocation3 + $0x51] sm:$0xff]
  %v5641 = vld [vmem:[#allocation3 + $0x59] sm:$0xff]
  %v5642 = vpack.c.bf16 %v5631, %v5630
  %v5643 = vpack.c.bf16 %v5633, %v5632
  %v5644 = vpack.c.bf16 %v5635, %v5634
  %v5645 = vpack.c.bf16 %v5637, %v5636
  %v5646 = vpack.c.bf16 %v5639, %v5638
  %v5647 = vpack.c.bf16 %v5641, %v5640
  %v5648 = vld [vmem:[%s836] sm:$0xf]
  %v5649 = vld [vmem:[%s836 + $0x4] sm:$0xf]
  %v5650 = vld [vmem:[%s836 + $0x8] sm:$0xf]
  %v5651 = vld [vmem:[%s836 + $0xc] sm:$0xf]
  %v5652 = vld [vmem:[%s836 + $0x10] sm:$0xf]
  %v5653 = vld [vmem:[%s836 + $0x14] sm:$0xf]
  %v5654 = vld [vmem:[%s836 + $0x18] sm:$0xf]
  %v5655 = vld [vmem:[%s836 + $0x1c] sm:$0xf]
  %v5656 = vld [vmem:[%s836 + $0x20] sm:$0xf]
  %v5657 = vld [vmem:[%s836 + $0x24] sm:$0xf]
  %v5658 = vld [vmem:[%s836 + $0x28] sm:$0xf]
  %v5659 = vld [vmem:[%s836 + $0x2c] sm:$0xf]
  %v5660 = vld [vmem:[%s836 + $0x30] sm:$0xf]
  %v5661 = vld [vmem:[%s836 + $0x34] sm:$0xf]
  %v5662 = vld [vmem:[%s836 + $0x38] sm:$0xf]
  %v5663 = vld [vmem:[%s836 + $0x3c] sm:$0xf]
  %v5680 = vunpack.c.l.b16 %v5648
  %v5681 = vunpack.c.l.b16 %v5649
  %v5682 = vunpack.c.l.b16 %v5650
  %v5683 = vunpack.c.l.b16 %v5651
  %v5684 = vunpack.c.l.b16 %v5652
  %v5685 = vunpack.c.l.b16 %v5653
  %v5686 = vunpack.c.l.b16 %v5654
  %v5687 = vunpack.c.l.b16 %v5655
  %v5688 = vunpack.c.l.b16 %v5656
  %v5689 = vunpack.c.l.b16 %v5657
  %v5690 = vunpack.c.l.b16 %v5658
  %v5691 = vunpack.c.l.b16 %v5659
  %v5692 = vunpack.c.l.b16 %v5660
  %v5693 = vunpack.c.l.b16 %v5661
  %v5694 = vunpack.c.l.b16 %v5662
  %v5695 = vunpack.c.l.b16 %v5663
  %v5696 = vpack.c.b16 %v5681, %v5680
  %v5697 = vpack.c.b16 %v5683, %v5682
  %v5698 = vpack.c.b16 %v5685, %v5684
  %v5699 = vpack.c.b16 %v5687, %v5686
  %v5700 = vpack.c.b16 %v5689, %v5688
  %v5701 = vpack.c.b16 %v5691, %v5690
  %v5702 = vpack.c.b16 %v5693, %v5692
  %v5703 = vpack.c.b16 %v5695, %v5694
  %5712 = vmatpush.bf16.msra.mxu0 %v5703
  %5713 = vmatpush.bf16.msra.mxu0 %v5702
  %5714 = vmatpush.bf16.msra.mxu0 %v5701
  %5715 = vmatpush.bf16.msra.mxu0 %v5700
  %5716 = vmatpush.bf16.msra.mxu0 %v5699
  %5717 = vmatpush.bf16.msra.mxu0 %v5698
  %5718 = vmatpush.bf16.msra.mxu0 %v5697
  %5719 = vmatpush.bf16.msra.mxu0 %v5696
  %5720 = vmatmul.bf16.gmra.mxu0 %v5642
  %v5721 = vpop.f32.mrf.mxu0
  %v5722 = vadd.f32 0.0, %v5721
  %v5723 = vpop.f32.mrf.mxu0
  %v5724 = vadd.f32 0.0, %v5723
  %5725 = vmatmul.bf16.gmra.mxu0 %v5643
  %v5726 = vpop.f32.mrf.mxu0
  %v5727 = vadd.f32 0.0, %v5726
  %v5728 = vpop.f32.mrf.mxu0
  %v5729 = vadd.f32 0.0, %v5728
  %5730 = vmatmul.bf16.gmra.mxu0 %v5644
  %v5731 = vpop.f32.mrf.mxu0
  %v5732 = vadd.f32 0.0, %v5731
  %v5733 = vpop.f32.mrf.mxu0
  %v5734 = vadd.f32 0.0, %v5733
  %5735 = vmatmul.bf16.gmra.mxu0 %v5645
  %v5736 = vpop.f32.mrf.mxu0
  %v5737 = vadd.f32 0.0, %v5736
  %v5738 = vpop.f32.mrf.mxu0
  %v5739 = vadd.f32 0.0, %v5738
  %5740 = vmatmul.bf16.gmra.mxu0 %v5646
  %v5741 = vpop.f32.mrf.mxu0
  %v5742 = vadd.f32 0.0, %v5741
  %v5743 = vpop.f32.mrf.mxu0
  %v5744 = vadd.f32 0.0, %v5743
  %5745 = vmatmul.bf16.gmra.mxu0 %v5647
  %v5746 = vpop.f32.mrf.mxu0
  %v5747 = vadd.f32 0.0, %v5746
  %v5748 = vpop.f32.mrf.mxu0
  %v5749 = vadd.f32 0.0, %v5748
  %5750 = vdwg.mxu0
  %v5767 = vunpack.c.l.b16 %v5614
  %v5768 = vunpack.c.l.b16 %v5615
  %v5769 = vunpack.c.l.b16 %v5616
  %v5770 = vunpack.c.l.b16 %v5617
  %v5771 = vunpack.c.l.b16 %v5618
  %v5772 = vunpack.c.l.b16 %v5619
  %v5773 = vunpack.c.l.b16 %v5620
  %v5774 = vunpack.c.l.b16 %v5621
  %v5775 = vunpack.c.l.b16 %v5622
  %v5776 = vunpack.c.l.b16 %v5623
  %v5777 = vunpack.c.l.b16 %v5624
  %v5778 = vunpack.c.l.b16 %v5625
  %v5779 = vunpack.c.l.b16 %v5626
  %v5780 = vunpack.c.l.b16 %v5627
  %v5781 = vunpack.c.l.b16 %v5628
  %v5782 = vunpack.c.l.b16 %v5629
  %v5783 = vpack.c.b16 %v5768, %v5767
  %v5784 = vpack.c.b16 %v5770, %v5769
  %v5785 = vpack.c.b16 %v5772, %v5771
  %v5786 = vpack.c.b16 %v5774, %v5773
  %v5787 = vpack.c.b16 %v5776, %v5775
  %v5788 = vpack.c.b16 %v5778, %v5777
  %v5789 = vpack.c.b16 %v5780, %v5779
  %v5790 = vpack.c.b16 %v5782, %v5781
  %5799 = vmatpush.bf16.msra.mxu0 %v5790
  %5800 = vmatpush.bf16.msra.mxu0 %v5789
  %5801 = vmatpush.bf16.msra.mxu0 %v5788
  %5802 = vmatpush.bf16.msra.mxu0 %v5787
  %5803 = vmatpush.bf16.msra.mxu0 %v5786
  %5804 = vmatpush.bf16.msra.mxu0 %v5785
  %5805 = vmatpush.bf16.msra.mxu0 %v5784
  %5806 = vmatpush.bf16.msra.mxu0 %v5783
  %5807 = vmatmul.bf16.gmra.mxu0 %v5608
  %v5808 = vpop.f32.mrf.mxu0
  %v5809 = vadd.f32 %v5722, %v5808
  %v5810 = vpop.f32.mrf.mxu0
  %v5811 = vadd.f32 %v5724, %v5810
  %5812 = vmatmul.bf16.gmra.mxu0 %v5609
  %v5813 = vpop.f32.mrf.mxu0
  %v5814 = vadd.f32 %v5727, %v5813
  %v5815 = vpop.f32.mrf.mxu0
  %v5816 = vadd.f32 %v5729, %v5815
  %5817 = vmatmul.bf16.gmra.mxu0 %v5610
  %v5818 = vpop.f32.mrf.mxu0
  %v5819 = vadd.f32 %v5732, %v5818
  %v5820 = vpop.f32.mrf.mxu0
  %v5821 = vadd.f32 %v5734, %v5820
  %5822 = vmatmul.bf16.gmra.mxu0 %v5611
  %v5823 = vpop.f32.mrf.mxu0
  %v5824 = vadd.f32 %v5737, %v5823
  %v5825 = vpop.f32.mrf.mxu0
  %v5826 = vadd.f32 %v5739, %v5825
  %5827 = vmatmul.bf16.gmra.mxu0 %v5612
  %v5828 = vpop.f32.mrf.mxu0
  %v5829 = vadd.f32 %v5742, %v5828
  %v5830 = vpop.f32.mrf.mxu0
  %v5831 = vadd.f32 %v5744, %v5830
  %5832 = vmatmul.bf16.gmra.mxu0 %v5613
  %v5833 = vpop.f32.mrf.mxu0
  %v5834 = vadd.f32 %v5747, %v5833
  %v5835 = vpop.f32.mrf.mxu0
  %v5836 = vadd.f32 %v5749, %v5835
  %5837 = vdwg.mxu0
  %v5838 = vld [vmem:[#allocation3 + $0x2] sm:$0xff]
  %v5839 = vld [vmem:[#allocation3 + $0xa] sm:$0xff]
  %v5840 = vld [vmem:[#allocation3 + $0x12] sm:$0xff]
  %v5841 = vld [vmem:[#allocation3 + $0x1a] sm:$0xff]
  %v5842 = vld [vmem:[#allocation3 + $0x22] sm:$0xff]
  %v5843 = vld [vmem:[#allocation3 + $0x2a] sm:$0xff]
  %v5844 = vld [vmem:[#allocation3 + $0x32] sm:$0xff]
  %v5845 = vld [vmem:[#allocation3 + $0x3a] sm:$0xff]
  %v5846 = vld [vmem:[#allocation3 + $0x42] sm:$0xff]
  %v5847 = vld [vmem:[#allocation3 + $0x4a] sm:$0xff]
  %v5848 = vld [vmem:[#allocation3 + $0x52] sm:$0xff]
  %v5849 = vld [vmem:[#allocation3 + $0x5a] sm:$0xff]
  %v5850 = vpack.c.bf16 %v5839, %v5838
  %v5851 = vpack.c.bf16 %v5841, %v5840
  %v5852 = vpack.c.bf16 %v5843, %v5842
  %v5853 = vpack.c.bf16 %v5845, %v5844
  %v5854 = vpack.c.bf16 %v5847, %v5846
  %v5855 = vpack.c.bf16 %v5849, %v5848
  %v5856 = vld [vmem:[%s1045] sm:$0xf]
  %v5857 = vld [vmem:[%s1045 + $0x4] sm:$0xf]
  %v5858 = vld [vmem:[%s1045 + $0x8] sm:$0xf]
  %v5859 = vld [vmem:[%s1045 + $0xc] sm:$0xf]
  %v5860 = vld [vmem:[%s1045 + $0x10] sm:$0xf]
  %v5861 = vld [vmem:[%s1045 + $0x14] sm:$0xf]
  %v5862 = vld [vmem:[%s1045 + $0x18] sm:$0xf]
  %v5863 = vld [vmem:[%s1045 + $0x1c] sm:$0xf]
  %v5864 = vld [vmem:[%s1045 + $0x20] sm:$0xf]
  %v5865 = vld [vmem:[%s1045 + $0x24] sm:$0xf]
  %v5866 = vld [vmem:[%s1045 + $0x28] sm:$0xf]
  %v5867 = vld [vmem:[%s1045 + $0x2c] sm:$0xf]
  %v5868 = vld [vmem:[%s1045 + $0x30] sm:$0xf]
  %v5869 = vld [vmem:[%s1045 + $0x34] sm:$0xf]
  %v5870 = vld [vmem:[%s1045 + $0x38] sm:$0xf]
  %v5871 = vld [vmem:[%s1045 + $0x3c] sm:$0xf]
  %v5888 = vunpack.c.l.b16 %v5856
  %v5889 = vunpack.c.l.b16 %v5857
  %v5890 = vunpack.c.l.b16 %v5858
  %v5891 = vunpack.c.l.b16 %v5859
  %v5892 = vunpack.c.l.b16 %v5860
  %v5893 = vunpack.c.l.b16 %v5861
  %v5894 = vunpack.c.l.b16 %v5862
  %v5895 = vunpack.c.l.b16 %v5863
  %v5896 = vunpack.c.l.b16 %v5864
  %v5897 = vunpack.c.l.b16 %v5865
  %v5898 = vunpack.c.l.b16 %v5866
  %v5899 = vunpack.c.l.b16 %v5867
  %v5900 = vunpack.c.l.b16 %v5868
  %v5901 = vunpack.c.l.b16 %v5869
  %v5902 = vunpack.c.l.b16 %v5870
  %v5903 = vunpack.c.l.b16 %v5871
  %v5904 = vpack.c.b16 %v5889, %v5888
  %v5905 = vpack.c.b16 %v5891, %v5890
  %v5906 = vpack.c.b16 %v5893, %v5892
  %v5907 = vpack.c.b16 %v5895, %v5894
  %v5908 = vpack.c.b16 %v5897, %v5896
  %v5909 = vpack.c.b16 %v5899, %v5898
  %v5910 = vpack.c.b16 %v5901, %v5900
  %v5911 = vpack.c.b16 %v5903, %v5902
  %5920 = vmatpush.bf16.msra.mxu0 %v5911
  %5921 = vmatpush.bf16.msra.mxu0 %v5910
  %5922 = vmatpush.bf16.msra.mxu0 %v5909
  %5923 = vmatpush.bf16.msra.mxu0 %v5908
  %5924 = vmatpush.bf16.msra.mxu0 %v5907
  %5925 = vmatpush.bf16.msra.mxu0 %v5906
  %5926 = vmatpush.bf16.msra.mxu0 %v5905
  %5927 = vmatpush.bf16.msra.mxu0 %v5904
  %5928 = vmatmul.bf16.gmra.mxu0 %v5850
  %v5929 = vpop.f32.mrf.mxu0
  %v5930 = vadd.f32 0.0, %v5929
  %v5931 = vpop.f32.mrf.mxu0
  %v5932 = vadd.f32 0.0, %v5931
  %5933 = vmatmul.bf16.gmra.mxu0 %v5851
  %v5934 = vpop.f32.mrf.mxu0
  %v5935 = vadd.f32 0.0, %v5934
  %v5936 = vpop.f32.mrf.mxu0
  %v5937 = vadd.f32 0.0, %v5936
  %5938 = vmatmul.bf16.gmra.mxu0 %v5852
  %v5939 = vpop.f32.mrf.mxu0
  %v5940 = vadd.f32 0.0, %v5939
  %v5941 = vpop.f32.mrf.mxu0
  %v5942 = vadd.f32 0.0, %v5941
  %5943 = vmatmul.bf16.gmra.mxu0 %v5853
  %v5944 = vpop.f32.mrf.mxu0
  %v5945 = vadd.f32 0.0, %v5944
  %v5946 = vpop.f32.mrf.mxu0
  %v5947 = vadd.f32 0.0, %v5946
  %5948 = vmatmul.bf16.gmra.mxu0 %v5854
  %v5949 = vpop.f32.mrf.mxu0
  %v5950 = vadd.f32 0.0, %v5949
  %v5951 = vpop.f32.mrf.mxu0
  %v5952 = vadd.f32 0.0, %v5951
  %5953 = vmatmul.bf16.gmra.mxu0 %v5855
  %v5954 = vpop.f32.mrf.mxu0
  %v5955 = vadd.f32 0.0, %v5954
  %v5956 = vpop.f32.mrf.mxu0
  %v5957 = vadd.f32 0.0, %v5956
  %5958 = vdwg.mxu0
  %v5959 = vadd.f32 %v5809, %v5930
  %v5960 = vadd.f32 %v5811, %v5932
  %v5961 = vadd.f32 %v5814, %v5935
  %v5962 = vadd.f32 %v5816, %v5937
  %v5963 = vadd.f32 %v5819, %v5940
  %v5964 = vadd.f32 %v5821, %v5942
  %v5965 = vadd.f32 %v5824, %v5945
  %v5966 = vadd.f32 %v5826, %v5947
  %v5967 = vadd.f32 %v5829, %v5950
  %v5968 = vadd.f32 %v5831, %v5952
  %v5969 = vadd.f32 %v5834, %v5955
  %v5970 = vadd.f32 %v5836, %v5957
  %v5971 = vld [vmem:[#allocation3 + $0xe] sm:$0xff]
  %v5972 = vld [vmem:[#allocation3 + $0x16] sm:$0xff]
  %v5973 = vld [vmem:[#allocation3 + $0x1e] sm:$0xff]
  %v5974 = vld [vmem:[#allocation3 + $0x26] sm:$0xff]
  %v5975 = vld [vmem:[#allocation3 + $0x2e] sm:$0xff]
  %v5976 = vld [vmem:[#allocation3 + $0x36] sm:$0xff]
  %v5977 = vld [vmem:[#allocation3 + $0x3e] sm:$0xff]
  %v5978 = vld [vmem:[#allocation3 + $0x46] sm:$0xff]
  %v5979 = vld [vmem:[#allocation3 + $0x4e] sm:$0xff]
  %v5980 = vld [vmem:[#allocation3 + $0x56] sm:$0xff]
  %v5981 = vld [vmem:[#allocation3 + $0x5e] sm:$0xff]
  %v5982 = vld [vmem:[#allocation3 + $0x66] sm:$0xff]
  %v5983 = vpack.c.bf16 %v5972, %v5971
  %v5984 = vpack.c.bf16 %v5974, %v5973
  %v5985 = vpack.c.bf16 %v5976, %v5975
  %v5986 = vpack.c.bf16 %v5978, %v5977
  %v5987 = vpack.c.bf16 %v5980, %v5979
  %v5988 = vpack.c.bf16 %v5982, %v5981
  %v5989 = vld [vmem:[%s1179] sm:$0xf]
  %v5990 = vld [vmem:[%s1179 + $0x4] sm:$0xf]
  %v5991 = vld [vmem:[%s1179 + $0x8] sm:$0xf]
  %v5992 = vld [vmem:[%s1179 + $0xc] sm:$0xf]
  %v5993 = vld [vmem:[%s1179 + $0x10] sm:$0xf]
  %v5994 = vld [vmem:[%s1179 + $0x14] sm:$0xf]
  %v5995 = vld [vmem:[%s1179 + $0x18] sm:$0xf]
  %v5996 = vld [vmem:[%s1179 + $0x1c] sm:$0xf]
  %v5997 = vld [vmem:[%s1179 + $0x20] sm:$0xf]
  %v5998 = vld [vmem:[%s1179 + $0x24] sm:$0xf]
  %v5999 = vld [vmem:[%s1179 + $0x28] sm:$0xf]
  %v6000 = vld [vmem:[%s1179 + $0x2c] sm:$0xf]
  %v6001 = vld [vmem:[%s1179 + $0x30] sm:$0xf]
  %v6002 = vld [vmem:[%s1179 + $0x34] sm:$0xf]
  %v6003 = vld [vmem:[%s1179 + $0x38] sm:$0xf]
  %v6004 = vld [vmem:[%s1179 + $0x3c] sm:$0xf]
  %v6021 = vunpack.c.l.b16 %v5989
  %v6022 = vunpack.c.l.b16 %v5990
  %v6023 = vunpack.c.l.b16 %v5991
  %v6024 = vunpack.c.l.b16 %v5992
  %v6025 = vunpack.c.l.b16 %v5993
  %v6026 = vunpack.c.l.b16 %v5994
  %v6027 = vunpack.c.l.b16 %v5995
  %v6028 = vunpack.c.l.b16 %v5996
  %v6029 = vunpack.c.l.b16 %v5997
  %v6030 = vunpack.c.l.b16 %v5998
  %v6031 = vunpack.c.l.b16 %v5999
  %v6032 = vunpack.c.l.b16 %v6000
  %v6033 = vunpack.c.l.b16 %v6001
  %v6034 = vunpack.c.l.b16 %v6002
  %v6035 = vunpack.c.l.b16 %v6003
  %v6036 = vunpack.c.l.b16 %v6004
  %v6037 = vpack.c.b16 %v6022, %v6021
  %v6038 = vpack.c.b16 %v6024, %v6023
  %v6039 = vpack.c.b16 %v6026, %v6025
  %v6040 = vpack.c.b16 %v6028, %v6027
  %v6041 = vpack.c.b16 %v6030, %v6029
  %v6042 = vpack.c.b16 %v6032, %v6031
  %v6043 = vpack.c.b16 %v6034, %v6033
  %v6044 = vpack.c.b16 %v6036, %v6035
  %6053 = vmatpush.bf16.msra.mxu0 %v6044
  %6054 = vmatpush.bf16.msra.mxu0 %v6043
  %6055 = vmatpush.bf16.msra.mxu0 %v6042
  %6056 = vmatpush.bf16.msra.mxu0 %v6041
  %6057 = vmatpush.bf16.msra.mxu0 %v6040
  %6058 = vmatpush.bf16.msra.mxu0 %v6039
  %6059 = vmatpush.bf16.msra.mxu0 %v6038
  %6060 = vmatpush.bf16.msra.mxu0 %v6037
  %6061 = vmatmul.bf16.gmra.mxu0 %v5983
  %v6062 = vpop.f32.mrf.mxu0
  %v6063 = vadd.f32 0.0, %v6062
  %v6064 = vpop.f32.mrf.mxu0
  %v6065 = vadd.f32 0.0, %v6064
  %6066 = vmatmul.bf16.gmra.mxu0 %v5984
  %v6067 = vpop.f32.mrf.mxu0
  %v6068 = vadd.f32 0.0, %v6067
  %v6069 = vpop.f32.mrf.mxu0
  %v6070 = vadd.f32 0.0, %v6069
  %6071 = vmatmul.bf16.gmra.mxu0 %v5985
  %v6072 = vpop.f32.mrf.mxu0
  %v6073 = vadd.f32 0.0, %v6072
  %v6074 = vpop.f32.mrf.mxu0
  %v6075 = vadd.f32 0.0, %v6074
  %6076 = vmatmul.bf16.gmra.mxu0 %v5986
  %v6077 = vpop.f32.mrf.mxu0
  %v6078 = vadd.f32 0.0, %v6077
  %v6079 = vpop.f32.mrf.mxu0
  %v6080 = vadd.f32 0.0, %v6079
  %6081 = vmatmul.bf16.gmra.mxu0 %v5987
  %v6082 = vpop.f32.mrf.mxu0
  %v6083 = vadd.f32 0.0, %v6082
  %v6084 = vpop.f32.mrf.mxu0
  %v6085 = vadd.f32 0.0, %v6084
  %6086 = vmatmul.bf16.gmra.mxu0 %v5988
  %v6087 = vpop.f32.mrf.mxu0
  %v6088 = vadd.f32 0.0, %v6087
  %v6089 = vpop.f32.mrf.mxu0
  %v6090 = vadd.f32 0.0, %v6089
  %6091 = vdwg.mxu0
  %v6092 = vadd.f32 %v5959, %v6063
  %v6093 = vadd.f32 %v5960, %v6065
  %v6094 = vadd.f32 %v5961, %v6068
  %v6095 = vadd.f32 %v5962, %v6070
  %v6096 = vadd.f32 %v5963, %v6073
  %v6097 = vadd.f32 %v5964, %v6075
  %v6098 = vadd.f32 %v5965, %v6078
  %v6099 = vadd.f32 %v5966, %v6080
  %v6100 = vadd.f32 %v5967, %v6083
  %v6101 = vadd.f32 %v5968, %v6085
  %v6102 = vadd.f32 %v5969, %v6088
  %v6103 = vadd.f32 %v5970, %v6090
  %v6104 = vld [vmem:[#allocation3 + $0xf] sm:$0xff]
  %v6105 = vld [vmem:[#allocation3 + $0x17] sm:$0xff]
  %v6106 = vld [vmem:[#allocation3 + $0x1f] sm:$0xff]
  %v6107 = vld [vmem:[#allocation3 + $0x27] sm:$0xff]
  %v6108 = vld [vmem:[#allocation3 + $0x2f] sm:$0xff]
  %v6109 = vld [vmem:[#allocation3 + $0x37] sm:$0xff]
  %v6110 = vld [vmem:[#allocation3 + $0x3f] sm:$0xff]
  %v6111 = vld [vmem:[#allocation3 + $0x47] sm:$0xff]
  %v6112 = vld [vmem:[#allocation3 + $0x4f] sm:$0xff]
  %v6113 = vld [vmem:[#allocation3 + $0x57] sm:$0xff]
  %v6114 = vld [vmem:[#allocation3 + $0x5f] sm:$0xff]
  %v6115 = vld [vmem:[#allocation3 + $0x67] sm:$0xff]
  %v6116 = vpack.c.bf16 %v6105, %v6104
  %v6117 = vpack.c.bf16 %v6107, %v6106
  %v6118 = vpack.c.bf16 %v6109, %v6108
  %v6119 = vpack.c.bf16 %v6111, %v6110
  %v6120 = vpack.c.bf16 %v6113, %v6112
  %v6121 = vpack.c.bf16 %v6115, %v6114
  %v6122 = vld [vmem:[%s1313] sm:$0xf]
  %v6123 = vld [vmem:[%s1313 + $0x4] sm:$0xf]
  %v6124 = vld [vmem:[%s1313 + $0x8] sm:$0xf]
  %v6125 = vld [vmem:[%s1313 + $0xc] sm:$0xf]
  %v6126 = vld [vmem:[%s1313 + $0x10] sm:$0xf]
  %v6127 = vld [vmem:[%s1313 + $0x14] sm:$0xf]
  %v6128 = vld [vmem:[%s1313 + $0x18] sm:$0xf]
  %v6129 = vld [vmem:[%s1313 + $0x1c] sm:$0xf]
  %v6130 = vld [vmem:[%s1313 + $0x20] sm:$0xf]
  %v6131 = vld [vmem:[%s1313 + $0x24] sm:$0xf]
  %v6132 = vld [vmem:[%s1313 + $0x28] sm:$0xf]
  %v6133 = vld [vmem:[%s1313 + $0x2c] sm:$0xf]
  %v6134 = vld [vmem:[%s1313 + $0x30] sm:$0xf]
  %v6135 = vld [vmem:[%s1313 + $0x34] sm:$0xf]
  %v6136 = vld [vmem:[%s1313 + $0x38] sm:$0xf]
  %v6137 = vld [vmem:[%s1313 + $0x3c] sm:$0xf]
  %v6154 = vunpack.c.l.b16 %v6122
  %v6155 = vunpack.c.l.b16 %v6123
  %v6156 = vunpack.c.l.b16 %v6124
  %v6157 = vunpack.c.l.b16 %v6125
  %v6158 = vunpack.c.l.b16 %v6126
  %v6159 = vunpack.c.l.b16 %v6127
  %v6160 = vunpack.c.l.b16 %v6128
  %v6161 = vunpack.c.l.b16 %v6129
  %v6162 = vunpack.c.l.b16 %v6130
  %v6163 = vunpack.c.l.b16 %v6131
  %v6164 = vunpack.c.l.b16 %v6132
  %v6165 = vunpack.c.l.b16 %v6133
  %v6166 = vunpack.c.l.b16 %v6134
  %v6167 = vunpack.c.l.b16 %v6135
  %v6168 = vunpack.c.l.b16 %v6136
  %v6169 = vunpack.c.l.b16 %v6137
  %v6170 = vpack.c.b16 %v6155, %v6154
  %v6171 = vpack.c.b16 %v6157, %v6156
  %v6172 = vpack.c.b16 %v6159, %v6158
  %v6173 = vpack.c.b16 %v6161, %v6160
  %v6174 = vpack.c.b16 %v6163, %v6162
  %v6175 = vpack.c.b16 %v6165, %v6164
  %v6176 = vpack.c.b16 %v6167, %v6166
  %v6177 = vpack.c.b16 %v6169, %v6168
  %6186 = vmatpush.bf16.msra.mxu0 %v6177
  %6187 = vmatpush.bf16.msra.mxu0 %v6176
  %6188 = vmatpush.bf16.msra.mxu0 %v6175
  %6189 = vmatpush.bf16.msra.mxu0 %v6174
  %6190 = vmatpush.bf16.msra.mxu0 %v6173
  %6191 = vmatpush.bf16.msra.mxu0 %v6172
  %6192 = vmatpush.bf16.msra.mxu0 %v6171
  %6193 = vmatpush.bf16.msra.mxu0 %v6170
  %6194 = vmatmul.bf16.gmra.mxu0 %v6116
  %v6195 = vpop.f32.mrf.mxu0
  %v6196 = vadd.f32 0.0, %v6195
  %v6197 = vpop.f32.mrf.mxu0
  %v6198 = vadd.f32 0.0, %v6197
  %6199 = vmatmul.bf16.gmra.mxu0 %v6117
  %v6200 = vpop.f32.mrf.mxu0
  %v6201 = vadd.f32 0.0, %v6200
  %v6202 = vpop.f32.mrf.mxu0
  %v6203 = vadd.f32 0.0, %v6202
  %6204 = vmatmul.bf16.gmra.mxu0 %v6118
  %v6205 = vpop.f32.mrf.mxu0
  %v6206 = vadd.f32 0.0, %v6205
  %v6207 = vpop.f32.mrf.mxu0
  %v6208 = vadd.f32 0.0, %v6207
  %6209 = vmatmul.bf16.gmra.mxu0 %v6119
  %v6210 = vpop.f32.mrf.mxu0
  %v6211 = vadd.f32 0.0, %v6210
  %v6212 = vpop.f32.mrf.mxu0
  %v6213 = vadd.f32 0.0, %v6212
  %6214 = vmatmul.bf16.gmra.mxu0 %v6120
  %v6215 = vpop.f32.mrf.mxu0
  %v6216 = vadd.f32 0.0, %v6215
  %v6217 = vpop.f32.mrf.mxu0
  %v6218 = vadd.f32 0.0, %v6217
  %6219 = vmatmul.bf16.gmra.mxu0 %v6121
  %v6220 = vpop.f32.mrf.mxu0
  %v6221 = vadd.f32 0.0, %v6220
  %v6222 = vpop.f32.mrf.mxu0
  %v6223 = vadd.f32 0.0, %v6222
  %6224 = vdwg.mxu0
  %v6225 = vadd.f32 %v6092, %v6196
  %v6226 = vadd.f32 %v6093, %v6198
  %v6227 = vadd.f32 %v6094, %v6201
  %v6228 = vadd.f32 %v6095, %v6203
  %v6229 = vadd.f32 %v6096, %v6206
  %v6230 = vadd.f32 %v6097, %v6208
  %v6231 = vadd.f32 %v6098, %v6211
  %v6232 = vadd.f32 %v6099, %v6213
  %v6233 = vadd.f32 %v6100, %v6216
  %v6234 = vadd.f32 %v6101, %v6218
  %v6235 = vadd.f32 %v6102, %v6221
  %v6236 = vadd.f32 %v6103, %v6223
  %v6237 = vld [vmem:[#allocation3 + $0x10] sm:$0xff]
  %v6238 = vld [vmem:[#allocation3 + $0x18] sm:$0xff]
  %v6239 = vld [vmem:[#allocation3 + $0x20] sm:$0xff]
  %v6240 = vld [vmem:[#allocation3 + $0x28] sm:$0xff]
  %v6241 = vld [vmem:[#allocation3 + $0x30] sm:$0xff]
  %v6242 = vld [vmem:[#allocation3 + $0x38] sm:$0xff]
  %v6243 = vld [vmem:[#allocation3 + $0x40] sm:$0xff]
  %v6244 = vld [vmem:[#allocation3 + $0x48] sm:$0xff]
  %v6245 = vld [vmem:[#allocation3 + $0x50] sm:$0xff]
  %v6246 = vld [vmem:[#allocation3 + $0x58] sm:$0xff]
  %v6247 = vld [vmem:[#allocation3 + $0x60] sm:$0xff]
  %v6248 = vld [vmem:[#allocation3 + $0x68] sm:$0xff]
  %v6249 = vpack.c.bf16 %v6238, %v6237
  %v6250 = vpack.c.bf16 %v6240, %v6239
  %v6251 = vpack.c.bf16 %v6242, %v6241
  %v6252 = vpack.c.bf16 %v6244, %v6243
  %v6253 = vpack.c.bf16 %v6246, %v6245
  %v6254 = vpack.c.bf16 %v6248, %v6247
  %v6255 = vld [vmem:[%s1447] sm:$0xf]
  %v6256 = vld [vmem:[%s1447 + $0x4] sm:$0xf]
  %v6257 = vld [vmem:[%s1447 + $0x8] sm:$0xf]
  %v6258 = vld [vmem:[%s1447 + $0xc] sm:$0xf]
  %v6259 = vld [vmem:[%s1447 + $0x10] sm:$0xf]
  %v6260 = vld [vmem:[%s1447 + $0x14] sm:$0xf]
  %v6261 = vld [vmem:[%s1447 + $0x18] sm:$0xf]
  %v6262 = vld [vmem:[%s1447 + $0x1c] sm:$0xf]
  %v6263 = vld [vmem:[%s1447 + $0x20] sm:$0xf]
  %v6264 = vld [vmem:[%s1447 + $0x24] sm:$0xf]
  %v6265 = vld [vmem:[%s1447 + $0x28] sm:$0xf]
  %v6266 = vld [vmem:[%s1447 + $0x2c] sm:$0xf]
  %v6267 = vld [vmem:[%s1447 + $0x30] sm:$0xf]
  %v6268 = vld [vmem:[%s1447 + $0x34] sm:$0xf]
  %v6269 = vld [vmem:[%s1447 + $0x38] sm:$0xf]
  %v6270 = vld [vmem:[%s1447 + $0x3c] sm:$0xf]
  %v6287 = vunpack.c.l.b16 %v6255
  %v6288 = vunpack.c.l.b16 %v6256
  %v6289 = vunpack.c.l.b16 %v6257
  %v6290 = vunpack.c.l.b16 %v6258
  %v6291 = vunpack.c.l.b16 %v6259
  %v6292 = vunpack.c.l.b16 %v6260
  %v6293 = vunpack.c.l.b16 %v6261
  %v6294 = vunpack.c.l.b16 %v6262
  %v6295 = vunpack.c.l.b16 %v6263
  %v6296 = vunpack.c.l.b16 %v6264
  %v6297 = vunpack.c.l.b16 %v6265
  %v6298 = vunpack.c.l.b16 %v6266
  %v6299 = vunpack.c.l.b16 %v6267
  %v6300 = vunpack.c.l.b16 %v6268
  %v6301 = vunpack.c.l.b16 %v6269
  %v6302 = vunpack.c.l.b16 %v6270
  %v6303 = vpack.c.b16 %v6288, %v6287
  %v6304 = vpack.c.b16 %v6290, %v6289
  %v6305 = vpack.c.b16 %v6292, %v6291
  %v6306 = vpack.c.b16 %v6294, %v6293
  %v6307 = vpack.c.b16 %v6296, %v6295
  %v6308 = vpack.c.b16 %v6298, %v6297
  %v6309 = vpack.c.b16 %v6300, %v6299
  %v6310 = vpack.c.b16 %v6302, %v6301
  %6319 = vmatpush.bf16.msra.mxu0 %v6310
  %6320 = vmatpush.bf16.msra.mxu0 %v6309
  %6321 = vmatpush.bf16.msra.mxu0 %v6308
  %6322 = vmatpush.bf16.msra.mxu0 %v6307
  %6323 = vmatpush.bf16.msra.mxu0 %v6306
  %6324 = vmatpush.bf16.msra.mxu0 %v6305
  %6325 = vmatpush.bf16.msra.mxu0 %v6304
  %6326 = vmatpush.bf16.msra.mxu0 %v6303
  %6327 = vmatmul.bf16.gmra.mxu0 %v6249
  %v6328 = vpop.f32.mrf.mxu0
  %v6329 = vadd.f32 0.0, %v6328
  %v6330 = vpop.f32.mrf.mxu0
  %v6331 = vadd.f32 0.0, %v6330
  %6332 = vmatmul.bf16.gmra.mxu0 %v6250
  %v6333 = vpop.f32.mrf.mxu0
  %v6334 = vadd.f32 0.0, %v6333
  %v6335 = vpop.f32.mrf.mxu0
  %v6336 = vadd.f32 0.0, %v6335
  %6337 = vmatmul.bf16.gmra.mxu0 %v6251
  %v6338 = vpop.f32.mrf.mxu0
  %v6339 = vadd.f32 0.0, %v6338
  %v6340 = vpop.f32.mrf.mxu0
  %v6341 = vadd.f32 0.0, %v6340
  %6342 = vmatmul.bf16.gmra.mxu0 %v6252
  %v6343 = vpop.f32.mrf.mxu0
  %v6344 = vadd.f32 0.0, %v6343
  %v6345 = vpop.f32.mrf.mxu0
  %v6346 = vadd.f32 0.0, %v6345
  %6347 = vmatmul.bf16.gmra.mxu0 %v6253
  %v6348 = vpop.f32.mrf.mxu0
  %v6349 = vadd.f32 0.0, %v6348
  %v6350 = vpop.f32.mrf.mxu0
  %v6351 = vadd.f32 0.0, %v6350
  %6352 = vmatmul.bf16.gmra.mxu0 %v6254
  %v6353 = vpop.f32.mrf.mxu0
  %v6354 = vadd.f32 0.0, %v6353
  %v6355 = vpop.f32.mrf.mxu0
  %v6356 = vadd.f32 0.0, %v6355
  %6357 = vdwg.mxu0
  %v6358 = vadd.f32 %v6225, %v6329
  %v6359 = vadd.f32 %v6226, %v6331
  %v6360 = vadd.f32 %v6227, %v6334
  %v6361 = vadd.f32 %v6228, %v6336
  %v6362 = vadd.f32 %v6229, %v6339
  %v6363 = vadd.f32 %v6230, %v6341
  %v6364 = vadd.f32 %v6231, %v6344
  %v6365 = vadd.f32 %v6232, %v6346
  %v6366 = vadd.f32 %v6233, %v6349
  %v6367 = vadd.f32 %v6234, %v6351
  %v6368 = vadd.f32 %v6235, %v6354
  %v6369 = vadd.f32 %v6236, %v6356
  %v6370 = vld [vmem:[#allocation3 + $0x1c] sm:$0xff]
  %v6371 = vld [vmem:[#allocation3 + $0x24] sm:$0xff]
  %v6372 = vld [vmem:[#allocation3 + $0x2c] sm:$0xff]
  %v6373 = vld [vmem:[#allocation3 + $0x34] sm:$0xff]
  %v6374 = vld [vmem:[#allocation3 + $0x3c] sm:$0xff]
  %v6375 = vld [vmem:[#allocation3 + $0x44] sm:$0xff]
  %v6376 = vld [vmem:[#allocation3 + $0x4c] sm:$0xff]
  %v6377 = vld [vmem:[#allocation3 + $0x54] sm:$0xff]
  %v6378 = vld [vmem:[#allocation3 + $0x5c] sm:$0xff]
  %v6379 = vld [vmem:[#allocation3 + $0x64] sm:$0xff]
  %v6380 = vld [vmem:[#allocation3 + $0x6c] sm:$0xff]
  %v6381 = vld [vmem:[#allocation3 + $0x74] sm:$0xff]
  %v6382 = vpack.c.bf16 %v6371, %v6370
  %v6383 = vpack.c.bf16 %v6373, %v6372
  %v6384 = vpack.c.bf16 %v6375, %v6374
  %v6385 = vpack.c.bf16 %v6377, %v6376
  %v6386 = vpack.c.bf16 %v6379, %v6378
  %v6387 = vpack.c.bf16 %v6381, %v6380
  %v6388 = vld [vmem:[%s1581] sm:$0xf]
  %v6389 = vld [vmem:[%s1581 + $0x4] sm:$0xf]
  %v6390 = vld [vmem:[%s1581 + $0x8] sm:$0xf]
  %v6391 = vld [vmem:[%s1581 + $0xc] sm:$0xf]
  %v6392 = vld [vmem:[%s1581 + $0x10] sm:$0xf]
  %v6393 = vld [vmem:[%s1581 + $0x14] sm:$0xf]
  %v6394 = vld [vmem:[%s1581 + $0x18] sm:$0xf]
  %v6395 = vld [vmem:[%s1581 + $0x1c] sm:$0xf]
  %v6396 = vld [vmem:[%s1581 + $0x20] sm:$0xf]
  %v6397 = vld [vmem:[%s1581 + $0x24] sm:$0xf]
  %v6398 = vld [vmem:[%s1581 + $0x28] sm:$0xf]
  %v6399 = vld [vmem:[%s1581 + $0x2c] sm:$0xf]
  %v6400 = vld [vmem:[%s1581 + $0x30] sm:$0xf]
  %v6401 = vld [vmem:[%s1581 + $0x34] sm:$0xf]
  %v6402 = vld [vmem:[%s1581 + $0x38] sm:$0xf]
  %v6403 = vld [vmem:[%s1581 + $0x3c] sm:$0xf]
  %v6420 = vunpack.c.l.b16 %v6388
  %v6421 = vunpack.c.l.b16 %v6389
  %v6422 = vunpack.c.l.b16 %v6390
  %v6423 = vunpack.c.l.b16 %v6391
  %v6424 = vunpack.c.l.b16 %v6392
  %v6425 = vunpack.c.l.b16 %v6393
  %v6426 = vunpack.c.l.b16 %v6394
  %v6427 = vunpack.c.l.b16 %v6395
  %v6428 = vunpack.c.l.b16 %v6396
  %v6429 = vunpack.c.l.b16 %v6397
  %v6430 = vunpack.c.l.b16 %v6398
  %v6431 = vunpack.c.l.b16 %v6399
  %v6432 = vunpack.c.l.b16 %v6400
  %v6433 = vunpack.c.l.b16 %v6401
  %v6434 = vunpack.c.l.b16 %v6402
  %v6435 = vunpack.c.l.b16 %v6403
  %v6436 = vpack.c.b16 %v6421, %v6420
  %v6437 = vpack.c.b16 %v6423, %v6422
  %v6438 = vpack.c.b16 %v6425, %v6424
  %v6439 = vpack.c.b16 %v6427, %v6426
  %v6440 = vpack.c.b16 %v6429, %v6428
  %v6441 = vpack.c.b16 %v6431, %v6430
  %v6442 = vpack.c.b16 %v6433, %v6432
  %v6443 = vpack.c.b16 %v6435, %v6434
  %6452 = vmatpush.bf16.msra.mxu0 %v6443
  %6453 = vmatpush.bf16.msra.mxu0 %v6442
  %6454 = vmatpush.bf16.msra.mxu0 %v6441
  %6455 = vmatpush.bf16.msra.mxu0 %v6440
  %6456 = vmatpush.bf16.msra.mxu0 %v6439
  %6457 = vmatpush.bf16.msra.mxu0 %v6438
  %6458 = vmatpush.bf16.msra.mxu0 %v6437
  %6459 = vmatpush.bf16.msra.mxu0 %v6436
  %6460 = vmatmul.bf16.gmra.mxu0 %v6382
  %v6461 = vpop.f32.mrf.mxu0
  %v6462 = vadd.f32 0.0, %v6461
  %v6463 = vpop.f32.mrf.mxu0
  %v6464 = vadd.f32 0.0, %v6463
  %6465 = vmatmul.bf16.gmra.mxu0 %v6383
  %v6466 = vpop.f32.mrf.mxu0
  %v6467 = vadd.f32 0.0, %v6466
  %v6468 = vpop.f32.mrf.mxu0
  %v6469 = vadd.f32 0.0, %v6468
  %6470 = vmatmul.bf16.gmra.mxu0 %v6384
  %v6471 = vpop.f32.mrf.mxu0
  %v6472 = vadd.f32 0.0, %v6471
  %v6473 = vpop.f32.mrf.mxu0
  %v6474 = vadd.f32 0.0, %v6473
  %6475 = vmatmul.bf16.gmra.mxu0 %v6385
  %v6476 = vpop.f32.mrf.mxu0
  %v6477 = vadd.f32 0.0, %v6476
  %v6478 = vpop.f32.mrf.mxu0
  %v6479 = vadd.f32 0.0, %v6478
  %6480 = vmatmul.bf16.gmra.mxu0 %v6386
  %v6481 = vpop.f32.mrf.mxu0
  %v6482 = vadd.f32 0.0, %v6481
  %v6483 = vpop.f32.mrf.mxu0
  %v6484 = vadd.f32 0.0, %v6483
  %6485 = vmatmul.bf16.gmra.mxu0 %v6387
  %v6486 = vpop.f32.mrf.mxu0
  %v6487 = vadd.f32 0.0, %v6486
  %v6488 = vpop.f32.mrf.mxu0
  %v6489 = vadd.f32 0.0, %v6488
  %6490 = vdwg.mxu0
  %v6491 = vadd.f32 %v6358, %v6462
  %v6492 = vadd.f32 %v6359, %v6464
  %v6493 = vadd.f32 %v6360, %v6467
  %v6494 = vadd.f32 %v6361, %v6469
  %v6495 = vadd.f32 %v6362, %v6472
  %v6496 = vadd.f32 %v6363, %v6474
  %v6497 = vadd.f32 %v6364, %v6477
  %v6498 = vadd.f32 %v6365, %v6479
  %v6499 = vadd.f32 %v6366, %v6482
  %v6500 = vadd.f32 %v6367, %v6484
  %v6501 = vadd.f32 %v6368, %v6487
  %v6502 = vadd.f32 %v6369, %v6489
  %v6503 = vld [vmem:[#allocation3 + $0x1d] sm:$0xff]
  %v6504 = vld [vmem:[#allocation3 + $0x25] sm:$0xff]
  %v6505 = vld [vmem:[#allocation3 + $0x2d] sm:$0xff]
  %v6506 = vld [vmem:[#allocation3 + $0x35] sm:$0xff]
  %v6507 = vld [vmem:[#allocation3 + $0x3d] sm:$0xff]
  %v6508 = vld [vmem:[#allocation3 + $0x45] sm:$0xff]
  %v6509 = vld [vmem:[#allocation3 + $0x4d] sm:$0xff]
  %v6510 = vld [vmem:[#allocation3 + $0x55] sm:$0xff]
  %v6511 = vld [vmem:[#allocation3 + $0x5d] sm:$0xff]
  %v6512 = vld [vmem:[#allocation3 + $0x65] sm:$0xff]
  %v6513 = vld [vmem:[#allocation3 + $0x6d] sm:$0xff]
  %v6514 = vld [vmem:[#allocation3 + $0x75] sm:$0xff]
  %v6515 = vpack.c.bf16 %v6504, %v6503
  %v6516 = vpack.c.bf16 %v6506, %v6505
  %v6517 = vpack.c.bf16 %v6508, %v6507
  %v6518 = vpack.c.bf16 %v6510, %v6509
  %v6519 = vpack.c.bf16 %v6512, %v6511
  %v6520 = vpack.c.bf16 %v6514, %v6513
  %v6521 = vld [vmem:[%s1715] sm:$0xf]
  %v6522 = vld [vmem:[%s1715 + $0x4] sm:$0xf]
  %v6523 = vld [vmem:[%s1715 + $0x8] sm:$0xf]
  %v6524 = vld [vmem:[%s1715 + $0xc] sm:$0xf]
  %v6525 = vld [vmem:[%s1715 + $0x10] sm:$0xf]
  %v6526 = vld [vmem:[%s1715 + $0x14] sm:$0xf]
  %v6527 = vld [vmem:[%s1715 + $0x18] sm:$0xf]
  %v6528 = vld [vmem:[%s1715 + $0x1c] sm:$0xf]
  %v6529 = vld [vmem:[%s1715 + $0x20] sm:$0xf]
  %v6530 = vld [vmem:[%s1715 + $0x24] sm:$0xf]
  %v6531 = vld [vmem:[%s1715 + $0x28] sm:$0xf]
  %v6532 = vld [vmem:[%s1715 + $0x2c] sm:$0xf]
  %v6533 = vld [vmem:[%s1715 + $0x30] sm:$0xf]
  %v6534 = vld [vmem:[%s1715 + $0x34] sm:$0xf]
  %v6535 = vld [vmem:[%s1715 + $0x38] sm:$0xf]
  %v6536 = vld [vmem:[%s1715 + $0x3c] sm:$0xf]
  %v6553 = vunpack.c.l.b16 %v6521
  %v6554 = vunpack.c.l.b16 %v6522
  %v6555 = vunpack.c.l.b16 %v6523
  %v6556 = vunpack.c.l.b16 %v6524
  %v6557 = vunpack.c.l.b16 %v6525
  %v6558 = vunpack.c.l.b16 %v6526
  %v6559 = vunpack.c.l.b16 %v6527
  %v6560 = vunpack.c.l.b16 %v6528
  %v6561 = vunpack.c.l.b16 %v6529
  %v6562 = vunpack.c.l.b16 %v6530
  %v6563 = vunpack.c.l.b16 %v6531
  %v6564 = vunpack.c.l.b16 %v6532
  %v6565 = vunpack.c.l.b16 %v6533
  %v6566 = vunpack.c.l.b16 %v6534
  %v6567 = vunpack.c.l.b16 %v6535
  %v6568 = vunpack.c.l.b16 %v6536
  %v6569 = vpack.c.b16 %v6554, %v6553
  %v6570 = vpack.c.b16 %v6556, %v6555
  %v6571 = vpack.c.b16 %v6558, %v6557
  %v6572 = vpack.c.b16 %v6560, %v6559
  %v6573 = vpack.c.b16 %v6562, %v6561
  %v6574 = vpack.c.b16 %v6564, %v6563
  %v6575 = vpack.c.b16 %v6566, %v6565
  %v6576 = vpack.c.b16 %v6568, %v6567
  %6585 = vmatpush.bf16.msra.mxu0 %v6576
  %6586 = vmatpush.bf16.msra.mxu0 %v6575
  %6587 = vmatpush.bf16.msra.mxu0 %v6574
  %6588 = vmatpush.bf16.msra.mxu0 %v6573
  %6589 = vmatpush.bf16.msra.mxu0 %v6572
  %6590 = vmatpush.bf16.msra.mxu0 %v6571
  %6591 = vmatpush.bf16.msra.mxu0 %v6570
  %6592 = vmatpush.bf16.msra.mxu0 %v6569
  %6593 = vmatmul.bf16.gmra.mxu0 %v6515
  %v6594 = vpop.f32.mrf.mxu0
  %v6595 = vadd.f32 0.0, %v6594
  %v6596 = vpop.f32.mrf.mxu0
  %v6597 = vadd.f32 0.0, %v6596
  %6598 = vmatmul.bf16.gmra.mxu0 %v6516
  %v6599 = vpop.f32.mrf.mxu0
  %v6600 = vadd.f32 0.0, %v6599
  %v6601 = vpop.f32.mrf.mxu0
  %v6602 = vadd.f32 0.0, %v6601
  %6603 = vmatmul.bf16.gmra.mxu0 %v6517
  %v6604 = vpop.f32.mrf.mxu0
  %v6605 = vadd.f32 0.0, %v6604
  %v6606 = vpop.f32.mrf.mxu0
  %v6607 = vadd.f32 0.0, %v6606
  %6608 = vmatmul.bf16.gmra.mxu0 %v6518
  %v6609 = vpop.f32.mrf.mxu0
  %v6610 = vadd.f32 0.0, %v6609
  %v6611 = vpop.f32.mrf.mxu0
  %v6612 = vadd.f32 0.0, %v6611
  %6613 = vmatmul.bf16.gmra.mxu0 %v6519
  %v6614 = vpop.f32.mrf.mxu0
  %v6615 = vadd.f32 0.0, %v6614
  %v6616 = vpop.f32.mrf.mxu0
  %v6617 = vadd.f32 0.0, %v6616
  %6618 = vmatmul.bf16.gmra.mxu0 %v6520
  %v6619 = vpop.f32.mrf.mxu0
  %v6620 = vadd.f32 0.0, %v6619
  %v6621 = vpop.f32.mrf.mxu0
  %v6622 = vadd.f32 0.0, %v6621
  %6623 = vdwg.mxu0
  %v6624 = vadd.f32 %v6491, %v6595
  %v6625 = vadd.f32 %v6492, %v6597
  %v6626 = vadd.f32 %v6493, %v6600
  %v6627 = vadd.f32 %v6494, %v6602
  %v6628 = vadd.f32 %v6495, %v6605
  %v6629 = vadd.f32 %v6496, %v6607
  %v6630 = vadd.f32 %v6497, %v6610
  %v6631 = vadd.f32 %v6498, %v6612
  %v6632 = vadd.f32 %v6499, %v6615
  %v6633 = vadd.f32 %v6500, %v6617
  %v6634 = vadd.f32 %v6501, %v6620
  %v6635 = vadd.f32 %v6502, %v6622
  %v6636 = vld [vmem:[#allocation3 + $0x1e] sm:$0xff]
  %v6637 = vld [vmem:[#allocation3 + $0x26] sm:$0xff]
  %v6638 = vld [vmem:[#allocation3 + $0x2e] sm:$0xff]
  %v6639 = vld [vmem:[#allocation3 + $0x36] sm:$0xff]
  %v6640 = vld [vmem:[#allocation3 + $0x3e] sm:$0xff]
  %v6641 = vld [vmem:[#allocation3 + $0x46] sm:$0xff]
  %v6642 = vld [vmem:[#allocation3 + $0x4e] sm:$0xff]
  %v6643 = vld [vmem:[#allocation3 + $0x56] sm:$0xff]
  %v6644 = vld [vmem:[#allocation3 + $0x5e] sm:$0xff]
  %v6645 = vld [vmem:[#allocation3 + $0x66] sm:$0xff]
  %v6646 = vld [vmem:[#allocation3 + $0x6e] sm:$0xff]
  %v6647 = vld [vmem:[#allocation3 + $0x76] sm:$0xff]
  %v6648 = vpack.c.bf16 %v6637, %v6636
  %v6649 = vpack.c.bf16 %v6639, %v6638
  %v6650 = vpack.c.bf16 %v6641, %v6640
  %v6651 = vpack.c.bf16 %v6643, %v6642
  %v6652 = vpack.c.bf16 %v6645, %v6644
  %v6653 = vpack.c.bf16 %v6647, %v6646
  %v6654 = vld [vmem:[%s1849] sm:$0xf]
  %v6655 = vld [vmem:[%s1849 + $0x4] sm:$0xf]
  %v6656 = vld [vmem:[%s1849 + $0x8] sm:$0xf]
  %v6657 = vld [vmem:[%s1849 + $0xc] sm:$0xf]
  %v6658 = vld [vmem:[%s1849 + $0x10] sm:$0xf]
  %v6659 = vld [vmem:[%s1849 + $0x14] sm:$0xf]
  %v6660 = vld [vmem:[%s1849 + $0x18] sm:$0xf]
  %v6661 = vld [vmem:[%s1849 + $0x1c] sm:$0xf]
  %v6662 = vld [vmem:[%s1849 + $0x20] sm:$0xf]
  %v6663 = vld [vmem:[%s1849 + $0x24] sm:$0xf]
  %v6664 = vld [vmem:[%s1849 + $0x28] sm:$0xf]
  %v6665 = vld [vmem:[%s1849 + $0x2c] sm:$0xf]
  %v6666 = vld [vmem:[%s1849 + $0x30] sm:$0xf]
  %v6667 = vld [vmem:[%s1849 + $0x34] sm:$0xf]
  %v6668 = vld [vmem:[%s1849 + $0x38] sm:$0xf]
  %v6669 = vld [vmem:[%s1849 + $0x3c] sm:$0xf]
  %v6686 = vunpack.c.l.b16 %v6654
  %v6687 = vunpack.c.l.b16 %v6655
  %v6688 = vunpack.c.l.b16 %v6656
  %v6689 = vunpack.c.l.b16 %v6657
  %v6690 = vunpack.c.l.b16 %v6658
  %v6691 = vunpack.c.l.b16 %v6659
  %v6692 = vunpack.c.l.b16 %v6660
  %v6693 = vunpack.c.l.b16 %v6661
  %v6694 = vunpack.c.l.b16 %v6662
  %v6695 = vunpack.c.l.b16 %v6663
  %v6696 = vunpack.c.l.b16 %v6664
  %v6697 = vunpack.c.l.b16 %v6665
  %v6698 = vunpack.c.l.b16 %v6666
  %v6699 = vunpack.c.l.b16 %v6667
  %v6700 = vunpack.c.l.b16 %v6668
  %v6701 = vunpack.c.l.b16 %v6669
  %v6702 = vpack.c.b16 %v6687, %v6686
  %v6703 = vpack.c.b16 %v6689, %v6688
  %v6704 = vpack.c.b16 %v6691, %v6690
  %v6705 = vpack.c.b16 %v6693, %v6692
  %v6706 = vpack.c.b16 %v6695, %v6694
  %v6707 = vpack.c.b16 %v6697, %v6696
  %v6708 = vpack.c.b16 %v6699, %v6698
  %v6709 = vpack.c.b16 %v6701, %v6700
  %6718 = vmatpush.bf16.msra.mxu0 %v6709
  %6719 = vmatpush.bf16.msra.mxu0 %v6708
  %6720 = vmatpush.bf16.msra.mxu0 %v6707
  %6721 = vmatpush.bf16.msra.mxu0 %v6706
  %6722 = vmatpush.bf16.msra.mxu0 %v6705
  %6723 = vmatpush.bf16.msra.mxu0 %v6704
  %6724 = vmatpush.bf16.msra.mxu0 %v6703
  %6725 = vmatpush.bf16.msra.mxu0 %v6702
  %6726 = vmatmul.bf16.gmra.mxu0 %v6648
  %v6727 = vpop.f32.mrf.mxu0
  %v6728 = vadd.f32 0.0, %v6727
  %v6729 = vpop.f32.mrf.mxu0
  %v6730 = vadd.f32 0.0, %v6729
  %6731 = vmatmul.bf16.gmra.mxu0 %v6649
  %v6732 = vpop.f32.mrf.mxu0
  %v6733 = vadd.f32 0.0, %v6732
  %v6734 = vpop.f32.mrf.mxu0
  %v6735 = vadd.f32 0.0, %v6734
  %6736 = vmatmul.bf16.gmra.mxu0 %v6650
  %v6737 = vpop.f32.mrf.mxu0
  %v6738 = vadd.f32 0.0, %v6737
  %v6739 = vpop.f32.mrf.mxu0
  %v6740 = vadd.f32 0.0, %v6739
  %6741 = vmatmul.bf16.gmra.mxu0 %v6651
  %v6742 = vpop.f32.mrf.mxu0
  %v6743 = vadd.f32 0.0, %v6742
  %v6744 = vpop.f32.mrf.mxu0
  %v6745 = vadd.f32 0.0, %v6744
  %6746 = vmatmul.bf16.gmra.mxu0 %v6652
  %v6747 = vpop.f32.mrf.mxu0
  %v6748 = vadd.f32 0.0, %v6747
  %v6749 = vpop.f32.mrf.mxu0
  %v6750 = vadd.f32 0.0, %v6749
  %6751 = vmatmul.bf16.gmra.mxu0 %v6653
  %v6752 = vpop.f32.mrf.mxu0
  %v6753 = vadd.f32 0.0, %v6752
  %v6754 = vpop.f32.mrf.mxu0
  %v6755 = vadd.f32 0.0, %v6754
  %6756 = vdwg.mxu0
  %v6757 = vadd.f32 %v6624, %v6728
  %v6758 = vadd.f32 %v6625, %v6730
  %v6759 = vadd.f32 %v6626, %v6733
  %v6760 = vadd.f32 %v6627, %v6735
  %v6761 = vadd.f32 %v6628, %v6738
  %v6762 = vadd.f32 %v6629, %v6740
  %v6763 = vadd.f32 %v6630, %v6743
  %v6764 = vadd.f32 %v6631, %v6745
  %v6765 = vadd.f32 %v6632, %v6748
  %v6766 = vadd.f32 %v6633, %v6750
  %v6767 = vadd.f32 %v6634, %v6753
  %v6768 = vadd.f32 %v6635, %v6755
  %v6769 = vadd.f32 %v6757, %v1966
  %v6770 = vadd.f32 %v6758, %v1966
  %v6771 = vadd.f32 %v6759, %v1966
  %v6772 = vadd.f32 %v6760, %v1966
  %v6773 = vadd.f32 %v6761, %v1966
  %v6774 = vadd.f32 %v6762, %v1966
  %v6775 = vadd.f32 %v6763, %v1966
  %v6776 = vadd.f32 %v6764, %v1966
  %v6777 = vadd.f32 %v6765, %v1966
  %v6778 = vadd.f32 %v6766, %v1966
  %v6779 = vadd.f32 %v6767, %v1966
  %v6780 = vadd.f32 %v6768, %v1966
  %6781 = vst [vmem:[#allocation4] sm:$0xff] %v6769
  %6782 = vst [vmem:[#allocation4 + $0x8] sm:$0xff] %v6770
  %6783 = vst [vmem:[#allocation4 + $0x10] sm:$0xff] %v6771
  %6784 = vst [vmem:[#allocation4 + $0x18] sm:$0xff] %v6772
  %6785 = vst [vmem:[#allocation4 + $0x20] sm:$0xff] %v6773
  %6786 = vst [vmem:[#allocation4 + $0x28] sm:$0xff] %v6774
  %6787 = vst [vmem:[#allocation4 + $0x30] sm:$0xff] %v6775
  %6788 = vst [vmem:[#allocation4 + $0x38] sm:$0xff] %v6776
  %6789 = vst [vmem:[#allocation4 + $0x40] sm:$0xff] %v6777
  %6790 = vst [vmem:[#allocation4 + $0x48] sm:$0xff] %v6778
  %6791 = vst [vmem:[#allocation4 + $0x50] sm:$0xff] %v6779
  %6792 = vst [vmem:[#allocation4 + $0x58] sm:$0xff] %v6780
  %v6793 = vld [vmem:[#allocation3 + $0x60] sm:$0xff]
  %v6794 = vld [vmem:[#allocation3 + $0x68] sm:$0xff]
  %v6795 = vld [vmem:[#allocation3 + $0x70] sm:$0xff]
  %v6796 = vld [vmem:[#allocation3 + $0x78] sm:$0xff]
  %v6797 = vld [vmem:[#allocation3 + $0x80] sm:$0xff]
  %v6798 = vld [vmem:[#allocation3 + $0x88] sm:$0xff]
  %v6799 = vld [vmem:[#allocation3 + $0x90] sm:$0xff]
  %v6800 = vld [vmem:[#allocation3 + $0x98] sm:$0xff]
  %v6801 = vld [vmem:[#allocation3 + $0xa0] sm:$0xff]
  %v6802 = vld [vmem:[#allocation3 + $0xa8] sm:$0xff]
  %v6803 = vld [vmem:[#allocation3 + $0xb0] sm:$0xff]
  %v6804 = vld [vmem:[#allocation3 + $0xb8] sm:$0xff]
  %v6805 = vpack.c.bf16 %v6794, %v6793
  %v6806 = vpack.c.bf16 %v6796, %v6795
  %v6807 = vpack.c.bf16 %v6798, %v6797
  %v6808 = vpack.c.bf16 %v6800, %v6799
  %v6809 = vpack.c.bf16 %v6802, %v6801
  %v6810 = vpack.c.bf16 %v6804, %v6803
  %v6811 = vld [vmem:[%s3] sm:$0xf]
  %v6812 = vld [vmem:[%s3 + $0x4] sm:$0xf]
  %v6813 = vld [vmem:[%s3 + $0x8] sm:$0xf]
  %v6814 = vld [vmem:[%s3 + $0xc] sm:$0xf]
  %v6815 = vld [vmem:[%s3 + $0x10] sm:$0xf]
  %v6816 = vld [vmem:[%s3 + $0x14] sm:$0xf]
  %v6817 = vld [vmem:[%s3 + $0x18] sm:$0xf]
  %v6818 = vld [vmem:[%s3 + $0x1c] sm:$0xf]
  %v6819 = vld [vmem:[%s3 + $0x20] sm:$0xf]
  %v6820 = vld [vmem:[%s3 + $0x24] sm:$0xf]
  %v6821 = vld [vmem:[%s3 + $0x28] sm:$0xf]
  %v6822 = vld [vmem:[%s3 + $0x2c] sm:$0xf]
  %v6823 = vld [vmem:[%s3 + $0x30] sm:$0xf]
  %v6824 = vld [vmem:[%s3 + $0x34] sm:$0xf]
  %v6825 = vld [vmem:[%s3 + $0x38] sm:$0xf]
  %v6826 = vld [vmem:[%s3 + $0x3c] sm:$0xf]
  %v6827 = vld [vmem:[#allocation3 + $0x61] sm:$0xff]
  %v6828 = vld [vmem:[#allocation3 + $0x69] sm:$0xff]
  %v6829 = vld [vmem:[#allocation3 + $0x71] sm:$0xff]
  %v6830 = vld [vmem:[#allocation3 + $0x79] sm:$0xff]
  %v6831 = vld [vmem:[#allocation3 + $0x81] sm:$0xff]
  %v6832 = vld [vmem:[#allocation3 + $0x89] sm:$0xff]
  %v6833 = vld [vmem:[#allocation3 + $0x91] sm:$0xff]
  %v6834 = vld [vmem:[#allocation3 + $0x99] sm:$0xff]
  %v6835 = vld [vmem:[#allocation3 + $0xa1] sm:$0xff]
  %v6836 = vld [vmem:[#allocation3 + $0xa9] sm:$0xff]
  %v6837 = vld [vmem:[#allocation3 + $0xb1] sm:$0xff]
  %v6838 = vld [vmem:[#allocation3 + $0xb9] sm:$0xff]
  %v6839 = vpack.c.bf16 %v6828, %v6827
  %v6840 = vpack.c.bf16 %v6830, %v6829
  %v6841 = vpack.c.bf16 %v6832, %v6831
  %v6842 = vpack.c.bf16 %v6834, %v6833
  %v6843 = vpack.c.bf16 %v6836, %v6835
  %v6844 = vpack.c.bf16 %v6838, %v6837
  %v6845 = vld [vmem:[%s836] sm:$0xf]
  %v6846 = vld [vmem:[%s836 + $0x4] sm:$0xf]
  %v6847 = vld [vmem:[%s836 + $0x8] sm:$0xf]
  %v6848 = vld [vmem:[%s836 + $0xc] sm:$0xf]
  %v6849 = vld [vmem:[%s836 + $0x10] sm:$0xf]
  %v6850 = vld [vmem:[%s836 + $0x14] sm:$0xf]
  %v6851 = vld [vmem:[%s836 + $0x18] sm:$0xf]
  %v6852 = vld [vmem:[%s836 + $0x1c] sm:$0xf]
  %v6853 = vld [vmem:[%s836 + $0x20] sm:$0xf]
  %v6854 = vld [vmem:[%s836 + $0x24] sm:$0xf]
  %v6855 = vld [vmem:[%s836 + $0x28] sm:$0xf]
  %v6856 = vld [vmem:[%s836 + $0x2c] sm:$0xf]
  %v6857 = vld [vmem:[%s836 + $0x30] sm:$0xf]
  %v6858 = vld [vmem:[%s836 + $0x34] sm:$0xf]
  %v6859 = vld [vmem:[%s836 + $0x38] sm:$0xf]
  %v6860 = vld [vmem:[%s836 + $0x3c] sm:$0xf]
  %v6877 = vunpack.c.l.b16 %v6845
  %v6878 = vunpack.c.l.b16 %v6846
  %v6879 = vunpack.c.l.b16 %v6847
  %v6880 = vunpack.c.l.b16 %v6848
  %v6881 = vunpack.c.l.b16 %v6849
  %v6882 = vunpack.c.l.b16 %v6850
  %v6883 = vunpack.c.l.b16 %v6851
  %v6884 = vunpack.c.l.b16 %v6852
  %v6885 = vunpack.c.l.b16 %v6853
  %v6886 = vunpack.c.l.b16 %v6854
  %v6887 = vunpack.c.l.b16 %v6855
  %v6888 = vunpack.c.l.b16 %v6856
  %v6889 = vunpack.c.l.b16 %v6857
  %v6890 = vunpack.c.l.b16 %v6858
  %v6891 = vunpack.c.l.b16 %v6859
  %v6892 = vunpack.c.l.b16 %v6860
  %v6893 = vpack.c.b16 %v6878, %v6877
  %v6894 = vpack.c.b16 %v6880, %v6879
  %v6895 = vpack.c.b16 %v6882, %v6881
  %v6896 = vpack.c.b16 %v6884, %v6883
  %v6897 = vpack.c.b16 %v6886, %v6885
  %v6898 = vpack.c.b16 %v6888, %v6887
  %v6899 = vpack.c.b16 %v6890, %v6889
  %v6900 = vpack.c.b16 %v6892, %v6891
  %6909 = vmatpush.bf16.msra.mxu0 %v6900
  %6910 = vmatpush.bf16.msra.mxu0 %v6899
  %6911 = vmatpush.bf16.msra.mxu0 %v6898
  %6912 = vmatpush.bf16.msra.mxu0 %v6897
  %6913 = vmatpush.bf16.msra.mxu0 %v6896
  %6914 = vmatpush.bf16.msra.mxu0 %v6895
  %6915 = vmatpush.bf16.msra.mxu0 %v6894
  %6916 = vmatpush.bf16.msra.mxu0 %v6893
  %6917 = vmatmul.bf16.gmra.mxu0 %v6839
  %v6918 = vpop.f32.mrf.mxu0
  %v6919 = vadd.f32 0.0, %v6918
  %v6920 = vpop.f32.mrf.mxu0
  %v6921 = vadd.f32 0.0, %v6920
  %6922 = vmatmul.bf16.gmra.mxu0 %v6840
  %v6923 = vpop.f32.mrf.mxu0
  %v6924 = vadd.f32 0.0, %v6923
  %v6925 = vpop.f32.mrf.mxu0
  %v6926 = vadd.f32 0.0, %v6925
  %6927 = vmatmul.bf16.gmra.mxu0 %v6841
  %v6928 = vpop.f32.mrf.mxu0
  %v6929 = vadd.f32 0.0, %v6928
  %v6930 = vpop.f32.mrf.mxu0
  %v6931 = vadd.f32 0.0, %v6930
  %6932 = vmatmul.bf16.gmra.mxu0 %v6842
  %v6933 = vpop.f32.mrf.mxu0
  %v6934 = vadd.f32 0.0, %v6933
  %v6935 = vpop.f32.mrf.mxu0
  %v6936 = vadd.f32 0.0, %v6935
  %6937 = vmatmul.bf16.gmra.mxu0 %v6843
  %v6938 = vpop.f32.mrf.mxu0
  %v6939 = vadd.f32 0.0, %v6938
  %v6940 = vpop.f32.mrf.mxu0
  %v6941 = vadd.f32 0.0, %v6940
  %6942 = vmatmul.bf16.gmra.mxu0 %v6844
  %v6943 = vpop.f32.mrf.mxu0
  %v6944 = vadd.f32 0.0, %v6943
  %v6945 = vpop.f32.mrf.mxu0
  %v6946 = vadd.f32 0.0, %v6945
  %6947 = vdwg.mxu0
  %v6964 = vunpack.c.l.b16 %v6811
  %v6965 = vunpack.c.l.b16 %v6812
  %v6966 = vunpack.c.l.b16 %v6813
  %v6967 = vunpack.c.l.b16 %v6814
  %v6968 = vunpack.c.l.b16 %v6815
  %v6969 = vunpack.c.l.b16 %v6816
  %v6970 = vunpack.c.l.b16 %v6817
  %v6971 = vunpack.c.l.b16 %v6818
  %v6972 = vunpack.c.l.b16 %v6819
  %v6973 = vunpack.c.l.b16 %v6820
  %v6974 = vunpack.c.l.b16 %v6821
  %v6975 = vunpack.c.l.b16 %v6822
  %v6976 = vunpack.c.l.b16 %v6823
  %v6977 = vunpack.c.l.b16 %v6824
  %v6978 = vunpack.c.l.b16 %v6825
  %v6979 = vunpack.c.l.b16 %v6826
  %v6980 = vpack.c.b16 %v6965, %v6964
  %v6981 = vpack.c.b16 %v6967, %v6966
  %v6982 = vpack.c.b16 %v6969, %v6968
  %v6983 = vpack.c.b16 %v6971, %v6970
  %v6984 = vpack.c.b16 %v6973, %v6972
  %v6985 = vpack.c.b16 %v6975, %v6974
  %v6986 = vpack.c.b16 %v6977, %v6976
  %v6987 = vpack.c.b16 %v6979, %v6978
  %6996 = vmatpush.bf16.msra.mxu0 %v6987
  %6997 = vmatpush.bf16.msra.mxu0 %v6986
  %6998 = vmatpush.bf16.msra.mxu0 %v6985
  %6999 = vmatpush.bf16.msra.mxu0 %v6984
  %7000 = vmatpush.bf16.msra.mxu0 %v6983
  %7001 = vmatpush.bf16.msra.mxu0 %v6982
  %7002 = vmatpush.bf16.msra.mxu0 %v6981
  %7003 = vmatpush.bf16.msra.mxu0 %v6980
  %7004 = vmatmul.bf16.gmra.mxu0 %v6805
  %v7005 = vpop.f32.mrf.mxu0
  %v7006 = vadd.f32 %v6919, %v7005
  %v7007 = vpop.f32.mrf.mxu0
  %v7008 = vadd.f32 %v6921, %v7007
  %7009 = vmatmul.bf16.gmra.mxu0 %v6806
  %v7010 = vpop.f32.mrf.mxu0
  %v7011 = vadd.f32 %v6924, %v7010
  %v7012 = vpop.f32.mrf.mxu0
  %v7013 = vadd.f32 %v6926, %v7012
  %7014 = vmatmul.bf16.gmra.mxu0 %v6807
  %v7015 = vpop.f32.mrf.mxu0
  %v7016 = vadd.f32 %v6929, %v7015
  %v7017 = vpop.f32.mrf.mxu0
  %v7018 = vadd.f32 %v6931, %v7017
  %7019 = vmatmul.bf16.gmra.mxu0 %v6808
  %v7020 = vpop.f32.mrf.mxu0
  %v7021 = vadd.f32 %v6934, %v7020
  %v7022 = vpop.f32.mrf.mxu0
  %v7023 = vadd.f32 %v6936, %v7022
  %7024 = vmatmul.bf16.gmra.mxu0 %v6809
  %v7025 = vpop.f32.mrf.mxu0
  %v7026 = vadd.f32 %v6939, %v7025
  %v7027 = vpop.f32.mrf.mxu0
  %v7028 = vadd.f32 %v6941, %v7027
  %7029 = vmatmul.bf16.gmra.mxu0 %v6810
  %v7030 = vpop.f32.mrf.mxu0
  %v7031 = vadd.f32 %v6944, %v7030
  %v7032 = vpop.f32.mrf.mxu0
  %v7033 = vadd.f32 %v6946, %v7032
  %7034 = vdwg.mxu0
  %v7035 = vld [vmem:[#allocation3 + $0x62] sm:$0xff]
  %v7036 = vld [vmem:[#allocation3 + $0x6a] sm:$0xff]
  %v7037 = vld [vmem:[#allocation3 + $0x72] sm:$0xff]
  %v7038 = vld [vmem:[#allocation3 + $0x7a] sm:$0xff]
  %v7039 = vld [vmem:[#allocation3 + $0x82] sm:$0xff]
  %v7040 = vld [vmem:[#allocation3 + $0x8a] sm:$0xff]
  %v7041 = vld [vmem:[#allocation3 + $0x92] sm:$0xff]
  %v7042 = vld [vmem:[#allocation3 + $0x9a] sm:$0xff]
  %v7043 = vld [vmem:[#allocation3 + $0xa2] sm:$0xff]
  %v7044 = vld [vmem:[#allocation3 + $0xaa] sm:$0xff]
  %v7045 = vld [vmem:[#allocation3 + $0xb2] sm:$0xff]
  %v7046 = vld [vmem:[#allocation3 + $0xba] sm:$0xff]
  %v7047 = vpack.c.bf16 %v7036, %v7035
  %v7048 = vpack.c.bf16 %v7038, %v7037
  %v7049 = vpack.c.bf16 %v7040, %v7039
  %v7050 = vpack.c.bf16 %v7042, %v7041
  %v7051 = vpack.c.bf16 %v7044, %v7043
  %v7052 = vpack.c.bf16 %v7046, %v7045
  %v7053 = vld [vmem:[%s1045] sm:$0xf]
  %v7054 = vld [vmem:[%s1045 + $0x4] sm:$0xf]
  %v7055 = vld [vmem:[%s1045 + $0x8] sm:$0xf]
  %v7056 = vld [vmem:[%s1045 + $0xc] sm:$0xf]
  %v7057 = vld [vmem:[%s1045 + $0x10] sm:$0xf]
  %v7058 = vld [vmem:[%s1045 + $0x14] sm:$0xf]
  %v7059 = vld [vmem:[%s1045 + $0x18] sm:$0xf]
  %v7060 = vld [vmem:[%s1045 + $0x1c] sm:$0xf]
  %v7061 = vld [vmem:[%s1045 + $0x20] sm:$0xf]
  %v7062 = vld [vmem:[%s1045 + $0x24] sm:$0xf]
  %v7063 = vld [vmem:[%s1045 + $0x28] sm:$0xf]
  %v7064 = vld [vmem:[%s1045 + $0x2c] sm:$0xf]
  %v7065 = vld [vmem:[%s1045 + $0x30] sm:$0xf]
  %v7066 = vld [vmem:[%s1045 + $0x34] sm:$0xf]
  %v7067 = vld [vmem:[%s1045 + $0x38] sm:$0xf]
  %v7068 = vld [vmem:[%s1045 + $0x3c] sm:$0xf]
  %v7085 = vunpack.c.l.b16 %v7053
  %v7086 = vunpack.c.l.b16 %v7054
  %v7087 = vunpack.c.l.b16 %v7055
  %v7088 = vunpack.c.l.b16 %v7056
  %v7089 = vunpack.c.l.b16 %v7057
  %v7090 = vunpack.c.l.b16 %v7058
  %v7091 = vunpack.c.l.b16 %v7059
  %v7092 = vunpack.c.l.b16 %v7060
  %v7093 = vunpack.c.l.b16 %v7061
  %v7094 = vunpack.c.l.b16 %v7062
  %v7095 = vunpack.c.l.b16 %v7063
  %v7096 = vunpack.c.l.b16 %v7064
  %v7097 = vunpack.c.l.b16 %v7065
  %v7098 = vunpack.c.l.b16 %v7066
  %v7099 = vunpack.c.l.b16 %v7067
  %v7100 = vunpack.c.l.b16 %v7068
  %v7101 = vpack.c.b16 %v7086, %v7085
  %v7102 = vpack.c.b16 %v7088, %v7087
  %v7103 = vpack.c.b16 %v7090, %v7089
  %v7104 = vpack.c.b16 %v7092, %v7091
  %v7105 = vpack.c.b16 %v7094, %v7093
  %v7106 = vpack.c.b16 %v7096, %v7095
  %v7107 = vpack.c.b16 %v7098, %v7097
  %v7108 = vpack.c.b16 %v7100, %v7099
  %7117 = vmatpush.bf16.msra.mxu0 %v7108
  %7118 = vmatpush.bf16.msra.mxu0 %v7107
  %7119 = vmatpush.bf16.msra.mxu0 %v7106
  %7120 = vmatpush.bf16.msra.mxu0 %v7105
  %7121 = vmatpush.bf16.msra.mxu0 %v7104
  %7122 = vmatpush.bf16.msra.mxu0 %v7103
  %7123 = vmatpush.bf16.msra.mxu0 %v7102
  %7124 = vmatpush.bf16.msra.mxu0 %v7101
  %7125 = vmatmul.bf16.gmra.mxu0 %v7047
  %v7126 = vpop.f32.mrf.mxu0
  %v7127 = vadd.f32 0.0, %v7126
  %v7128 = vpop.f32.mrf.mxu0
  %v7129 = vadd.f32 0.0, %v7128
  %7130 = vmatmul.bf16.gmra.mxu0 %v7048
  %v7131 = vpop.f32.mrf.mxu0
  %v7132 = vadd.f32 0.0, %v7131
  %v7133 = vpop.f32.mrf.mxu0
  %v7134 = vadd.f32 0.0, %v7133
  %7135 = vmatmul.bf16.gmra.mxu0 %v7049
  %v7136 = vpop.f32.mrf.mxu0
  %v7137 = vadd.f32 0.0, %v7136
  %v7138 = vpop.f32.mrf.mxu0
  %v7139 = vadd.f32 0.0, %v7138
  %7140 = vmatmul.bf16.gmra.mxu0 %v7050
  %v7141 = vpop.f32.mrf.mxu0
  %v7142 = vadd.f32 0.0, %v7141
  %v7143 = vpop.f32.mrf.mxu0
  %v7144 = vadd.f32 0.0, %v7143
  %7145 = vmatmul.bf16.gmra.mxu0 %v7051
  %v7146 = vpop.f32.mrf.mxu0
  %v7147 = vadd.f32 0.0, %v7146
  %v7148 = vpop.f32.mrf.mxu0
  %v7149 = vadd.f32 0.0, %v7148
  %7150 = vmatmul.bf16.gmra.mxu0 %v7052
  %v7151 = vpop.f32.mrf.mxu0
  %v7152 = vadd.f32 0.0, %v7151
  %v7153 = vpop.f32.mrf.mxu0
  %v7154 = vadd.f32 0.0, %v7153
  %7155 = vdwg.mxu0
  %v7156 = vadd.f32 %v7006, %v7127
  %v7157 = vadd.f32 %v7008, %v7129
  %v7158 = vadd.f32 %v7011, %v7132
  %v7159 = vadd.f32 %v7013, %v7134
  %v7160 = vadd.f32 %v7016, %v7137
  %v7161 = vadd.f32 %v7018, %v7139
  %v7162 = vadd.f32 %v7021, %v7142
  %v7163 = vadd.f32 %v7023, %v7144
  %v7164 = vadd.f32 %v7026, %v7147
  %v7165 = vadd.f32 %v7028, %v7149
  %v7166 = vadd.f32 %v7031, %v7152
  %v7167 = vadd.f32 %v7033, %v7154
  %v7168 = vld [vmem:[#allocation3 + $0x6e] sm:$0xff]
  %v7169 = vld [vmem:[#allocation3 + $0x76] sm:$0xff]
  %v7170 = vld [vmem:[#allocation3 + $0x7e] sm:$0xff]
  %v7171 = vld [vmem:[#allocation3 + $0x86] sm:$0xff]
  %v7172 = vld [vmem:[#allocation3 + $0x8e] sm:$0xff]
  %v7173 = vld [vmem:[#allocation3 + $0x96] sm:$0xff]
  %v7174 = vld [vmem:[#allocation3 + $0x9e] sm:$0xff]
  %v7175 = vld [vmem:[#allocation3 + $0xa6] sm:$0xff]
  %v7176 = vld [vmem:[#allocation3 + $0xae] sm:$0xff]
  %v7177 = vld [vmem:[#allocation3 + $0xb6] sm:$0xff]
  %v7178 = vld [vmem:[#allocation3 + $0xbe] sm:$0xff]
  %v7179 = vld [vmem:[#allocation3 + $0xc6] sm:$0xff]
  %v7180 = vpack.c.bf16 %v7169, %v7168
  %v7181 = vpack.c.bf16 %v7171, %v7170
  %v7182 = vpack.c.bf16 %v7173, %v7172
  %v7183 = vpack.c.bf16 %v7175, %v7174
  %v7184 = vpack.c.bf16 %v7177, %v7176
  %v7185 = vpack.c.bf16 %v7179, %v7178
  %v7186 = vld [vmem:[%s1179] sm:$0xf]
  %v7187 = vld [vmem:[%s1179 + $0x4] sm:$0xf]
  %v7188 = vld [vmem:[%s1179 + $0x8] sm:$0xf]
  %v7189 = vld [vmem:[%s1179 + $0xc] sm:$0xf]
  %v7190 = vld [vmem:[%s1179 + $0x10] sm:$0xf]
  %v7191 = vld [vmem:[%s1179 + $0x14] sm:$0xf]
  %v7192 = vld [vmem:[%s1179 + $0x18] sm:$0xf]
  %v7193 = vld [vmem:[%s1179 + $0x1c] sm:$0xf]
  %v7194 = vld [vmem:[%s1179 + $0x20] sm:$0xf]
  %v7195 = vld [vmem:[%s1179 + $0x24] sm:$0xf]
  %v7196 = vld [vmem:[%s1179 + $0x28] sm:$0xf]
  %v7197 = vld [vmem:[%s1179 + $0x2c] sm:$0xf]
  %v7198 = vld [vmem:[%s1179 + $0x30] sm:$0xf]
  %v7199 = vld [vmem:[%s1179 + $0x34] sm:$0xf]
  %v7200 = vld [vmem:[%s1179 + $0x38] sm:$0xf]
  %v7201 = vld [vmem:[%s1179 + $0x3c] sm:$0xf]
  %v7218 = vunpack.c.l.b16 %v7186
  %v7219 = vunpack.c.l.b16 %v7187
  %v7220 = vunpack.c.l.b16 %v7188
  %v7221 = vunpack.c.l.b16 %v7189
  %v7222 = vunpack.c.l.b16 %v7190
  %v7223 = vunpack.c.l.b16 %v7191
  %v7224 = vunpack.c.l.b16 %v7192
  %v7225 = vunpack.c.l.b16 %v7193
  %v7226 = vunpack.c.l.b16 %v7194
  %v7227 = vunpack.c.l.b16 %v7195
  %v7228 = vunpack.c.l.b16 %v7196
  %v7229 = vunpack.c.l.b16 %v7197
  %v7230 = vunpack.c.l.b16 %v7198
  %v7231 = vunpack.c.l.b16 %v7199
  %v7232 = vunpack.c.l.b16 %v7200
  %v7233 = vunpack.c.l.b16 %v7201
  %v7234 = vpack.c.b16 %v7219, %v7218
  %v7235 = vpack.c.b16 %v7221, %v7220
  %v7236 = vpack.c.b16 %v7223, %v7222
  %v7237 = vpack.c.b16 %v7225, %v7224
  %v7238 = vpack.c.b16 %v7227, %v7226
  %v7239 = vpack.c.b16 %v7229, %v7228
  %v7240 = vpack.c.b16 %v7231, %v7230
  %v7241 = vpack.c.b16 %v7233, %v7232
  %7250 = vmatpush.bf16.msra.mxu0 %v7241
  %7251 = vmatpush.bf16.msra.mxu0 %v7240
  %7252 = vmatpush.bf16.msra.mxu0 %v7239
  %7253 = vmatpush.bf16.msra.mxu0 %v7238
  %7254 = vmatpush.bf16.msra.mxu0 %v7237
  %7255 = vmatpush.bf16.msra.mxu0 %v7236
  %7256 = vmatpush.bf16.msra.mxu0 %v7235
  %7257 = vmatpush.bf16.msra.mxu0 %v7234
  %7258 = vmatmul.bf16.gmra.mxu0 %v7180
  %v7259 = vpop.f32.mrf.mxu0
  %v7260 = vadd.f32 0.0, %v7259
  %v7261 = vpop.f32.mrf.mxu0
  %v7262 = vadd.f32 0.0, %v7261
  %7263 = vmatmul.bf16.gmra.mxu0 %v7181
  %v7264 = vpop.f32.mrf.mxu0
  %v7265 = vadd.f32 0.0, %v7264
  %v7266 = vpop.f32.mrf.mxu0
  %v7267 = vadd.f32 0.0, %v7266
  %7268 = vmatmul.bf16.gmra.mxu0 %v7182
  %v7269 = vpop.f32.mrf.mxu0
  %v7270 = vadd.f32 0.0, %v7269
  %v7271 = vpop.f32.mrf.mxu0
  %v7272 = vadd.f32 0.0, %v7271
  %7273 = vmatmul.bf16.gmra.mxu0 %v7183
  %v7274 = vpop.f32.mrf.mxu0
  %v7275 = vadd.f32 0.0, %v7274
  %v7276 = vpop.f32.mrf.mxu0
  %v7277 = vadd.f32 0.0, %v7276
  %7278 = vmatmul.bf16.gmra.mxu0 %v7184
  %v7279 = vpop.f32.mrf.mxu0
  %v7280 = vadd.f32 0.0, %v7279
  %v7281 = vpop.f32.mrf.mxu0
  %v7282 = vadd.f32 0.0, %v7281
  %7283 = vmatmul.bf16.gmra.mxu0 %v7185
  %v7284 = vpop.f32.mrf.mxu0
  %v7285 = vadd.f32 0.0, %v7284
  %v7286 = vpop.f32.mrf.mxu0
  %v7287 = vadd.f32 0.0, %v7286
  %7288 = vdwg.mxu0
  %v7289 = vadd.f32 %v7156, %v7260
  %v7290 = vadd.f32 %v7157, %v7262
  %v7291 = vadd.f32 %v7158, %v7265
  %v7292 = vadd.f32 %v7159, %v7267
  %v7293 = vadd.f32 %v7160, %v7270
  %v7294 = vadd.f32 %v7161, %v7272
  %v7295 = vadd.f32 %v7162, %v7275
  %v7296 = vadd.f32 %v7163, %v7277
  %v7297 = vadd.f32 %v7164, %v7280
  %v7298 = vadd.f32 %v7165, %v7282
  %v7299 = vadd.f32 %v7166, %v7285
  %v7300 = vadd.f32 %v7167, %v7287
  %v7301 = vld [vmem:[#allocation3 + $0x6f] sm:$0xff]
  %v7302 = vld [vmem:[#allocation3 + $0x77] sm:$0xff]
  %v7303 = vld [vmem:[#allocation3 + $0x7f] sm:$0xff]
  %v7304 = vld [vmem:[#allocation3 + $0x87] sm:$0xff]
  %v7305 = vld [vmem:[#allocation3 + $0x8f] sm:$0xff]
  %v7306 = vld [vmem:[#allocation3 + $0x97] sm:$0xff]
  %v7307 = vld [vmem:[#allocation3 + $0x9f] sm:$0xff]
  %v7308 = vld [vmem:[#allocation3 + $0xa7] sm:$0xff]
  %v7309 = vld [vmem:[#allocation3 + $0xaf] sm:$0xff]
  %v7310 = vld [vmem:[#allocation3 + $0xb7] sm:$0xff]
  %v7311 = vld [vmem:[#allocation3 + $0xbf] sm:$0xff]
  %v7312 = vld [vmem:[#allocation3 + $0xc7] sm:$0xff]
  %v7313 = vpack.c.bf16 %v7302, %v7301
  %v7314 = vpack.c.bf16 %v7304, %v7303
  %v7315 = vpack.c.bf16 %v7306, %v7305
  %v7316 = vpack.c.bf16 %v7308, %v7307
  %v7317 = vpack.c.bf16 %v7310, %v7309
  %v7318 = vpack.c.bf16 %v7312, %v7311
  %v7319 = vld [vmem:[%s1313] sm:$0xf]
  %v7320 = vld [vmem:[%s1313 + $0x4] sm:$0xf]
  %v7321 = vld [vmem:[%s1313 + $0x8] sm:$0xf]
  %v7322 = vld [vmem:[%s1313 + $0xc] sm:$0xf]
  %v7323 = vld [vmem:[%s1313 + $0x10] sm:$0xf]
  %v7324 = vld [vmem:[%s1313 + $0x14] sm:$0xf]
  %v7325 = vld [vmem:[%s1313 + $0x18] sm:$0xf]
  %v7326 = vld [vmem:[%s1313 + $0x1c] sm:$0xf]
  %v7327 = vld [vmem:[%s1313 + $0x20] sm:$0xf]
  %v7328 = vld [vmem:[%s1313 + $0x24] sm:$0xf]
  %v7329 = vld [vmem:[%s1313 + $0x28] sm:$0xf]
  %v7330 = vld [vmem:[%s1313 + $0x2c] sm:$0xf]
  %v7331 = vld [vmem:[%s1313 + $0x30] sm:$0xf]
  %v7332 = vld [vmem:[%s1313 + $0x34] sm:$0xf]
  %v7333 = vld [vmem:[%s1313 + $0x38] sm:$0xf]
  %v7334 = vld [vmem:[%s1313 + $0x3c] sm:$0xf]
  %v7351 = vunpack.c.l.b16 %v7319
  %v7352 = vunpack.c.l.b16 %v7320
  %v7353 = vunpack.c.l.b16 %v7321
  %v7354 = vunpack.c.l.b16 %v7322
  %v7355 = vunpack.c.l.b16 %v7323
  %v7356 = vunpack.c.l.b16 %v7324
  %v7357 = vunpack.c.l.b16 %v7325
  %v7358 = vunpack.c.l.b16 %v7326
  %v7359 = vunpack.c.l.b16 %v7327
  %v7360 = vunpack.c.l.b16 %v7328
  %v7361 = vunpack.c.l.b16 %v7329
  %v7362 = vunpack.c.l.b16 %v7330
  %v7363 = vunpack.c.l.b16 %v7331
  %v7364 = vunpack.c.l.b16 %v7332
  %v7365 = vunpack.c.l.b16 %v7333
  %v7366 = vunpack.c.l.b16 %v7334
  %v7367 = vpack.c.b16 %v7352, %v7351
  %v7368 = vpack.c.b16 %v7354, %v7353
  %v7369 = vpack.c.b16 %v7356, %v7355
  %v7370 = vpack.c.b16 %v7358, %v7357
  %v7371 = vpack.c.b16 %v7360, %v7359
  %v7372 = vpack.c.b16 %v7362, %v7361
  %v7373 = vpack.c.b16 %v7364, %v7363
  %v7374 = vpack.c.b16 %v7366, %v7365
  %7383 = vmatpush.bf16.msra.mxu0 %v7374
  %7384 = vmatpush.bf16.msra.mxu0 %v7373
  %7385 = vmatpush.bf16.msra.mxu0 %v7372
  %7386 = vmatpush.bf16.msra.mxu0 %v7371
  %7387 = vmatpush.bf16.msra.mxu0 %v7370
  %7388 = vmatpush.bf16.msra.mxu0 %v7369
  %7389 = vmatpush.bf16.msra.mxu0 %v7368
  %7390 = vmatpush.bf16.msra.mxu0 %v7367
  %7391 = vmatmul.bf16.gmra.mxu0 %v7313
  %v7392 = vpop.f32.mrf.mxu0
  %v7393 = vadd.f32 0.0, %v7392
  %v7394 = vpop.f32.mrf.mxu0
  %v7395 = vadd.f32 0.0, %v7394
  %7396 = vmatmul.bf16.gmra.mxu0 %v7314
  %v7397 = vpop.f32.mrf.mxu0
  %v7398 = vadd.f32 0.0, %v7397
  %v7399 = vpop.f32.mrf.mxu0
  %v7400 = vadd.f32 0.0, %v7399
  %7401 = vmatmul.bf16.gmra.mxu0 %v7315
  %v7402 = vpop.f32.mrf.mxu0
  %v7403 = vadd.f32 0.0, %v7402
  %v7404 = vpop.f32.mrf.mxu0
  %v7405 = vadd.f32 0.0, %v7404
  %7406 = vmatmul.bf16.gmra.mxu0 %v7316
  %v7407 = vpop.f32.mrf.mxu0
  %v7408 = vadd.f32 0.0, %v7407
  %v7409 = vpop.f32.mrf.mxu0
  %v7410 = vadd.f32 0.0, %v7409
  %7411 = vmatmul.bf16.gmra.mxu0 %v7317
  %v7412 = vpop.f32.mrf.mxu0
  %v7413 = vadd.f32 0.0, %v7412
  %v7414 = vpop.f32.mrf.mxu0
  %v7415 = vadd.f32 0.0, %v7414
  %7416 = vmatmul.bf16.gmra.mxu0 %v7318
  %v7417 = vpop.f32.mrf.mxu0
  %v7418 = vadd.f32 0.0, %v7417
  %v7419 = vpop.f32.mrf.mxu0
  %v7420 = vadd.f32 0.0, %v7419
  %7421 = vdwg.mxu0
  %v7422 = vadd.f32 %v7289, %v7393
  %v7423 = vadd.f32 %v7290, %v7395
  %v7424 = vadd.f32 %v7291, %v7398
  %v7425 = vadd.f32 %v7292, %v7400
  %v7426 = vadd.f32 %v7293, %v7403
  %v7427 = vadd.f32 %v7294, %v7405
  %v7428 = vadd.f32 %v7295, %v7408
  %v7429 = vadd.f32 %v7296, %v7410
  %v7430 = vadd.f32 %v7297, %v7413
  %v7431 = vadd.f32 %v7298, %v7415
  %v7432 = vadd.f32 %v7299, %v7418
  %v7433 = vadd.f32 %v7300, %v7420
  %v7434 = vld [vmem:[#allocation3 + $0x70] sm:$0xff]
  %v7435 = vld [vmem:[#allocation3 + $0x78] sm:$0xff]
  %v7436 = vld [vmem:[#allocation3 + $0x80] sm:$0xff]
  %v7437 = vld [vmem:[#allocation3 + $0x88] sm:$0xff]
  %v7438 = vld [vmem:[#allocation3 + $0x90] sm:$0xff]
  %v7439 = vld [vmem:[#allocation3 + $0x98] sm:$0xff]
  %v7440 = vld [vmem:[#allocation3 + $0xa0] sm:$0xff]
  %v7441 = vld [vmem:[#allocation3 + $0xa8] sm:$0xff]
  %v7442 = vld [vmem:[#allocation3 + $0xb0] sm:$0xff]
  %v7443 = vld [vmem:[#allocation3 + $0xb8] sm:$0xff]
  %v7444 = vld [vmem:[#allocation3 + $0xc0] sm:$0xff]
  %v7445 = vld [vmem:[#allocation3 + $0xc8] sm:$0xff]
  %v7446 = vpack.c.bf16 %v7435, %v7434
  %v7447 = vpack.c.bf16 %v7437, %v7436
  %v7448 = vpack.c.bf16 %v7439, %v7438
  %v7449 = vpack.c.bf16 %v7441, %v7440
  %v7450 = vpack.c.bf16 %v7443, %v7442
  %v7451 = vpack.c.bf16 %v7445, %v7444
  %v7452 = vld [vmem:[%s1447] sm:$0xf]
  %v7453 = vld [vmem:[%s1447 + $0x4] sm:$0xf]
  %v7454 = vld [vmem:[%s1447 + $0x8] sm:$0xf]
  %v7455 = vld [vmem:[%s1447 + $0xc] sm:$0xf]
  %v7456 = vld [vmem:[%s1447 + $0x10] sm:$0xf]
  %v7457 = vld [vmem:[%s1447 + $0x14] sm:$0xf]
  %v7458 = vld [vmem:[%s1447 + $0x18] sm:$0xf]
  %v7459 = vld [vmem:[%s1447 + $0x1c] sm:$0xf]
  %v7460 = vld [vmem:[%s1447 + $0x20] sm:$0xf]
  %v7461 = vld [vmem:[%s1447 + $0x24] sm:$0xf]
  %v7462 = vld [vmem:[%s1447 + $0x28] sm:$0xf]
  %v7463 = vld [vmem:[%s1447 + $0x2c] sm:$0xf]
  %v7464 = vld [vmem:[%s1447 + $0x30] sm:$0xf]
  %v7465 = vld [vmem:[%s1447 + $0x34] sm:$0xf]
  %v7466 = vld [vmem:[%s1447 + $0x38] sm:$0xf]
  %v7467 = vld [vmem:[%s1447 + $0x3c] sm:$0xf]
  %v7484 = vunpack.c.l.b16 %v7452
  %v7485 = vunpack.c.l.b16 %v7453
  %v7486 = vunpack.c.l.b16 %v7454
  %v7487 = vunpack.c.l.b16 %v7455
  %v7488 = vunpack.c.l.b16 %v7456
  %v7489 = vunpack.c.l.b16 %v7457
  %v7490 = vunpack.c.l.b16 %v7458
  %v7491 = vunpack.c.l.b16 %v7459
  %v7492 = vunpack.c.l.b16 %v7460
  %v7493 = vunpack.c.l.b16 %v7461
  %v7494 = vunpack.c.l.b16 %v7462
  %v7495 = vunpack.c.l.b16 %v7463
  %v7496 = vunpack.c.l.b16 %v7464
  %v7497 = vunpack.c.l.b16 %v7465
  %v7498 = vunpack.c.l.b16 %v7466
  %v7499 = vunpack.c.l.b16 %v7467
  %v7500 = vpack.c.b16 %v7485, %v7484
  %v7501 = vpack.c.b16 %v7487, %v7486
  %v7502 = vpack.c.b16 %v7489, %v7488
  %v7503 = vpack.c.b16 %v7491, %v7490
  %v7504 = vpack.c.b16 %v7493, %v7492
  %v7505 = vpack.c.b16 %v7495, %v7494
  %v7506 = vpack.c.b16 %v7497, %v7496
  %v7507 = vpack.c.b16 %v7499, %v7498
  %7516 = vmatpush.bf16.msra.mxu0 %v7507
  %7517 = vmatpush.bf16.msra.mxu0 %v7506
  %7518 = vmatpush.bf16.msra.mxu0 %v7505
  %7519 = vmatpush.bf16.msra.mxu0 %v7504
  %7520 = vmatpush.bf16.msra.mxu0 %v7503
  %7521 = vmatpush.bf16.msra.mxu0 %v7502
  %7522 = vmatpush.bf16.msra.mxu0 %v7501
  %7523 = vmatpush.bf16.msra.mxu0 %v7500
  %7524 = vmatmul.bf16.gmra.mxu0 %v7446
  %v7525 = vpop.f32.mrf.mxu0
  %v7526 = vadd.f32 0.0, %v7525
  %v7527 = vpop.f32.mrf.mxu0
  %v7528 = vadd.f32 0.0, %v7527
  %7529 = vmatmul.bf16.gmra.mxu0 %v7447
  %v7530 = vpop.f32.mrf.mxu0
  %v7531 = vadd.f32 0.0, %v7530
  %v7532 = vpop.f32.mrf.mxu0
  %v7533 = vadd.f32 0.0, %v7532
  %7534 = vmatmul.bf16.gmra.mxu0 %v7448
  %v7535 = vpop.f32.mrf.mxu0
  %v7536 = vadd.f32 0.0, %v7535
  %v7537 = vpop.f32.mrf.mxu0
  %v7538 = vadd.f32 0.0, %v7537
  %7539 = vmatmul.bf16.gmra.mxu0 %v7449
  %v7540 = vpop.f32.mrf.mxu0
  %v7541 = vadd.f32 0.0, %v7540
  %v7542 = vpop.f32.mrf.mxu0
  %v7543 = vadd.f32 0.0, %v7542
  %7544 = vmatmul.bf16.gmra.mxu0 %v7450
  %v7545 = vpop.f32.mrf.mxu0
  %v7546 = vadd.f32 0.0, %v7545
  %v7547 = vpop.f32.mrf.mxu0
  %v7548 = vadd.f32 0.0, %v7547
  %7549 = vmatmul.bf16.gmra.mxu0 %v7451
  %v7550 = vpop.f32.mrf.mxu0
  %v7551 = vadd.f32 0.0, %v7550
  %v7552 = vpop.f32.mrf.mxu0
  %v7553 = vadd.f32 0.0, %v7552
  %7554 = vdwg.mxu0
  %v7555 = vadd.f32 %v7422, %v7526
  %v7556 = vadd.f32 %v7423, %v7528
  %v7557 = vadd.f32 %v7424, %v7531
  %v7558 = vadd.f32 %v7425, %v7533
  %v7559 = vadd.f32 %v7426, %v7536
  %v7560 = vadd.f32 %v7427, %v7538
  %v7561 = vadd.f32 %v7428, %v7541
  %v7562 = vadd.f32 %v7429, %v7543
  %v7563 = vadd.f32 %v7430, %v7546
  %v7564 = vadd.f32 %v7431, %v7548
  %v7565 = vadd.f32 %v7432, %v7551
  %v7566 = vadd.f32 %v7433, %v7553
  %v7567 = vld [vmem:[#allocation3 + $0x7c] sm:$0xff]
  %v7568 = vld [vmem:[#allocation3 + $0x84] sm:$0xff]
  %v7569 = vld [vmem:[#allocation3 + $0x8c] sm:$0xff]
  %v7570 = vld [vmem:[#allocation3 + $0x94] sm:$0xff]
  %v7571 = vld [vmem:[#allocation3 + $0x9c] sm:$0xff]
  %v7572 = vld [vmem:[#allocation3 + $0xa4] sm:$0xff]
  %v7573 = vld [vmem:[#allocation3 + $0xac] sm:$0xff]
  %v7574 = vld [vmem:[#allocation3 + $0xb4] sm:$0xff]
  %v7575 = vld [vmem:[#allocation3 + $0xbc] sm:$0xff]
  %v7576 = vld [vmem:[#allocation3 + $0xc4] sm:$0xff]
  %v7577 = vld [vmem:[#allocation3 + $0xcc] sm:$0xff]
  %v7578 = vld [vmem:[#allocation3 + $0xd4] sm:$0xff]
  %v7579 = vpack.c.bf16 %v7568, %v7567
  %v7580 = vpack.c.bf16 %v7570, %v7569
  %v7581 = vpack.c.bf16 %v7572, %v7571
  %v7582 = vpack.c.bf16 %v7574, %v7573
  %v7583 = vpack.c.bf16 %v7576, %v7575
  %v7584 = vpack.c.bf16 %v7578, %v7577
  %v7585 = vld [vmem:[%s1581] sm:$0xf]
  %v7586 = vld [vmem:[%s1581 + $0x4] sm:$0xf]
  %v7587 = vld [vmem:[%s1581 + $0x8] sm:$0xf]
  %v7588 = vld [vmem:[%s1581 + $0xc] sm:$0xf]
  %v7589 = vld [vmem:[%s1581 + $0x10] sm:$0xf]
  %v7590 = vld [vmem:[%s1581 + $0x14] sm:$0xf]
  %v7591 = vld [vmem:[%s1581 + $0x18] sm:$0xf]
  %v7592 = vld [vmem:[%s1581 + $0x1c] sm:$0xf]
  %v7593 = vld [vmem:[%s1581 + $0x20] sm:$0xf]
  %v7594 = vld [vmem:[%s1581 + $0x24] sm:$0xf]
  %v7595 = vld [vmem:[%s1581 + $0x28] sm:$0xf]
  %v7596 = vld [vmem:[%s1581 + $0x2c] sm:$0xf]
  %v7597 = vld [vmem:[%s1581 + $0x30] sm:$0xf]
  %v7598 = vld [vmem:[%s1581 + $0x34] sm:$0xf]
  %v7599 = vld [vmem:[%s1581 + $0x38] sm:$0xf]
  %v7600 = vld [vmem:[%s1581 + $0x3c] sm:$0xf]
  %v7617 = vunpack.c.l.b16 %v7585
  %v7618 = vunpack.c.l.b16 %v7586
  %v7619 = vunpack.c.l.b16 %v7587
  %v7620 = vunpack.c.l.b16 %v7588
  %v7621 = vunpack.c.l.b16 %v7589
  %v7622 = vunpack.c.l.b16 %v7590
  %v7623 = vunpack.c.l.b16 %v7591
  %v7624 = vunpack.c.l.b16 %v7592
  %v7625 = vunpack.c.l.b16 %v7593
  %v7626 = vunpack.c.l.b16 %v7594
  %v7627 = vunpack.c.l.b16 %v7595
  %v7628 = vunpack.c.l.b16 %v7596
  %v7629 = vunpack.c.l.b16 %v7597
  %v7630 = vunpack.c.l.b16 %v7598
  %v7631 = vunpack.c.l.b16 %v7599
  %v7632 = vunpack.c.l.b16 %v7600
  %v7633 = vpack.c.b16 %v7618, %v7617
  %v7634 = vpack.c.b16 %v7620, %v7619
  %v7635 = vpack.c.b16 %v7622, %v7621
  %v7636 = vpack.c.b16 %v7624, %v7623
  %v7637 = vpack.c.b16 %v7626, %v7625
  %v7638 = vpack.c.b16 %v7628, %v7627
  %v7639 = vpack.c.b16 %v7630, %v7629
  %v7640 = vpack.c.b16 %v7632, %v7631
  %7649 = vmatpush.bf16.msra.mxu0 %v7640
  %7650 = vmatpush.bf16.msra.mxu0 %v7639
  %7651 = vmatpush.bf16.msra.mxu0 %v7638
  %7652 = vmatpush.bf16.msra.mxu0 %v7637
  %7653 = vmatpush.bf16.msra.mxu0 %v7636
  %7654 = vmatpush.bf16.msra.mxu0 %v7635
  %7655 = vmatpush.bf16.msra.mxu0 %v7634
  %7656 = vmatpush.bf16.msra.mxu0 %v7633
  %7657 = vmatmul.bf16.gmra.mxu0 %v7579
  %v7658 = vpop.f32.mrf.mxu0
  %v7659 = vadd.f32 0.0, %v7658
  %v7660 = vpop.f32.mrf.mxu0
  %v7661 = vadd.f32 0.0, %v7660
  %7662 = vmatmul.bf16.gmra.mxu0 %v7580
  %v7663 = vpop.f32.mrf.mxu0
  %v7664 = vadd.f32 0.0, %v7663
  %v7665 = vpop.f32.mrf.mxu0
  %v7666 = vadd.f32 0.0, %v7665
  %7667 = vmatmul.bf16.gmra.mxu0 %v7581
  %v7668 = vpop.f32.mrf.mxu0
  %v7669 = vadd.f32 0.0, %v7668
  %v7670 = vpop.f32.mrf.mxu0
  %v7671 = vadd.f32 0.0, %v7670
  %7672 = vmatmul.bf16.gmra.mxu0 %v7582
  %v7673 = vpop.f32.mrf.mxu0
  %v7674 = vadd.f32 0.0, %v7673
  %v7675 = vpop.f32.mrf.mxu0
  %v7676 = vadd.f32 0.0, %v7675
  %7677 = vmatmul.bf16.gmra.mxu0 %v7583
  %v7678 = vpop.f32.mrf.mxu0
  %v7679 = vadd.f32 0.0, %v7678
  %v7680 = vpop.f32.mrf.mxu0
  %v7681 = vadd.f32 0.0, %v7680
  %7682 = vmatmul.bf16.gmra.mxu0 %v7584
  %v7683 = vpop.f32.mrf.mxu0
  %v7684 = vadd.f32 0.0, %v7683
  %v7685 = vpop.f32.mrf.mxu0
  %v7686 = vadd.f32 0.0, %v7685
  %7687 = vdwg.mxu0
  %v7688 = vadd.f32 %v7555, %v7659
  %v7689 = vadd.f32 %v7556, %v7661
  %v7690 = vadd.f32 %v7557, %v7664
  %v7691 = vadd.f32 %v7558, %v7666
  %v7692 = vadd.f32 %v7559, %v7669
  %v7693 = vadd.f32 %v7560, %v7671
  %v7694 = vadd.f32 %v7561, %v7674
  %v7695 = vadd.f32 %v7562, %v7676
  %v7696 = vadd.f32 %v7563, %v7679
  %v7697 = vadd.f32 %v7564, %v7681
  %v7698 = vadd.f32 %v7565, %v7684
  %v7699 = vadd.f32 %v7566, %v7686
  %v7700 = vld [vmem:[#allocation3 + $0x7d] sm:$0xff]
  %v7701 = vld [vmem:[#allocation3 + $0x85] sm:$0xff]
  %v7702 = vld [vmem:[#allocation3 + $0x8d] sm:$0xff]
  %v7703 = vld [vmem:[#allocation3 + $0x95] sm:$0xff]
  %v7704 = vld [vmem:[#allocation3 + $0x9d] sm:$0xff]
  %v7705 = vld [vmem:[#allocation3 + $0xa5] sm:$0xff]
  %v7706 = vld [vmem:[#allocation3 + $0xad] sm:$0xff]
  %v7707 = vld [vmem:[#allocation3 + $0xb5] sm:$0xff]
  %v7708 = vld [vmem:[#allocation3 + $0xbd] sm:$0xff]
  %v7709 = vld [vmem:[#allocation3 + $0xc5] sm:$0xff]
  %v7710 = vld [vmem:[#allocation3 + $0xcd] sm:$0xff]
  %v7711 = vld [vmem:[#allocation3 + $0xd5] sm:$0xff]
  %v7712 = vpack.c.bf16 %v7701, %v7700
  %v7713 = vpack.c.bf16 %v7703, %v7702
  %v7714 = vpack.c.bf16 %v7705, %v7704
  %v7715 = vpack.c.bf16 %v7707, %v7706
  %v7716 = vpack.c.bf16 %v7709, %v7708
  %v7717 = vpack.c.bf16 %v7711, %v7710
  %v7718 = vld [vmem:[%s1715] sm:$0xf]
  %v7719 = vld [vmem:[%s1715 + $0x4] sm:$0xf]
  %v7720 = vld [vmem:[%s1715 + $0x8] sm:$0xf]
  %v7721 = vld [vmem:[%s1715 + $0xc] sm:$0xf]
  %v7722 = vld [vmem:[%s1715 + $0x10] sm:$0xf]
  %v7723 = vld [vmem:[%s1715 + $0x14] sm:$0xf]
  %v7724 = vld [vmem:[%s1715 + $0x18] sm:$0xf]
  %v7725 = vld [vmem:[%s1715 + $0x1c] sm:$0xf]
  %v7726 = vld [vmem:[%s1715 + $0x20] sm:$0xf]
  %v7727 = vld [vmem:[%s1715 + $0x24] sm:$0xf]
  %v7728 = vld [vmem:[%s1715 + $0x28] sm:$0xf]
  %v7729 = vld [vmem:[%s1715 + $0x2c] sm:$0xf]
  %v7730 = vld [vmem:[%s1715 + $0x30] sm:$0xf]
  %v7731 = vld [vmem:[%s1715 + $0x34] sm:$0xf]
  %v7732 = vld [vmem:[%s1715 + $0x38] sm:$0xf]
  %v7733 = vld [vmem:[%s1715 + $0x3c] sm:$0xf]
  %v7750 = vunpack.c.l.b16 %v7718
  %v7751 = vunpack.c.l.b16 %v7719
  %v7752 = vunpack.c.l.b16 %v7720
  %v7753 = vunpack.c.l.b16 %v7721
  %v7754 = vunpack.c.l.b16 %v7722
  %v7755 = vunpack.c.l.b16 %v7723
  %v7756 = vunpack.c.l.b16 %v7724
  %v7757 = vunpack.c.l.b16 %v7725
  %v7758 = vunpack.c.l.b16 %v7726
  %v7759 = vunpack.c.l.b16 %v7727
  %v7760 = vunpack.c.l.b16 %v7728
  %v7761 = vunpack.c.l.b16 %v7729
  %v7762 = vunpack.c.l.b16 %v7730
  %v7763 = vunpack.c.l.b16 %v7731
  %v7764 = vunpack.c.l.b16 %v7732
  %v7765 = vunpack.c.l.b16 %v7733
  %v7766 = vpack.c.b16 %v7751, %v7750
  %v7767 = vpack.c.b16 %v7753, %v7752
  %v7768 = vpack.c.b16 %v7755, %v7754
  %v7769 = vpack.c.b16 %v7757, %v7756
  %v7770 = vpack.c.b16 %v7759, %v7758
  %v7771 = vpack.c.b16 %v7761, %v7760
  %v7772 = vpack.c.b16 %v7763, %v7762
  %v7773 = vpack.c.b16 %v7765, %v7764
  %7782 = vmatpush.bf16.msra.mxu0 %v7773
  %7783 = vmatpush.bf16.msra.mxu0 %v7772
  %7784 = vmatpush.bf16.msra.mxu0 %v7771
  %7785 = vmatpush.bf16.msra.mxu0 %v7770
  %7786 = vmatpush.bf16.msra.mxu0 %v7769
  %7787 = vmatpush.bf16.msra.mxu0 %v7768
  %7788 = vmatpush.bf16.msra.mxu0 %v7767
  %7789 = vmatpush.bf16.msra.mxu0 %v7766
  %7790 = vmatmul.bf16.gmra.mxu0 %v7712
  %v7791 = vpop.f32.mrf.mxu0
  %v7792 = vadd.f32 0.0, %v7791
  %v7793 = vpop.f32.mrf.mxu0
  %v7794 = vadd.f32 0.0, %v7793
  %7795 = vmatmul.bf16.gmra.mxu0 %v7713
  %v7796 = vpop.f32.mrf.mxu0
  %v7797 = vadd.f32 0.0, %v7796
  %v7798 = vpop.f32.mrf.mxu0
  %v7799 = vadd.f32 0.0, %v7798
  %7800 = vmatmul.bf16.gmra.mxu0 %v7714
  %v7801 = vpop.f32.mrf.mxu0
  %v7802 = vadd.f32 0.0, %v7801
  %v7803 = vpop.f32.mrf.mxu0
  %v7804 = vadd.f32 0.0, %v7803
  %7805 = vmatmul.bf16.gmra.mxu0 %v7715
  %v7806 = vpop.f32.mrf.mxu0
  %v7807 = vadd.f32 0.0, %v7806
  %v7808 = vpop.f32.mrf.mxu0
  %v7809 = vadd.f32 0.0, %v7808
  %7810 = vmatmul.bf16.gmra.mxu0 %v7716
  %v7811 = vpop.f32.mrf.mxu0
  %v7812 = vadd.f32 0.0, %v7811
  %v7813 = vpop.f32.mrf.mxu0
  %v7814 = vadd.f32 0.0, %v7813
  %7815 = vmatmul.bf16.gmra.mxu0 %v7717
  %v7816 = vpop.f32.mrf.mxu0
  %v7817 = vadd.f32 0.0, %v7816
  %v7818 = vpop.f32.mrf.mxu0
  %v7819 = vadd.f32 0.0, %v7818
  %7820 = vdwg.mxu0
  %v7821 = vadd.f32 %v7688, %v7792
  %v7822 = vadd.f32 %v7689, %v7794
  %v7823 = vadd.f32 %v7690, %v7797
  %v7824 = vadd.f32 %v7691, %v7799
  %v7825 = vadd.f32 %v7692, %v7802
  %v7826 = vadd.f32 %v7693, %v7804
  %v7827 = vadd.f32 %v7694, %v7807
  %v7828 = vadd.f32 %v7695, %v7809
  %v7829 = vadd.f32 %v7696, %v7812
  %v7830 = vadd.f32 %v7697, %v7814
  %v7831 = vadd.f32 %v7698, %v7817
  %v7832 = vadd.f32 %v7699, %v7819
  %v7833 = vld [vmem:[#allocation3 + $0x7e] sm:$0xff]
  %v7834 = vld [vmem:[#allocation3 + $0x86] sm:$0xff]
  %v7835 = vld [vmem:[#allocation3 + $0x8e] sm:$0xff]
  %v7836 = vld [vmem:[#allocation3 + $0x96] sm:$0xff]
  %v7837 = vld [vmem:[#allocation3 + $0x9e] sm:$0xff]
  %v7838 = vld [vmem:[#allocation3 + $0xa6] sm:$0xff]
  %v7839 = vld [vmem:[#allocation3 + $0xae] sm:$0xff]
  %v7840 = vld [vmem:[#allocation3 + $0xb6] sm:$0xff]
  %v7841 = vld [vmem:[#allocation3 + $0xbe] sm:$0xff]
  %v7842 = vld [vmem:[#allocation3 + $0xc6] sm:$0xff]
  %v7843 = vld [vmem:[#allocation3 + $0xce] sm:$0xff]
  %v7844 = vld [vmem:[#allocation3 + $0xd6] sm:$0xff]
  %v7845 = vpack.c.bf16 %v7834, %v7833
  %v7846 = vpack.c.bf16 %v7836, %v7835
  %v7847 = vpack.c.bf16 %v7838, %v7837
  %v7848 = vpack.c.bf16 %v7840, %v7839
  %v7849 = vpack.c.bf16 %v7842, %v7841
  %v7850 = vpack.c.bf16 %v7844, %v7843
  %v7851 = vld [vmem:[%s1849] sm:$0xf]
  %v7852 = vld [vmem:[%s1849 + $0x4] sm:$0xf]
  %v7853 = vld [vmem:[%s1849 + $0x8] sm:$0xf]
  %v7854 = vld [vmem:[%s1849 + $0xc] sm:$0xf]
  %v7855 = vld [vmem:[%s1849 + $0x10] sm:$0xf]
  %v7856 = vld [vmem:[%s1849 + $0x14] sm:$0xf]
  %v7857 = vld [vmem:[%s1849 + $0x18] sm:$0xf]
  %v7858 = vld [vmem:[%s1849 + $0x1c] sm:$0xf]
  %v7859 = vld [vmem:[%s1849 + $0x20] sm:$0xf]
  %v7860 = vld [vmem:[%s1849 + $0x24] sm:$0xf]
  %v7861 = vld [vmem:[%s1849 + $0x28] sm:$0xf]
  %v7862 = vld [vmem:[%s1849 + $0x2c] sm:$0xf]
  %v7863 = vld [vmem:[%s1849 + $0x30] sm:$0xf]
  %v7864 = vld [vmem:[%s1849 + $0x34] sm:$0xf]
  %v7865 = vld [vmem:[%s1849 + $0x38] sm:$0xf]
  %v7866 = vld [vmem:[%s1849 + $0x3c] sm:$0xf]
  %v7883 = vunpack.c.l.b16 %v7851
  %v7884 = vunpack.c.l.b16 %v7852
  %v7885 = vunpack.c.l.b16 %v7853
  %v7886 = vunpack.c.l.b16 %v7854
  %v7887 = vunpack.c.l.b16 %v7855
  %v7888 = vunpack.c.l.b16 %v7856
  %v7889 = vunpack.c.l.b16 %v7857
  %v7890 = vunpack.c.l.b16 %v7858
  %v7891 = vunpack.c.l.b16 %v7859
  %v7892 = vunpack.c.l.b16 %v7860
  %v7893 = vunpack.c.l.b16 %v7861
  %v7894 = vunpack.c.l.b16 %v7862
  %v7895 = vunpack.c.l.b16 %v7863
  %v7896 = vunpack.c.l.b16 %v7864
  %v7897 = vunpack.c.l.b16 %v7865
  %v7898 = vunpack.c.l.b16 %v7866
  %v7899 = vpack.c.b16 %v7884, %v7883
  %v7900 = vpack.c.b16 %v7886, %v7885
  %v7901 = vpack.c.b16 %v7888, %v7887
  %v7902 = vpack.c.b16 %v7890, %v7889
  %v7903 = vpack.c.b16 %v7892, %v7891
  %v7904 = vpack.c.b16 %v7894, %v7893
  %v7905 = vpack.c.b16 %v7896, %v7895
  %v7906 = vpack.c.b16 %v7898, %v7897
  %7915 = vmatpush.bf16.msra.mxu0 %v7906
  %7916 = vmatpush.bf16.msra.mxu0 %v7905
  %7917 = vmatpush.bf16.msra.mxu0 %v7904
  %7918 = vmatpush.bf16.msra.mxu0 %v7903
  %7919 = vmatpush.bf16.msra.mxu0 %v7902
  %7920 = vmatpush.bf16.msra.mxu0 %v7901
  %7921 = vmatpush.bf16.msra.mxu0 %v7900
  %7922 = vmatpush.bf16.msra.mxu0 %v7899
  %7923 = vmatmul.bf16.gmra.mxu0 %v7845
  %v7924 = vpop.f32.mrf.mxu0
  %v7925 = vadd.f32 0.0, %v7924
  %v7926 = vpop.f32.mrf.mxu0
  %v7927 = vadd.f32 0.0, %v7926
  %7928 = vmatmul.bf16.gmra.mxu0 %v7846
  %v7929 = vpop.f32.mrf.mxu0
  %v7930 = vadd.f32 0.0, %v7929
  %v7931 = vpop.f32.mrf.mxu0
  %v7932 = vadd.f32 0.0, %v7931
  %7933 = vmatmul.bf16.gmra.mxu0 %v7847
  %v7934 = vpop.f32.mrf.mxu0
  %v7935 = vadd.f32 0.0, %v7934
  %v7936 = vpop.f32.mrf.mxu0
  %v7937 = vadd.f32 0.0, %v7936
  %7938 = vmatmul.bf16.gmra.mxu0 %v7848
  %v7939 = vpop.f32.mrf.mxu0
  %v7940 = vadd.f32 0.0, %v7939
  %v7941 = vpop.f32.mrf.mxu0
  %v7942 = vadd.f32 0.0, %v7941
  %7943 = vmatmul.bf16.gmra.mxu0 %v7849
  %v7944 = vpop.f32.mrf.mxu0
  %v7945 = vadd.f32 0.0, %v7944
  %v7946 = vpop.f32.mrf.mxu0
  %v7947 = vadd.f32 0.0, %v7946
  %7948 = vmatmul.bf16.gmra.mxu0 %v7850
  %v7949 = vpop.f32.mrf.mxu0
  %v7950 = vadd.f32 0.0, %v7949
  %v7951 = vpop.f32.mrf.mxu0
  %v7952 = vadd.f32 0.0, %v7951
  %7953 = vdwg.mxu0
  %v7954 = vadd.f32 %v7821, %v7925
  %v7955 = vadd.f32 %v7822, %v7927
  %v7956 = vadd.f32 %v7823, %v7930
  %v7957 = vadd.f32 %v7824, %v7932
  %v7958 = vadd.f32 %v7825, %v7935
  %v7959 = vadd.f32 %v7826, %v7937
  %v7960 = vadd.f32 %v7827, %v7940
  %v7961 = vadd.f32 %v7828, %v7942
  %v7962 = vadd.f32 %v7829, %v7945
  %v7963 = vadd.f32 %v7830, %v7947
  %v7964 = vadd.f32 %v7831, %v7950
  %v7965 = vadd.f32 %v7832, %v7952
  %v7966 = vadd.f32 %v7954, %v1966
  %v7967 = vadd.f32 %v7955, %v1966
  %v7968 = vadd.f32 %v7956, %v1966
  %v7969 = vadd.f32 %v7957, %v1966
  %v7970 = vadd.f32 %v7958, %v1966
  %v7971 = vadd.f32 %v7959, %v1966
  %v7972 = vadd.f32 %v7960, %v1966
  %v7973 = vadd.f32 %v7961, %v1966
  %v7974 = vadd.f32 %v7962, %v1966
  %v7975 = vadd.f32 %v7963, %v1966
  %v7976 = vadd.f32 %v7964, %v1966
  %v7977 = vadd.f32 %v7965, %v1966
  %7978 = vst [vmem:[#allocation4 + $0x60] sm:$0xff] %v7966
  %7979 = vst [vmem:[#allocation4 + $0x68] sm:$0xff] %v7967
  %7980 = vst [vmem:[#allocation4 + $0x70] sm:$0xff] %v7968
  %7981 = vst [vmem:[#allocation4 + $0x78] sm:$0xff] %v7969
  %7982 = vst [vmem:[#allocation4 + $0x80] sm:$0xff] %v7970
  %7983 = vst [vmem:[#allocation4 + $0x88] sm:$0xff] %v7971
  %7984 = vst [vmem:[#allocation4 + $0x90] sm:$0xff] %v7972
  %7985 = vst [vmem:[#allocation4 + $0x98] sm:$0xff] %v7973
  %7986 = vst [vmem:[#allocation4 + $0xa0] sm:$0xff] %v7974
  %7987 = vst [vmem:[#allocation4 + $0xa8] sm:$0xff] %v7975
  %7988 = vst [vmem:[#allocation4 + $0xb0] sm:$0xff] %v7976
  %7989 = vst [vmem:[#allocation4 + $0xb8] sm:$0xff] %v7977
  %v7990 = vld [vmem:[#allocation4] ss:$2 sm:$0x1f]
  %v7991 = vld [vmem:[%s3190] ss:$2 sm:$0x1f]
  %v7992 = vmax.f32 %v7990, %v7991
  %v7993 = vld [vmem:[%s3193] ss:$2 sm:$0x1f]
  %v7994 = vld [vmem:[%s3195] ss:$2 sm:$0x1f]
  %v7995 = vmax.f32 %v7993, %v7994
  %v7996 = vmax.f32 %v7992, %v7995
  %v7997 = vmax.f32 %v7996, 0.0
  %7998 = vst [vmem:[#allocation5 + $0x16] sm:$0x1f] %v7997
  %v7999 = vld [vmem:[%s3201] ss:$2 sm:$0x1f]
  %v8000 = vld [vmem:[%s3203] ss:$2 sm:$0x1f]
  %v8001 = vmax.f32 %v7999, %v8000
  %v8002 = vld [vmem:[%s3206] ss:$2 sm:$0x1f]
  %v8003 = vld [vmem:[%s3208] ss:$2 sm:$0x1f]
  %v8004 = vmax.f32 %v8002, %v8003
  %v8005 = vmax.f32 %v8001, %v8004
  %v8006 = vmax.f32 %v8005, 0.0
  %8007 = vst [vmem:[#allocation5 + $0x20] sm:$0x1f] %v8006
  %v8008 = vld [vmem:[%s3214] ss:$2 sm:$0x1f]
  %v8009 = vld [vmem:[%s3216] ss:$2 sm:$0x1f]
  %v8010 = vmax.f32 %v8008, %v8009
  %v8011 = vld [vmem:[%s3219] ss:$2 sm:$0x1f]
  %v8012 = vld [vmem:[%s3221] ss:$2 sm:$0x1f]
  %v8013 = vmax.f32 %v8011, %v8012
  %v8014 = vmax.f32 %v8010, %v8013
  %v8015 = vmax.f32 %v8014, 0.0
  %8016 = vst [vmem:[#allocation5 + $0x2a] sm:$0x1f] %v8015
  %v8017 = vld [vmem:[%s3227] ss:$2 sm:$0x1f]
  %v8018 = vld [vmem:[%s3229] ss:$2 sm:$0x1f]
  %v8019 = vmax.f32 %v8017, %v8018
  %v8020 = vld [vmem:[%s3232] ss:$2 sm:$0x1f]
  %v8021 = vld [vmem:[%s3234] ss:$2 sm:$0x1f]
  %v8022 = vmax.f32 %v8020, %v8021
  %v8023 = vmax.f32 %v8019, %v8022
  %v8024 = vmax.f32 %v8023, 0.0
  %8025 = vst [vmem:[#allocation5 + $0x34] sm:$0x1f] %v8024
  %v8026 = vld [vmem:[%s3240] ss:$2 sm:$0x1f]
  %v8027 = vld [vmem:[%s3242] ss:$2 sm:$0x1f]
  %v8028 = vmax.f32 %v8026, %v8027
  %v8029 = vld [vmem:[%s3245] ss:$2 sm:$0x1f]
  %v8030 = vld [vmem:[%s3247] ss:$2 sm:$0x1f]
  %v8031 = vmax.f32 %v8029, %v8030
  %v8032 = vmax.f32 %v8028, %v8031
  %v8033 = vmax.f32 %v8032, 0.0
  %8034 = vst [vmem:[#allocation5 + $0x3e] sm:$0x1f] %v8033
  %v8035 = vld [vmem:[#allocation5] sm:$0xff]
  %v8036 = vld [vmem:[#allocation5 + $0x8] sm:$0xff]
  %v8037 = vld [vmem:[#allocation5 + $0x10] sm:$0xff]
  %v8038 = vld [vmem:[#allocation5 + $0x18] sm:$0xff]
  %v8039 = vld [vmem:[#allocation5 + $0x20] sm:$0xff]
  %v8040 = vld [vmem:[#allocation5 + $0x28] sm:$0xff]
  %v8041 = vld [vmem:[#allocation5 + $0x30] sm:$0xff]
  %v8042 = vld [vmem:[#allocation5 + $0x38] sm:$0xff]
  %v8043 = vld [vmem:[#allocation5 + $0x40] sm:$0xff]
  %v8044 = vld [vmem:[#allocation5 + $0x48] sm:$0xff]
  %v8045 = vld [vmem:[#allocation5 + $0x50] sm:$0xff]
  %v8046 = vld [vmem:[#allocation5 + $0x58] sm:$0xff]
  %v8047 = vpack.c.bf16 %v8036, %v8035
  %v8048 = vpack.c.bf16 %v8038, %v8037
  %v8049 = vpack.c.bf16 %v8040, %v8039
  %v8050 = vpack.c.bf16 %v8042, %v8041
  %v8051 = vpack.c.bf16 %v8044, %v8043
  %v8052 = vpack.c.bf16 %v8046, %v8045
  %v8053 = vld [vmem:[%s5] sm:$0xf]
  %v8054 = vld [vmem:[%s5 + $0x4] sm:$0xf]
  %v8055 = vld [vmem:[%s5 + $0x8] sm:$0xf]
  %v8056 = vld [vmem:[%s5 + $0xc] sm:$0xf]
  %v8057 = vld [vmem:[%s5 + $0x10] sm:$0xf]
  %v8058 = vld [vmem:[%s5 + $0x14] sm:$0xf]
  %v8059 = vld [vmem:[%s5 + $0x18] sm:$0xf]
  %v8060 = vld [vmem:[%s5 + $0x1c] sm:$0xf]
  %v8061 = vld [vmem:[%s5 + $0x20] sm:$0xf]
  %v8062 = vld [vmem:[%s5 + $0x24] sm:$0xf]
  %v8063 = vld [vmem:[%s5 + $0x28] sm:$0xf]
  %v8064 = vld [vmem:[%s5 + $0x2c] sm:$0xf]
  %v8065 = vld [vmem:[%s5 + $0x30] sm:$0xf]
  %v8066 = vld [vmem:[%s5 + $0x34] sm:$0xf]
  %v8067 = vld [vmem:[%s5 + $0x38] sm:$0xf]
  %v8068 = vld [vmem:[%s5 + $0x3c] sm:$0xf]
  %v8069 = vld [vmem:[#allocation5 + $0x1] sm:$0xff]
  %v8070 = vld [vmem:[#allocation5 + $0x9] sm:$0xff]
  %v8071 = vld [vmem:[#allocation5 + $0x11] sm:$0xff]
  %v8072 = vld [vmem:[#allocation5 + $0x19] sm:$0xff]
  %v8073 = vld [vmem:[#allocation5 + $0x21] sm:$0xff]
  %v8074 = vld [vmem:[#allocation5 + $0x29] sm:$0xff]
  %v8075 = vld [vmem:[#allocation5 + $0x31] sm:$0xff]
  %v8076 = vld [vmem:[#allocation5 + $0x39] sm:$0xff]
  %v8077 = vld [vmem:[#allocation5 + $0x41] sm:$0xff]
  %v8078 = vld [vmem:[#allocation5 + $0x49] sm:$0xff]
  %v8079 = vld [vmem:[#allocation5 + $0x51] sm:$0xff]
  %v8080 = vld [vmem:[#allocation5 + $0x59] sm:$0xff]
  %v8081 = vpack.c.bf16 %v8070, %v8069
  %v8082 = vpack.c.bf16 %v8072, %v8071
  %v8083 = vpack.c.bf16 %v8074, %v8073
  %v8084 = vpack.c.bf16 %v8076, %v8075
  %v8085 = vpack.c.bf16 %v8078, %v8077
  %v8086 = vpack.c.bf16 %v8080, %v8079
  %v8087 = vld [vmem:[%s3305] sm:$0xf]
  %v8088 = vld [vmem:[%s3305 + $0x4] sm:$0xf]
  %v8089 = vld [vmem:[%s3305 + $0x8] sm:$0xf]
  %v8090 = vld [vmem:[%s3305 + $0xc] sm:$0xf]
  %v8091 = vld [vmem:[%s3305 + $0x10] sm:$0xf]
  %v8092 = vld [vmem:[%s3305 + $0x14] sm:$0xf]
  %v8093 = vld [vmem:[%s3305 + $0x18] sm:$0xf]
  %v8094 = vld [vmem:[%s3305 + $0x1c] sm:$0xf]
  %v8095 = vld [vmem:[%s3305 + $0x20] sm:$0xf]
  %v8096 = vld [vmem:[%s3305 + $0x24] sm:$0xf]
  %v8097 = vld [vmem:[%s3305 + $0x28] sm:$0xf]
  %v8098 = vld [vmem:[%s3305 + $0x2c] sm:$0xf]
  %v8099 = vld [vmem:[%s3305 + $0x30] sm:$0xf]
  %v8100 = vld [vmem:[%s3305 + $0x34] sm:$0xf]
  %v8101 = vld [vmem:[%s3305 + $0x38] sm:$0xf]
  %v8102 = vld [vmem:[%s3305 + $0x3c] sm:$0xf]
  %v8119 = vunpack.c.l.b16 %v8087
  %v8120 = vunpack.c.l.b16 %v8088
  %v8121 = vunpack.c.l.b16 %v8089
  %v8122 = vunpack.c.l.b16 %v8090
  %v8123 = vunpack.c.l.b16 %v8091
  %v8124 = vunpack.c.l.b16 %v8092
  %v8125 = vunpack.c.l.b16 %v8093
  %v8126 = vunpack.c.l.b16 %v8094
  %v8127 = vunpack.c.l.b16 %v8095
  %v8128 = vunpack.c.l.b16 %v8096
  %v8129 = vunpack.c.l.b16 %v8097
  %v8130 = vunpack.c.l.b16 %v8098
  %v8131 = vunpack.c.l.b16 %v8099
  %v8132 = vunpack.c.l.b16 %v8100
  %v8133 = vunpack.c.l.b16 %v8101
  %v8134 = vunpack.c.l.b16 %v8102
  %v8135 = vpack.c.b16 %v8120, %v8119
  %v8136 = vpack.c.b16 %v8122, %v8121
  %v8137 = vpack.c.b16 %v8124, %v8123
  %v8138 = vpack.c.b16 %v8126, %v8125
  %v8139 = vpack.c.b16 %v8128, %v8127
  %v8140 = vpack.c.b16 %v8130, %v8129
  %v8141 = vpack.c.b16 %v8132, %v8131
  %v8142 = vpack.c.b16 %v8134, %v8133
  %8151 = vmatpush.bf16.msra.mxu0 %v8142
  %8152 = vmatpush.bf16.msra.mxu0 %v8141
  %8153 = vmatpush.bf16.msra.mxu0 %v8140
  %8154 = vmatpush.bf16.msra.mxu0 %v8139
  %8155 = vmatpush.bf16.msra.mxu0 %v8138
  %8156 = vmatpush.bf16.msra.mxu0 %v8137
  %8157 = vmatpush.bf16.msra.mxu0 %v8136
  %8158 = vmatpush.bf16.msra.mxu0 %v8135
  %8159 = vmatmul.bf16.gmra.mxu0 %v8081
  %v8160 = vpop.f32.mrf.mxu0
  %v8161 = vadd.f32 0.0, %v8160
  %v8162 = vpop.f32.mrf.mxu0
  %v8163 = vadd.f32 0.0, %v8162
  %8164 = vmatmul.bf16.gmra.mxu0 %v8082
  %v8165 = vpop.f32.mrf.mxu0
  %v8166 = vadd.f32 0.0, %v8165
  %v8167 = vpop.f32.mrf.mxu0
  %v8168 = vadd.f32 0.0, %v8167
  %8169 = vmatmul.bf16.gmra.mxu0 %v8083
  %v8170 = vpop.f32.mrf.mxu0
  %v8171 = vadd.f32 0.0, %v8170
  %v8172 = vpop.f32.mrf.mxu0
  %v8173 = vadd.f32 0.0, %v8172
  %8174 = vmatmul.bf16.gmra.mxu0 %v8084
  %v8175 = vpop.f32.mrf.mxu0
  %v8176 = vadd.f32 0.0, %v8175
  %v8177 = vpop.f32.mrf.mxu0
  %v8178 = vadd.f32 0.0, %v8177
  %8179 = vmatmul.bf16.gmra.mxu0 %v8085
  %v8180 = vpop.f32.mrf.mxu0
  %v8181 = vadd.f32 0.0, %v8180
  %v8182 = vpop.f32.mrf.mxu0
  %v8183 = vadd.f32 0.0, %v8182
  %8184 = vmatmul.bf16.gmra.mxu0 %v8086
  %v8185 = vpop.f32.mrf.mxu0
  %v8186 = vadd.f32 0.0, %v8185
  %v8187 = vpop.f32.mrf.mxu0
  %v8188 = vadd.f32 0.0, %v8187
  %8189 = vdwg.mxu0
  %v8206 = vunpack.c.l.b16 %v8053
  %v8207 = vunpack.c.l.b16 %v8054
  %v8208 = vunpack.c.l.b16 %v8055
  %v8209 = vunpack.c.l.b16 %v8056
  %v8210 = vunpack.c.l.b16 %v8057
  %v8211 = vunpack.c.l.b16 %v8058
  %v8212 = vunpack.c.l.b16 %v8059
  %v8213 = vunpack.c.l.b16 %v8060
  %v8214 = vunpack.c.l.b16 %v8061
  %v8215 = vunpack.c.l.b16 %v8062
  %v8216 = vunpack.c.l.b16 %v8063
  %v8217 = vunpack.c.l.b16 %v8064
  %v8218 = vunpack.c.l.b16 %v8065
  %v8219 = vunpack.c.l.b16 %v8066
  %v8220 = vunpack.c.l.b16 %v8067
  %v8221 = vunpack.c.l.b16 %v8068
  %v8222 = vpack.c.b16 %v8207, %v8206
  %v8223 = vpack.c.b16 %v8209, %v8208
  %v8224 = vpack.c.b16 %v8211, %v8210
  %v8225 = vpack.c.b16 %v8213, %v8212
  %v8226 = vpack.c.b16 %v8215, %v8214
  %v8227 = vpack.c.b16 %v8217, %v8216
  %v8228 = vpack.c.b16 %v8219, %v8218
  %v8229 = vpack.c.b16 %v8221, %v8220
  %8238 = vmatpush.bf16.msra.mxu0 %v8229
  %8239 = vmatpush.bf16.msra.mxu0 %v8228
  %8240 = vmatpush.bf16.msra.mxu0 %v8227
  %8241 = vmatpush.bf16.msra.mxu0 %v8226
  %8242 = vmatpush.bf16.msra.mxu0 %v8225
  %8243 = vmatpush.bf16.msra.mxu0 %v8224
  %8244 = vmatpush.bf16.msra.mxu0 %v8223
  %8245 = vmatpush.bf16.msra.mxu0 %v8222
  %8246 = vmatmul.bf16.gmra.mxu0 %v8047
  %v8247 = vpop.f32.mrf.mxu0
  %v8248 = vadd.f32 %v8161, %v8247
  %v8249 = vpop.f32.mrf.mxu0
  %v8250 = vadd.f32 %v8163, %v8249
  %8251 = vmatmul.bf16.gmra.mxu0 %v8048
  %v8252 = vpop.f32.mrf.mxu0
  %v8253 = vadd.f32 %v8166, %v8252
  %v8254 = vpop.f32.mrf.mxu0
  %v8255 = vadd.f32 %v8168, %v8254
  %8256 = vmatmul.bf16.gmra.mxu0 %v8049
  %v8257 = vpop.f32.mrf.mxu0
  %v8258 = vadd.f32 %v8171, %v8257
  %v8259 = vpop.f32.mrf.mxu0
  %v8260 = vadd.f32 %v8173, %v8259
  %8261 = vmatmul.bf16.gmra.mxu0 %v8050
  %v8262 = vpop.f32.mrf.mxu0
  %v8263 = vadd.f32 %v8176, %v8262
  %v8264 = vpop.f32.mrf.mxu0
  %v8265 = vadd.f32 %v8178, %v8264
  %8266 = vmatmul.bf16.gmra.mxu0 %v8051
  %v8267 = vpop.f32.mrf.mxu0
  %v8268 = vadd.f32 %v8181, %v8267
  %v8269 = vpop.f32.mrf.mxu0
  %v8270 = vadd.f32 %v8183, %v8269
  %8271 = vmatmul.bf16.gmra.mxu0 %v8052
  %v8272 = vpop.f32.mrf.mxu0
  %v8273 = vadd.f32 %v8186, %v8272
  %v8274 = vpop.f32.mrf.mxu0
  %v8275 = vadd.f32 %v8188, %v8274
  %8276 = vdwg.mxu0
  %v8277 = vld [vmem:[#allocation5 + $0x2] sm:$0xff]
  %v8278 = vld [vmem:[#allocation5 + $0xa] sm:$0xff]
  %v8279 = vld [vmem:[#allocation5 + $0x12] sm:$0xff]
  %v8280 = vld [vmem:[#allocation5 + $0x1a] sm:$0xff]
  %v8281 = vld [vmem:[#allocation5 + $0x22] sm:$0xff]
  %v8282 = vld [vmem:[#allocation5 + $0x2a] sm:$0xff]
  %v8283 = vld [vmem:[#allocation5 + $0x32] sm:$0xff]
  %v8284 = vld [vmem:[#allocation5 + $0x3a] sm:$0xff]
  %v8285 = vld [vmem:[#allocation5 + $0x42] sm:$0xff]
  %v8286 = vld [vmem:[#allocation5 + $0x4a] sm:$0xff]
  %v8287 = vld [vmem:[#allocation5 + $0x52] sm:$0xff]
  %v8288 = vld [vmem:[#allocation5 + $0x5a] sm:$0xff]
  %v8289 = vpack.c.bf16 %v8278, %v8277
  %v8290 = vpack.c.bf16 %v8280, %v8279
  %v8291 = vpack.c.bf16 %v8282, %v8281
  %v8292 = vpack.c.bf16 %v8284, %v8283
  %v8293 = vpack.c.bf16 %v8286, %v8285
  %v8294 = vpack.c.bf16 %v8288, %v8287
  %v8295 = vld [vmem:[%s3514] sm:$0xf]
  %v8296 = vld [vmem:[%s3514 + $0x4] sm:$0xf]
  %v8297 = vld [vmem:[%s3514 + $0x8] sm:$0xf]
  %v8298 = vld [vmem:[%s3514 + $0xc] sm:$0xf]
  %v8299 = vld [vmem:[%s3514 + $0x10] sm:$0xf]
  %v8300 = vld [vmem:[%s3514 + $0x14] sm:$0xf]
  %v8301 = vld [vmem:[%s3514 + $0x18] sm:$0xf]
  %v8302 = vld [vmem:[%s3514 + $0x1c] sm:$0xf]
  %v8303 = vld [vmem:[%s3514 + $0x20] sm:$0xf]
  %v8304 = vld [vmem:[%s3514 + $0x24] sm:$0xf]
  %v8305 = vld [vmem:[%s3514 + $0x28] sm:$0xf]
  %v8306 = vld [vmem:[%s3514 + $0x2c] sm:$0xf]
  %v8307 = vld [vmem:[%s3514 + $0x30] sm:$0xf]
  %v8308 = vld [vmem:[%s3514 + $0x34] sm:$0xf]
  %v8309 = vld [vmem:[%s3514 + $0x38] sm:$0xf]
  %v8310 = vld [vmem:[%s3514 + $0x3c] sm:$0xf]
  %v8327 = vunpack.c.l.b16 %v8295
  %v8328 = vunpack.c.l.b16 %v8296
  %v8329 = vunpack.c.l.b16 %v8297
  %v8330 = vunpack.c.l.b16 %v8298
  %v8331 = vunpack.c.l.b16 %v8299
  %v8332 = vunpack.c.l.b16 %v8300
  %v8333 = vunpack.c.l.b16 %v8301
  %v8334 = vunpack.c.l.b16 %v8302
  %v8335 = vunpack.c.l.b16 %v8303
  %v8336 = vunpack.c.l.b16 %v8304
  %v8337 = vunpack.c.l.b16 %v8305
  %v8338 = vunpack.c.l.b16 %v8306
  %v8339 = vunpack.c.l.b16 %v8307
  %v8340 = vunpack.c.l.b16 %v8308
  %v8341 = vunpack.c.l.b16 %v8309
  %v8342 = vunpack.c.l.b16 %v8310
  %v8343 = vpack.c.b16 %v8328, %v8327
  %v8344 = vpack.c.b16 %v8330, %v8329
  %v8345 = vpack.c.b16 %v8332, %v8331
  %v8346 = vpack.c.b16 %v8334, %v8333
  %v8347 = vpack.c.b16 %v8336, %v8335
  %v8348 = vpack.c.b16 %v8338, %v8337
  %v8349 = vpack.c.b16 %v8340, %v8339
  %v8350 = vpack.c.b16 %v8342, %v8341
  %8359 = vmatpush.bf16.msra.mxu0 %v8350
  %8360 = vmatpush.bf16.msra.mxu0 %v8349
  %8361 = vmatpush.bf16.msra.mxu0 %v8348
  %8362 = vmatpush.bf16.msra.mxu0 %v8347
  %8363 = vmatpush.bf16.msra.mxu0 %v8346
  %8364 = vmatpush.bf16.msra.mxu0 %v8345
  %8365 = vmatpush.bf16.msra.mxu0 %v8344
  %8366 = vmatpush.bf16.msra.mxu0 %v8343
  %8367 = vmatmul.bf16.gmra.mxu0 %v8289
  %v8368 = vpop.f32.mrf.mxu0
  %v8369 = vadd.f32 0.0, %v8368
  %v8370 = vpop.f32.mrf.mxu0
  %v8371 = vadd.f32 0.0, %v8370
  %8372 = vmatmul.bf16.gmra.mxu0 %v8290
  %v8373 = vpop.f32.mrf.mxu0
  %v8374 = vadd.f32 0.0, %v8373
  %v8375 = vpop.f32.mrf.mxu0
  %v8376 = vadd.f32 0.0, %v8375
  %8377 = vmatmul.bf16.gmra.mxu0 %v8291
  %v8378 = vpop.f32.mrf.mxu0
  %v8379 = vadd.f32 0.0, %v8378
  %v8380 = vpop.f32.mrf.mxu0
  %v8381 = vadd.f32 0.0, %v8380
  %8382 = vmatmul.bf16.gmra.mxu0 %v8292
  %v8383 = vpop.f32.mrf.mxu0
  %v8384 = vadd.f32 0.0, %v8383
  %v8385 = vpop.f32.mrf.mxu0
  %v8386 = vadd.f32 0.0, %v8385
  %8387 = vmatmul.bf16.gmra.mxu0 %v8293
  %v8388 = vpop.f32.mrf.mxu0
  %v8389 = vadd.f32 0.0, %v8388
  %v8390 = vpop.f32.mrf.mxu0
  %v8391 = vadd.f32 0.0, %v8390
  %8392 = vmatmul.bf16.gmra.mxu0 %v8294
  %v8393 = vpop.f32.mrf.mxu0
  %v8394 = vadd.f32 0.0, %v8393
  %v8395 = vpop.f32.mrf.mxu0
  %v8396 = vadd.f32 0.0, %v8395
  %8397 = vdwg.mxu0
  %v8398 = vadd.f32 %v8248, %v8369
  %v8399 = vadd.f32 %v8250, %v8371
  %v8400 = vadd.f32 %v8253, %v8374
  %v8401 = vadd.f32 %v8255, %v8376
  %v8402 = vadd.f32 %v8258, %v8379
  %v8403 = vadd.f32 %v8260, %v8381
  %v8404 = vadd.f32 %v8263, %v8384
  %v8405 = vadd.f32 %v8265, %v8386
  %v8406 = vadd.f32 %v8268, %v8389
  %v8407 = vadd.f32 %v8270, %v8391
  %v8408 = vadd.f32 %v8273, %v8394
  %v8409 = vadd.f32 %v8275, %v8396
  %v8410 = vld [vmem:[#allocation5 + $0xa] sm:$0xff]
  %v8411 = vld [vmem:[#allocation5 + $0x12] sm:$0xff]
  %v8412 = vld [vmem:[#allocation5 + $0x1a] sm:$0xff]
  %v8413 = vld [vmem:[#allocation5 + $0x22] sm:$0xff]
  %v8414 = vld [vmem:[#allocation5 + $0x2a] sm:$0xff]
  %v8415 = vld [vmem:[#allocation5 + $0x32] sm:$0xff]
  %v8416 = vld [vmem:[#allocation5 + $0x3a] sm:$0xff]
  %v8417 = vld [vmem:[#allocation5 + $0x42] sm:$0xff]
  %v8418 = vld [vmem:[#allocation5 + $0x4a] sm:$0xff]
  %v8419 = vld [vmem:[#allocation5 + $0x52] sm:$0xff]
  %v8420 = vld [vmem:[#allocation5 + $0x5a] sm:$0xff]
  %v8421 = vld [vmem:[#allocation5 + $0x62] sm:$0xff]
  %v8422 = vpack.c.bf16 %v8411, %v8410
  %v8423 = vpack.c.bf16 %v8413, %v8412
  %v8424 = vpack.c.bf16 %v8415, %v8414
  %v8425 = vpack.c.bf16 %v8417, %v8416
  %v8426 = vpack.c.bf16 %v8419, %v8418
  %v8427 = vpack.c.bf16 %v8421, %v8420
  %v8428 = vld [vmem:[%s3648] sm:$0xf]
  %v8429 = vld [vmem:[%s3648 + $0x4] sm:$0xf]
  %v8430 = vld [vmem:[%s3648 + $0x8] sm:$0xf]
  %v8431 = vld [vmem:[%s3648 + $0xc] sm:$0xf]
  %v8432 = vld [vmem:[%s3648 + $0x10] sm:$0xf]
  %v8433 = vld [vmem:[%s3648 + $0x14] sm:$0xf]
  %v8434 = vld [vmem:[%s3648 + $0x18] sm:$0xf]
  %v8435 = vld [vmem:[%s3648 + $0x1c] sm:$0xf]
  %v8436 = vld [vmem:[%s3648 + $0x20] sm:$0xf]
  %v8437 = vld [vmem:[%s3648 + $0x24] sm:$0xf]
  %v8438 = vld [vmem:[%s3648 + $0x28] sm:$0xf]
  %v8439 = vld [vmem:[%s3648 + $0x2c] sm:$0xf]
  %v8440 = vld [vmem:[%s3648 + $0x30] sm:$0xf]
  %v8441 = vld [vmem:[%s3648 + $0x34] sm:$0xf]
  %v8442 = vld [vmem:[%s3648 + $0x38] sm:$0xf]
  %v8443 = vld [vmem:[%s3648 + $0x3c] sm:$0xf]
  %v8460 = vunpack.c.l.b16 %v8428
  %v8461 = vunpack.c.l.b16 %v8429
  %v8462 = vunpack.c.l.b16 %v8430
  %v8463 = vunpack.c.l.b16 %v8431
  %v8464 = vunpack.c.l.b16 %v8432
  %v8465 = vunpack.c.l.b16 %v8433
  %v8466 = vunpack.c.l.b16 %v8434
  %v8467 = vunpack.c.l.b16 %v8435
  %v8468 = vunpack.c.l.b16 %v8436
  %v8469 = vunpack.c.l.b16 %v8437
  %v8470 = vunpack.c.l.b16 %v8438
  %v8471 = vunpack.c.l.b16 %v8439
  %v8472 = vunpack.c.l.b16 %v8440
  %v8473 = vunpack.c.l.b16 %v8441
  %v8474 = vunpack.c.l.b16 %v8442
  %v8475 = vunpack.c.l.b16 %v8443
  %v8476 = vpack.c.b16 %v8461, %v8460
  %v8477 = vpack.c.b16 %v8463, %v8462
  %v8478 = vpack.c.b16 %v8465, %v8464
  %v8479 = vpack.c.b16 %v8467, %v8466
  %v8480 = vpack.c.b16 %v8469, %v8468
  %v8481 = vpack.c.b16 %v8471, %v8470
  %v8482 = vpack.c.b16 %v8473, %v8472
  %v8483 = vpack.c.b16 %v8475, %v8474
  %8492 = vmatpush.bf16.msra.mxu0 %v8483
  %8493 = vmatpush.bf16.msra.mxu0 %v8482
  %8494 = vmatpush.bf16.msra.mxu0 %v8481
  %8495 = vmatpush.bf16.msra.mxu0 %v8480
  %8496 = vmatpush.bf16.msra.mxu0 %v8479
  %8497 = vmatpush.bf16.msra.mxu0 %v8478
  %8498 = vmatpush.bf16.msra.mxu0 %v8477
  %8499 = vmatpush.bf16.msra.mxu0 %v8476
  %8500 = vmatmul.bf16.gmra.mxu0 %v8422
  %v8501 = vpop.f32.mrf.mxu0
  %v8502 = vadd.f32 0.0, %v8501
  %v8503 = vpop.f32.mrf.mxu0
  %v8504 = vadd.f32 0.0, %v8503
  %8505 = vmatmul.bf16.gmra.mxu0 %v8423
  %v8506 = vpop.f32.mrf.mxu0
  %v8507 = vadd.f32 0.0, %v8506
  %v8508 = vpop.f32.mrf.mxu0
  %v8509 = vadd.f32 0.0, %v8508
  %8510 = vmatmul.bf16.gmra.mxu0 %v8424
  %v8511 = vpop.f32.mrf.mxu0
  %v8512 = vadd.f32 0.0, %v8511
  %v8513 = vpop.f32.mrf.mxu0
  %v8514 = vadd.f32 0.0, %v8513
  %8515 = vmatmul.bf16.gmra.mxu0 %v8425
  %v8516 = vpop.f32.mrf.mxu0
  %v8517 = vadd.f32 0.0, %v8516
  %v8518 = vpop.f32.mrf.mxu0
  %v8519 = vadd.f32 0.0, %v8518
  %8520 = vmatmul.bf16.gmra.mxu0 %v8426
  %v8521 = vpop.f32.mrf.mxu0
  %v8522 = vadd.f32 0.0, %v8521
  %v8523 = vpop.f32.mrf.mxu0
  %v8524 = vadd.f32 0.0, %v8523
  %8525 = vmatmul.bf16.gmra.mxu0 %v8427
  %v8526 = vpop.f32.mrf.mxu0
  %v8527 = vadd.f32 0.0, %v8526
  %v8528 = vpop.f32.mrf.mxu0
  %v8529 = vadd.f32 0.0, %v8528
  %8530 = vdwg.mxu0
  %v8531 = vadd.f32 %v8398, %v8502
  %v8532 = vadd.f32 %v8399, %v8504
  %v8533 = vadd.f32 %v8400, %v8507
  %v8534 = vadd.f32 %v8401, %v8509
  %v8535 = vadd.f32 %v8402, %v8512
  %v8536 = vadd.f32 %v8403, %v8514
  %v8537 = vadd.f32 %v8404, %v8517
  %v8538 = vadd.f32 %v8405, %v8519
  %v8539 = vadd.f32 %v8406, %v8522
  %v8540 = vadd.f32 %v8407, %v8524
  %v8541 = vadd.f32 %v8408, %v8527
  %v8542 = vadd.f32 %v8409, %v8529
  %v8543 = vld [vmem:[#allocation5 + $0xb] sm:$0xff]
  %v8544 = vld [vmem:[#allocation5 + $0x13] sm:$0xff]
  %v8545 = vld [vmem:[#allocation5 + $0x1b] sm:$0xff]
  %v8546 = vld [vmem:[#allocation5 + $0x23] sm:$0xff]
  %v8547 = vld [vmem:[#allocation5 + $0x2b] sm:$0xff]
  %v8548 = vld [vmem:[#allocation5 + $0x33] sm:$0xff]
  %v8549 = vld [vmem:[#allocation5 + $0x3b] sm:$0xff]
  %v8550 = vld [vmem:[#allocation5 + $0x43] sm:$0xff]
  %v8551 = vld [vmem:[#allocation5 + $0x4b] sm:$0xff]
  %v8552 = vld [vmem:[#allocation5 + $0x53] sm:$0xff]
  %v8553 = vld [vmem:[#allocation5 + $0x5b] sm:$0xff]
  %v8554 = vld [vmem:[#allocation5 + $0x63] sm:$0xff]
  %v8555 = vpack.c.bf16 %v8544, %v8543
  %v8556 = vpack.c.bf16 %v8546, %v8545
  %v8557 = vpack.c.bf16 %v8548, %v8547
  %v8558 = vpack.c.bf16 %v8550, %v8549
  %v8559 = vpack.c.bf16 %v8552, %v8551
  %v8560 = vpack.c.bf16 %v8554, %v8553
  %v8561 = vld [vmem:[%s3782] sm:$0xf]
  %v8562 = vld [vmem:[%s3782 + $0x4] sm:$0xf]
  %v8563 = vld [vmem:[%s3782 + $0x8] sm:$0xf]
  %v8564 = vld [vmem:[%s3782 + $0xc] sm:$0xf]
  %v8565 = vld [vmem:[%s3782 + $0x10] sm:$0xf]
  %v8566 = vld [vmem:[%s3782 + $0x14] sm:$0xf]
  %v8567 = vld [vmem:[%s3782 + $0x18] sm:$0xf]
  %v8568 = vld [vmem:[%s3782 + $0x1c] sm:$0xf]
  %v8569 = vld [vmem:[%s3782 + $0x20] sm:$0xf]
  %v8570 = vld [vmem:[%s3782 + $0x24] sm:$0xf]
  %v8571 = vld [vmem:[%s3782 + $0x28] sm:$0xf]
  %v8572 = vld [vmem:[%s3782 + $0x2c] sm:$0xf]
  %v8573 = vld [vmem:[%s3782 + $0x30] sm:$0xf]
  %v8574 = vld [vmem:[%s3782 + $0x34] sm:$0xf]
  %v8575 = vld [vmem:[%s3782 + $0x38] sm:$0xf]
  %v8576 = vld [vmem:[%s3782 + $0x3c] sm:$0xf]
  %v8593 = vunpack.c.l.b16 %v8561
  %v8594 = vunpack.c.l.b16 %v8562
  %v8595 = vunpack.c.l.b16 %v8563
  %v8596 = vunpack.c.l.b16 %v8564
  %v8597 = vunpack.c.l.b16 %v8565
  %v8598 = vunpack.c.l.b16 %v8566
  %v8599 = vunpack.c.l.b16 %v8567
  %v8600 = vunpack.c.l.b16 %v8568
  %v8601 = vunpack.c.l.b16 %v8569
  %v8602 = vunpack.c.l.b16 %v8570
  %v8603 = vunpack.c.l.b16 %v8571
  %v8604 = vunpack.c.l.b16 %v8572
  %v8605 = vunpack.c.l.b16 %v8573
  %v8606 = vunpack.c.l.b16 %v8574
  %v8607 = vunpack.c.l.b16 %v8575
  %v8608 = vunpack.c.l.b16 %v8576
  %v8609 = vpack.c.b16 %v8594, %v8593
  %v8610 = vpack.c.b16 %v8596, %v8595
  %v8611 = vpack.c.b16 %v8598, %v8597
  %v8612 = vpack.c.b16 %v8600, %v8599
  %v8613 = vpack.c.b16 %v8602, %v8601
  %v8614 = vpack.c.b16 %v8604, %v8603
  %v8615 = vpack.c.b16 %v8606, %v8605
  %v8616 = vpack.c.b16 %v8608, %v8607
  %8625 = vmatpush.bf16.msra.mxu0 %v8616
  %8626 = vmatpush.bf16.msra.mxu0 %v8615
  %8627 = vmatpush.bf16.msra.mxu0 %v8614
  %8628 = vmatpush.bf16.msra.mxu0 %v8613
  %8629 = vmatpush.bf16.msra.mxu0 %v8612
  %8630 = vmatpush.bf16.msra.mxu0 %v8611
  %8631 = vmatpush.bf16.msra.mxu0 %v8610
  %8632 = vmatpush.bf16.msra.mxu0 %v8609
  %8633 = vmatmul.bf16.gmra.mxu0 %v8555
  %v8634 = vpop.f32.mrf.mxu0
  %v8635 = vadd.f32 0.0, %v8634
  %v8636 = vpop.f32.mrf.mxu0
  %v8637 = vadd.f32 0.0, %v8636
  %8638 = vmatmul.bf16.gmra.mxu0 %v8556
  %v8639 = vpop.f32.mrf.mxu0
  %v8640 = vadd.f32 0.0, %v8639
  %v8641 = vpop.f32.mrf.mxu0
  %v8642 = vadd.f32 0.0, %v8641
  %8643 = vmatmul.bf16.gmra.mxu0 %v8557
  %v8644 = vpop.f32.mrf.mxu0
  %v8645 = vadd.f32 0.0, %v8644
  %v8646 = vpop.f32.mrf.mxu0
  %v8647 = vadd.f32 0.0, %v8646
  %8648 = vmatmul.bf16.gmra.mxu0 %v8558
  %v8649 = vpop.f32.mrf.mxu0
  %v8650 = vadd.f32 0.0, %v8649
  %v8651 = vpop.f32.mrf.mxu0
  %v8652 = vadd.f32 0.0, %v8651
  %8653 = vmatmul.bf16.gmra.mxu0 %v8559
  %v8654 = vpop.f32.mrf.mxu0
  %v8655 = vadd.f32 0.0, %v8654
  %v8656 = vpop.f32.mrf.mxu0
  %v8657 = vadd.f32 0.0, %v8656
  %8658 = vmatmul.bf16.gmra.mxu0 %v8560
  %v8659 = vpop.f32.mrf.mxu0
  %v8660 = vadd.f32 0.0, %v8659
  %v8661 = vpop.f32.mrf.mxu0
  %v8662 = vadd.f32 0.0, %v8661
  %8663 = vdwg.mxu0
  %v8664 = vadd.f32 %v8531, %v8635
  %v8665 = vadd.f32 %v8532, %v8637
  %v8666 = vadd.f32 %v8533, %v8640
  %v8667 = vadd.f32 %v8534, %v8642
  %v8668 = vadd.f32 %v8535, %v8645
  %v8669 = vadd.f32 %v8536, %v8647
  %v8670 = vadd.f32 %v8537, %v8650
  %v8671 = vadd.f32 %v8538, %v8652
  %v8672 = vadd.f32 %v8539, %v8655
  %v8673 = vadd.f32 %v8540, %v8657
  %v8674 = vadd.f32 %v8541, %v8660
  %v8675 = vadd.f32 %v8542, %v8662
  %v8676 = vld [vmem:[#allocation5 + $0xc] sm:$0xff]
  %v8677 = vld [vmem:[#allocation5 + $0x14] sm:$0xff]
  %v8678 = vld [vmem:[#allocation5 + $0x1c] sm:$0xff]
  %v8679 = vld [vmem:[#allocation5 + $0x24] sm:$0xff]
  %v8680 = vld [vmem:[#allocation5 + $0x2c] sm:$0xff]
  %v8681 = vld [vmem:[#allocation5 + $0x34] sm:$0xff]
  %v8682 = vld [vmem:[#allocation5 + $0x3c] sm:$0xff]
  %v8683 = vld [vmem:[#allocation5 + $0x44] sm:$0xff]
  %v8684 = vld [vmem:[#allocation5 + $0x4c] sm:$0xff]
  %v8685 = vld [vmem:[#allocation5 + $0x54] sm:$0xff]
  %v8686 = vld [vmem:[#allocation5 + $0x5c] sm:$0xff]
  %v8687 = vld [vmem:[#allocation5 + $0x64] sm:$0xff]
  %v8688 = vpack.c.bf16 %v8677, %v8676
  %v8689 = vpack.c.bf16 %v8679, %v8678
  %v8690 = vpack.c.bf16 %v8681, %v8680
  %v8691 = vpack.c.bf16 %v8683, %v8682
  %v8692 = vpack.c.bf16 %v8685, %v8684
  %v8693 = vpack.c.bf16 %v8687, %v8686
  %v8694 = vld [vmem:[%s3916] sm:$0xf]
  %v8695 = vld [vmem:[%s3916 + $0x4] sm:$0xf]
  %v8696 = vld [vmem:[%s3916 + $0x8] sm:$0xf]
  %v8697 = vld [vmem:[%s3916 + $0xc] sm:$0xf]
  %v8698 = vld [vmem:[%s3916 + $0x10] sm:$0xf]
  %v8699 = vld [vmem:[%s3916 + $0x14] sm:$0xf]
  %v8700 = vld [vmem:[%s3916 + $0x18] sm:$0xf]
  %v8701 = vld [vmem:[%s3916 + $0x1c] sm:$0xf]
  %v8702 = vld [vmem:[%s3916 + $0x20] sm:$0xf]
  %v8703 = vld [vmem:[%s3916 + $0x24] sm:$0xf]
  %v8704 = vld [vmem:[%s3916 + $0x28] sm:$0xf]
  %v8705 = vld [vmem:[%s3916 + $0x2c] sm:$0xf]
  %v8706 = vld [vmem:[%s3916 + $0x30] sm:$0xf]
  %v8707 = vld [vmem:[%s3916 + $0x34] sm:$0xf]
  %v8708 = vld [vmem:[%s3916 + $0x38] sm:$0xf]
  %v8709 = vld [vmem:[%s3916 + $0x3c] sm:$0xf]
  %v8726 = vunpack.c.l.b16 %v8694
  %v8727 = vunpack.c.l.b16 %v8695
  %v8728 = vunpack.c.l.b16 %v8696
  %v8729 = vunpack.c.l.b16 %v8697
  %v8730 = vunpack.c.l.b16 %v8698
  %v8731 = vunpack.c.l.b16 %v8699
  %v8732 = vunpack.c.l.b16 %v8700
  %v8733 = vunpack.c.l.b16 %v8701
  %v8734 = vunpack.c.l.b16 %v8702
  %v8735 = vunpack.c.l.b16 %v8703
  %v8736 = vunpack.c.l.b16 %v8704
  %v8737 = vunpack.c.l.b16 %v8705
  %v8738 = vunpack.c.l.b16 %v8706
  %v8739 = vunpack.c.l.b16 %v8707
  %v8740 = vunpack.c.l.b16 %v8708
  %v8741 = vunpack.c.l.b16 %v8709
  %v8742 = vpack.c.b16 %v8727, %v8726
  %v8743 = vpack.c.b16 %v8729, %v8728
  %v8744 = vpack.c.b16 %v8731, %v8730
  %v8745 = vpack.c.b16 %v8733, %v8732
  %v8746 = vpack.c.b16 %v8735, %v8734
  %v8747 = vpack.c.b16 %v8737, %v8736
  %v8748 = vpack.c.b16 %v8739, %v8738
  %v8749 = vpack.c.b16 %v8741, %v8740
  %8758 = vmatpush.bf16.msra.mxu0 %v8749
  %8759 = vmatpush.bf16.msra.mxu0 %v8748
  %8760 = vmatpush.bf16.msra.mxu0 %v8747
  %8761 = vmatpush.bf16.msra.mxu0 %v8746
  %8762 = vmatpush.bf16.msra.mxu0 %v8745
  %8763 = vmatpush.bf16.msra.mxu0 %v8744
  %8764 = vmatpush.bf16.msra.mxu0 %v8743
  %8765 = vmatpush.bf16.msra.mxu0 %v8742
  %8766 = vmatmul.bf16.gmra.mxu0 %v8688
  %v8767 = vpop.f32.mrf.mxu0
  %v8768 = vadd.f32 0.0, %v8767
  %v8769 = vpop.f32.mrf.mxu0
  %v8770 = vadd.f32 0.0, %v8769
  %8771 = vmatmul.bf16.gmra.mxu0 %v8689
  %v8772 = vpop.f32.mrf.mxu0
  %v8773 = vadd.f32 0.0, %v8772
  %v8774 = vpop.f32.mrf.mxu0
  %v8775 = vadd.f32 0.0, %v8774
  %8776 = vmatmul.bf16.gmra.mxu0 %v8690
  %v8777 = vpop.f32.mrf.mxu0
  %v8778 = vadd.f32 0.0, %v8777
  %v8779 = vpop.f32.mrf.mxu0
  %v8780 = vadd.f32 0.0, %v8779
  %8781 = vmatmul.bf16.gmra.mxu0 %v8691
  %v8782 = vpop.f32.mrf.mxu0
  %v8783 = vadd.f32 0.0, %v8782
  %v8784 = vpop.f32.mrf.mxu0
  %v8785 = vadd.f32 0.0, %v8784
  %8786 = vmatmul.bf16.gmra.mxu0 %v8692
  %v8787 = vpop.f32.mrf.mxu0
  %v8788 = vadd.f32 0.0, %v8787
  %v8789 = vpop.f32.mrf.mxu0
  %v8790 = vadd.f32 0.0, %v8789
  %8791 = vmatmul.bf16.gmra.mxu0 %v8693
  %v8792 = vpop.f32.mrf.mxu0
  %v8793 = vadd.f32 0.0, %v8792
  %v8794 = vpop.f32.mrf.mxu0
  %v8795 = vadd.f32 0.0, %v8794
  %8796 = vdwg.mxu0
  %v8797 = vadd.f32 %v8664, %v8768
  %v8798 = vadd.f32 %v8665, %v8770
  %v8799 = vadd.f32 %v8666, %v8773
  %v8800 = vadd.f32 %v8667, %v8775
  %v8801 = vadd.f32 %v8668, %v8778
  %v8802 = vadd.f32 %v8669, %v8780
  %v8803 = vadd.f32 %v8670, %v8783
  %v8804 = vadd.f32 %v8671, %v8785
  %v8805 = vadd.f32 %v8672, %v8788
  %v8806 = vadd.f32 %v8673, %v8790
  %v8807 = vadd.f32 %v8674, %v8793
  %v8808 = vadd.f32 %v8675, %v8795
  %v8809 = vld [vmem:[#allocation5 + $0x14] sm:$0xff]
  %v8810 = vld [vmem:[#allocation5 + $0x1c] sm:$0xff]
  %v8811 = vld [vmem:[#allocation5 + $0x24] sm:$0xff]
  %v8812 = vld [vmem:[#allocation5 + $0x2c] sm:$0xff]
  %v8813 = vld [vmem:[#allocation5 + $0x34] sm:$0xff]
  %v8814 = vld [vmem:[#allocation5 + $0x3c] sm:$0xff]
  %v8815 = vld [vmem:[#allocation5 + $0x44] sm:$0xff]
  %v8816 = vld [vmem:[#allocation5 + $0x4c] sm:$0xff]
  %v8817 = vld [vmem:[#allocation5 + $0x54] sm:$0xff]
  %v8818 = vld [vmem:[#allocation5 + $0x5c] sm:$0xff]
  %v8819 = vld [vmem:[#allocation5 + $0x64] sm:$0xff]
  %v8820 = vld [vmem:[#allocation5 + $0x6c] sm:$0xff]
  %v8821 = vpack.c.bf16 %v8810, %v8809
  %v8822 = vpack.c.bf16 %v8812, %v8811
  %v8823 = vpack.c.bf16 %v8814, %v8813
  %v8824 = vpack.c.bf16 %v8816, %v8815
  %v8825 = vpack.c.bf16 %v8818, %v8817
  %v8826 = vpack.c.bf16 %v8820, %v8819
  %v8827 = vld [vmem:[%s4050] sm:$0xf]
  %v8828 = vld [vmem:[%s4050 + $0x4] sm:$0xf]
  %v8829 = vld [vmem:[%s4050 + $0x8] sm:$0xf]
  %v8830 = vld [vmem:[%s4050 + $0xc] sm:$0xf]
  %v8831 = vld [vmem:[%s4050 + $0x10] sm:$0xf]
  %v8832 = vld [vmem:[%s4050 + $0x14] sm:$0xf]
  %v8833 = vld [vmem:[%s4050 + $0x18] sm:$0xf]
  %v8834 = vld [vmem:[%s4050 + $0x1c] sm:$0xf]
  %v8835 = vld [vmem:[%s4050 + $0x20] sm:$0xf]
  %v8836 = vld [vmem:[%s4050 + $0x24] sm:$0xf]
  %v8837 = vld [vmem:[%s4050 + $0x28] sm:$0xf]
  %v8838 = vld [vmem:[%s4050 + $0x2c] sm:$0xf]
  %v8839 = vld [vmem:[%s4050 + $0x30] sm:$0xf]
  %v8840 = vld [vmem:[%s4050 + $0x34] sm:$0xf]
  %v8841 = vld [vmem:[%s4050 + $0x38] sm:$0xf]
  %v8842 = vld [vmem:[%s4050 + $0x3c] sm:$0xf]
  %v8859 = vunpack.c.l.b16 %v8827
  %v8860 = vunpack.c.l.b16 %v8828
  %v8861 = vunpack.c.l.b16 %v8829
  %v8862 = vunpack.c.l.b16 %v8830
  %v8863 = vunpack.c.l.b16 %v8831
  %v8864 = vunpack.c.l.b16 %v8832
  %v8865 = vunpack.c.l.b16 %v8833
  %v8866 = vunpack.c.l.b16 %v8834
  %v8867 = vunpack.c.l.b16 %v8835
  %v8868 = vunpack.c.l.b16 %v8836
  %v8869 = vunpack.c.l.b16 %v8837
  %v8870 = vunpack.c.l.b16 %v8838
  %v8871 = vunpack.c.l.b16 %v8839
  %v8872 = vunpack.c.l.b16 %v8840
  %v8873 = vunpack.c.l.b16 %v8841
  %v8874 = vunpack.c.l.b16 %v8842
  %v8875 = vpack.c.b16 %v8860, %v8859
  %v8876 = vpack.c.b16 %v8862, %v8861
  %v8877 = vpack.c.b16 %v8864, %v8863
  %v8878 = vpack.c.b16 %v8866, %v8865
  %v8879 = vpack.c.b16 %v8868, %v8867
  %v8880 = vpack.c.b16 %v8870, %v8869
  %v8881 = vpack.c.b16 %v8872, %v8871
  %v8882 = vpack.c.b16 %v8874, %v8873
  %8891 = vmatpush.bf16.msra.mxu0 %v8882
  %8892 = vmatpush.bf16.msra.mxu0 %v8881
  %8893 = vmatpush.bf16.msra.mxu0 %v8880
  %8894 = vmatpush.bf16.msra.mxu0 %v8879
  %8895 = vmatpush.bf16.msra.mxu0 %v8878
  %8896 = vmatpush.bf16.msra.mxu0 %v8877
  %8897 = vmatpush.bf16.msra.mxu0 %v8876
  %8898 = vmatpush.bf16.msra.mxu0 %v8875
  %8899 = vmatmul.bf16.gmra.mxu0 %v8821
  %v8900 = vpop.f32.mrf.mxu0
  %v8901 = vadd.f32 0.0, %v8900
  %v8902 = vpop.f32.mrf.mxu0
  %v8903 = vadd.f32 0.0, %v8902
  %8904 = vmatmul.bf16.gmra.mxu0 %v8822
  %v8905 = vpop.f32.mrf.mxu0
  %v8906 = vadd.f32 0.0, %v8905
  %v8907 = vpop.f32.mrf.mxu0
  %v8908 = vadd.f32 0.0, %v8907
  %8909 = vmatmul.bf16.gmra.mxu0 %v8823
  %v8910 = vpop.f32.mrf.mxu0
  %v8911 = vadd.f32 0.0, %v8910
  %v8912 = vpop.f32.mrf.mxu0
  %v8913 = vadd.f32 0.0, %v8912
  %8914 = vmatmul.bf16.gmra.mxu0 %v8824
  %v8915 = vpop.f32.mrf.mxu0
  %v8916 = vadd.f32 0.0, %v8915
  %v8917 = vpop.f32.mrf.mxu0
  %v8918 = vadd.f32 0.0, %v8917
  %8919 = vmatmul.bf16.gmra.mxu0 %v8825
  %v8920 = vpop.f32.mrf.mxu0
  %v8921 = vadd.f32 0.0, %v8920
  %v8922 = vpop.f32.mrf.mxu0
  %v8923 = vadd.f32 0.0, %v8922
  %8924 = vmatmul.bf16.gmra.mxu0 %v8826
  %v8925 = vpop.f32.mrf.mxu0
  %v8926 = vadd.f32 0.0, %v8925
  %v8927 = vpop.f32.mrf.mxu0
  %v8928 = vadd.f32 0.0, %v8927
  %8929 = vdwg.mxu0
  %v8930 = vadd.f32 %v8797, %v8901
  %v8931 = vadd.f32 %v8798, %v8903
  %v8932 = vadd.f32 %v8799, %v8906
  %v8933 = vadd.f32 %v8800, %v8908
  %v8934 = vadd.f32 %v8801, %v8911
  %v8935 = vadd.f32 %v8802, %v8913
  %v8936 = vadd.f32 %v8803, %v8916
  %v8937 = vadd.f32 %v8804, %v8918
  %v8938 = vadd.f32 %v8805, %v8921
  %v8939 = vadd.f32 %v8806, %v8923
  %v8940 = vadd.f32 %v8807, %v8926
  %v8941 = vadd.f32 %v8808, %v8928
  %v8942 = vld [vmem:[#allocation5 + $0x15] sm:$0xff]
  %v8943 = vld [vmem:[#allocation5 + $0x1d] sm:$0xff]
  %v8944 = vld [vmem:[#allocation5 + $0x25] sm:$0xff]
  %v8945 = vld [vmem:[#allocation5 + $0x2d] sm:$0xff]
  %v8946 = vld [vmem:[#allocation5 + $0x35] sm:$0xff]
  %v8947 = vld [vmem:[#allocation5 + $0x3d] sm:$0xff]
  %v8948 = vld [vmem:[#allocation5 + $0x45] sm:$0xff]
  %v8949 = vld [vmem:[#allocation5 + $0x4d] sm:$0xff]
  %v8950 = vld [vmem:[#allocation5 + $0x55] sm:$0xff]
  %v8951 = vld [vmem:[#allocation5 + $0x5d] sm:$0xff]
  %v8952 = vld [vmem:[#allocation5 + $0x65] sm:$0xff]
  %v8953 = vld [vmem:[#allocation5 + $0x6d] sm:$0xff]
  %v8954 = vpack.c.bf16 %v8943, %v8942
  %v8955 = vpack.c.bf16 %v8945, %v8944
  %v8956 = vpack.c.bf16 %v8947, %v8946
  %v8957 = vpack.c.bf16 %v8949, %v8948
  %v8958 = vpack.c.bf16 %v8951, %v8950
  %v8959 = vpack.c.bf16 %v8953, %v8952
  %v8960 = vld [vmem:[%s4184] sm:$0xf]
  %v8961 = vld [vmem:[%s4184 + $0x4] sm:$0xf]
  %v8962 = vld [vmem:[%s4184 + $0x8] sm:$0xf]
  %v8963 = vld [vmem:[%s4184 + $0xc] sm:$0xf]
  %v8964 = vld [vmem:[%s4184 + $0x10] sm:$0xf]
  %v8965 = vld [vmem:[%s4184 + $0x14] sm:$0xf]
  %v8966 = vld [vmem:[%s4184 + $0x18] sm:$0xf]
  %v8967 = vld [vmem:[%s4184 + $0x1c] sm:$0xf]
  %v8968 = vld [vmem:[%s4184 + $0x20] sm:$0xf]
  %v8969 = vld [vmem:[%s4184 + $0x24] sm:$0xf]
  %v8970 = vld [vmem:[%s4184 + $0x28] sm:$0xf]
  %v8971 = vld [vmem:[%s4184 + $0x2c] sm:$0xf]
  %v8972 = vld [vmem:[%s4184 + $0x30] sm:$0xf]
  %v8973 = vld [vmem:[%s4184 + $0x34] sm:$0xf]
  %v8974 = vld [vmem:[%s4184 + $0x38] sm:$0xf]
  %v8975 = vld [vmem:[%s4184 + $0x3c] sm:$0xf]
  %v8992 = vunpack.c.l.b16 %v8960
  %v8993 = vunpack.c.l.b16 %v8961
  %v8994 = vunpack.c.l.b16 %v8962
  %v8995 = vunpack.c.l.b16 %v8963
  %v8996 = vunpack.c.l.b16 %v8964
  %v8997 = vunpack.c.l.b16 %v8965
  %v8998 = vunpack.c.l.b16 %v8966
  %v8999 = vunpack.c.l.b16 %v8967
  %v9000 = vunpack.c.l.b16 %v8968
  %v9001 = vunpack.c.l.b16 %v8969
  %v9002 = vunpack.c.l.b16 %v8970
  %v9003 = vunpack.c.l.b16 %v8971
  %v9004 = vunpack.c.l.b16 %v8972
  %v9005 = vunpack.c.l.b16 %v8973
  %v9006 = vunpack.c.l.b16 %v8974
  %v9007 = vunpack.c.l.b16 %v8975
  %v9008 = vpack.c.b16 %v8993, %v8992
  %v9009 = vpack.c.b16 %v8995, %v8994
  %v9010 = vpack.c.b16 %v8997, %v8996
  %v9011 = vpack.c.b16 %v8999, %v8998
  %v9012 = vpack.c.b16 %v9001, %v9000
  %v9013 = vpack.c.b16 %v9003, %v9002
  %v9014 = vpack.c.b16 %v9005, %v9004
  %v9015 = vpack.c.b16 %v9007, %v9006
  %9024 = vmatpush.bf16.msra.mxu0 %v9015
  %9025 = vmatpush.bf16.msra.mxu0 %v9014
  %9026 = vmatpush.bf16.msra.mxu0 %v9013
  %9027 = vmatpush.bf16.msra.mxu0 %v9012
  %9028 = vmatpush.bf16.msra.mxu0 %v9011
  %9029 = vmatpush.bf16.msra.mxu0 %v9010
  %9030 = vmatpush.bf16.msra.mxu0 %v9009
  %9031 = vmatpush.bf16.msra.mxu0 %v9008
  %9032 = vmatmul.bf16.gmra.mxu0 %v8954
  %v9033 = vpop.f32.mrf.mxu0
  %v9034 = vadd.f32 0.0, %v9033
  %v9035 = vpop.f32.mrf.mxu0
  %v9036 = vadd.f32 0.0, %v9035
  %9037 = vmatmul.bf16.gmra.mxu0 %v8955
  %v9038 = vpop.f32.mrf.mxu0
  %v9039 = vadd.f32 0.0, %v9038
  %v9040 = vpop.f32.mrf.mxu0
  %v9041 = vadd.f32 0.0, %v9040
  %9042 = vmatmul.bf16.gmra.mxu0 %v8956
  %v9043 = vpop.f32.mrf.mxu0
  %v9044 = vadd.f32 0.0, %v9043
  %v9045 = vpop.f32.mrf.mxu0
  %v9046 = vadd.f32 0.0, %v9045
  %9047 = vmatmul.bf16.gmra.mxu0 %v8957
  %v9048 = vpop.f32.mrf.mxu0
  %v9049 = vadd.f32 0.0, %v9048
  %v9050 = vpop.f32.mrf.mxu0
  %v9051 = vadd.f32 0.0, %v9050
  %9052 = vmatmul.bf16.gmra.mxu0 %v8958
  %v9053 = vpop.f32.mrf.mxu0
  %v9054 = vadd.f32 0.0, %v9053
  %v9055 = vpop.f32.mrf.mxu0
  %v9056 = vadd.f32 0.0, %v9055
  %9057 = vmatmul.bf16.gmra.mxu0 %v8959
  %v9058 = vpop.f32.mrf.mxu0
  %v9059 = vadd.f32 0.0, %v9058
  %v9060 = vpop.f32.mrf.mxu0
  %v9061 = vadd.f32 0.0, %v9060
  %9062 = vdwg.mxu0
  %v9063 = vadd.f32 %v8930, %v9034
  %v9064 = vadd.f32 %v8931, %v9036
  %v9065 = vadd.f32 %v8932, %v9039
  %v9066 = vadd.f32 %v8933, %v9041
  %v9067 = vadd.f32 %v8934, %v9044
  %v9068 = vadd.f32 %v8935, %v9046
  %v9069 = vadd.f32 %v8936, %v9049
  %v9070 = vadd.f32 %v8937, %v9051
  %v9071 = vadd.f32 %v8938, %v9054
  %v9072 = vadd.f32 %v8939, %v9056
  %v9073 = vadd.f32 %v8940, %v9059
  %v9074 = vadd.f32 %v8941, %v9061
  %v9075 = vld [vmem:[#allocation5 + $0x16] sm:$0xff]
  %v9076 = vld [vmem:[#allocation5 + $0x1e] sm:$0xff]
  %v9077 = vld [vmem:[#allocation5 + $0x26] sm:$0xff]
  %v9078 = vld [vmem:[#allocation5 + $0x2e] sm:$0xff]
  %v9079 = vld [vmem:[#allocation5 + $0x36] sm:$0xff]
  %v9080 = vld [vmem:[#allocation5 + $0x3e] sm:$0xff]
  %v9081 = vld [vmem:[#allocation5 + $0x46] sm:$0xff]
  %v9082 = vld [vmem:[#allocation5 + $0x4e] sm:$0xff]
  %v9083 = vld [vmem:[#allocation5 + $0x56] sm:$0xff]
  %v9084 = vld [vmem:[#allocation5 + $0x5e] sm:$0xff]
  %v9085 = vld [vmem:[#allocation5 + $0x66] sm:$0xff]
  %v9086 = vld [vmem:[#allocation5 + $0x6e] sm:$0xff]
  %v9087 = vpack.c.bf16 %v9076, %v9075
  %v9088 = vpack.c.bf16 %v9078, %v9077
  %v9089 = vpack.c.bf16 %v9080, %v9079
  %v9090 = vpack.c.bf16 %v9082, %v9081
  %v9091 = vpack.c.bf16 %v9084, %v9083
  %v9092 = vpack.c.bf16 %v9086, %v9085
  %v9093 = vld [vmem:[%s4318] sm:$0xf]
  %v9094 = vld [vmem:[%s4318 + $0x4] sm:$0xf]
  %v9095 = vld [vmem:[%s4318 + $0x8] sm:$0xf]
  %v9096 = vld [vmem:[%s4318 + $0xc] sm:$0xf]
  %v9097 = vld [vmem:[%s4318 + $0x10] sm:$0xf]
  %v9098 = vld [vmem:[%s4318 + $0x14] sm:$0xf]
  %v9099 = vld [vmem:[%s4318 + $0x18] sm:$0xf]
  %v9100 = vld [vmem:[%s4318 + $0x1c] sm:$0xf]
  %v9101 = vld [vmem:[%s4318 + $0x20] sm:$0xf]
  %v9102 = vld [vmem:[%s4318 + $0x24] sm:$0xf]
  %v9103 = vld [vmem:[%s4318 + $0x28] sm:$0xf]
  %v9104 = vld [vmem:[%s4318 + $0x2c] sm:$0xf]
  %v9105 = vld [vmem:[%s4318 + $0x30] sm:$0xf]
  %v9106 = vld [vmem:[%s4318 + $0x34] sm:$0xf]
  %v9107 = vld [vmem:[%s4318 + $0x38] sm:$0xf]
  %v9108 = vld [vmem:[%s4318 + $0x3c] sm:$0xf]
  %v9125 = vunpack.c.l.b16 %v9093
  %v9126 = vunpack.c.l.b16 %v9094
  %v9127 = vunpack.c.l.b16 %v9095
  %v9128 = vunpack.c.l.b16 %v9096
  %v9129 = vunpack.c.l.b16 %v9097
  %v9130 = vunpack.c.l.b16 %v9098
  %v9131 = vunpack.c.l.b16 %v9099
  %v9132 = vunpack.c.l.b16 %v9100
  %v9133 = vunpack.c.l.b16 %v9101
  %v9134 = vunpack.c.l.b16 %v9102
  %v9135 = vunpack.c.l.b16 %v9103
  %v9136 = vunpack.c.l.b16 %v9104
  %v9137 = vunpack.c.l.b16 %v9105
  %v9138 = vunpack.c.l.b16 %v9106
  %v9139 = vunpack.c.l.b16 %v9107
  %v9140 = vunpack.c.l.b16 %v9108
  %v9141 = vpack.c.b16 %v9126, %v9125
  %v9142 = vpack.c.b16 %v9128, %v9127
  %v9143 = vpack.c.b16 %v9130, %v9129
  %v9144 = vpack.c.b16 %v9132, %v9131
  %v9145 = vpack.c.b16 %v9134, %v9133
  %v9146 = vpack.c.b16 %v9136, %v9135
  %v9147 = vpack.c.b16 %v9138, %v9137
  %v9148 = vpack.c.b16 %v9140, %v9139
  %9157 = vmatpush.bf16.msra.mxu0 %v9148
  %9158 = vmatpush.bf16.msra.mxu0 %v9147
  %9159 = vmatpush.bf16.msra.mxu0 %v9146
  %9160 = vmatpush.bf16.msra.mxu0 %v9145
  %9161 = vmatpush.bf16.msra.mxu0 %v9144
  %9162 = vmatpush.bf16.msra.mxu0 %v9143
  %9163 = vmatpush.bf16.msra.mxu0 %v9142
  %9164 = vmatpush.bf16.msra.mxu0 %v9141
  %9165 = vmatmul.bf16.gmra.mxu0 %v9087
  %v9166 = vpop.f32.mrf.mxu0
  %v9167 = vadd.f32 0.0, %v9166
  %v9168 = vpop.f32.mrf.mxu0
  %v9169 = vadd.f32 0.0, %v9168
  %9170 = vmatmul.bf16.gmra.mxu0 %v9088
  %v9171 = vpop.f32.mrf.mxu0
  %v9172 = vadd.f32 0.0, %v9171
  %v9173 = vpop.f32.mrf.mxu0
  %v9174 = vadd.f32 0.0, %v9173
  %9175 = vmatmul.bf16.gmra.mxu0 %v9089
  %v9176 = vpop.f32.mrf.mxu0
  %v9177 = vadd.f32 0.0, %v9176
  %v9178 = vpop.f32.mrf.mxu0
  %v9179 = vadd.f32 0.0, %v9178
  %9180 = vmatmul.bf16.gmra.mxu0 %v9090
  %v9181 = vpop.f32.mrf.mxu0
  %v9182 = vadd.f32 0.0, %v9181
  %v9183 = vpop.f32.mrf.mxu0
  %v9184 = vadd.f32 0.0, %v9183
  %9185 = vmatmul.bf16.gmra.mxu0 %v9091
  %v9186 = vpop.f32.mrf.mxu0
  %v9187 = vadd.f32 0.0, %v9186
  %v9188 = vpop.f32.mrf.mxu0
  %v9189 = vadd.f32 0.0, %v9188
  %9190 = vmatmul.bf16.gmra.mxu0 %v9092
  %v9191 = vpop.f32.mrf.mxu0
  %v9192 = vadd.f32 0.0, %v9191
  %v9193 = vpop.f32.mrf.mxu0
  %v9194 = vadd.f32 0.0, %v9193
  %9195 = vdwg.mxu0
  %v9196 = vadd.f32 %v9063, %v9167
  %v9197 = vadd.f32 %v9064, %v9169
  %v9198 = vadd.f32 %v9065, %v9172
  %v9199 = vadd.f32 %v9066, %v9174
  %v9200 = vadd.f32 %v9067, %v9177
  %v9201 = vadd.f32 %v9068, %v9179
  %v9202 = vadd.f32 %v9069, %v9182
  %v9203 = vadd.f32 %v9070, %v9184
  %v9204 = vadd.f32 %v9071, %v9187
  %v9205 = vadd.f32 %v9072, %v9189
  %v9206 = vadd.f32 %v9073, %v9192
  %v9207 = vadd.f32 %v9074, %v9194
  %v9208 = vadd.f32 %v9196, %v4435
  %v9209 = vadd.f32 %v9197, %v4435
  %v9210 = vadd.f32 %v9198, %v4435
  %v9211 = vadd.f32 %v9199, %v4435
  %v9212 = vadd.f32 %v9200, %v4435
  %v9213 = vadd.f32 %v9201, %v4435
  %v9214 = vadd.f32 %v9202, %v4435
  %v9215 = vadd.f32 %v9203, %v4435
  %v9216 = vadd.f32 %v9204, %v4435
  %v9217 = vadd.f32 %v9205, %v4435
  %v9218 = vadd.f32 %v9206, %v4435
  %v9219 = vadd.f32 %v9207, %v4435
  %9220 = vst [vmem:[#allocation6] sm:$0xff] %v9208
  %9221 = vst [vmem:[#allocation6 + $0x8] sm:$0xff] %v9209
  %9222 = vst [vmem:[#allocation6 + $0x10] sm:$0xff] %v9210
  %9223 = vst [vmem:[#allocation6 + $0x18] sm:$0xff] %v9211
  %9224 = vst [vmem:[#allocation6 + $0x20] sm:$0xff] %v9212
  %9225 = vst [vmem:[#allocation6 + $0x28] sm:$0xff] %v9213
  %9226 = vst [vmem:[#allocation6 + $0x30] sm:$0xff] %v9214
  %9227 = vst [vmem:[#allocation6 + $0x38] sm:$0xff] %v9215
  %9228 = vst [vmem:[#allocation6 + $0x40] sm:$0xff] %v9216
  %9229 = vst [vmem:[#allocation6 + $0x48] sm:$0xff] %v9217
  %9230 = vst [vmem:[#allocation6 + $0x50] sm:$0xff] %v9218
  %9231 = vst [vmem:[#allocation6 + $0x58] sm:$0xff] %v9219
  %v9232 = vld [vmem:[#allocation6] sm:$0x7f]
  %v9233 = vld [vmem:[#allocation6 + $0xa] sm:$0x7f]
  %v9234 = vld [vmem:[#allocation6 + $0x14] sm:$0x7f]
  %v9235 = vld [vmem:[#allocation6 + $0x1e] sm:$0x7f]
  %v9236 = vld [vmem:[#allocation6 + $0x28] sm:$0x7f]
  %v9237 = vld [vmem:[#allocation6 + $0x32] sm:$0x7f]
  %v9238 = vld [vmem:[#allocation6 + $0x3c] sm:$0x7f]
  %v9240 = vrot.slane %v9233, 1
  %v9243 = vrot.slane %v9234, 2
  %v9246 = vrot.slane %v9235, 3
  %v9249 = vrot.slane %v9236, 4
  %v9252 = vrot.slane %v9237, 5
  %v9255 = vrot.slane %v9238, 6
  %v9257 = vsel %vm4486, %v9232, %v9240
  %v9258 = vsel %vm4488, %v9240, %v9243
  %v9259 = vsel %vm4490, %v9243, %v9246
  %v9260 = vsel %vm4492, %v9246, %v9249
  %v9261 = vsel %vm4494, %v9249, %v9252
  %v9262 = vsel %vm224, %v9252, %v9255
  %v9263 = vsel %vm4497, %v9257, -inf
  %9264 = vmax.xlane.f32.xlu0 %v9263
  %v9265 = vpop.xlane.xlu0 %9264
  %v9266 = vsel %vm4497, %v9258, -inf
  %9267 = vmax.xlane.f32.xlu0 %v9266
  %v9268 = vpop.xlane.xlu0 %9267
  %v9269 = vsel %vm4497, %v9259, -inf
  %9270 = vmax.xlane.f32.xlu0 %v9269
  %v9271 = vpop.xlane.xlu0 %9270
  %v9272 = vsel %vm4497, %v9260, -inf
  %9273 = vmax.xlane.f32.xlu0 %v9272
  %v9274 = vpop.xlane.xlu0 %9273
  %v9275 = vsel %vm4497, %v9261, -inf
  %9276 = vmax.xlane.f32.xlu0 %v9275
  %v9277 = vpop.xlane.xlu0 %9276
  %v9278 = vsel %vm4497, %v9262, -inf
  %9279 = vmax.xlane.f32.xlu0 %v9278
  %v9280 = vpop.xlane.xlu0 %9279
  %v9281 = vsel %vm4516, %v9255, -inf
  %9282 = vmax.xlane.f32.xlu0 %v9281
  %v9283 = vpop.xlane.xlu0 %9282
  %v9284 = vsub.f32 %v9257, %v9265
  %v9285 = vsub.f32 %v9258, %v9268
  %v9286 = vsub.f32 %v9259, %v9271
  %v9287 = vsub.f32 %v9260, %v9274
  %v9288 = vsub.f32 %v9261, %v9277
  %v9289 = vsub.f32 %v9262, %v9280
  %v9290 = vsub.f32 %v9255, %v9283
  %v9291 = vmul.f32 %v9284, 1.442695
  %v9292 = vpow.pop %v9291
  %v9293 = vmul.f32 %v9285, 1.442695
  %v9294 = vpow.pop %v9293
  %v9295 = vmul.f32 %v9286, 1.442695
  %v9296 = vpow.pop %v9295
  %v9297 = vmul.f32 %v9287, 1.442695
  %v9298 = vpow.pop %v9297
  %v9299 = vmul.f32 %v9288, 1.442695
  %v9300 = vpow.pop %v9299
  %v9301 = vmul.f32 %v9289, 1.442695
  %v9302 = vpow.pop %v9301
  %v9303 = vmul.f32 %v9290, 1.442695
  %v9304 = vpow.pop %v9303
  %v9305 = vsel %vm4497, %v9292, 0.0
  %9306 = vadd.xlane.f32.xlu0 %v9305
  %v9307 = vpop.xlane.xlu0 %9306
  %v9308 = vsel %vm4497, %v9294, 0.0
  %9309 = vadd.xlane.f32.xlu0 %v9308
  %v9310 = vpop.xlane.xlu0 %9309
  %v9311 = vsel %vm4497, %v9296, 0.0
  %9312 = vadd.xlane.f32.xlu0 %v9311
  %v9313 = vpop.xlane.xlu0 %9312
  %v9314 = vsel %vm4497, %v9298, 0.0
  %9315 = vadd.xlane.f32.xlu0 %v9314
  %v9316 = vpop.xlane.xlu0 %9315
  %v9317 = vsel %vm4497, %v9300, 0.0
  %9318 = vadd.xlane.f32.xlu0 %v9317
  %v9319 = vpop.xlane.xlu0 %9318
  %v9320 = vsel %vm4497, %v9302, 0.0
  %9321 = vadd.xlane.f32.xlu0 %v9320
  %v9322 = vpop.xlane.xlu0 %9321
  %v9323 = vsel %vm4516, %v9304, 0.0
  %9324 = vadd.xlane.f32.xlu0 %v9323
  %v9325 = vpop.xlane.xlu0 %9324
  %v9326 = vlog2.pop %v9307
  %v9327 = vmul.f32 %v9326, 0.6931472
  %v9328 = vlog2.pop %v9310
  %v9329 = vmul.f32 %v9328, 0.6931472
  %v9330 = vlog2.pop %v9313
  %v9331 = vmul.f32 %v9330, 0.6931472
  %v9332 = vlog2.pop %v9316
  %v9333 = vmul.f32 %v9332, 0.6931472
  %v9334 = vlog2.pop %v9319
  %v9335 = vmul.f32 %v9334, 0.6931472
  %v9336 = vlog2.pop %v9322
  %v9337 = vmul.f32 %v9336, 0.6931472
  %v9338 = vlog2.pop %v9325
  %v9339 = vmul.f32 %v9338, 0.6931472
  %v9340 = vadd.f32 %v9265, %v9327
  %v9341 = vadd.f32 %v9268, %v9329
  %v9342 = vadd.f32 %v9271, %v9331
  %v9343 = vadd.f32 %v9274, %v9333
  %v9344 = vadd.f32 %v9277, %v9335
  %v9345 = vadd.f32 %v9280, %v9337
  %v9346 = vadd.f32 %v9283, %v9339
  %v9347 = vsub.f32 %v9257, %v9340
  %v9348 = vsub.f32 %v9258, %v9341
  %v9349 = vsub.f32 %v9259, %v9342
  %v9350 = vsub.f32 %v9260, %v9343
  %v9351 = vsub.f32 %v9261, %v9344
  %v9352 = vsub.f32 %v9262, %v9345
  %v9353 = vsub.f32 %v9255, %v9346
  %v9354 = vsel %vm4590, %v9257, -inf
  %9355 = vmax.xlane.f32.xlu0 %v9354
  %v9356 = vpop.xlane.xlu0 %9355
  %v9357 = vsel %vm4590, %v9258, -inf
  %9358 = vmax.xlane.f32.xlu0 %v9357
  %v9359 = vpop.xlane.xlu0 %9358
  %v9360 = vsel %vm4590, %v9259, -inf
  %9361 = vmax.xlane.f32.xlu0 %v9360
  %v9362 = vpop.xlane.xlu0 %9361
  %v9363 = vsel %vm4590, %v9260, -inf
  %9364 = vmax.xlane.f32.xlu0 %v9363
  %v9365 = vpop.xlane.xlu0 %9364
  %v9366 = vsel %vm4590, %v9261, -inf
  %9367 = vmax.xlane.f32.xlu0 %v9366
  %v9368 = vpop.xlane.xlu0 %9367
  %v9369 = vsel %vm4590, %v9262, -inf
  %9370 = vmax.xlane.f32.xlu0 %v9369
  %v9371 = vpop.xlane.xlu0 %9370
  %v9372 = vsel %vm4609, %v9255, -inf
  %9373 = vmax.xlane.f32.xlu0 %v9372
  %v9374 = vpop.xlane.xlu0 %9373
  %v9375 = vsub.f32 %v9257, %v9356
  %v9376 = vsub.f32 %v9258, %v9359
  %v9377 = vsub.f32 %v9259, %v9362
  %v9378 = vsub.f32 %v9260, %v9365
  %v9379 = vsub.f32 %v9261, %v9368
  %v9380 = vsub.f32 %v9262, %v9371
  %v9381 = vsub.f32 %v9255, %v9374
  %v9382 = vmul.f32 %v9375, 1.442695
  %v9383 = vpow.pop %v9382
  %v9384 = vmul.f32 %v9376, 1.442695
  %v9385 = vpow.pop %v9384
  %v9386 = vmul.f32 %v9377, 1.442695
  %v9387 = vpow.pop %v9386
  %v9388 = vmul.f32 %v9378, 1.442695
  %v9389 = vpow.pop %v9388
  %v9390 = vmul.f32 %v9379, 1.442695
  %v9391 = vpow.pop %v9390
  %v9392 = vmul.f32 %v9380, 1.442695
  %v9393 = vpow.pop %v9392
  %v9394 = vmul.f32 %v9381, 1.442695
  %v9395 = vpow.pop %v9394
  %9403 = vrot.lane.b32.xlu0 %v9383, 96
  %v9404 = vpop.permute.xlu0 %9403
  %9405 = vrot.lane.b32.xlu0 %v9385, 96
  %v9406 = vpop.permute.xlu0 %9405
  %9407 = vrot.lane.b32.xlu0 %v9387, 96
  %v9408 = vpop.permute.xlu0 %9407
  %9409 = vrot.lane.b32.xlu0 %v9389, 96
  %v9410 = vpop.permute.xlu0 %9409
  %9411 = vrot.lane.b32.xlu0 %v9391, 96
  %v9412 = vpop.permute.xlu0 %9411
  %9413 = vrot.lane.b32.xlu0 %v9393, 96
  %v9414 = vpop.permute.xlu0 %9413
  %9415 = vrot.lane.b32.xlu0 %v9395, 96
  %v9416 = vpop.permute.xlu0 %9415
  %v9424 = vsel %vm4497, %v9404, 0.0
  %9425 = vadd.xlane.f32.xlu0 %v9424
  %v9426 = vpop.xlane.xlu0 %9425
  %v9427 = vsel %vm4497, %v9406, 0.0
  %9428 = vadd.xlane.f32.xlu0 %v9427
  %v9429 = vpop.xlane.xlu0 %9428
  %v9430 = vsel %vm4497, %v9408, 0.0
  %9431 = vadd.xlane.f32.xlu0 %v9430
  %v9432 = vpop.xlane.xlu0 %9431
  %v9433 = vsel %vm4497, %v9410, 0.0
  %9434 = vadd.xlane.f32.xlu0 %v9433
  %v9435 = vpop.xlane.xlu0 %9434
  %v9436 = vsel %vm4497, %v9412, 0.0
  %9437 = vadd.xlane.f32.xlu0 %v9436
  %v9438 = vpop.xlane.xlu0 %9437
  %v9439 = vsel %vm4497, %v9414, 0.0
  %9440 = vadd.xlane.f32.xlu0 %v9439
  %v9441 = vpop.xlane.xlu0 %9440
  %v9442 = vsel %vm4516, %v9416, 0.0
  %9443 = vadd.xlane.f32.xlu0 %v9442
  %v9444 = vpop.xlane.xlu0 %9443
  %v9445 = vlog2.pop %v9426
  %v9446 = vmul.f32 %v9445, 0.6931472
  %v9447 = vlog2.pop %v9429
  %v9448 = vmul.f32 %v9447, 0.6931472
  %v9449 = vlog2.pop %v9432
  %v9450 = vmul.f32 %v9449, 0.6931472
  %v9451 = vlog2.pop %v9435
  %v9452 = vmul.f32 %v9451, 0.6931472
  %v9453 = vlog2.pop %v9438
  %v9454 = vmul.f32 %v9453, 0.6931472
  %v9455 = vlog2.pop %v9441
  %v9456 = vmul.f32 %v9455, 0.6931472
  %v9457 = vlog2.pop %v9444
  %v9458 = vmul.f32 %v9457, 0.6931472
  %v9459 = vadd.f32 %v9356, %v9446
  %v9460 = vadd.f32 %v9359, %v9448
  %v9461 = vadd.f32 %v9362, %v9450
  %v9462 = vadd.f32 %v9365, %v9452
  %v9463 = vadd.f32 %v9368, %v9454
  %v9464 = vadd.f32 %v9371, %v9456
  %v9465 = vadd.f32 %v9374, %v9458
  %v9466 = vsub.f32 %v9257, %v9459
  %v9467 = vsub.f32 %v9258, %v9460
  %v9468 = vsub.f32 %v9259, %v9461
  %v9469 = vsub.f32 %v9260, %v9462
  %v9470 = vsub.f32 %v9261, %v9463
  %v9471 = vsub.f32 %v9262, %v9464
  %v9472 = vsub.f32 %v9255, %v9465
  %v9473 = vsel %vm4711, %v9257, -inf
  %9474 = vmax.xlane.f32.xlu0 %v9473
  %v9475 = vpop.xlane.xlu0 %9474
  %v9476 = vsel %vm4711, %v9258, -inf
  %9477 = vmax.xlane.f32.xlu0 %v9476
  %v9478 = vpop.xlane.xlu0 %9477
  %v9479 = vsel %vm4711, %v9259, -inf
  %9480 = vmax.xlane.f32.xlu0 %v9479
  %v9481 = vpop.xlane.xlu0 %9480
  %v9482 = vsel %vm4711, %v9260, -inf
  %9483 = vmax.xlane.f32.xlu0 %v9482
  %v9484 = vpop.xlane.xlu0 %9483
  %v9485 = vsel %vm4711, %v9261, -inf
  %9486 = vmax.xlane.f32.xlu0 %v9485
  %v9487 = vpop.xlane.xlu0 %9486
  %v9488 = vsel %vm4711, %v9262, -inf
  %9489 = vmax.xlane.f32.xlu0 %v9488
  %v9490 = vpop.xlane.xlu0 %9489
  %v9491 = vsel %vm4730, %v9255, -inf
  %9492 = vmax.xlane.f32.xlu0 %v9491
  %v9493 = vpop.xlane.xlu0 %9492
  %v9494 = vsub.f32 %v9257, %v9475
  %v9495 = vsub.f32 %v9258, %v9478
  %v9496 = vsub.f32 %v9259, %v9481
  %v9497 = vsub.f32 %v9260, %v9484
  %v9498 = vsub.f32 %v9261, %v9487
  %v9499 = vsub.f32 %v9262, %v9490
  %v9500 = vsub.f32 %v9255, %v9493
  %v9501 = vmul.f32 %v9494, 1.442695
  %v9502 = vpow.pop %v9501
  %v9503 = vmul.f32 %v9495, 1.442695
  %v9504 = vpow.pop %v9503
  %v9505 = vmul.f32 %v9496, 1.442695
  %v9506 = vpow.pop %v9505
  %v9507 = vmul.f32 %v9497, 1.442695
  %v9508 = vpow.pop %v9507
  %v9509 = vmul.f32 %v9498, 1.442695
  %v9510 = vpow.pop %v9509
  %v9511 = vmul.f32 %v9499, 1.442695
  %v9512 = vpow.pop %v9511
  %v9513 = vmul.f32 %v9500, 1.442695
  %v9514 = vpow.pop %v9513
  %9522 = vrot.lane.b32.xlu0 %v9502, 64
  %v9523 = vpop.permute.xlu0 %9522
  %9524 = vrot.lane.b32.xlu0 %v9504, 64
  %v9525 = vpop.permute.xlu0 %9524
  %9526 = vrot.lane.b32.xlu0 %v9506, 64
  %v9527 = vpop.permute.xlu0 %9526
  %9528 = vrot.lane.b32.xlu0 %v9508, 64
  %v9529 = vpop.permute.xlu0 %9528
  %9530 = vrot.lane.b32.xlu0 %v9510, 64
  %v9531 = vpop.permute.xlu0 %9530
  %9532 = vrot.lane.b32.xlu0 %v9512, 64
  %v9533 = vpop.permute.xlu0 %9532
  %9534 = vrot.lane.b32.xlu0 %v9514, 64
  %v9535 = vpop.permute.xlu0 %9534
  %v9543 = vsel %vm4497, %v9523, 0.0
  %9544 = vadd.xlane.f32.xlu0 %v9543
  %v9545 = vpop.xlane.xlu0 %9544
  %v9546 = vsel %vm4497, %v9525, 0.0
  %9547 = vadd.xlane.f32.xlu0 %v9546
  %v9548 = vpop.xlane.xlu0 %9547
  %v9549 = vsel %vm4497, %v9527, 0.0
  %9550 = vadd.xlane.f32.xlu0 %v9549
  %v9551 = vpop.xlane.xlu0 %9550
  %v9552 = vsel %vm4497, %v9529, 0.0
  %9553 = vadd.xlane.f32.xlu0 %v9552
  %v9554 = vpop.xlane.xlu0 %9553
  %v9555 = vsel %vm4497, %v9531, 0.0
  %9556 = vadd.xlane.f32.xlu0 %v9555
  %v9557 = vpop.xlane.xlu0 %9556
  %v9558 = vsel %vm4497, %v9533, 0.0
  %9559 = vadd.xlane.f32.xlu0 %v9558
  %v9560 = vpop.xlane.xlu0 %9559
  %v9561 = vsel %vm4516, %v9535, 0.0
  %9562 = vadd.xlane.f32.xlu0 %v9561
  %v9563 = vpop.xlane.xlu0 %9562
  %v9564 = vlog2.pop %v9545
  %v9565 = vmul.f32 %v9564, 0.6931472
  %v9566 = vlog2.pop %v9548
  %v9567 = vmul.f32 %v9566, 0.6931472
  %v9568 = vlog2.pop %v9551
  %v9569 = vmul.f32 %v9568, 0.6931472
  %v9570 = vlog2.pop %v9554
  %v9571 = vmul.f32 %v9570, 0.6931472
  %v9572 = vlog2.pop %v9557
  %v9573 = vmul.f32 %v9572, 0.6931472
  %v9574 = vlog2.pop %v9560
  %v9575 = vmul.f32 %v9574, 0.6931472
  %v9576 = vlog2.pop %v9563
  %v9577 = vmul.f32 %v9576, 0.6931472
  %v9578 = vadd.f32 %v9475, %v9565
  %v9579 = vadd.f32 %v9478, %v9567
  %v9580 = vadd.f32 %v9481, %v9569
  %v9581 = vadd.f32 %v9484, %v9571
  %v9582 = vadd.f32 %v9487, %v9573
  %v9583 = vadd.f32 %v9490, %v9575
  %v9584 = vadd.f32 %v9493, %v9577
  %v9585 = vsub.f32 %v9257, %v9578
  %v9586 = vsub.f32 %v9258, %v9579
  %v9587 = vsub.f32 %v9259, %v9580
  %v9588 = vsub.f32 %v9260, %v9581
  %v9589 = vsub.f32 %v9261, %v9582
  %v9590 = vsub.f32 %v9262, %v9583
  %v9591 = vsub.f32 %v9255, %v9584
  %v9592 = vsel %vm4832, %v9257, -inf
  %9593 = vmax.xlane.f32.xlu0 %v9592
  %v9594 = vpop.xlane.xlu0 %9593
  %v9595 = vsel %vm4832, %v9258, -inf
  %9596 = vmax.xlane.f32.xlu0 %v9595
  %v9597 = vpop.xlane.xlu0 %9596
  %v9598 = vsel %vm4832, %v9259, -inf
  %9599 = vmax.xlane.f32.xlu0 %v9598
  %v9600 = vpop.xlane.xlu0 %9599
  %v9601 = vsel %vm4832, %v9260, -inf
  %9602 = vmax.xlane.f32.xlu0 %v9601
  %v9603 = vpop.xlane.xlu0 %9602
  %v9604 = vsel %vm4832, %v9261, -inf
  %9605 = vmax.xlane.f32.xlu0 %v9604
  %v9606 = vpop.xlane.xlu0 %9605
  %v9607 = vsel %vm4832, %v9262, -inf
  %9608 = vmax.xlane.f32.xlu0 %v9607
  %v9609 = vpop.xlane.xlu0 %9608
  %v9610 = vsel %vm4851, %v9255, -inf
  %9611 = vmax.xlane.f32.xlu0 %v9610
  %v9612 = vpop.xlane.xlu0 %9611
  %v9613 = vsub.f32 %v9257, %v9594
  %v9614 = vsub.f32 %v9258, %v9597
  %v9615 = vsub.f32 %v9259, %v9600
  %v9616 = vsub.f32 %v9260, %v9603
  %v9617 = vsub.f32 %v9261, %v9606
  %v9618 = vsub.f32 %v9262, %v9609
  %v9619 = vsub.f32 %v9255, %v9612
  %v9620 = vmul.f32 %v9613, 1.442695
  %v9621 = vpow.pop %v9620
  %v9622 = vmul.f32 %v9614, 1.442695
  %v9623 = vpow.pop %v9622
  %v9624 = vmul.f32 %v9615, 1.442695
  %v9625 = vpow.pop %v9624
  %v9626 = vmul.f32 %v9616, 1.442695
  %v9627 = vpow.pop %v9626
  %v9628 = vmul.f32 %v9617, 1.442695
  %v9629 = vpow.pop %v9628
  %v9630 = vmul.f32 %v9618, 1.442695
  %v9631 = vpow.pop %v9630
  %v9632 = vmul.f32 %v9619, 1.442695
  %v9633 = vpow.pop %v9632
  %9641 = vrot.lane.b32.xlu0 %v9621, 32
  %v9642 = vpop.permute.xlu0 %9641
  %9643 = vrot.lane.b32.xlu0 %v9623, 32
  %v9644 = vpop.permute.xlu0 %9643
  %9645 = vrot.lane.b32.xlu0 %v9625, 32
  %v9646 = vpop.permute.xlu0 %9645
  %9647 = vrot.lane.b32.xlu0 %v9627, 32
  %v9648 = vpop.permute.xlu0 %9647
  %9649 = vrot.lane.b32.xlu0 %v9629, 32
  %v9650 = vpop.permute.xlu0 %9649
  %9651 = vrot.lane.b32.xlu0 %v9631, 32
  %v9652 = vpop.permute.xlu0 %9651
  %9653 = vrot.lane.b32.xlu0 %v9633, 32
  %v9654 = vpop.permute.xlu0 %9653
  %v9662 = vsel %vm4497, %v9642, 0.0
  %9663 = vadd.xlane.f32.xlu0 %v9662
  %v9664 = vpop.xlane.xlu0 %9663
  %v9665 = vsel %vm4497, %v9644, 0.0
  %9666 = vadd.xlane.f32.xlu0 %v9665
  %v9667 = vpop.xlane.xlu0 %9666
  %v9668 = vsel %vm4497, %v9646, 0.0
  %9669 = vadd.xlane.f32.xlu0 %v9668
  %v9670 = vpop.xlane.xlu0 %9669
  %v9671 = vsel %vm4497, %v9648, 0.0
  %9672 = vadd.xlane.f32.xlu0 %v9671
  %v9673 = vpop.xlane.xlu0 %9672
  %v9674 = vsel %vm4497, %v9650, 0.0
  %9675 = vadd.xlane.f32.xlu0 %v9674
  %v9676 = vpop.xlane.xlu0 %9675
  %v9677 = vsel %vm4497, %v9652, 0.0
  %9678 = vadd.xlane.f32.xlu0 %v9677
  %v9679 = vpop.xlane.xlu0 %9678
  %v9680 = vsel %vm4516, %v9654, 0.0
  %9681 = vadd.xlane.f32.xlu0 %v9680
  %v9682 = vpop.xlane.xlu0 %9681
  %v9683 = vlog2.pop %v9664
  %v9684 = vmul.f32 %v9683, 0.6931472
  %v9685 = vlog2.pop %v9667
  %v9686 = vmul.f32 %v9685, 0.6931472
  %v9687 = vlog2.pop %v9670
  %v9688 = vmul.f32 %v9687, 0.6931472
  %v9689 = vlog2.pop %v9673
  %v9690 = vmul.f32 %v9689, 0.6931472
  %v9691 = vlog2.pop %v9676
  %v9692 = vmul.f32 %v9691, 0.6931472
  %v9693 = vlog2.pop %v9679
  %v9694 = vmul.f32 %v9693, 0.6931472
  %v9695 = vlog2.pop %v9682
  %v9696 = vmul.f32 %v9695, 0.6931472
  %v9697 = vadd.f32 %v9594, %v9684
  %v9698 = vadd.f32 %v9597, %v9686
  %v9699 = vadd.f32 %v9600, %v9688
  %v9700 = vadd.f32 %v9603, %v9690
  %v9701 = vadd.f32 %v9606, %v9692
  %v9702 = vadd.f32 %v9609, %v9694
  %v9703 = vadd.f32 %v9612, %v9696
  %v9704 = vsub.f32 %v9257, %v9697
  %v9705 = vsub.f32 %v9258, %v9698
  %v9706 = vsub.f32 %v9259, %v9699
  %v9707 = vsub.f32 %v9260, %v9700
  %v9708 = vsub.f32 %v9261, %v9701
  %v9709 = vsub.f32 %v9262, %v9702
  %v9710 = vsub.f32 %v9255, %v9703
  %v9711 = vsel %vm4497, %v9347, %v9466
  %v9712 = vsel %vm4497, %v9348, %v9467
  %v9713 = vsel %vm4497, %v9349, %v9468
  %v9714 = vsel %vm4497, %v9350, %v9469
  %v9715 = vsel %vm4497, %v9351, %v9470
  %v9716 = vsel %vm4497, %v9352, %v9471
  %v9717 = vsel %vm4497, %v9353, %v9472
  %v9718 = vsel %vm4960, %v9711, %v9585
  %v9719 = vsel %vm4960, %v9712, %v9586
  %v9720 = vsel %vm4960, %v9713, %v9587
  %v9721 = vsel %vm4960, %v9714, %v9588
  %v9722 = vsel %vm4960, %v9715, %v9589
  %v9723 = vsel %vm4960, %v9716, %v9590
  %v9724 = vsel %vm4960, %v9717, %v9591
  %v9725 = vsel %vm4968, %v9718, %v9704
  %v9726 = vsel %vm4968, %v9719, %v9705
  %v9727 = vsel %vm4968, %v9720, %v9706
  %v9728 = vsel %vm4968, %v9721, %v9707
  %v9729 = vsel %vm4968, %v9722, %v9708
  %v9730 = vsel %vm4968, %v9723, %v9709
  %v9731 = vsel %vm4968, %v9724, %v9710
  %s9732 = scalar_lea.vmem %s7, 56
  %9733 = vst [vmem:[%s9732] sm:$0xff] %v9725
  %9734 = vst [vmem:[%s9732 + $0x8] sm:$0xff] %v9726
  %9735 = vst [vmem:[%s9732 + $0x10] sm:$0xff] %v9727
  %9736 = vst [vmem:[%s9732 + $0x18] sm:$0xff] %v9728
  %9737 = vst [vmem:[%s9732 + $0x20] sm:$0xff] %v9729
  %9738 = vst [vmem:[%s9732 + $0x28] sm:$0xff] %v9730
  %9739 = vst [vmem:[%s9732 + $0x30] sm:$0x1] %v9731
  // Predicated region
  $region30: #{omni_forward.1} parent=0 // pred_check
    _
  $region31: #{omni_forward.1} parent=0 // pred_check_branch
    %9741 = sbr.rel (0) target = $region33
  $region32: #{omni_forward.1} parent=0 // pred_region
    _
  $region33: #{omni_forward.1} parent=0 // pred_fallthru
    _
  // Predicated region
  $region34: #{omni_forward.1} parent=0 // pred_check
    _
  $region35: #{omni_forward.1} parent=0 // pred_check_branch
    %9743 = sbr.rel (0) target = $region37
  $region36: #{omni_forward.1} parent=0 // pred_region
    _
  $region37: #{omni_forward.1} parent=0 // pred_fallthru
    _

</llo_original>
